<compile_context>
chip_gen: v7x
topology: tpu7x:2x2x1
jax: 0.10.0
libtpu: 0.0.40
codegen_flags: <defaults>
</compile_context>

<pallas_src>
import jax
import jax.numpy as jnp
from jax.experimental import pallas as pl
from jax.experimental.pallas import tpu as pltpu

HIDDEN_SIZE = 300
INPUT_EMBEDDING = 300
OUTPUT_EMBEDDING = 300
GRU_LAYERS = 3

GATE_PAD = 384                     # hidden/gate width padded up to a 128-lane multiple
VOCAB_PAD = 256                    # vocab padded so every logit store is unmasked
VOCAB_TILE = 4096                  # W12 streaming tile width for the large-vocab path
FUSE_W12_BYTES = 8 * 1024 * 1024   # fuse vocab matmul into the GRU call below this


def _round_up(x, m):
    return ((x + m - 1) // m) * m


# --------------------------------------------------------------------------- kernels

def _gru_body(emb_ref, h_ref, wih_ref, whh_ref, bih_ref, bhh_ref, hout_ref):
    """3-layer GRU cell for one token. All tensors lane-padded to GATE_PAD=384.

    emb_ref : (1, 1, G)     f32  embedded token (row gathered via index_map)
    h_ref   : (L, G)        f32  previous hidden state (pad lanes zero)
    wih_ref : (L, G, 3G)    bf16 input->hidden weights, gates packed at 0/G/2G
    whh_ref : (L, G, 3G)    bf16 hidden->hidden weights, gates packed at 0/G/2G
    bih_ref : (L, 1, 3G)    f32  input biases (pad lanes zero)
    bhh_ref : (L, 1, 3G)    f32  hidden biases (pad lanes zero)
    hout_ref: (L, G)        f32  new hidden state
    Returns the top-layer output x (1, G).
    """
    G = GATE_PAD
    x = emb_ref[0]                                              # (1, G) f32

    # Hoisted off the serial layer chain: the hidden-side gates of every layer (and
    # the layer-0 input gate) depend only on kernel inputs, so issue them up front
    # and let the MXU overlap the sigmoid/tanh (EUP) chain.
    gh = [jnp.dot(h_ref[pl.ds(l, 1), :].astype(jnp.bfloat16), whh_ref[l],
                  preferred_element_type=jnp.float32) + bhh_ref[l]
          for l in range(GRU_LAYERS)]
    gi = jnp.dot(x.astype(jnp.bfloat16), wih_ref[0],
                 preferred_element_type=jnp.float32) + bih_ref[0]

    for l in range(GRU_LAYERS):
        if l > 0:   # only the layer-1/2 input gates stay on the dependent chain
            gi = jnp.dot(x.astype(jnp.bfloat16), wih_ref[l],
                         preferred_element_type=jnp.float32) + bih_ref[l]
        h = h_ref[pl.ds(l, 1), :]                               # (1, G)
        # lane-aligned gate slices: r | z | n at offsets 0, G, 2G (multiples of 128)
        r = jax.nn.sigmoid(gi[:, 0:G] + gh[l][:, 0:G])
        z = jax.nn.sigmoid(gi[:, G:2 * G] + gh[l][:, G:2 * G])
        n = jnp.tanh(gi[:, 2 * G:3 * G] + r * gh[l][:, 2 * G:3 * G])
        h_new = (1.0 - z) * n + z * h                           # pad lanes stay 0
        hout_ref[pl.ds(l, 1), :] = h_new
        # inter-layer GRU dropout (p=0.22) is identity in eval mode
        x = h_new
    return x


def gru_vocab_fused_kernel(tok_ref, emb_ref, h_ref, wih_ref, whh_ref,
                           bih_ref, bhh_ref, w12_ref, b12_ref,
                           hout_ref, logits_ref):
    """Fused embedding-gather + GRU step + collapsed vocab projection (small/medium V)."""
    x = _gru_body(emb_ref, h_ref, wih_ref, whh_ref, bih_ref, bhh_ref, hout_ref)
    logits_ref[...] = (jnp.dot(x.astype(jnp.bfloat16), w12_ref[...],
                               preferred_element_type=jnp.float32) + b12_ref[...])


def gru_step_kernel(tok_ref, emb_ref, h_ref, wih_ref, whh_ref,
                    bih_ref, bhh_ref, hout_ref):
    """GRU step only (large-V path; vocab projection runs as a separate tiled call)."""
    _gru_body(emb_ref, h_ref, wih_ref, whh_ref, bih_ref, bhh_ref, hout_ref)


def vocab_proj_kernel(x_ref, w_ref, b_ref, o_ref):
    """Collapsed linear heads: one lane-dense tile of logits = x @ W12 + b12."""
    o_ref[...] = (jnp.dot(x_ref[...].astype(jnp.bfloat16), w_ref[...],
                          preferred_element_type=jnp.float32) + b_ref[...])


# --------------------------------------------------------------------------- params

def init_params(key, token_dict_size):
    """Deterministic synthetic parameters matching the PyTorch module's shapes,
    repacked into the lane-aligned / collapsed layout the kernels expect."""
    E, H, O, L, V = INPUT_EMBEDDING, HIDDEN_SIZE, OUTPUT_EMBEDDING, GRU_LAYERS, token_dict_size
    G = GATE_PAD
    assert E == H, "fused (L, G, 3G) weight stacking relies on INPUT_EMBEDDING == HIDDEN_SIZE"
    ks = jax.random.split(key, 20)
    s = 1.0 / jnp.sqrt(jnp.float32(H))

    embedding = jax.random.normal(ks[0], (V, E), jnp.float32)
    # pad embedding columns to G and add a middle axis so the kernel can gather one
    # (1, 1, G) row with a data-dependent block index (scalar prefetch).
    emb_pad = jnp.pad(embedding, ((0, 0), (0, G - E))).reshape(V, 1, G)

    def pack_w(w_t, in_dim):
        # w_t: (in_dim, 3H) -> (G, 3G): gates scattered to lane-aligned offsets 0/G/2G,
        # contraction rows padded to G with zeros (so stale pad lanes cannot leak).
        out = jnp.zeros((G, 3 * G), jnp.float32)
        for g in range(3):
            out = out.at[:in_dim, g * G:g * G + H].set(w_t[:, g * H:(g + 1) * H])
        return out

    def pack_b(b):
        out = jnp.zeros((1, 3 * G), jnp.float32)
        for g in range(3):
            out = out.at[0, g * G:g * G + H].set(b[g * H:(g + 1) * H])
        return out

    wih_l, whh_l, bih_l, bhh_l = [], [], [], []
    for l in range(L):
        in_dim = E if l == 0 else H
        # PyTorch GRU layout: (3H, in_dim), gate order (r, z, n) along rows.
        wih = jax.random.uniform(ks[1 + l], (3 * H, in_dim), jnp.float32, -s, s)
        whh = jax.random.uniform(ks[4 + l], (3 * H, H), jnp.float32, -s, s)
        bih = jax.random.uniform(ks[7 + l], (3 * H,), jnp.float32, -s, s)
        bhh = jax.random.uniform(ks[10 + l], (3 * H,), jnp.float32, -s, s)
        wih_l.append(pack_w(wih.T, in_dim)[None])      # (1, G, 3G)
        whh_l.append(pack_w(whh.T, H)[None])           # (1, G, 3G)
        bih_l.append(pack_b(bih)[None])                # (1, 1, 3G)
        bhh_l.append(pack_b(bhh)[None])                # (1, 1, 3G)

    lin_w = jax.random.uniform(ks[13], (O, H), jnp.float32, -s, s)   # self.linear.weight
    lin_b = jax.random.uniform(ks[14], (1, O), jnp.float32, -s, s)   # self.linear.bias
    out_w = jax.random.uniform(ks[15], (V, O), jnp.float32, -s, s)   # self.out.weight
    out_b = jax.random.uniform(ks[16], (1, V), jnp.float32, -s, s)   # self.out.bias

    # Collapse the two affine heads (no nonlinearity between them, eval mode):
    #   out(linear(x)) = x @ (W1^T @ W2^T) + (b1 @ W2^T + b2)
    w12 = lin_w.T @ out_w.T                              # (H, V) f32
    b12 = lin_b @ out_w.T + out_b                        # (1, V) f32

    Vp = _round_up(V, VOCAB_PAD)
    if G * Vp * 2 > FUSE_W12_BYTES:
        # large vocab -> separate tiled projection; pad so no partial trailing tile
        Vp = _round_up(V, VOCAB_TILE)
    w12p = jnp.zeros((G, Vp), jnp.float32).at[:H, :V].set(w12)
    b12p = jnp.zeros((1, Vp), jnp.float32).at[:, :V].set(b12)

    return {
        "embedding": emb_pad,                                        # (V, 1, G)  f32
        "w_ih": jnp.concatenate(wih_l, 0).astype(jnp.bfloat16),      # (L, G, 3G) bf16
        "w_hh": jnp.concatenate(whh_l, 0).astype(jnp.bfloat16),      # (L, G, 3G) bf16
        "b_ih": jnp.concatenate(bih_l, 0),                           # (L, 1, 3G) f32
        "b_hh": jnp.concatenate(bhh_l, 0),                           # (L, 1, 3G) f32
        "w12": w12p.astype(jnp.bfloat16),                            # (G, Vp)    bf16
        "b12": b12p,                                                 # (1, Vp)    f32
    }


# --------------------------------------------------------------------------- forward

def ic_v6_forward(params, input_token, hidden):
    """Text-path forward of IC_V6 (process_image=False), eval mode."""
    L, H, G = GRU_LAYERS, HIDDEN_SIZE, GATE_PAD
    V = params["embedding"].shape[0]
    Vp = params["w12"].shape[1]
    fused = (G * Vp * 2) <= FUSE_W12_BYTES      # static (shape-derived) decision

    tok = jnp.asarray(input_token, jnp.int32).reshape(1)
    # hidden.view(L, 1, H) -> (L, H), lane-padded to (L, G) with zeros
    h0 = jnp.pad(hidden.reshape(L, H).astype(jnp.float32), ((0, 0), (0, G - H)))

    gru_in_specs = [
        pl.BlockSpec((1, 1, G), lambda i, t: (t[0], 0, 0)),       # embedding row gather
        pl.BlockSpec((L, G), lambda i, t: (0, 0)),
        pl.BlockSpec((L, G, 3 * G), lambda i, t: (0, 0, 0)),
        pl.BlockSpec((L, G, 3 * G), lambda i, t: (0, 0, 0)),
        pl.BlockSpec((L, 1, 3 * G), lambda i, t: (0, 0, 0)),
        pl.BlockSpec((L, 1, 3 * G), lambda i, t: (0, 0, 0)),
    ]
    gru_args = (tok, params["embedding"], h0, params["w_ih"], params["w_hh"],
                params["b_ih"], params["b_hh"])

    if fused:
        # single kernel: embedding gather + GRU step + whole-W12 vocab projection
        grid_spec = pltpu.PrefetchScalarGridSpec(
            num_scalar_prefetch=1, grid=(1,),
            in_specs=gru_in_specs + [
                pl.BlockSpec((G, Vp), lambda i, t: (0, 0)),
                pl.BlockSpec((1, Vp), lambda i, t: (0, 0)),
            ],
            out_specs=[
                pl.BlockSpec((L, G), lambda i, t: (0, 0)),
                pl.BlockSpec((1, Vp), lambda i, t: (0, 0)),
            ],
        )
        h_new_p, logits_p = pl.pallas_call(
            gru_vocab_fused_kernel,
            out_shape=(jax.ShapeDtypeStruct((L, G), jnp.float32),
                       jax.ShapeDtypeStruct((1, Vp), jnp.float32)),
            grid_spec=grid_spec,
        )(*gru_args, params["w12"], params["b12"])
    else:
        # large vocab: GRU step kernel, then W12 streamed in lane-dense 4096-wide tiles
        grid_spec = pltpu.PrefetchScalarGridSpec(
            num_scalar_prefetch=1, grid=(1,),
            in_specs=gru_in_specs,
            out_specs=pl.BlockSpec((L, G), lambda i, t: (0, 0)),
        )
        h_new_p = pl.pallas_call(
            gru_step_kernel,
            out_shape=jax.ShapeDtypeStruct((L, G), jnp.float32),
            grid_spec=grid_spec,
        )(*gru_args)

        x = h_new_p[L - 1:]                                  # (1, G) top-layer output
        TN = VOCAB_TILE                                      # Vp is a multiple of TN
        logits_p = pl.pallas_call(
            vocab_proj_kernel,
            out_shape=jax.ShapeDtypeStruct((1, Vp), jnp.float32),
            grid=(Vp // TN,),
            in_specs=[pl.BlockSpec((1, G), lambda j: (0, 0)),
                      pl.BlockSpec((G, TN), lambda j: (0, j)),
                      pl.BlockSpec((1, TN), lambda j: (0, j))],
            out_specs=pl.BlockSpec((1, TN), lambda j: (0, j)),
            compiler_params=pltpu.CompilerParams(
                dimension_semantics=("parallel",)),
        )(x, params["w12"], params["b12"])

    # strip padding; match PyTorch output shapes: out (1, 1, V), hidden (L, 1, H)
    out = logits_p[:, :V].reshape(1, 1, V)
    h_new = h_new_p[:, :H].reshape(L, 1, H)
    return out, h_new


if __name__ == "__main__":
    token_dict_size = 64
    key = jax.random.PRNGKey(0)
    pkey, hkey = jax.random.split(key)

    params = init_params(pkey, token_dict_size)
    input_token = jnp.array(5, dtype=jnp.int32)                       # input_tokens.view(1)
    hidden = jax.random.normal(hkey, (GRU_LAYERS, 1, HIDDEN_SIZE), jnp.float32)

    fwd = jax.jit(ic_v6_forward)
    out, new_hidden = fwd(params, input_token, hidden)
    jax.block_until_ready((out, new_hidden))

    assert out.shape == (1, 1, token_dict_size)
    assert new_hidden.shape == (GRU_LAYERS, 1, HIDDEN_SIZE)
    print("KERNEL_OK")
</pallas_src>

<mosaic_0001>
module attributes {stable_mosaic.version = 11 : i64} {
  func.func @gru_vocab_fused_kernel(%arg0: i32, %arg1: memref<1xi32, #tpu.memory_space<smem>>, %arg2: memref<1x1x384xf32, #tpu.memory_space<vmem>>, %arg3: memref<3x384xf32, #tpu.memory_space<vmem>>, %arg4: memref<3x384x1152xbf16, #tpu.memory_space<vmem>>, %arg5: memref<3x384x1152xbf16, #tpu.memory_space<vmem>>, %arg6: memref<3x1x1152xf32, #tpu.memory_space<vmem>>, %arg7: memref<3x1x1152xf32, #tpu.memory_space<vmem>>, %arg8: memref<384x256xbf16, #tpu.memory_space<vmem>>, %arg9: memref<1x256xf32, #tpu.memory_space<vmem>>, %arg10: memref<3x384xf32, #tpu.memory_space<vmem>>, %arg11: memref<1x256xf32, #tpu.memory_space<vmem>>) attributes {dimension_semantics = [#tpu.dimension_semantics<arbitrary>], iteration_bounds = array<i64: 1>, scalar_prefetch = 1 : i64, scratch_operands = 0 : i64, tpu.core_type = #tpu.core_type<tc>, window_params = [{transform_indices = @transform_0, window_bounds = array<i64: 1, 1, 384>}, {pipeline_mode = #tpu.pipeline_mode<synchronous>, transform_indices = @transform_1, window_bounds = array<i64: 3, 384>}, {pipeline_mode = #tpu.pipeline_mode<synchronous>, transform_indices = @transform_2, window_bounds = array<i64: 3, 384, 1152>}, {pipeline_mode = #tpu.pipeline_mode<synchronous>, transform_indices = @transform_3, window_bounds = array<i64: 3, 384, 1152>}, {pipeline_mode = #tpu.pipeline_mode<synchronous>, transform_indices = @transform_4, window_bounds = array<i64: 3, 1, 1152>}, {pipeline_mode = #tpu.pipeline_mode<synchronous>, transform_indices = @transform_5, window_bounds = array<i64: 3, 1, 1152>}, {pipeline_mode = #tpu.pipeline_mode<synchronous>, transform_indices = @transform_6, window_bounds = array<i64: 384, 256>}, {pipeline_mode = #tpu.pipeline_mode<synchronous>, transform_indices = @transform_7, window_bounds = array<i64: 1, 256>}, {pipeline_mode = #tpu.pipeline_mode<synchronous>, transform_indices = @transform_8, window_bounds = array<i64: 3, 384>}, {pipeline_mode = #tpu.pipeline_mode<synchronous>, transform_indices = @transform_9, window_bounds = array<i64: 1, 256>}]} {
    %c0 = arith.constant 0 : index
    %c0_0 = arith.constant 0 : index
    %c0_1 = arith.constant 0 : index
    %0 = vector.load %arg2[%c0, %c0_0, %c0_1] : memref<1x1x384xf32, #tpu.memory_space<vmem>>, vector<1x1x384xf32>
    %1 = vector.shape_cast %0 : vector<1x1x384xf32> to vector<1x384xf32>
    %c0_2 = arith.constant 0 : index
    %c0_3 = arith.constant 0 : index
    %2 = vector.load %arg3[%c0_2, %c0_3] : memref<3x384xf32, #tpu.memory_space<vmem>>, vector<1x384xf32>
    %3 = arith.truncf %2 : vector<1x384xf32> to vector<1x384xbf16>
    %c0_4 = arith.constant 0 : index
    %c0_5 = arith.constant 0 : index
    %c0_6 = arith.constant 0 : index
    %4 = vector.load %arg5[%c0_4, %c0_5, %c0_6] : memref<3x384x1152xbf16, #tpu.memory_space<vmem>>, vector<1x384x1152xbf16>
    %5 = vector.shape_cast %4 : vector<1x384x1152xbf16> to vector<384x1152xbf16>
    %cst = arith.constant dense<0.000000e+00> : vector<1x1152xf32>
    %6 = tpu.matmul %3, %5, %cst {dimension_numbers = #tpu.dot_dimension_numbers<[1], [0], [0], [1], [0, 0, 1, 1], [], []>} : vector<1x384xbf16>, vector<384x1152xbf16>, vector<1x1152xf32> -> vector<1x1152xf32>
    %c0_7 = arith.constant 0 : index
    %c0_8 = arith.constant 0 : index
    %c0_9 = arith.constant 0 : index
    %7 = vector.load %arg7[%c0_7, %c0_8, %c0_9] : memref<3x1x1152xf32, #tpu.memory_space<vmem>>, vector<1x1x1152xf32>
    %8 = vector.shape_cast %7 : vector<1x1x1152xf32> to vector<1x1152xf32>
    %9 = arith.addf %6, %8 : vector<1x1152xf32>
    %c1 = arith.constant 1 : index
    %c0_10 = arith.constant 0 : index
    %10 = vector.load %arg3[%c1, %c0_10] : memref<3x384xf32, #tpu.memory_space<vmem>>, vector<1x384xf32>
    %11 = arith.truncf %10 : vector<1x384xf32> to vector<1x384xbf16>
    %c1_11 = arith.constant 1 : index
    %c0_12 = arith.constant 0 : index
    %c0_13 = arith.constant 0 : index
    %12 = vector.load %arg5[%c1_11, %c0_12, %c0_13] : memref<3x384x1152xbf16, #tpu.memory_space<vmem>>, vector<1x384x1152xbf16>
    %13 = vector.shape_cast %12 : vector<1x384x1152xbf16> to vector<384x1152xbf16>
    %cst_14 = arith.constant dense<0.000000e+00> : vector<1x1152xf32>
    %14 = tpu.matmul %11, %13, %cst_14 {dimension_numbers = #tpu.dot_dimension_numbers<[1], [0], [0], [1], [0, 0, 1, 1], [], []>} : vector<1x384xbf16>, vector<384x1152xbf16>, vector<1x1152xf32> -> vector<1x1152xf32>
    %c1_15 = arith.constant 1 : index
    %c0_16 = arith.constant 0 : index
    %c0_17 = arith.constant 0 : index
    %15 = vector.load %arg7[%c1_15, %c0_16, %c0_17] : memref<3x1x1152xf32, #tpu.memory_space<vmem>>, vector<1x1x1152xf32>
    %16 = vector.shape_cast %15 : vector<1x1x1152xf32> to vector<1x1152xf32>
    %17 = arith.addf %14, %16 : vector<1x1152xf32>
    %c2 = arith.constant 2 : index
    %c0_18 = arith.constant 0 : index
    %18 = vector.load %arg3[%c2, %c0_18] : memref<3x384xf32, #tpu.memory_space<vmem>>, vector<1x384xf32>
    %19 = arith.truncf %18 : vector<1x384xf32> to vector<1x384xbf16>
    %c2_19 = arith.constant 2 : index
    %c0_20 = arith.constant 0 : index
    %c0_21 = arith.constant 0 : index
    %20 = vector.load %arg5[%c2_19, %c0_20, %c0_21] : memref<3x384x1152xbf16, #tpu.memory_space<vmem>>, vector<1x384x1152xbf16>
    %21 = vector.shape_cast %20 : vector<1x384x1152xbf16> to vector<384x1152xbf16>
    %cst_22 = arith.constant dense<0.000000e+00> : vector<1x1152xf32>
    %22 = tpu.matmul %19, %21, %cst_22 {dimension_numbers = #tpu.dot_dimension_numbers<[1], [0], [0], [1], [0, 0, 1, 1], [], []>} : vector<1x384xbf16>, vector<384x1152xbf16>, vector<1x1152xf32> -> vector<1x1152xf32>
    %c2_23 = arith.constant 2 : index
    %c0_24 = arith.constant 0 : index
    %c0_25 = arith.constant 0 : index
    %23 = vector.load %arg7[%c2_23, %c0_24, %c0_25] : memref<3x1x1152xf32, #tpu.memory_space<vmem>>, vector<1x1x1152xf32>
    %24 = vector.shape_cast %23 : vector<1x1x1152xf32> to vector<1x1152xf32>
    %25 = arith.addf %22, %24 : vector<1x1152xf32>
    %26 = arith.truncf %1 : vector<1x384xf32> to vector<1x384xbf16>
    %c0_26 = arith.constant 0 : index
    %c0_27 = arith.constant 0 : index
    %c0_28 = arith.constant 0 : index
    %27 = vector.load %arg4[%c0_26, %c0_27, %c0_28] : memref<3x384x1152xbf16, #tpu.memory_space<vmem>>, vector<1x384x1152xbf16>
    %28 = vector.shape_cast %27 : vector<1x384x1152xbf16> to vector<384x1152xbf16>
    %cst_29 = arith.constant dense<0.000000e+00> : vector<1x1152xf32>
    %29 = tpu.matmul %26, %28, %cst_29 {dimension_numbers = #tpu.dot_dimension_numbers<[1], [0], [0], [1], [0, 0, 1, 1], [], []>} : vector<1x384xbf16>, vector<384x1152xbf16>, vector<1x1152xf32> -> vector<1x1152xf32>
    %c0_30 = arith.constant 0 : index
    %c0_31 = arith.constant 0 : index
    %c0_32 = arith.constant 0 : index
    %30 = vector.load %arg6[%c0_30, %c0_31, %c0_32] : memref<3x1x1152xf32, #tpu.memory_space<vmem>>, vector<1x1x1152xf32>
    %31 = vector.shape_cast %30 : vector<1x1x1152xf32> to vector<1x1152xf32>
    %32 = arith.addf %29, %31 : vector<1x1152xf32>
    %c0_33 = arith.constant 0 : index
    %c0_34 = arith.constant 0 : index
    %33 = vector.load %arg3[%c0_33, %c0_34] : memref<3x384xf32, #tpu.memory_space<vmem>>, vector<1x384xf32>
    %34 = vector.extract_strided_slice %32 {offsets = [0, 0], sizes = [1, 384], strides = [1, 1]} : vector<1x1152xf32> to vector<1x384xf32>
    %35 = vector.extract_strided_slice %9 {offsets = [0, 0], sizes = [1, 384], strides = [1, 1]} : vector<1x1152xf32> to vector<1x384xf32>
    %36 = arith.addf %34, %35 : vector<1x384xf32>
    %37 = arith.negf %36 : vector<1x384xf32>
    %38 = math.exp %37 : vector<1x384xf32>
    %cst_35 = arith.constant 1.000000e+00 : f32
    %39 = vector.broadcast %cst_35 : f32 to vector<1x384xf32>
    %40 = arith.addf %39, %38 : vector<1x384xf32>
    %41 = arith.divf %39, %40 : vector<1x384xf32>
    %42 = vector.extract_strided_slice %32 {offsets = [0, 384], sizes = [1, 384], strides = [1, 1]} : vector<1x1152xf32> to vector<1x384xf32>
    %43 = vector.extract_strided_slice %9 {offsets = [0, 384], sizes = [1, 384], strides = [1, 1]} : vector<1x1152xf32> to vector<1x384xf32>
    %44 = arith.addf %42, %43 : vector<1x384xf32>
    %45 = arith.negf %44 : vector<1x384xf32>
    %46 = math.exp %45 : vector<1x384xf32>
    %cst_36 = arith.constant 1.000000e+00 : f32
    %47 = vector.broadcast %cst_36 : f32 to vector<1x384xf32>
    %48 = arith.addf %47, %46 : vector<1x384xf32>
    %49 = arith.divf %47, %48 : vector<1x384xf32>
    %50 = vector.extract_strided_slice %32 {offsets = [0, 768], sizes = [1, 384], strides = [1, 1]} : vector<1x1152xf32> to vector<1x384xf32>
    %51 = vector.extract_strided_slice %9 {offsets = [0, 768], sizes = [1, 384], strides = [1, 1]} : vector<1x1152xf32> to vector<1x384xf32>
    %52 = arith.mulf %41, %51 : vector<1x384xf32>
    %53 = arith.addf %50, %52 : vector<1x384xf32>
    %54 = math.tanh %53 : vector<1x384xf32>
    %cst_37 = arith.constant 1.000000e+00 : f32
    %55 = vector.broadcast %cst_37 : f32 to vector<1x384xf32>
    %56 = arith.subf %55, %49 : vector<1x384xf32>
    %57 = arith.mulf %56, %54 : vector<1x384xf32>
    %58 = arith.mulf %49, %33 : vector<1x384xf32>
    %59 = arith.addf %57, %58 : vector<1x384xf32>
    %c0_38 = arith.constant 0 : index
    %c0_39 = arith.constant 0 : index
    %60 = vector.load %arg10[%c0_38, %c0_39] : memref<3x384xf32, #tpu.memory_space<vmem>>, vector<1x384xf32>
    tpu.vector_store %arg10[%c0_38, %c0_39], %59 {strides = array<i32>} : memref<3x384xf32, #tpu.memory_space<vmem>>, vector<1x384xf32>,
    %61 = arith.truncf %59 : vector<1x384xf32> to vector<1x384xbf16>
    %c1_40 = arith.constant 1 : index
    %c0_41 = arith.constant 0 : index
    %c0_42 = arith.constant 0 : index
    %62 = vector.load %arg4[%c1_40, %c0_41, %c0_42] : memref<3x384x1152xbf16, #tpu.memory_space<vmem>>, vector<1x384x1152xbf16>
    %63 = vector.shape_cast %62 : vector<1x384x1152xbf16> to vector<384x1152xbf16>
    %cst_43 = arith.constant dense<0.000000e+00> : vector<1x1152xf32>
    %64 = tpu.matmul %61, %63, %cst_43 {dimension_numbers = #tpu.dot_dimension_numbers<[1], [0], [0], [1], [0, 0, 1, 1], [], []>} : vector<1x384xbf16>, vector<384x1152xbf16>, vector<1x1152xf32> -> vector<1x1152xf32>
    %c1_44 = arith.constant 1 : index
    %c0_45 = arith.constant 0 : index
    %c0_46 = arith.constant 0 : index
    %65 = vector.load %arg6[%c1_44, %c0_45, %c0_46] : memref<3x1x1152xf32, #tpu.memory_space<vmem>>, vector<1x1x1152xf32>
    %66 = vector.shape_cast %65 : vector<1x1x1152xf32> to vector<1x1152xf32>
    %67 = arith.addf %64, %66 : vector<1x1152xf32>
    %c1_47 = arith.constant 1 : index
    %c0_48 = arith.constant 0 : index
    %68 = vector.load %arg3[%c1_47, %c0_48] : memref<3x384xf32, #tpu.memory_space<vmem>>, vector<1x384xf32>
    %69 = vector.extract_strided_slice %67 {offsets = [0, 0], sizes = [1, 384], strides = [1, 1]} : vector<1x1152xf32> to vector<1x384xf32>
    %70 = vector.extract_strided_slice %17 {offsets = [0, 0], sizes = [1, 384], strides = [1, 1]} : vector<1x1152xf32> to vector<1x384xf32>
    %71 = arith.addf %69, %70 : vector<1x384xf32>
    %72 = arith.negf %71 : vector<1x384xf32>
    %73 = math.exp %72 : vector<1x384xf32>
    %cst_49 = arith.constant 1.000000e+00 : f32
    %74 = vector.broadcast %cst_49 : f32 to vector<1x384xf32>
    %75 = arith.addf %74, %73 : vector<1x384xf32>
    %76 = arith.divf %74, %75 : vector<1x384xf32>
    %77 = vector.extract_strided_slice %67 {offsets = [0, 384], sizes = [1, 384], strides = [1, 1]} : vector<1x1152xf32> to vector<1x384xf32>
    %78 = vector.extract_strided_slice %17 {offsets = [0, 384], sizes = [1, 384], strides = [1, 1]} : vector<1x1152xf32> to vector<1x384xf32>
    %79 = arith.addf %77, %78 : vector<1x384xf32>
    %80 = arith.negf %79 : vector<1x384xf32>
    %81 = math.exp %80 : vector<1x384xf32>
    %cst_50 = arith.constant 1.000000e+00 : f32
    %82 = vector.broadcast %cst_50 : f32 to vector<1x384xf32>
    %83 = arith.addf %82, %81 : vector<1x384xf32>
    %84 = arith.divf %82, %83 : vector<1x384xf32>
    %85 = vector.extract_strided_slice %67 {offsets = [0, 768], sizes = [1, 384], strides = [1, 1]} : vector<1x1152xf32> to vector<1x384xf32>
    %86 = vector.extract_strided_slice %17 {offsets = [0, 768], sizes = [1, 384], strides = [1, 1]} : vector<1x1152xf32> to vector<1x384xf32>
    %87 = arith.mulf %76, %86 : vector<1x384xf32>
    %88 = arith.addf %85, %87 : vector<1x384xf32>
    %89 = math.tanh %88 : vector<1x384xf32>
    %cst_51 = arith.constant 1.000000e+00 : f32
    %90 = vector.broadcast %cst_51 : f32 to vector<1x384xf32>
    %91 = arith.subf %90, %84 : vector<1x384xf32>
    %92 = arith.mulf %91, %89 : vector<1x384xf32>
    %93 = arith.mulf %84, %68 : vector<1x384xf32>
    %94 = arith.addf %92, %93 : vector<1x384xf32>
    %c1_52 = arith.constant 1 : index
    %c0_53 = arith.constant 0 : index
    %95 = vector.load %arg10[%c1_52, %c0_53] : memref<3x384xf32, #tpu.memory_space<vmem>>, vector<1x384xf32>
    tpu.vector_store %arg10[%c1_52, %c0_53], %94 {strides = array<i32>} : memref<3x384xf32, #tpu.memory_space<vmem>>, vector<1x384xf32>,
    %96 = arith.truncf %94 : vector<1x384xf32> to vector<1x384xbf16>
    %c2_54 = arith.constant 2 : index
    %c0_55 = arith.constant 0 : index
    %c0_56 = arith.constant 0 : index
    %97 = vector.load %arg4[%c2_54, %c0_55, %c0_56] : memref<3x384x1152xbf16, #tpu.memory_space<vmem>>, vector<1x384x1152xbf16>
    %98 = vector.shape_cast %97 : vector<1x384x1152xbf16> to vector<384x1152xbf16>
    %cst_57 = arith.constant dense<0.000000e+00> : vector<1x1152xf32>
    %99 = tpu.matmul %96, %98, %cst_57 {dimension_numbers = #tpu.dot_dimension_numbers<[1], [0], [0], [1], [0, 0, 1, 1], [], []>} : vector<1x384xbf16>, vector<384x1152xbf16>, vector<1x1152xf32> -> vector<1x1152xf32>
    %c2_58 = arith.constant 2 : index
    %c0_59 = arith.constant 0 : index
    %c0_60 = arith.constant 0 : index
    %100 = vector.load %arg6[%c2_58, %c0_59, %c0_60] : memref<3x1x1152xf32, #tpu.memory_space<vmem>>, vector<1x1x1152xf32>
    %101 = vector.shape_cast %100 : vector<1x1x1152xf32> to vector<1x1152xf32>
    %102 = arith.addf %99, %101 : vector<1x1152xf32>
    %c2_61 = arith.constant 2 : index
    %c0_62 = arith.constant 0 : index
    %103 = vector.load %arg3[%c2_61, %c0_62] : memref<3x384xf32, #tpu.memory_space<vmem>>, vector<1x384xf32>
    %104 = vector.extract_strided_slice %102 {offsets = [0, 0], sizes = [1, 384], strides = [1, 1]} : vector<1x1152xf32> to vector<1x384xf32>
    %105 = vector.extract_strided_slice %25 {offsets = [0, 0], sizes = [1, 384], strides = [1, 1]} : vector<1x1152xf32> to vector<1x384xf32>
    %106 = arith.addf %104, %105 : vector<1x384xf32>
    %107 = arith.negf %106 : vector<1x384xf32>
    %108 = math.exp %107 : vector<1x384xf32>
    %cst_63 = arith.constant 1.000000e+00 : f32
    %109 = vector.broadcast %cst_63 : f32 to vector<1x384xf32>
    %110 = arith.addf %109, %108 : vector<1x384xf32>
    %111 = arith.divf %109, %110 : vector<1x384xf32>
    %112 = vector.extract_strided_slice %102 {offsets = [0, 384], sizes = [1, 384], strides = [1, 1]} : vector<1x1152xf32> to vector<1x384xf32>
    %113 = vector.extract_strided_slice %25 {offsets = [0, 384], sizes = [1, 384], strides = [1, 1]} : vector<1x1152xf32> to vector<1x384xf32>
    %114 = arith.addf %112, %113 : vector<1x384xf32>
    %115 = arith.negf %114 : vector<1x384xf32>
    %116 = math.exp %115 : vector<1x384xf32>
    %cst_64 = arith.constant 1.000000e+00 : f32
    %117 = vector.broadcast %cst_64 : f32 to vector<1x384xf32>
    %118 = arith.addf %117, %116 : vector<1x384xf32>
    %119 = arith.divf %117, %118 : vector<1x384xf32>
    %120 = vector.extract_strided_slice %102 {offsets = [0, 768], sizes = [1, 384], strides = [1, 1]} : vector<1x1152xf32> to vector<1x384xf32>
    %121 = vector.extract_strided_slice %25 {offsets = [0, 768], sizes = [1, 384], strides = [1, 1]} : vector<1x1152xf32> to vector<1x384xf32>
    %122 = arith.mulf %111, %121 : vector<1x384xf32>
    %123 = arith.addf %120, %122 : vector<1x384xf32>
    %124 = math.tanh %123 : vector<1x384xf32>
    %cst_65 = arith.constant 1.000000e+00 : f32
    %125 = vector.broadcast %cst_65 : f32 to vector<1x384xf32>
    %126 = arith.subf %125, %119 : vector<1x384xf32>
    %127 = arith.mulf %126, %124 : vector<1x384xf32>
    %128 = arith.mulf %119, %103 : vector<1x384xf32>
    %129 = arith.addf %127, %128 : vector<1x384xf32>
    %c2_66 = arith.constant 2 : index
    %c0_67 = arith.constant 0 : index
    %130 = vector.load %arg10[%c2_66, %c0_67] : memref<3x384xf32, #tpu.memory_space<vmem>>, vector<1x384xf32>
    tpu.vector_store %arg10[%c2_66, %c0_67], %129 {strides = array<i32>} : memref<3x384xf32, #tpu.memory_space<vmem>>, vector<1x384xf32>,
    %131 = arith.truncf %129 : vector<1x384xf32> to vector<1x384xbf16>
    %c0_68 = arith.constant 0 : index
    %c0_69 = arith.constant 0 : index
    %132 = vector.load %arg8[%c0_68, %c0_69] : memref<384x256xbf16, #tpu.memory_space<vmem>>, vector<384x256xbf16>
    %cst_70 = arith.constant dense<0.000000e+00> : vector<1x256xf32>
    %133 = tpu.matmul %131, %132, %cst_70 {dimension_numbers = #tpu.dot_dimension_numbers<[1], [0], [0], [1], [0, 0, 1, 1], [], []>} : vector<1x384xbf16>, vector<384x256xbf16>, vector<1x256xf32> -> vector<1x256xf32>
    %c0_71 = arith.constant 0 : index
    %c0_72 = arith.constant 0 : index
    %134 = vector.load %arg9[%c0_71, %c0_72] : memref<1x256xf32, #tpu.memory_space<vmem>>, vector<1x256xf32>
    %135 = arith.addf %133, %134 : vector<1x256xf32>
    %c0_73 = arith.constant 0 : index
    %c0_74 = arith.constant 0 : index
    %136 = vector.load %arg11[%c0_73, %c0_74] : memref<1x256xf32, #tpu.memory_space<vmem>>, vector<1x256xf32>
    tpu.vector_store %arg11[%c0_73, %c0_74], %135 {strides = array<i32>} : memref<1x256xf32, #tpu.memory_space<vmem>>, vector<1x256xf32>,
    return
  }
  func.func @transform_0(%arg0: i32, %arg1: memref<1xi32, #tpu.memory_space<smem>>) -> (i32, i32, i32) {
    %c0 = arith.constant 0 : index
    %0 = memref.load %arg1[%c0] : memref<1xi32, #tpu.memory_space<smem>>
    %c0_i32 = arith.constant 0 : i32
    %c0_i32_0 = arith.constant 0 : i32
    %c0_i32_1 = arith.constant 0 : i32
    return %0, %c0_i32, %c0_i32_0 : i32, i32, i32
  }
  func.func @transform_1(%arg0: i32, %arg1: memref<1xi32, #tpu.memory_space<smem>>) -> (i32, i32) {
    %c0_i32 = arith.constant 0 : i32
    %c0_i32_0 = arith.constant 0 : i32
    %c0_i32_1 = arith.constant 0 : i32
    return %c0_i32, %c0_i32_0 : i32, i32
  }
  func.func @transform_2(%arg0: i32, %arg1: memref<1xi32, #tpu.memory_space<smem>>) -> (i32, i32, i32) {
    %c0_i32 = arith.constant 0 : i32
    %c0_i32_0 = arith.constant 0 : i32
    %c0_i32_1 = arith.constant 0 : i32
    %c0_i32_2 = arith.constant 0 : i32
    return %c0_i32, %c0_i32_0, %c0_i32_1 : i32, i32, i32
  }
  func.func @transform_3(%arg0: i32, %arg1: memref<1xi32, #tpu.memory_space<smem>>) -> (i32, i32, i32) {
    %c0_i32 = arith.constant 0 : i32
    %c0_i32_0 = arith.constant 0 : i32
    %c0_i32_1 = arith.constant 0 : i32
    %c0_i32_2 = arith.constant 0 : i32
    return %c0_i32, %c0_i32_0, %c0_i32_1 : i32, i32, i32
  }
  func.func @transform_4(%arg0: i32, %arg1: memref<1xi32, #tpu.memory_space<smem>>) -> (i32, i32, i32) {
    %c0_i32 = arith.constant 0 : i32
    %c0_i32_0 = arith.constant 0 : i32
    %c0_i32_1 = arith.constant 0 : i32
    %c0_i32_2 = arith.constant 0 : i32
    return %c0_i32, %c0_i32_0, %c0_i32_1 : i32, i32, i32
  }
  func.func @transform_5(%arg0: i32, %arg1: memref<1xi32, #tpu.memory_space<smem>>) -> (i32, i32, i32) {
    %c0_i32 = arith.constant 0 : i32
    %c0_i32_0 = arith.constant 0 : i32
    %c0_i32_1 = arith.constant 0 : i32
    %c0_i32_2 = arith.constant 0 : i32
    return %c0_i32, %c0_i32_0, %c0_i32_1 : i32, i32, i32
  }
  func.func @transform_6(%arg0: i32, %arg1: memref<1xi32, #tpu.memory_space<smem>>) -> (i32, i32) {
    %c0_i32 = arith.constant 0 : i32
    %c0_i32_0 = arith.constant 0 : i32
    %c0_i32_1 = arith.constant 0 : i32
    return %c0_i32, %c0_i32_0 : i32, i32
  }
  func.func @transform_7(%arg0: i32, %arg1: memref<1xi32, #tpu.memory_space<smem>>) -> (i32, i32) {
    %c0_i32 = arith.constant 0 : i32
    %c0_i32_0 = arith.constant 0 : i32
    %c0_i32_1 = arith.constant 0 : i32
    return %c0_i32, %c0_i32_0 : i32, i32
  }
  func.func @transform_8(%arg0: i32, %arg1: memref<1xi32, #tpu.memory_space<smem>>) -> (i32, i32) {
    %c0_i32 = arith.constant 0 : i32
    %c0_i32_0 = arith.constant 0 : i32
    %c0_i32_1 = arith.constant 0 : i32
    return %c0_i32, %c0_i32_0 : i32, i32
  }
  func.func @transform_9(%arg0: i32, %arg1: memref<1xi32, #tpu.memory_space<smem>>) -> (i32, i32) {
    %c0_i32 = arith.constant 0 : i32
    %c0_i32_0 = arith.constant 0 : i32
    %c0_i32_1 = arith.constant 0 : i32
    return %c0_i32, %c0_i32_0 : i32, i32
  }
}

</mosaic_0001>

<llo_original>
// kernel: ic_v6_forward.1
$region0: #{ic_v6_forward.1}
  #allocation0 [shape = 'u32[]', space=smem, size = 0x4, offset = 0x4, fixed_abs, tag = 'smem constant byte address 0x4 - core index']
  #allocation1 [shape = 'u32[144,128]{1,0:T(1,128)}', space=vmem, size = 0x12000, scoped, tag = 'internal scratch']
  #allocation2 [shape = 's32[1]{0}', space=sflag, size = 0x4, scoped, tag = 'scoped memory for ic_v6_forward.1']
  #allocation3 [shape = 's32[1]{0:T(128)S(6)}', space=smem, size = 0x200, scoped, tag = 'prefetched SMEM operand 0']
  %s0 = inlined_call_operand.<no memory space> [shape: s32[1], index: 0, kind: input, shape index: {}]
  %s1 = inlined_call_operand.hbm [shape: f32[64,1,384], index: 1, kind: input, shape index: {}]
  %s2 = inlined_call_operand.vmem [shape: f32[3,384], index: 2, kind: input, shape index: {}]
  %s3 = inlined_call_operand.hbm [shape: bf16[3,384,1152], index: 3, kind: input, shape index: {}]
  %s4 = inlined_call_operand.hbm [shape: bf16[3,384,1152], index: 4, kind: input, shape index: {}]
  %s5 = inlined_call_operand.hbm [shape: f32[3,1,1152], index: 5, kind: input, shape index: {}]
  %s6 = inlined_call_operand.hbm [shape: f32[3,1,1152], index: 6, kind: input, shape index: {}]
  %s7 = inlined_call_operand.hbm [shape: bf16[384,256], index: 7, kind: input, shape index: {}]
  %s8 = inlined_call_operand.hbm [shape: f32[1,256], index: 8, kind: input, shape index: {}]
  %s9 = inlined_call_operand.vmem [shape: f32[3,384], index: 9, kind: output, shape index: {0}]
  %s10 = inlined_call_operand.vmem [shape: f32[1,256], index: 10, kind: output, shape index: {1}]
  %11 = xla_tuple %s9, %s10
  %s12 = sld [smem:[#allocation0]]
  $region78: #{ic_v6_forward.1} parent=0
    _
  %s14 = ssub.s32 1, %s12
  %s15 = scalar_select 0, %s14, %s12
  %16 = sst [smem:[#allocation3]] %s0
  $region1: #{ic_v6_forward.1} parent=0
    #allocation4 [shape = 'u8[1536]{0}', space=vmem, size = 0x800, scoped, tag = 'input window, operand 1, single buffered']
    #allocation5 [shape = 's32[1]{0}', space=sflag, size = 0x4, scoped, tag = 'scoped memory for ic_v6_forward.1']
    #allocation6 [shape = 'u8[2654208]{0}', space=vmem, size = 0x288000, scoped, tag = 'input window, operand 3, single buffered']
    #allocation7 [shape = 's32[1]{0}', space=sflag, size = 0x4, scoped, tag = 'scoped memory for ic_v6_forward.1']
    #allocation8 [shape = 'u8[2654208]{0}', space=vmem, size = 0x288000, scoped, tag = 'input window, operand 4, single buffered']
    #allocation9 [shape = 'u8[13824]{0}', space=vmem, size = 0x3800, scoped, tag = 'input window, operand 5, single buffered']
    #allocation10 [shape = 's32[1]{0}', space=sflag, size = 0x4, scoped, tag = 'scoped memory for ic_v6_forward.1']
    #allocation11 [shape = 'u8[13824]{0}', space=vmem, size = 0x3800, scoped, tag = 'input window, operand 6, single buffered']
    #allocation12 [shape = 'u8[196608]{0}', space=vmem, size = 0x30000, scoped, tag = 'input window, operand 7, single buffered']
    #allocation13 [shape = 's32[1]{0}', space=sflag, size = 0x4, scoped, tag = 'scoped memory for ic_v6_forward.1']
    #allocation14 [shape = 'u8[1024]{0}', space=vmem, size = 0x400, scoped, tag = 'input window, operand 8, single buffered']
    %17 = vsyncpa [#allocation5], 0
    %18 = vsyncpa [#allocation7], 0
    %19 = vsyncpa [#allocation10], 0
    %20 = vsyncpa [#allocation13], 0
    // Predicated region
    $region2: #{ic_v6_forward.1} parent=1 // pred_check
      _
    $region3: #{ic_v6_forward.1} parent=1 // pred_check_branch
      %22 = sbr.rel (0) target = $region5
    $region4: #{ic_v6_forward.1} parent=1 // pred_region
      %s23 = sld [smem:[#allocation3]]
      %s25 = ssub.s32 48, 48
      %26 = vsyncadd [#allocation5], %s25
      %s27 = smul.addr %s23, 3
      %s28 = smul.addr %s27, 16
      %s29 = scalar_lea.hbm %s1, %s28
      %s31 = sshll.u32 [#allocation4], 4
      %s32 = int_to_ptr.vmem [resolvable:$true] %s31
      %34 = dma.hbm_to_vmem [thread:$0]  %s29, 48, %s32, [#allocation5]
    $region5: #{ic_v6_forward.1} parent=1 // pred_fallthru
      _
    // Predicated region
    $region6: #{ic_v6_forward.1} parent=1 // pred_check
      _
    $region7: #{ic_v6_forward.1} parent=1 // pred_check_branch
      %36 = sbr.rel (0) target = $region9
    $region8: #{ic_v6_forward.1} parent=1 // pred_region
      _
    $region9: #{ic_v6_forward.1} parent=1 // pred_fallthru
      _
    // Predicated region
    $region10: #{ic_v6_forward.1} parent=1 // pred_check
      _
    $region11: #{ic_v6_forward.1} parent=1 // pred_check_branch
      %38 = sbr.rel (0) target = $region13
    $region12: #{ic_v6_forward.1} parent=1 // pred_region
      %s40 = ssub.s32 82944, 82944
      %41 = vsyncadd [#allocation7], %s40
      %s42 = sshll.u32 [#allocation6], 4
      %s43 = int_to_ptr.vmem [resolvable:$true] %s42
      %48 = dma.hbm_to_vmem [thread:$0]  %s3, 82944, %s43, [#allocation7], 576, 576, 36
    $region13: #{ic_v6_forward.1} parent=1 // pred_fallthru
      _
    // Predicated region
    $region14: #{ic_v6_forward.1} parent=1 // pred_check
      _
    $region15: #{ic_v6_forward.1} parent=1 // pred_check_branch
      %50 = sbr.rel (0) target = $region17
    $region16: #{ic_v6_forward.1} parent=1 // pred_region
      %s52 = ssub.s32 82944, 82944
      %53 = vsyncadd [#allocation7], %s52
      %s54 = sshll.u32 [#allocation8], 4
      %s55 = int_to_ptr.vmem [resolvable:$true] %s54
      %60 = dma.hbm_to_vmem [thread:$0]  %s4, 82944, %s55, [#allocation7], 576, 576, 36
    $region17: #{ic_v6_forward.1} parent=1 // pred_fallthru
      _
    // Predicated region
    $region18: #{ic_v6_forward.1} parent=1 // pred_check
      _
    $region19: #{ic_v6_forward.1} parent=1 // pred_check_branch
      %62 = sbr.rel (0) target = $region21
    $region20: #{ic_v6_forward.1} parent=1 // pred_region
      %s64 = ssub.s32 432, 432
      %65 = vsyncadd [#allocation10], %s64
      %s66 = sshll.u32 [#allocation9], 4
      %s67 = int_to_ptr.vmem [resolvable:$true] %s66
      %72 = dma.hbm_to_vmem [thread:$0]  %s5, 432, %s67, [#allocation10], 144, 144, 9
    $region21: #{ic_v6_forward.1} parent=1 // pred_fallthru
      _
    // Predicated region
    $region22: #{ic_v6_forward.1} parent=1 // pred_check
      _
    $region23: #{ic_v6_forward.1} parent=1 // pred_check_branch
      %74 = sbr.rel (0) target = $region25
    $region24: #{ic_v6_forward.1} parent=1 // pred_region
      %s76 = ssub.s32 432, 432
      %77 = vsyncadd [#allocation10], %s76
      %s78 = sshll.u32 [#allocation11], 4
      %s79 = int_to_ptr.vmem [resolvable:$true] %s78
      %84 = dma.hbm_to_vmem [thread:$0]  %s6, 432, %s79, [#allocation10], 144, 144, 9
    $region25: #{ic_v6_forward.1} parent=1 // pred_fallthru
      _
    // Predicated region
    $region26: #{ic_v6_forward.1} parent=1 // pred_check
      _
    $region27: #{ic_v6_forward.1} parent=1 // pred_check_branch
      %86 = sbr.rel (0) target = $region29
    $region28: #{ic_v6_forward.1} parent=1 // pred_region
      %s88 = ssub.s32 6144, 6144
      %89 = vsyncadd [#allocation13], %s88
      %s90 = sshll.u32 [#allocation12], 4
      %s91 = int_to_ptr.vmem [resolvable:$true] %s90
      %96 = dma.hbm_to_vmem [thread:$0]  %s7, 6144, %s91, [#allocation13], 128, 128, 8
    $region29: #{ic_v6_forward.1} parent=1 // pred_fallthru
      _
    // Predicated region
    $region30: #{ic_v6_forward.1} parent=1 // pred_check
      _
    $region31: #{ic_v6_forward.1} parent=1 // pred_check_branch
      %98 = sbr.rel (0) target = $region33
    $region32: #{ic_v6_forward.1} parent=1 // pred_region
      %s100 = ssub.s32 32, 32
      %101 = vsyncadd [#allocation13], %s100
      %s103 = sshll.u32 [#allocation14], 4
      %s104 = int_to_ptr.vmem [resolvable:$true] %s103
      %106 = dma.hbm_to_vmem [thread:$0]  %s8, 32, %s104, [#allocation13]
    $region33: #{ic_v6_forward.1} parent=1 // pred_fallthru
      _
    // Predicated region
    $region34: #{ic_v6_forward.1} parent=1 // pred_check
      _
    $region35: #{ic_v6_forward.1} parent=1 // pred_check_branch
      %108 = sbr.rel (0) target = $region37
    $region36: #{ic_v6_forward.1} parent=1 // pred_region
      %109 = dma.done [#allocation5], 48
    $region37: #{ic_v6_forward.1} parent=1 // pred_fallthru
      _
    // Predicated region
    $region38: #{ic_v6_forward.1} parent=1 // pred_check
      _
    $region39: #{ic_v6_forward.1} parent=1 // pred_check_branch
      %111 = sbr.rel (0) target = $region41
    $region40: #{ic_v6_forward.1} parent=1 // pred_region
      %112 = dma.done [#allocation7], 82944
    $region41: #{ic_v6_forward.1} parent=1 // pred_fallthru
      _
    // Predicated region
    $region42: #{ic_v6_forward.1} parent=1 // pred_check
      _
    $region43: #{ic_v6_forward.1} parent=1 // pred_check_branch
      %114 = sbr.rel (0) target = $region45
    $region44: #{ic_v6_forward.1} parent=1 // pred_region
      %115 = dma.done [#allocation7], 82944
    $region45: #{ic_v6_forward.1} parent=1 // pred_fallthru
      _
    // Predicated region
    $region46: #{ic_v6_forward.1} parent=1 // pred_check
      _
    $region47: #{ic_v6_forward.1} parent=1 // pred_check_branch
      %117 = sbr.rel (0) target = $region49
    $region48: #{ic_v6_forward.1} parent=1 // pred_region
      %118 = dma.done [#allocation10], 432
    $region49: #{ic_v6_forward.1} parent=1 // pred_fallthru
      _
    // Predicated region
    $region50: #{ic_v6_forward.1} parent=1 // pred_check
      _
    $region51: #{ic_v6_forward.1} parent=1 // pred_check_branch
      %120 = sbr.rel (0) target = $region53
    $region52: #{ic_v6_forward.1} parent=1 // pred_region
      %121 = dma.done [#allocation10], 432
    $region53: #{ic_v6_forward.1} parent=1 // pred_fallthru
      _
    // Predicated region
    $region54: #{ic_v6_forward.1} parent=1 // pred_check
      _
    $region55: #{ic_v6_forward.1} parent=1 // pred_check_branch
      %123 = sbr.rel (0) target = $region57
    $region56: #{ic_v6_forward.1} parent=1 // pred_region
      %124 = dma.done [#allocation13], 6144
    $region57: #{ic_v6_forward.1} parent=1 // pred_fallthru
      _
    // Predicated region
    $region58: #{ic_v6_forward.1} parent=1 // pred_check
      _
    $region59: #{ic_v6_forward.1} parent=1 // pred_check_branch
      %126 = sbr.rel (0) target = $region61
    $region60: #{ic_v6_forward.1} parent=1 // pred_region
      %127 = dma.done [#allocation13], 32
    $region61: #{ic_v6_forward.1} parent=1 // pred_fallthru
      _
    %s128 = sld [smem:[#allocation3]]
    %v130 = vld [vmem:[#allocation4] sm:$0x7]
    %v131 = vld [vmem:[%s2] ss:$4 sm:$0x7]
    %v133 = vlaneseq
    %v134 = vshrl.u32 %v133, 7
    %v135 = vsub.s32 0, %v134
    %v136 = vrot.slane %v131, %v135
    %v137 = vlaneseq
    %v138 = vshrl.u32 %v137, 7
    %v139 = vsub.s32 1, %v138
    %v140 = vrot.slane %v131, %v139
    %v141 = vlaneseq
    %v142 = vshrl.u32 %v141, 7
    %v143 = vsub.s32 2, %v142
    %v144 = vrot.slane %v131, %v143
    %v148 = vpack.c.bf16 %v136, %v136
    %v149 = vpack.c.bf16 %v140, %v140
    %v150 = vpack.c.bf16 %v144, %v144
    %v151 = vld [vmem:[#allocation8] sm:$0xff]
    %v152 = vld [vmem:[#allocation8 + $0x8] sm:$0xff]
    %v153 = vld [vmem:[#allocation8 + $0x10] sm:$0xff]
    %v154 = vld [vmem:[#allocation8 + $0x18] sm:$0xff]
    %v155 = vld [vmem:[#allocation8 + $0x20] sm:$0xf]
    %v156 = vld [vmem:[#allocation8 + $0x24] sm:$0xff]
    %v157 = vld [vmem:[#allocation8 + $0x2c] sm:$0xff]
    %v158 = vld [vmem:[#allocation8 + $0x34] sm:$0xff]
    %v159 = vld [vmem:[#allocation8 + $0x3c] sm:$0xff]
    %v160 = vld [vmem:[#allocation8 + $0x44] sm:$0xf]
    %v161 = vld [vmem:[#allocation8 + $0x48] sm:$0xff]
    %v162 = vld [vmem:[#allocation8 + $0x50] sm:$0xff]
    %v163 = vld [vmem:[#allocation8 + $0x58] sm:$0xff]
    %v164 = vld [vmem:[#allocation8 + $0x60] sm:$0xff]
    %v165 = vld [vmem:[#allocation8 + $0x68] sm:$0xf]
    %v166 = vld [vmem:[#allocation8 + $0x6c] sm:$0xff]
    %v167 = vld [vmem:[#allocation8 + $0x74] sm:$0xff]
    %v168 = vld [vmem:[#allocation8 + $0x7c] sm:$0xff]
    %v169 = vld [vmem:[#allocation8 + $0x84] sm:$0xff]
    %v170 = vld [vmem:[#allocation8 + $0x8c] sm:$0xf]
    %v171 = vld [vmem:[#allocation8 + $0x90] sm:$0xff]
    %v172 = vld [vmem:[#allocation8 + $0x98] sm:$0xff]
    %v173 = vld [vmem:[#allocation8 + $0xa0] sm:$0xff]
    %v174 = vld [vmem:[#allocation8 + $0xa8] sm:$0xff]
    %v175 = vld [vmem:[#allocation8 + $0xb0] sm:$0xf]
    %v176 = vld [vmem:[#allocation8 + $0xb4] sm:$0xff]
    %v177 = vld [vmem:[#allocation8 + $0xbc] sm:$0xff]
    %v178 = vld [vmem:[#allocation8 + $0xc4] sm:$0xff]
    %v179 = vld [vmem:[#allocation8 + $0xcc] sm:$0xff]
    %v180 = vld [vmem:[#allocation8 + $0xd4] sm:$0xf]
    %v181 = vld [vmem:[#allocation8 + $0xd8] sm:$0xff]
    %v182 = vld [vmem:[#allocation8 + $0xe0] sm:$0xff]
    %v183 = vld [vmem:[#allocation8 + $0xe8] sm:$0xff]
    %v184 = vld [vmem:[#allocation8 + $0xf0] sm:$0xff]
    %v185 = vld [vmem:[#allocation8 + $0xf8] sm:$0xf]
    %v186 = vld [vmem:[#allocation8 + $0xfc] sm:$0xff]
    %v187 = vld [vmem:[#allocation8 + $0x104] sm:$0xff]
    %v188 = vld [vmem:[#allocation8 + $0x10c] sm:$0xff]
    %v189 = vld [vmem:[#allocation8 + $0x114] sm:$0xff]
    %v190 = vld [vmem:[#allocation8 + $0x11c] sm:$0xf]
    %v191 = vld [vmem:[#allocation8 + $0x120] sm:$0xff]
    %v192 = vld [vmem:[#allocation8 + $0x128] sm:$0xff]
    %v193 = vld [vmem:[#allocation8 + $0x130] sm:$0xff]
    %v194 = vld [vmem:[#allocation8 + $0x138] sm:$0xff]
    %v195 = vld [vmem:[#allocation8 + $0x140] sm:$0xf]
    %v196 = vld [vmem:[#allocation8 + $0x144] sm:$0xff]
    %v197 = vld [vmem:[#allocation8 + $0x14c] sm:$0xff]
    %v198 = vld [vmem:[#allocation8 + $0x154] sm:$0xff]
    %v199 = vld [vmem:[#allocation8 + $0x15c] sm:$0xff]
    %v200 = vld [vmem:[#allocation8 + $0x164] sm:$0xf]
    %v201 = vld [vmem:[#allocation8 + $0x168] sm:$0xff]
    %v202 = vld [vmem:[#allocation8 + $0x170] sm:$0xff]
    %v203 = vld [vmem:[#allocation8 + $0x178] sm:$0xff]
    %v204 = vld [vmem:[#allocation8 + $0x180] sm:$0xff]
    %v205 = vld [vmem:[#allocation8 + $0x188] sm:$0xf]
    %v206 = vld [vmem:[#allocation8 + $0x18c] sm:$0xff]
    %v207 = vld [vmem:[#allocation8 + $0x194] sm:$0xff]
    %v208 = vld [vmem:[#allocation8 + $0x19c] sm:$0xff]
    %v209 = vld [vmem:[#allocation8 + $0x1a4] sm:$0xff]
    %v210 = vld [vmem:[#allocation8 + $0x1ac] sm:$0xf]
    %v211 = vld [vmem:[#allocation8 + $0x1b0] sm:$0xff]
    %v212 = vld [vmem:[#allocation8 + $0x1b8] sm:$0xff]
    %v213 = vld [vmem:[#allocation8 + $0x1c0] sm:$0xff]
    %v214 = vld [vmem:[#allocation8 + $0x1c8] sm:$0xff]
    %v215 = vld [vmem:[#allocation8 + $0x1d0] sm:$0xf]
    %v216 = vld [vmem:[#allocation8 + $0x1d4] sm:$0xff]
    %v217 = vld [vmem:[#allocation8 + $0x1dc] sm:$0xff]
    %v218 = vld [vmem:[#allocation8 + $0x1e4] sm:$0xff]
    %v219 = vld [vmem:[#allocation8 + $0x1ec] sm:$0xff]
    %v220 = vld [vmem:[#allocation8 + $0x1f4] sm:$0xf]
    %v221 = vld [vmem:[#allocation8 + $0x1f8] sm:$0xff]
    %v222 = vld [vmem:[#allocation8 + $0x200] sm:$0xff]
    %v223 = vld [vmem:[#allocation8 + $0x208] sm:$0xff]
    %v224 = vld [vmem:[#allocation8 + $0x210] sm:$0xff]
    %v225 = vld [vmem:[#allocation8 + $0x218] sm:$0xf]
    %v226 = vld [vmem:[#allocation8 + $0x21c] sm:$0xff]
    %v227 = vld [vmem:[#allocation8 + $0x224] sm:$0xff]
    %v228 = vld [vmem:[#allocation8 + $0x22c] sm:$0xff]
    %v229 = vld [vmem:[#allocation8 + $0x234] sm:$0xff]
    %v230 = vld [vmem:[#allocation8 + $0x23c] sm:$0xf]
    %v231 = vld [vmem:[#allocation8 + $0x240] sm:$0xff]
    %v232 = vld [vmem:[#allocation8 + $0x248] sm:$0xff]
    %v233 = vld [vmem:[#allocation8 + $0x250] sm:$0xff]
    %v234 = vld [vmem:[#allocation8 + $0x258] sm:$0xff]
    %v235 = vld [vmem:[#allocation8 + $0x260] sm:$0xf]
    %v236 = vld [vmem:[#allocation8 + $0x264] sm:$0xff]
    %v237 = vld [vmem:[#allocation8 + $0x26c] sm:$0xff]
    %v238 = vld [vmem:[#allocation8 + $0x274] sm:$0xff]
    %v239 = vld [vmem:[#allocation8 + $0x27c] sm:$0xff]
    %v240 = vld [vmem:[#allocation8 + $0x284] sm:$0xf]
    %v241 = vld [vmem:[#allocation8 + $0x288] sm:$0xff]
    %v242 = vld [vmem:[#allocation8 + $0x290] sm:$0xff]
    %v243 = vld [vmem:[#allocation8 + $0x298] sm:$0xff]
    %v244 = vld [vmem:[#allocation8 + $0x2a0] sm:$0xff]
    %v245 = vld [vmem:[#allocation8 + $0x2a8] sm:$0xf]
    %v246 = vld [vmem:[#allocation8 + $0x2ac] sm:$0xff]
    %v247 = vld [vmem:[#allocation8 + $0x2b4] sm:$0xff]
    %v248 = vld [vmem:[#allocation8 + $0x2bc] sm:$0xff]
    %v249 = vld [vmem:[#allocation8 + $0x2c4] sm:$0xff]
    %v250 = vld [vmem:[#allocation8 + $0x2cc] sm:$0xf]
    %v251 = vld [vmem:[#allocation8 + $0x2d0] sm:$0xff]
    %v252 = vld [vmem:[#allocation8 + $0x2d8] sm:$0xff]
    %v253 = vld [vmem:[#allocation8 + $0x2e0] sm:$0xff]
    %v254 = vld [vmem:[#allocation8 + $0x2e8] sm:$0xff]
    %v255 = vld [vmem:[#allocation8 + $0x2f0] sm:$0xf]
    %v256 = vld [vmem:[#allocation8 + $0x2f4] sm:$0xff]
    %v257 = vld [vmem:[#allocation8 + $0x2fc] sm:$0xff]
    %v258 = vld [vmem:[#allocation8 + $0x304] sm:$0xff]
    %v259 = vld [vmem:[#allocation8 + $0x30c] sm:$0xff]
    %v260 = vld [vmem:[#allocation8 + $0x314] sm:$0xf]
    %v261 = vld [vmem:[#allocation8 + $0x318] sm:$0xff]
    %v262 = vld [vmem:[#allocation8 + $0x320] sm:$0xff]
    %v263 = vld [vmem:[#allocation8 + $0x328] sm:$0xff]
    %v264 = vld [vmem:[#allocation8 + $0x330] sm:$0xff]
    %v265 = vld [vmem:[#allocation8 + $0x338] sm:$0xf]
    %v266 = vld [vmem:[#allocation8 + $0x33c] sm:$0xff]
    %v267 = vld [vmem:[#allocation8 + $0x344] sm:$0xff]
    %v268 = vld [vmem:[#allocation8 + $0x34c] sm:$0xff]
    %v269 = vld [vmem:[#allocation8 + $0x354] sm:$0xff]
    %v270 = vld [vmem:[#allocation8 + $0x35c] sm:$0xf]
    %v271 = vld [vmem:[#allocation8 + $0x360] sm:$0xff]
    %v272 = vld [vmem:[#allocation8 + $0x368] sm:$0xff]
    %v273 = vld [vmem:[#allocation8 + $0x370] sm:$0xff]
    %v274 = vld [vmem:[#allocation8 + $0x378] sm:$0xff]
    %v275 = vld [vmem:[#allocation8 + $0x380] sm:$0xf]
    %v276 = vld [vmem:[#allocation8 + $0x384] sm:$0xff]
    %v277 = vld [vmem:[#allocation8 + $0x38c] sm:$0xff]
    %v278 = vld [vmem:[#allocation8 + $0x394] sm:$0xff]
    %v279 = vld [vmem:[#allocation8 + $0x39c] sm:$0xff]
    %v280 = vld [vmem:[#allocation8 + $0x3a4] sm:$0xf]
    %v281 = vld [vmem:[#allocation8 + $0x3a8] sm:$0xff]
    %v282 = vld [vmem:[#allocation8 + $0x3b0] sm:$0xff]
    %v283 = vld [vmem:[#allocation8 + $0x3b8] sm:$0xff]
    %v284 = vld [vmem:[#allocation8 + $0x3c0] sm:$0xff]
    %v285 = vld [vmem:[#allocation8 + $0x3c8] sm:$0xf]
    %v286 = vld [vmem:[#allocation8 + $0x3cc] sm:$0xff]
    %v287 = vld [vmem:[#allocation8 + $0x3d4] sm:$0xff]
    %v288 = vld [vmem:[#allocation8 + $0x3dc] sm:$0xff]
    %v289 = vld [vmem:[#allocation8 + $0x3e4] sm:$0xff]
    %v290 = vld [vmem:[#allocation8 + $0x3ec] sm:$0xf]
    %v291 = vld [vmem:[#allocation8 + $0x3f0] sm:$0xff]
    %v292 = vld [vmem:[#allocation8 + $0x3f8] sm:$0xff]
    %v293 = vld [vmem:[#allocation8 + $0x400] sm:$0xff]
    %v294 = vld [vmem:[#allocation8 + $0x408] sm:$0xff]
    %v295 = vld [vmem:[#allocation8 + $0x410] sm:$0xf]
    %v296 = vld [vmem:[#allocation8 + $0x414] sm:$0xff]
    %v297 = vld [vmem:[#allocation8 + $0x41c] sm:$0xff]
    %v298 = vld [vmem:[#allocation8 + $0x424] sm:$0xff]
    %v299 = vld [vmem:[#allocation8 + $0x42c] sm:$0xff]
    %v300 = vld [vmem:[#allocation8 + $0x434] sm:$0xf]
    %v301 = vld [vmem:[#allocation8 + $0x438] sm:$0xff]
    %v302 = vld [vmem:[#allocation8 + $0x440] sm:$0xff]
    %v303 = vld [vmem:[#allocation8 + $0x448] sm:$0xff]
    %v304 = vld [vmem:[#allocation8 + $0x450] sm:$0xff]
    %v305 = vld [vmem:[#allocation8 + $0x458] sm:$0xf]
    %v306 = vld [vmem:[#allocation8 + $0x45c] sm:$0xff]
    %v307 = vld [vmem:[#allocation8 + $0x464] sm:$0xff]
    %v308 = vld [vmem:[#allocation8 + $0x46c] sm:$0xff]
    %v309 = vld [vmem:[#allocation8 + $0x474] sm:$0xff]
    %v310 = vld [vmem:[#allocation8 + $0x47c] sm:$0xf]
    %v311 = vld [vmem:[#allocation8 + $0x480] sm:$0xff]
    %v312 = vld [vmem:[#allocation8 + $0x488] sm:$0xff]
    %v313 = vld [vmem:[#allocation8 + $0x490] sm:$0xff]
    %v314 = vld [vmem:[#allocation8 + $0x498] sm:$0xff]
    %v315 = vld [vmem:[#allocation8 + $0x4a0] sm:$0xf]
    %v316 = vld [vmem:[#allocation8 + $0x4a4] sm:$0xff]
    %v317 = vld [vmem:[#allocation8 + $0x4ac] sm:$0xff]
    %v318 = vld [vmem:[#allocation8 + $0x4b4] sm:$0xff]
    %v319 = vld [vmem:[#allocation8 + $0x4bc] sm:$0xff]
    %v320 = vld [vmem:[#allocation8 + $0x4c4] sm:$0xf]
    %v321 = vld [vmem:[#allocation8 + $0x4c8] sm:$0xff]
    %v322 = vld [vmem:[#allocation8 + $0x4d0] sm:$0xff]
    %v323 = vld [vmem:[#allocation8 + $0x4d8] sm:$0xff]
    %v324 = vld [vmem:[#allocation8 + $0x4e0] sm:$0xff]
    %v325 = vld [vmem:[#allocation8 + $0x4e8] sm:$0xf]
    %v326 = vld [vmem:[#allocation8 + $0x4ec] sm:$0xff]
    %v327 = vld [vmem:[#allocation8 + $0x4f4] sm:$0xff]
    %v328 = vld [vmem:[#allocation8 + $0x4fc] sm:$0xff]
    %v329 = vld [vmem:[#allocation8 + $0x504] sm:$0xff]
    %v330 = vld [vmem:[#allocation8 + $0x50c] sm:$0xf]
    %v331 = vld [vmem:[#allocation8 + $0x510] sm:$0xff]
    %v332 = vld [vmem:[#allocation8 + $0x518] sm:$0xff]
    %v333 = vld [vmem:[#allocation8 + $0x520] sm:$0xff]
    %v334 = vld [vmem:[#allocation8 + $0x528] sm:$0xff]
    %v335 = vld [vmem:[#allocation8 + $0x530] sm:$0xf]
    %v336 = vld [vmem:[#allocation8 + $0x534] sm:$0xff]
    %v337 = vld [vmem:[#allocation8 + $0x53c] sm:$0xff]
    %v338 = vld [vmem:[#allocation8 + $0x544] sm:$0xff]
    %v339 = vld [vmem:[#allocation8 + $0x54c] sm:$0xff]
    %v340 = vld [vmem:[#allocation8 + $0x554] sm:$0xf]
    %v341 = vld [vmem:[#allocation8 + $0x558] sm:$0xff]
    %v342 = vld [vmem:[#allocation8 + $0x560] sm:$0xff]
    %v343 = vld [vmem:[#allocation8 + $0x568] sm:$0xff]
    %v344 = vld [vmem:[#allocation8 + $0x570] sm:$0xff]
    %v345 = vld [vmem:[#allocation8 + $0x578] sm:$0xf]
    %v346 = vld [vmem:[#allocation8 + $0x57c] sm:$0xff]
    %v347 = vld [vmem:[#allocation8 + $0x584] sm:$0xff]
    %v348 = vld [vmem:[#allocation8 + $0x58c] sm:$0xff]
    %v349 = vld [vmem:[#allocation8 + $0x594] sm:$0xff]
    %v350 = vld [vmem:[#allocation8 + $0x59c] sm:$0xf]
    %v351 = vld [vmem:[#allocation8 + $0x5a0] sm:$0xff]
    %v352 = vld [vmem:[#allocation8 + $0x5a8] sm:$0xff]
    %v353 = vld [vmem:[#allocation8 + $0x5b0] sm:$0xff]
    %v354 = vld [vmem:[#allocation8 + $0x5b8] sm:$0xff]
    %v355 = vld [vmem:[#allocation8 + $0x5c0] sm:$0xf]
    %v356 = vld [vmem:[#allocation8 + $0x5c4] sm:$0xff]
    %v357 = vld [vmem:[#allocation8 + $0x5cc] sm:$0xff]
    %v358 = vld [vmem:[#allocation8 + $0x5d4] sm:$0xff]
    %v359 = vld [vmem:[#allocation8 + $0x5dc] sm:$0xff]
    %v360 = vld [vmem:[#allocation8 + $0x5e4] sm:$0xf]
    %v361 = vld [vmem:[#allocation8 + $0x5e8] sm:$0xff]
    %v362 = vld [vmem:[#allocation8 + $0x5f0] sm:$0xff]
    %v363 = vld [vmem:[#allocation8 + $0x5f8] sm:$0xff]
    %v364 = vld [vmem:[#allocation8 + $0x600] sm:$0xff]
    %v365 = vld [vmem:[#allocation8 + $0x608] sm:$0xf]
    %v366 = vld [vmem:[#allocation8 + $0x60c] sm:$0xff]
    %v367 = vld [vmem:[#allocation8 + $0x614] sm:$0xff]
    %v368 = vld [vmem:[#allocation8 + $0x61c] sm:$0xff]
    %v369 = vld [vmem:[#allocation8 + $0x624] sm:$0xff]
    %v370 = vld [vmem:[#allocation8 + $0x62c] sm:$0xf]
    %v371 = vld [vmem:[#allocation8 + $0x630] sm:$0xff]
    %v372 = vld [vmem:[#allocation8 + $0x638] sm:$0xff]
    %v373 = vld [vmem:[#allocation8 + $0x640] sm:$0xff]
    %v374 = vld [vmem:[#allocation8 + $0x648] sm:$0xff]
    %v375 = vld [vmem:[#allocation8 + $0x650] sm:$0xf]
    %v376 = vld [vmem:[#allocation8 + $0x654] sm:$0xff]
    %v377 = vld [vmem:[#allocation8 + $0x65c] sm:$0xff]
    %v378 = vld [vmem:[#allocation8 + $0x664] sm:$0xff]
    %v379 = vld [vmem:[#allocation8 + $0x66c] sm:$0xff]
    %v380 = vld [vmem:[#allocation8 + $0x674] sm:$0xf]
    %v381 = vld [vmem:[#allocation8 + $0x678] sm:$0xff]
    %v382 = vld [vmem:[#allocation8 + $0x680] sm:$0xff]
    %v383 = vld [vmem:[#allocation8 + $0x688] sm:$0xff]
    %v384 = vld [vmem:[#allocation8 + $0x690] sm:$0xff]
    %v385 = vld [vmem:[#allocation8 + $0x698] sm:$0xf]
    %v386 = vld [vmem:[#allocation8 + $0x69c] sm:$0xff]
    %v387 = vld [vmem:[#allocation8 + $0x6a4] sm:$0xff]
    %v388 = vld [vmem:[#allocation8 + $0x6ac] sm:$0xff]
    %v389 = vld [vmem:[#allocation8 + $0x6b4] sm:$0xff]
    %v390 = vld [vmem:[#allocation8 + $0x6bc] sm:$0xf]
    %v391 = vld [vmem:[#allocation11] sm:$0xff]
    %v392 = vld [vmem:[#allocation11 + $0x8] sm:$0x1]
    %v633 = vunpack.c.l.b16 %v151
    %v634 = vunpack.c.h.b16 %v151
    %v635 = vunpack.c.l.b16 %v152
    %v636 = vunpack.c.h.b16 %v152
    %v637 = vunpack.c.l.b16 %v153
    %v638 = vunpack.c.h.b16 %v153
    %v639 = vunpack.c.l.b16 %v154
    %v640 = vunpack.c.h.b16 %v154
    %v641 = vunpack.c.l.b16 %v155
    %v642 = vunpack.c.l.b16 %v156
    %v643 = vunpack.c.h.b16 %v156
    %v644 = vunpack.c.l.b16 %v157
    %v645 = vunpack.c.h.b16 %v157
    %v646 = vunpack.c.l.b16 %v158
    %v647 = vunpack.c.h.b16 %v158
    %v648 = vunpack.c.l.b16 %v159
    %v649 = vunpack.c.h.b16 %v159
    %v650 = vunpack.c.l.b16 %v160
    %v651 = vunpack.c.l.b16 %v161
    %v652 = vunpack.c.h.b16 %v161
    %v653 = vunpack.c.l.b16 %v162
    %v654 = vunpack.c.h.b16 %v162
    %v655 = vunpack.c.l.b16 %v163
    %v656 = vunpack.c.h.b16 %v163
    %v657 = vunpack.c.l.b16 %v164
    %v658 = vunpack.c.h.b16 %v164
    %v659 = vunpack.c.l.b16 %v165
    %v660 = vunpack.c.l.b16 %v166
    %v661 = vunpack.c.h.b16 %v166
    %v662 = vunpack.c.l.b16 %v167
    %v663 = vunpack.c.h.b16 %v167
    %v664 = vunpack.c.l.b16 %v168
    %v665 = vunpack.c.h.b16 %v168
    %v666 = vunpack.c.l.b16 %v169
    %v667 = vunpack.c.h.b16 %v169
    %v668 = vunpack.c.l.b16 %v170
    %v669 = vunpack.c.l.b16 %v171
    %v670 = vunpack.c.h.b16 %v171
    %v671 = vunpack.c.l.b16 %v172
    %v672 = vunpack.c.h.b16 %v172
    %v673 = vunpack.c.l.b16 %v173
    %v674 = vunpack.c.h.b16 %v173
    %v675 = vunpack.c.l.b16 %v174
    %v676 = vunpack.c.h.b16 %v174
    %v677 = vunpack.c.l.b16 %v175
    %v678 = vunpack.c.l.b16 %v176
    %v679 = vunpack.c.h.b16 %v176
    %v680 = vunpack.c.l.b16 %v177
    %v681 = vunpack.c.h.b16 %v177
    %v682 = vunpack.c.l.b16 %v178
    %v683 = vunpack.c.h.b16 %v178
    %v684 = vunpack.c.l.b16 %v179
    %v685 = vunpack.c.h.b16 %v179
    %v686 = vunpack.c.l.b16 %v180
    %v687 = vunpack.c.l.b16 %v181
    %v688 = vunpack.c.h.b16 %v181
    %v689 = vunpack.c.l.b16 %v182
    %v690 = vunpack.c.h.b16 %v182
    %v691 = vunpack.c.l.b16 %v183
    %v692 = vunpack.c.h.b16 %v183
    %v693 = vunpack.c.l.b16 %v184
    %v694 = vunpack.c.h.b16 %v184
    %v695 = vunpack.c.l.b16 %v185
    %v696 = vunpack.c.l.b16 %v186
    %v697 = vunpack.c.h.b16 %v186
    %v698 = vunpack.c.l.b16 %v187
    %v699 = vunpack.c.h.b16 %v187
    %v700 = vunpack.c.l.b16 %v188
    %v701 = vunpack.c.h.b16 %v188
    %v702 = vunpack.c.l.b16 %v189
    %v703 = vunpack.c.h.b16 %v189
    %v704 = vunpack.c.l.b16 %v190
    %v705 = vunpack.c.l.b16 %v191
    %v706 = vunpack.c.h.b16 %v191
    %v707 = vunpack.c.l.b16 %v192
    %v708 = vunpack.c.h.b16 %v192
    %v709 = vunpack.c.l.b16 %v193
    %v710 = vunpack.c.h.b16 %v193
    %v711 = vunpack.c.l.b16 %v194
    %v712 = vunpack.c.h.b16 %v194
    %v713 = vunpack.c.l.b16 %v195
    %v714 = vunpack.c.l.b16 %v196
    %v715 = vunpack.c.h.b16 %v196
    %v716 = vunpack.c.l.b16 %v197
    %v717 = vunpack.c.h.b16 %v197
    %v718 = vunpack.c.l.b16 %v198
    %v719 = vunpack.c.h.b16 %v198
    %v720 = vunpack.c.l.b16 %v199
    %v721 = vunpack.c.h.b16 %v199
    %v722 = vunpack.c.l.b16 %v200
    %v723 = vunpack.c.l.b16 %v201
    %v724 = vunpack.c.h.b16 %v201
    %v725 = vunpack.c.l.b16 %v202
    %v726 = vunpack.c.h.b16 %v202
    %v727 = vunpack.c.l.b16 %v203
    %v728 = vunpack.c.h.b16 %v203
    %v729 = vunpack.c.l.b16 %v204
    %v730 = vunpack.c.h.b16 %v204
    %v731 = vunpack.c.l.b16 %v205
    %v732 = vunpack.c.l.b16 %v206
    %v733 = vunpack.c.h.b16 %v206
    %v734 = vunpack.c.l.b16 %v207
    %v735 = vunpack.c.h.b16 %v207
    %v736 = vunpack.c.l.b16 %v208
    %v737 = vunpack.c.h.b16 %v208
    %v738 = vunpack.c.l.b16 %v209
    %v739 = vunpack.c.h.b16 %v209
    %v740 = vunpack.c.l.b16 %v210
    %v741 = vunpack.c.l.b16 %v211
    %v742 = vunpack.c.h.b16 %v211
    %v743 = vunpack.c.l.b16 %v212
    %v744 = vunpack.c.h.b16 %v212
    %v745 = vunpack.c.l.b16 %v213
    %v746 = vunpack.c.h.b16 %v213
    %v747 = vunpack.c.l.b16 %v214
    %v748 = vunpack.c.h.b16 %v214
    %v749 = vunpack.c.l.b16 %v215
    %v750 = vunpack.c.l.b16 %v216
    %v751 = vunpack.c.h.b16 %v216
    %v752 = vunpack.c.l.b16 %v217
    %v753 = vunpack.c.h.b16 %v217
    %v754 = vunpack.c.l.b16 %v218
    %v755 = vunpack.c.h.b16 %v218
    %v756 = vunpack.c.l.b16 %v219
    %v757 = vunpack.c.h.b16 %v219
    %v758 = vunpack.c.l.b16 %v220
    %v759 = vunpack.c.l.b16 %v221
    %v760 = vunpack.c.h.b16 %v221
    %v761 = vunpack.c.l.b16 %v222
    %v762 = vunpack.c.h.b16 %v222
    %v763 = vunpack.c.l.b16 %v223
    %v764 = vunpack.c.h.b16 %v223
    %v765 = vunpack.c.l.b16 %v224
    %v766 = vunpack.c.h.b16 %v224
    %v767 = vunpack.c.l.b16 %v225
    %v768 = vunpack.c.l.b16 %v226
    %v769 = vunpack.c.h.b16 %v226
    %v770 = vunpack.c.l.b16 %v227
    %v771 = vunpack.c.h.b16 %v227
    %v772 = vunpack.c.l.b16 %v228
    %v773 = vunpack.c.h.b16 %v228
    %v774 = vunpack.c.l.b16 %v229
    %v775 = vunpack.c.h.b16 %v229
    %v776 = vunpack.c.l.b16 %v230
    %v777 = vunpack.c.l.b16 %v231
    %v778 = vunpack.c.h.b16 %v231
    %v779 = vunpack.c.l.b16 %v232
    %v780 = vunpack.c.h.b16 %v232
    %v781 = vunpack.c.l.b16 %v233
    %v782 = vunpack.c.h.b16 %v233
    %v783 = vunpack.c.l.b16 %v234
    %v784 = vunpack.c.h.b16 %v234
    %v785 = vunpack.c.l.b16 %v235
    %v786 = vunpack.c.l.b16 %v236
    %v787 = vunpack.c.h.b16 %v236
    %v788 = vunpack.c.l.b16 %v237
    %v789 = vunpack.c.h.b16 %v237
    %v790 = vunpack.c.l.b16 %v238
    %v791 = vunpack.c.h.b16 %v238
    %v792 = vunpack.c.l.b16 %v239
    %v793 = vunpack.c.h.b16 %v239
    %v794 = vunpack.c.l.b16 %v240
    %v795 = vunpack.c.l.b16 %v241
    %v796 = vunpack.c.h.b16 %v241
    %v797 = vunpack.c.l.b16 %v242
    %v798 = vunpack.c.h.b16 %v242
    %v799 = vunpack.c.l.b16 %v243
    %v800 = vunpack.c.h.b16 %v243
    %v801 = vunpack.c.l.b16 %v244
    %v802 = vunpack.c.h.b16 %v244
    %v803 = vunpack.c.l.b16 %v245
    %v804 = vunpack.c.l.b16 %v246
    %v805 = vunpack.c.h.b16 %v246
    %v806 = vunpack.c.l.b16 %v247
    %v807 = vunpack.c.h.b16 %v247
    %v808 = vunpack.c.l.b16 %v248
    %v809 = vunpack.c.h.b16 %v248
    %v810 = vunpack.c.l.b16 %v249
    %v811 = vunpack.c.h.b16 %v249
    %v812 = vunpack.c.l.b16 %v250
    %v813 = vunpack.c.l.b16 %v251
    %v814 = vunpack.c.h.b16 %v251
    %v815 = vunpack.c.l.b16 %v252
    %v816 = vunpack.c.h.b16 %v252
    %v817 = vunpack.c.l.b16 %v253
    %v818 = vunpack.c.h.b16 %v253
    %v819 = vunpack.c.l.b16 %v254
    %v820 = vunpack.c.h.b16 %v254
    %v821 = vunpack.c.l.b16 %v255
    %v822 = vunpack.c.l.b16 %v256
    %v823 = vunpack.c.h.b16 %v256
    %v824 = vunpack.c.l.b16 %v257
    %v825 = vunpack.c.h.b16 %v257
    %v826 = vunpack.c.l.b16 %v258
    %v827 = vunpack.c.h.b16 %v258
    %v828 = vunpack.c.l.b16 %v259
    %v829 = vunpack.c.h.b16 %v259
    %v830 = vunpack.c.l.b16 %v260
    %v831 = vunpack.c.l.b16 %v261
    %v832 = vunpack.c.h.b16 %v261
    %v833 = vunpack.c.l.b16 %v262
    %v834 = vunpack.c.h.b16 %v262
    %v835 = vunpack.c.l.b16 %v263
    %v836 = vunpack.c.h.b16 %v263
    %v837 = vunpack.c.l.b16 %v264
    %v838 = vunpack.c.h.b16 %v264
    %v839 = vunpack.c.l.b16 %v265
    %v840 = vunpack.c.l.b16 %v266
    %v841 = vunpack.c.h.b16 %v266
    %v842 = vunpack.c.l.b16 %v267
    %v843 = vunpack.c.h.b16 %v267
    %v844 = vunpack.c.l.b16 %v268
    %v845 = vunpack.c.h.b16 %v268
    %v846 = vunpack.c.l.b16 %v269
    %v847 = vunpack.c.h.b16 %v269
    %v848 = vunpack.c.l.b16 %v270
    %v849 = vunpack.c.l.b16 %v271
    %v850 = vunpack.c.h.b16 %v271
    %v851 = vunpack.c.l.b16 %v272
    %v852 = vunpack.c.h.b16 %v272
    %v853 = vunpack.c.l.b16 %v273
    %v854 = vunpack.c.h.b16 %v273
    %v855 = vunpack.c.l.b16 %v274
    %v856 = vunpack.c.h.b16 %v274
    %v857 = vunpack.c.l.b16 %v275
    %v858 = vunpack.c.l.b16 %v276
    %v859 = vunpack.c.h.b16 %v276
    %v860 = vunpack.c.l.b16 %v277
    %v861 = vunpack.c.h.b16 %v277
    %v862 = vunpack.c.l.b16 %v278
    %v863 = vunpack.c.h.b16 %v278
    %v864 = vunpack.c.l.b16 %v279
    %v865 = vunpack.c.h.b16 %v279
    %v866 = vunpack.c.l.b16 %v280
    %v867 = vunpack.c.l.b16 %v281
    %v868 = vunpack.c.h.b16 %v281
    %v869 = vunpack.c.l.b16 %v282
    %v870 = vunpack.c.h.b16 %v282
    %v871 = vunpack.c.l.b16 %v283
    %v872 = vunpack.c.h.b16 %v283
    %v873 = vunpack.c.l.b16 %v284
    %v874 = vunpack.c.h.b16 %v284
    %v875 = vunpack.c.l.b16 %v285
    %v876 = vunpack.c.l.b16 %v286
    %v877 = vunpack.c.h.b16 %v286
    %v878 = vunpack.c.l.b16 %v287
    %v879 = vunpack.c.h.b16 %v287
    %v880 = vunpack.c.l.b16 %v288
    %v881 = vunpack.c.h.b16 %v288
    %v882 = vunpack.c.l.b16 %v289
    %v883 = vunpack.c.h.b16 %v289
    %v884 = vunpack.c.l.b16 %v290
    %v885 = vunpack.c.l.b16 %v291
    %v886 = vunpack.c.h.b16 %v291
    %v887 = vunpack.c.l.b16 %v292
    %v888 = vunpack.c.h.b16 %v292
    %v889 = vunpack.c.l.b16 %v293
    %v890 = vunpack.c.h.b16 %v293
    %v891 = vunpack.c.l.b16 %v294
    %v892 = vunpack.c.h.b16 %v294
    %v893 = vunpack.c.l.b16 %v295
    %v894 = vunpack.c.l.b16 %v296
    %v895 = vunpack.c.h.b16 %v296
    %v896 = vunpack.c.l.b16 %v297
    %v897 = vunpack.c.h.b16 %v297
    %v898 = vunpack.c.l.b16 %v298
    %v899 = vunpack.c.h.b16 %v298
    %v900 = vunpack.c.l.b16 %v299
    %v901 = vunpack.c.h.b16 %v299
    %v902 = vunpack.c.l.b16 %v300
    %v903 = vunpack.c.l.b16 %v301
    %v904 = vunpack.c.h.b16 %v301
    %v905 = vunpack.c.l.b16 %v302
    %v906 = vunpack.c.h.b16 %v302
    %v907 = vunpack.c.l.b16 %v303
    %v908 = vunpack.c.h.b16 %v303
    %v909 = vunpack.c.l.b16 %v304
    %v910 = vunpack.c.h.b16 %v304
    %v911 = vunpack.c.l.b16 %v305
    %v912 = vunpack.c.l.b16 %v306
    %v913 = vunpack.c.h.b16 %v306
    %v914 = vunpack.c.l.b16 %v307
    %v915 = vunpack.c.h.b16 %v307
    %v916 = vunpack.c.l.b16 %v308
    %v917 = vunpack.c.h.b16 %v308
    %v918 = vunpack.c.l.b16 %v309
    %v919 = vunpack.c.h.b16 %v309
    %v920 = vunpack.c.l.b16 %v310
    %v921 = vunpack.c.l.b16 %v311
    %v922 = vunpack.c.h.b16 %v311
    %v923 = vunpack.c.l.b16 %v312
    %v924 = vunpack.c.h.b16 %v312
    %v925 = vunpack.c.l.b16 %v313
    %v926 = vunpack.c.h.b16 %v313
    %v927 = vunpack.c.l.b16 %v314
    %v928 = vunpack.c.h.b16 %v314
    %v929 = vunpack.c.l.b16 %v315
    %v930 = vunpack.c.l.b16 %v316
    %v931 = vunpack.c.h.b16 %v316
    %v932 = vunpack.c.l.b16 %v317
    %v933 = vunpack.c.h.b16 %v317
    %v934 = vunpack.c.l.b16 %v318
    %v935 = vunpack.c.h.b16 %v318
    %v936 = vunpack.c.l.b16 %v319
    %v937 = vunpack.c.h.b16 %v319
    %v938 = vunpack.c.l.b16 %v320
    %v939 = vunpack.c.l.b16 %v321
    %v940 = vunpack.c.h.b16 %v321
    %v941 = vunpack.c.l.b16 %v322
    %v942 = vunpack.c.h.b16 %v322
    %v943 = vunpack.c.l.b16 %v323
    %v944 = vunpack.c.h.b16 %v323
    %v945 = vunpack.c.l.b16 %v324
    %v946 = vunpack.c.h.b16 %v324
    %v947 = vunpack.c.l.b16 %v325
    %v948 = vunpack.c.l.b16 %v326
    %v949 = vunpack.c.h.b16 %v326
    %v950 = vunpack.c.l.b16 %v327
    %v951 = vunpack.c.h.b16 %v327
    %v952 = vunpack.c.l.b16 %v328
    %v953 = vunpack.c.h.b16 %v328
    %v954 = vunpack.c.l.b16 %v329
    %v955 = vunpack.c.h.b16 %v329
    %v956 = vunpack.c.l.b16 %v330
    %v957 = vunpack.c.l.b16 %v331
    %v958 = vunpack.c.h.b16 %v331
    %v959 = vunpack.c.l.b16 %v332
    %v960 = vunpack.c.h.b16 %v332
    %v961 = vunpack.c.l.b16 %v333
    %v962 = vunpack.c.h.b16 %v333
    %v963 = vunpack.c.l.b16 %v334
    %v964 = vunpack.c.h.b16 %v334
    %v965 = vunpack.c.l.b16 %v335
    %v966 = vunpack.c.l.b16 %v336
    %v967 = vunpack.c.h.b16 %v336
    %v968 = vunpack.c.l.b16 %v337
    %v969 = vunpack.c.h.b16 %v337
    %v970 = vunpack.c.l.b16 %v338
    %v971 = vunpack.c.h.b16 %v338
    %v972 = vunpack.c.l.b16 %v339
    %v973 = vunpack.c.h.b16 %v339
    %v974 = vunpack.c.l.b16 %v340
    %v975 = vunpack.c.l.b16 %v341
    %v976 = vunpack.c.h.b16 %v341
    %v977 = vunpack.c.l.b16 %v342
    %v978 = vunpack.c.h.b16 %v342
    %v979 = vunpack.c.l.b16 %v343
    %v980 = vunpack.c.h.b16 %v343
    %v981 = vunpack.c.l.b16 %v344
    %v982 = vunpack.c.h.b16 %v344
    %v983 = vunpack.c.l.b16 %v345
    %v984 = vunpack.c.l.b16 %v346
    %v985 = vunpack.c.h.b16 %v346
    %v986 = vunpack.c.l.b16 %v347
    %v987 = vunpack.c.h.b16 %v347
    %v988 = vunpack.c.l.b16 %v348
    %v989 = vunpack.c.h.b16 %v348
    %v990 = vunpack.c.l.b16 %v349
    %v991 = vunpack.c.h.b16 %v349
    %v992 = vunpack.c.l.b16 %v350
    %v993 = vunpack.c.l.b16 %v351
    %v994 = vunpack.c.h.b16 %v351
    %v995 = vunpack.c.l.b16 %v352
    %v996 = vunpack.c.h.b16 %v352
    %v997 = vunpack.c.l.b16 %v353
    %v998 = vunpack.c.h.b16 %v353
    %v999 = vunpack.c.l.b16 %v354
    %v1000 = vunpack.c.h.b16 %v354
    %v1001 = vunpack.c.l.b16 %v355
    %v1002 = vunpack.c.l.b16 %v356
    %v1003 = vunpack.c.h.b16 %v356
    %v1004 = vunpack.c.l.b16 %v357
    %v1005 = vunpack.c.h.b16 %v357
    %v1006 = vunpack.c.l.b16 %v358
    %v1007 = vunpack.c.h.b16 %v358
    %v1008 = vunpack.c.l.b16 %v359
    %v1009 = vunpack.c.h.b16 %v359
    %v1010 = vunpack.c.l.b16 %v360
    %v1011 = vunpack.c.l.b16 %v361
    %v1012 = vunpack.c.h.b16 %v361
    %v1013 = vunpack.c.l.b16 %v362
    %v1014 = vunpack.c.h.b16 %v362
    %v1015 = vunpack.c.l.b16 %v363
    %v1016 = vunpack.c.h.b16 %v363
    %v1017 = vunpack.c.l.b16 %v364
    %v1018 = vunpack.c.h.b16 %v364
    %v1019 = vunpack.c.l.b16 %v365
    %v1020 = vunpack.c.l.b16 %v366
    %v1021 = vunpack.c.h.b16 %v366
    %v1022 = vunpack.c.l.b16 %v367
    %v1023 = vunpack.c.h.b16 %v367
    %v1024 = vunpack.c.l.b16 %v368
    %v1025 = vunpack.c.h.b16 %v368
    %v1026 = vunpack.c.l.b16 %v369
    %v1027 = vunpack.c.h.b16 %v369
    %v1028 = vunpack.c.l.b16 %v370
    %v1029 = vunpack.c.l.b16 %v371
    %v1030 = vunpack.c.h.b16 %v371
    %v1031 = vunpack.c.l.b16 %v372
    %v1032 = vunpack.c.h.b16 %v372
    %v1033 = vunpack.c.l.b16 %v373
    %v1034 = vunpack.c.h.b16 %v373
    %v1035 = vunpack.c.l.b16 %v374
    %v1036 = vunpack.c.h.b16 %v374
    %v1037 = vunpack.c.l.b16 %v375
    %v1038 = vunpack.c.l.b16 %v376
    %v1039 = vunpack.c.h.b16 %v376
    %v1040 = vunpack.c.l.b16 %v377
    %v1041 = vunpack.c.h.b16 %v377
    %v1042 = vunpack.c.l.b16 %v378
    %v1043 = vunpack.c.h.b16 %v378
    %v1044 = vunpack.c.l.b16 %v379
    %v1045 = vunpack.c.h.b16 %v379
    %v1046 = vunpack.c.l.b16 %v380
    %v1047 = vunpack.c.l.b16 %v381
    %v1048 = vunpack.c.h.b16 %v381
    %v1049 = vunpack.c.l.b16 %v382
    %v1050 = vunpack.c.h.b16 %v382
    %v1051 = vunpack.c.l.b16 %v383
    %v1052 = vunpack.c.h.b16 %v383
    %v1053 = vunpack.c.l.b16 %v384
    %v1054 = vunpack.c.h.b16 %v384
    %v1055 = vunpack.c.l.b16 %v385
    %v1056 = vunpack.c.l.b16 %v386
    %v1057 = vunpack.c.h.b16 %v386
    %v1058 = vunpack.c.l.b16 %v387
    %v1059 = vunpack.c.h.b16 %v387
    %v1060 = vunpack.c.l.b16 %v388
    %v1061 = vunpack.c.h.b16 %v388
    %v1062 = vunpack.c.l.b16 %v389
    %v1063 = vunpack.c.h.b16 %v389
    %v1064 = vunpack.c.l.b16 %v390
    %v1065 = vpack.c.b16 %v642, %v633
    %v1066 = vpack.c.b16 %v643, %v634
    %v1067 = vpack.c.b16 %v644, %v635
    %v1068 = vpack.c.b16 %v645, %v636
    %v1069 = vpack.c.b16 %v646, %v637
    %v1070 = vpack.c.b16 %v647, %v638
    %v1071 = vpack.c.b16 %v648, %v639
    %v1072 = vpack.c.b16 %v649, %v640
    %v1073 = vpack.c.b16 %v650, %v641
    %v1074 = vpack.c.b16 %v660, %v651
    %v1075 = vpack.c.b16 %v661, %v652
    %v1076 = vpack.c.b16 %v662, %v653
    %v1077 = vpack.c.b16 %v663, %v654
    %v1078 = vpack.c.b16 %v664, %v655
    %v1079 = vpack.c.b16 %v665, %v656
    %v1080 = vpack.c.b16 %v666, %v657
    %v1081 = vpack.c.b16 %v667, %v658
    %v1082 = vpack.c.b16 %v668, %v659
    %v1083 = vpack.c.b16 %v678, %v669
    %v1084 = vpack.c.b16 %v679, %v670
    %v1085 = vpack.c.b16 %v680, %v671
    %v1086 = vpack.c.b16 %v681, %v672
    %v1087 = vpack.c.b16 %v682, %v673
    %v1088 = vpack.c.b16 %v683, %v674
    %v1089 = vpack.c.b16 %v684, %v675
    %v1090 = vpack.c.b16 %v685, %v676
    %v1091 = vpack.c.b16 %v686, %v677
    %v1092 = vpack.c.b16 %v696, %v687
    %v1093 = vpack.c.b16 %v697, %v688
    %v1094 = vpack.c.b16 %v698, %v689
    %v1095 = vpack.c.b16 %v699, %v690
    %v1096 = vpack.c.b16 %v700, %v691
    %v1097 = vpack.c.b16 %v701, %v692
    %v1098 = vpack.c.b16 %v702, %v693
    %v1099 = vpack.c.b16 %v703, %v694
    %v1100 = vpack.c.b16 %v704, %v695
    %v1101 = vpack.c.b16 %v714, %v705
    %v1102 = vpack.c.b16 %v715, %v706
    %v1103 = vpack.c.b16 %v716, %v707
    %v1104 = vpack.c.b16 %v717, %v708
    %v1105 = vpack.c.b16 %v718, %v709
    %v1106 = vpack.c.b16 %v719, %v710
    %v1107 = vpack.c.b16 %v720, %v711
    %v1108 = vpack.c.b16 %v721, %v712
    %v1109 = vpack.c.b16 %v722, %v713
    %v1110 = vpack.c.b16 %v732, %v723
    %v1111 = vpack.c.b16 %v733, %v724
    %v1112 = vpack.c.b16 %v734, %v725
    %v1113 = vpack.c.b16 %v735, %v726
    %v1114 = vpack.c.b16 %v736, %v727
    %v1115 = vpack.c.b16 %v737, %v728
    %v1116 = vpack.c.b16 %v738, %v729
    %v1117 = vpack.c.b16 %v739, %v730
    %v1118 = vpack.c.b16 %v740, %v731
    %v1119 = vpack.c.b16 %v750, %v741
    %v1120 = vpack.c.b16 %v751, %v742
    %v1121 = vpack.c.b16 %v752, %v743
    %v1122 = vpack.c.b16 %v753, %v744
    %v1123 = vpack.c.b16 %v754, %v745
    %v1124 = vpack.c.b16 %v755, %v746
    %v1125 = vpack.c.b16 %v756, %v747
    %v1126 = vpack.c.b16 %v757, %v748
    %v1127 = vpack.c.b16 %v758, %v749
    %v1128 = vpack.c.b16 %v768, %v759
    %v1129 = vpack.c.b16 %v769, %v760
    %v1130 = vpack.c.b16 %v770, %v761
    %v1131 = vpack.c.b16 %v771, %v762
    %v1132 = vpack.c.b16 %v772, %v763
    %v1133 = vpack.c.b16 %v773, %v764
    %v1134 = vpack.c.b16 %v774, %v765
    %v1135 = vpack.c.b16 %v775, %v766
    %v1136 = vpack.c.b16 %v776, %v767
    %v1137 = vpack.c.b16 %v786, %v777
    %v1138 = vpack.c.b16 %v787, %v778
    %v1139 = vpack.c.b16 %v788, %v779
    %v1140 = vpack.c.b16 %v789, %v780
    %v1141 = vpack.c.b16 %v790, %v781
    %v1142 = vpack.c.b16 %v791, %v782
    %v1143 = vpack.c.b16 %v792, %v783
    %v1144 = vpack.c.b16 %v793, %v784
    %v1145 = vpack.c.b16 %v794, %v785
    %v1146 = vpack.c.b16 %v804, %v795
    %v1147 = vpack.c.b16 %v805, %v796
    %v1148 = vpack.c.b16 %v806, %v797
    %v1149 = vpack.c.b16 %v807, %v798
    %v1150 = vpack.c.b16 %v808, %v799
    %v1151 = vpack.c.b16 %v809, %v800
    %v1152 = vpack.c.b16 %v810, %v801
    %v1153 = vpack.c.b16 %v811, %v802
    %v1154 = vpack.c.b16 %v812, %v803
    %v1155 = vpack.c.b16 %v822, %v813
    %v1156 = vpack.c.b16 %v823, %v814
    %v1157 = vpack.c.b16 %v824, %v815
    %v1158 = vpack.c.b16 %v825, %v816
    %v1159 = vpack.c.b16 %v826, %v817
    %v1160 = vpack.c.b16 %v827, %v818
    %v1161 = vpack.c.b16 %v828, %v819
    %v1162 = vpack.c.b16 %v829, %v820
    %v1163 = vpack.c.b16 %v830, %v821
    %v1164 = vpack.c.b16 %v840, %v831
    %v1165 = vpack.c.b16 %v841, %v832
    %v1166 = vpack.c.b16 %v842, %v833
    %v1167 = vpack.c.b16 %v843, %v834
    %v1168 = vpack.c.b16 %v844, %v835
    %v1169 = vpack.c.b16 %v845, %v836
    %v1170 = vpack.c.b16 %v846, %v837
    %v1171 = vpack.c.b16 %v847, %v838
    %v1172 = vpack.c.b16 %v848, %v839
    %v1173 = vpack.c.b16 %v858, %v849
    %v1174 = vpack.c.b16 %v859, %v850
    %v1175 = vpack.c.b16 %v860, %v851
    %v1176 = vpack.c.b16 %v861, %v852
    %v1177 = vpack.c.b16 %v862, %v853
    %v1178 = vpack.c.b16 %v863, %v854
    %v1179 = vpack.c.b16 %v864, %v855
    %v1180 = vpack.c.b16 %v865, %v856
    %v1181 = vpack.c.b16 %v866, %v857
    %v1182 = vpack.c.b16 %v876, %v867
    %v1183 = vpack.c.b16 %v877, %v868
    %v1184 = vpack.c.b16 %v878, %v869
    %v1185 = vpack.c.b16 %v879, %v870
    %v1186 = vpack.c.b16 %v880, %v871
    %v1187 = vpack.c.b16 %v881, %v872
    %v1188 = vpack.c.b16 %v882, %v873
    %v1189 = vpack.c.b16 %v883, %v874
    %v1190 = vpack.c.b16 %v884, %v875
    %v1191 = vpack.c.b16 %v894, %v885
    %v1192 = vpack.c.b16 %v895, %v886
    %v1193 = vpack.c.b16 %v896, %v887
    %v1194 = vpack.c.b16 %v897, %v888
    %v1195 = vpack.c.b16 %v898, %v889
    %v1196 = vpack.c.b16 %v899, %v890
    %v1197 = vpack.c.b16 %v900, %v891
    %v1198 = vpack.c.b16 %v901, %v892
    %v1199 = vpack.c.b16 %v902, %v893
    %v1200 = vpack.c.b16 %v912, %v903
    %v1201 = vpack.c.b16 %v913, %v904
    %v1202 = vpack.c.b16 %v914, %v905
    %v1203 = vpack.c.b16 %v915, %v906
    %v1204 = vpack.c.b16 %v916, %v907
    %v1205 = vpack.c.b16 %v917, %v908
    %v1206 = vpack.c.b16 %v918, %v909
    %v1207 = vpack.c.b16 %v919, %v910
    %v1208 = vpack.c.b16 %v920, %v911
    %v1209 = vpack.c.b16 %v930, %v921
    %v1210 = vpack.c.b16 %v931, %v922
    %v1211 = vpack.c.b16 %v932, %v923
    %v1212 = vpack.c.b16 %v933, %v924
    %v1213 = vpack.c.b16 %v934, %v925
    %v1214 = vpack.c.b16 %v935, %v926
    %v1215 = vpack.c.b16 %v936, %v927
    %v1216 = vpack.c.b16 %v937, %v928
    %v1217 = vpack.c.b16 %v938, %v929
    %v1218 = vpack.c.b16 %v948, %v939
    %v1219 = vpack.c.b16 %v949, %v940
    %v1220 = vpack.c.b16 %v950, %v941
    %v1221 = vpack.c.b16 %v951, %v942
    %v1222 = vpack.c.b16 %v952, %v943
    %v1223 = vpack.c.b16 %v953, %v944
    %v1224 = vpack.c.b16 %v954, %v945
    %v1225 = vpack.c.b16 %v955, %v946
    %v1226 = vpack.c.b16 %v956, %v947
    %v1227 = vpack.c.b16 %v966, %v957
    %v1228 = vpack.c.b16 %v967, %v958
    %v1229 = vpack.c.b16 %v968, %v959
    %v1230 = vpack.c.b16 %v969, %v960
    %v1231 = vpack.c.b16 %v970, %v961
    %v1232 = vpack.c.b16 %v971, %v962
    %v1233 = vpack.c.b16 %v972, %v963
    %v1234 = vpack.c.b16 %v973, %v964
    %v1235 = vpack.c.b16 %v974, %v965
    %v1236 = vpack.c.b16 %v984, %v975
    %v1237 = vpack.c.b16 %v985, %v976
    %v1238 = vpack.c.b16 %v986, %v977
    %v1239 = vpack.c.b16 %v987, %v978
    %v1240 = vpack.c.b16 %v988, %v979
    %v1241 = vpack.c.b16 %v989, %v980
    %v1242 = vpack.c.b16 %v990, %v981
    %v1243 = vpack.c.b16 %v991, %v982
    %v1244 = vpack.c.b16 %v992, %v983
    %v1245 = vpack.c.b16 %v1002, %v993
    %v1246 = vpack.c.b16 %v1003, %v994
    %v1247 = vpack.c.b16 %v1004, %v995
    %v1248 = vpack.c.b16 %v1005, %v996
    %v1249 = vpack.c.b16 %v1006, %v997
    %v1250 = vpack.c.b16 %v1007, %v998
    %v1251 = vpack.c.b16 %v1008, %v999
    %v1252 = vpack.c.b16 %v1009, %v1000
    %v1253 = vpack.c.b16 %v1010, %v1001
    %v1254 = vpack.c.b16 %v1020, %v1011
    %v1255 = vpack.c.b16 %v1021, %v1012
    %v1256 = vpack.c.b16 %v1022, %v1013
    %v1257 = vpack.c.b16 %v1023, %v1014
    %v1258 = vpack.c.b16 %v1024, %v1015
    %v1259 = vpack.c.b16 %v1025, %v1016
    %v1260 = vpack.c.b16 %v1026, %v1017
    %v1261 = vpack.c.b16 %v1027, %v1018
    %v1262 = vpack.c.b16 %v1028, %v1019
    %v1263 = vpack.c.b16 %v1038, %v1029
    %v1264 = vpack.c.b16 %v1039, %v1030
    %v1265 = vpack.c.b16 %v1040, %v1031
    %v1266 = vpack.c.b16 %v1041, %v1032
    %v1267 = vpack.c.b16 %v1042, %v1033
    %v1268 = vpack.c.b16 %v1043, %v1034
    %v1269 = vpack.c.b16 %v1044, %v1035
    %v1270 = vpack.c.b16 %v1045, %v1036
    %v1271 = vpack.c.b16 %v1046, %v1037
    %v1272 = vpack.c.b16 %v1056, %v1047
    %v1273 = vpack.c.b16 %v1057, %v1048
    %v1274 = vpack.c.b16 %v1058, %v1049
    %v1275 = vpack.c.b16 %v1059, %v1050
    %v1276 = vpack.c.b16 %v1060, %v1051
    %v1277 = vpack.c.b16 %v1061, %v1052
    %v1278 = vpack.c.b16 %v1062, %v1053
    %v1279 = vpack.c.b16 %v1063, %v1054
    %v1280 = vpack.c.b16 %v1064, %v1055
    %v1499 = vlaneseq
    %v1500 = vshrl.u32 %v1499, 7
    %v1501 = vsub.s32 0, %v1500
    %v1502 = vrot.slane %v391, %v1501
    %v1503 = vlaneseq
    %v1504 = vshrl.u32 %v1503, 7
    %v1505 = vsub.s32 1, %v1504
    %v1506 = vrot.slane %v391, %v1505
    %v1507 = vlaneseq
    %v1508 = vshrl.u32 %v1507, 7
    %v1509 = vsub.s32 2, %v1508
    %v1510 = vrot.slane %v391, %v1509
    %v1511 = vlaneseq
    %v1512 = vshrl.u32 %v1511, 7
    %v1513 = vsub.s32 3, %v1512
    %v1514 = vrot.slane %v391, %v1513
    %v1515 = vlaneseq
    %v1516 = vshrl.u32 %v1515, 7
    %v1517 = vsub.s32 4, %v1516
    %v1518 = vrot.slane %v391, %v1517
    %v1519 = vlaneseq
    %v1520 = vshrl.u32 %v1519, 7
    %v1521 = vsub.s32 5, %v1520
    %v1522 = vrot.slane %v391, %v1521
    %v1523 = vlaneseq
    %v1524 = vshrl.u32 %v1523, 7
    %v1525 = vsub.s32 6, %v1524
    %v1526 = vrot.slane %v391, %v1525
    %v1527 = vlaneseq
    %v1528 = vshrl.u32 %v1527, 7
    %v1529 = vsub.s32 7, %v1528
    %v1530 = vrot.slane %v391, %v1529
    %v1531 = vlaneseq
    %v1532 = vshrl.u32 %v1531, 7
    %v1533 = vsub.s32 0, %v1532
    %v1534 = vrot.slane %v392, %v1533
    %1544 = vmatprep.subr.bf16.mxu0 %v1066
    %1545 = vmatpush1.bf16.msra.mxu0 %v1065
    %1546 = vmatprep.subr.bf16.mxu0 %v1075
    %1547 = vmatpush1.bf16.msra.mxu0 %v1074
    %1548 = vmatprep.subr.bf16.mxu0 %v1084
    %1549 = vmatpush1.bf16.msra.mxu0 %v1083
    %1550 = vmatprep.subr.bf16.mxu0 %v1093
    %1551 = vmatpush1.bf16.msra.mxu0 %v1092
    %1552 = vmatprep.subr.bf16.mxu0 %v1102
    %1553 = vmatpush1.bf16.msra.mxu0 %v1101
    %1554 = vmatprep.subr.bf16.mxu0 %v1111
    %1555 = vmatpush1.bf16.msra.mxu0 %v1110
    %1556 = vmatprep.subr.bf16.mxu0 %v1120
    %1557 = vmatpush1.bf16.msra.mxu0 %v1119
    %1558 = vmatprep.subr.bf16.mxu0 %v1129
    %1559 = vmatpush1.bf16.msra.mxu0 %v1128
    %1560 = vmatprep.subr.bf16.mxu0 %v1138
    %1561 = vmatpush1.bf16.msra.mxu0 %v1137
    %1562 = vmatprep.subr.bf16.mxu0 %v1147
    %1563 = vmatpush1.bf16.msra.mxu0 %v1146
    %1564 = vmatprep.subr.bf16.mxu0 %v1156
    %1565 = vmatpush1.bf16.msra.mxu0 %v1155
    %1566 = vmatprep.subr.bf16.mxu0 %v1165
    %1567 = vmatpush1.bf16.msra.mxu0 %v1164
    %1568 = vmatprep.subr.bf16.mxu0 %v1174
    %1569 = vmatpush1.bf16.msra.mxu0 %v1173
    %1570 = vmatprep.subr.bf16.mxu0 %v1183
    %1571 = vmatpush1.bf16.msra.mxu0 %v1182
    %1572 = vmatprep.subr.bf16.mxu0 %v1192
    %1573 = vmatpush1.bf16.msra.mxu0 %v1191
    %1574 = vmatprep.subr.bf16.mxu0 %v1201
    %1575 = vmatpush1.bf16.msra.mxu0 %v1200
    %1576 = vmatprep.mubr.bf16.mxu0 %v149
    %1577 = vmatmul.mubr.bf16.gmra.mrb[0].mxu0 %v148
    %v1578 = vpop.f32.mrb[0].mxu0
    %v1579 = vadd.f32 %v1502, %v1578
    %v1580 = vpop.f32.mrb[0].mxu0
    %v1581 = vadd.f32 %v1506, %v1580
    %v1582 = vpop.f32.mrb[0].mxu0
    %v1583 = vpop.f32.mrb[0].mxu0
    %1584 = vdwg.mxu0
    %1585 = vmatprep.subr.bf16.mxu0 %v1210
    %1586 = vmatpush1.bf16.msra.mxu0 %v1209
    %1587 = vmatprep.subr.bf16.mxu0 %v1219
    %1588 = vmatpush1.bf16.msra.mxu0 %v1218
    %1589 = vmatprep.subr.bf16.mxu0 %v1228
    %1590 = vmatpush1.bf16.msra.mxu0 %v1227
    %1591 = vmatprep.subr.bf16.mxu0 %v1237
    %1592 = vmatpush1.bf16.msra.mxu0 %v1236
    %1593 = vmatprep.subr.bf16.mxu0 %v1246
    %1594 = vmatpush1.bf16.msra.mxu0 %v1245
    %1595 = vmatprep.subr.bf16.mxu0 %v1255
    %1596 = vmatpush1.bf16.msra.mxu0 %v1254
    %1597 = vmatprep.subr.bf16.mxu0 %v1264
    %1598 = vmatpush1.bf16.msra.mxu0 %v1263
    %1599 = vmatprep.subr.bf16.mxu0 %v1273
    %1600 = vmatpush1.bf16.msra.mxu0 %v1272
    %1601 = vmatprep.subr.bf16.mxu0 0
    %1602 = vmatpush1.bf16.msra.mxu0 0
    %1603 = vmatprep.subr.bf16.mxu0 0
    %1604 = vmatpush1.bf16.msra.mxu0 0
    %1605 = vmatprep.subr.bf16.mxu0 0
    %1606 = vmatpush1.bf16.msra.mxu0 0
    %1607 = vmatprep.subr.bf16.mxu0 0
    %1608 = vmatpush1.bf16.msra.mxu0 0
    %1609 = vmatprep.subr.bf16.mxu0 0
    %1610 = vmatpush1.bf16.msra.mxu0 0
    %1611 = vmatprep.subr.bf16.mxu0 0
    %1612 = vmatpush1.bf16.msra.mxu0 0
    %1613 = vmatprep.subr.bf16.mxu0 0
    %1614 = vmatpush1.bf16.msra.mxu0 0
    %1615 = vmatprep.subr.bf16.mxu0 0
    %1616 = vmatpush1.bf16.msra.mxu0 0
    %1617 = vmatprep.mubr.bf16.mxu0 0
    %1618 = vmatmul.mubr.bf16.gmra.mrb[0].mxu0 %v150
    %v1619 = vpop.f32.mrb[0].mxu0
    %v1620 = vadd.f32 %v1579, %v1619
    %v1621 = vpop.f32.mrb[0].mxu0
    %v1622 = vadd.f32 %v1581, %v1621
    %v1623 = vpop.f32.mrb[0].mxu0
    %v1624 = vpop.f32.mrb[0].mxu0
    %1625 = vdwg.mxu0
    %1626 = vmatprep.subr.bf16.mxu0 %v1068
    %1627 = vmatpush1.bf16.msra.mxu0 %v1067
    %1628 = vmatprep.subr.bf16.mxu0 %v1077
    %1629 = vmatpush1.bf16.msra.mxu0 %v1076
    %1630 = vmatprep.subr.bf16.mxu0 %v1086
    %1631 = vmatpush1.bf16.msra.mxu0 %v1085
    %1632 = vmatprep.subr.bf16.mxu0 %v1095
    %1633 = vmatpush1.bf16.msra.mxu0 %v1094
    %1634 = vmatprep.subr.bf16.mxu0 %v1104
    %1635 = vmatpush1.bf16.msra.mxu0 %v1103
    %1636 = vmatprep.subr.bf16.mxu0 %v1113
    %1637 = vmatpush1.bf16.msra.mxu0 %v1112
    %1638 = vmatprep.subr.bf16.mxu0 %v1122
    %1639 = vmatpush1.bf16.msra.mxu0 %v1121
    %1640 = vmatprep.subr.bf16.mxu0 %v1131
    %1641 = vmatpush1.bf16.msra.mxu0 %v1130
    %1642 = vmatprep.subr.bf16.mxu0 %v1140
    %1643 = vmatpush1.bf16.msra.mxu0 %v1139
    %1644 = vmatprep.subr.bf16.mxu0 %v1149
    %1645 = vmatpush1.bf16.msra.mxu0 %v1148
    %1646 = vmatprep.subr.bf16.mxu0 %v1158
    %1647 = vmatpush1.bf16.msra.mxu0 %v1157
    %1648 = vmatprep.subr.bf16.mxu0 %v1167
    %1649 = vmatpush1.bf16.msra.mxu0 %v1166
    %1650 = vmatprep.subr.bf16.mxu0 %v1176
    %1651 = vmatpush1.bf16.msra.mxu0 %v1175
    %1652 = vmatprep.subr.bf16.mxu0 %v1185
    %1653 = vmatpush1.bf16.msra.mxu0 %v1184
    %1654 = vmatprep.subr.bf16.mxu0 %v1194
    %1655 = vmatpush1.bf16.msra.mxu0 %v1193
    %1656 = vmatprep.subr.bf16.mxu0 %v1203
    %1657 = vmatpush1.bf16.msra.mxu0 %v1202
    %1658 = vmatprep.mubr.bf16.mxu0 %v149
    %1659 = vmatmul.mubr.bf16.gmra.mrb[0].mxu0 %v148
    %v1660 = vpop.f32.mrb[0].mxu0
    %v1661 = vadd.f32 %v1510, %v1660
    %v1662 = vpop.f32.mrb[0].mxu0
    %v1663 = vadd.f32 %v1514, %v1662
    %v1664 = vpop.f32.mrb[0].mxu0
    %v1665 = vpop.f32.mrb[0].mxu0
    %1666 = vdwg.mxu0
    %1667 = vmatprep.subr.bf16.mxu0 %v1212
    %1668 = vmatpush1.bf16.msra.mxu0 %v1211
    %1669 = vmatprep.subr.bf16.mxu0 %v1221
    %1670 = vmatpush1.bf16.msra.mxu0 %v1220
    %1671 = vmatprep.subr.bf16.mxu0 %v1230
    %1672 = vmatpush1.bf16.msra.mxu0 %v1229
    %1673 = vmatprep.subr.bf16.mxu0 %v1239
    %1674 = vmatpush1.bf16.msra.mxu0 %v1238
    %1675 = vmatprep.subr.bf16.mxu0 %v1248
    %1676 = vmatpush1.bf16.msra.mxu0 %v1247
    %1677 = vmatprep.subr.bf16.mxu0 %v1257
    %1678 = vmatpush1.bf16.msra.mxu0 %v1256
    %1679 = vmatprep.subr.bf16.mxu0 %v1266
    %1680 = vmatpush1.bf16.msra.mxu0 %v1265
    %1681 = vmatprep.subr.bf16.mxu0 %v1275
    %1682 = vmatpush1.bf16.msra.mxu0 %v1274
    %1683 = vmatprep.subr.bf16.mxu0 0
    %1684 = vmatpush1.bf16.msra.mxu0 0
    %1685 = vmatprep.subr.bf16.mxu0 0
    %1686 = vmatpush1.bf16.msra.mxu0 0
    %1687 = vmatprep.subr.bf16.mxu0 0
    %1688 = vmatpush1.bf16.msra.mxu0 0
    %1689 = vmatprep.subr.bf16.mxu0 0
    %1690 = vmatpush1.bf16.msra.mxu0 0
    %1691 = vmatprep.subr.bf16.mxu0 0
    %1692 = vmatpush1.bf16.msra.mxu0 0
    %1693 = vmatprep.subr.bf16.mxu0 0
    %1694 = vmatpush1.bf16.msra.mxu0 0
    %1695 = vmatprep.subr.bf16.mxu0 0
    %1696 = vmatpush1.bf16.msra.mxu0 0
    %1697 = vmatprep.subr.bf16.mxu0 0
    %1698 = vmatpush1.bf16.msra.mxu0 0
    %1699 = vmatprep.mubr.bf16.mxu0 0
    %1700 = vmatmul.mubr.bf16.gmra.mrb[0].mxu0 %v150
    %v1701 = vpop.f32.mrb[0].mxu0
    %v1702 = vadd.f32 %v1661, %v1701
    %v1703 = vpop.f32.mrb[0].mxu0
    %v1704 = vadd.f32 %v1663, %v1703
    %v1705 = vpop.f32.mrb[0].mxu0
    %v1706 = vpop.f32.mrb[0].mxu0
    %1707 = vdwg.mxu0
    %1708 = vmatprep.subr.bf16.mxu0 %v1070
    %1709 = vmatpush1.bf16.msra.mxu0 %v1069
    %1710 = vmatprep.subr.bf16.mxu0 %v1079
    %1711 = vmatpush1.bf16.msra.mxu0 %v1078
    %1712 = vmatprep.subr.bf16.mxu0 %v1088
    %1713 = vmatpush1.bf16.msra.mxu0 %v1087
    %1714 = vmatprep.subr.bf16.mxu0 %v1097
    %1715 = vmatpush1.bf16.msra.mxu0 %v1096
    %1716 = vmatprep.subr.bf16.mxu0 %v1106
    %1717 = vmatpush1.bf16.msra.mxu0 %v1105
    %1718 = vmatprep.subr.bf16.mxu0 %v1115
    %1719 = vmatpush1.bf16.msra.mxu0 %v1114
    %1720 = vmatprep.subr.bf16.mxu0 %v1124
    %1721 = vmatpush1.bf16.msra.mxu0 %v1123
    %1722 = vmatprep.subr.bf16.mxu0 %v1133
    %1723 = vmatpush1.bf16.msra.mxu0 %v1132
    %1724 = vmatprep.subr.bf16.mxu0 %v1142
    %1725 = vmatpush1.bf16.msra.mxu0 %v1141
    %1726 = vmatprep.subr.bf16.mxu0 %v1151
    %1727 = vmatpush1.bf16.msra.mxu0 %v1150
    %1728 = vmatprep.subr.bf16.mxu0 %v1160
    %1729 = vmatpush1.bf16.msra.mxu0 %v1159
    %1730 = vmatprep.subr.bf16.mxu0 %v1169
    %1731 = vmatpush1.bf16.msra.mxu0 %v1168
    %1732 = vmatprep.subr.bf16.mxu0 %v1178
    %1733 = vmatpush1.bf16.msra.mxu0 %v1177
    %1734 = vmatprep.subr.bf16.mxu0 %v1187
    %1735 = vmatpush1.bf16.msra.mxu0 %v1186
    %1736 = vmatprep.subr.bf16.mxu0 %v1196
    %1737 = vmatpush1.bf16.msra.mxu0 %v1195
    %1738 = vmatprep.subr.bf16.mxu0 %v1205
    %1739 = vmatpush1.bf16.msra.mxu0 %v1204
    %1740 = vmatprep.mubr.bf16.mxu0 %v149
    %1741 = vmatmul.mubr.bf16.gmra.mrb[0].mxu0 %v148
    %v1742 = vpop.f32.mrb[0].mxu0
    %v1743 = vadd.f32 %v1518, %v1742
    %v1744 = vpop.f32.mrb[0].mxu0
    %v1745 = vadd.f32 %v1522, %v1744
    %v1746 = vpop.f32.mrb[0].mxu0
    %v1747 = vpop.f32.mrb[0].mxu0
    %1748 = vdwg.mxu0
    %1749 = vmatprep.subr.bf16.mxu0 %v1214
    %1750 = vmatpush1.bf16.msra.mxu0 %v1213
    %1751 = vmatprep.subr.bf16.mxu0 %v1223
    %1752 = vmatpush1.bf16.msra.mxu0 %v1222
    %1753 = vmatprep.subr.bf16.mxu0 %v1232
    %1754 = vmatpush1.bf16.msra.mxu0 %v1231
    %1755 = vmatprep.subr.bf16.mxu0 %v1241
    %1756 = vmatpush1.bf16.msra.mxu0 %v1240
    %1757 = vmatprep.subr.bf16.mxu0 %v1250
    %1758 = vmatpush1.bf16.msra.mxu0 %v1249
    %1759 = vmatprep.subr.bf16.mxu0 %v1259
    %1760 = vmatpush1.bf16.msra.mxu0 %v1258
    %1761 = vmatprep.subr.bf16.mxu0 %v1268
    %1762 = vmatpush1.bf16.msra.mxu0 %v1267
    %1763 = vmatprep.subr.bf16.mxu0 %v1277
    %1764 = vmatpush1.bf16.msra.mxu0 %v1276
    %1765 = vmatprep.subr.bf16.mxu0 0
    %1766 = vmatpush1.bf16.msra.mxu0 0
    %1767 = vmatprep.subr.bf16.mxu0 0
    %1768 = vmatpush1.bf16.msra.mxu0 0
    %1769 = vmatprep.subr.bf16.mxu0 0
    %1770 = vmatpush1.bf16.msra.mxu0 0
    %1771 = vmatprep.subr.bf16.mxu0 0
    %1772 = vmatpush1.bf16.msra.mxu0 0
    %1773 = vmatprep.subr.bf16.mxu0 0
    %1774 = vmatpush1.bf16.msra.mxu0 0
    %1775 = vmatprep.subr.bf16.mxu0 0
    %1776 = vmatpush1.bf16.msra.mxu0 0
    %1777 = vmatprep.subr.bf16.mxu0 0
    %1778 = vmatpush1.bf16.msra.mxu0 0
    %1779 = vmatprep.subr.bf16.mxu0 0
    %1780 = vmatpush1.bf16.msra.mxu0 0
    %1781 = vmatprep.mubr.bf16.mxu0 0
    %1782 = vmatmul.mubr.bf16.gmra.mrb[0].mxu0 %v150
    %v1783 = vpop.f32.mrb[0].mxu0
    %v1784 = vadd.f32 %v1743, %v1783
    %v1785 = vpop.f32.mrb[0].mxu0
    %v1786 = vadd.f32 %v1745, %v1785
    %v1787 = vpop.f32.mrb[0].mxu0
    %v1788 = vpop.f32.mrb[0].mxu0
    %1789 = vdwg.mxu0
    %1790 = vmatprep.subr.bf16.mxu0 %v1072
    %1791 = vmatpush1.bf16.msra.mxu0 %v1071
    %1792 = vmatprep.subr.bf16.mxu0 %v1081
    %1793 = vmatpush1.bf16.msra.mxu0 %v1080
    %1794 = vmatprep.subr.bf16.mxu0 %v1090
    %1795 = vmatpush1.bf16.msra.mxu0 %v1089
    %1796 = vmatprep.subr.bf16.mxu0 %v1099
    %1797 = vmatpush1.bf16.msra.mxu0 %v1098
    %1798 = vmatprep.subr.bf16.mxu0 %v1108
    %1799 = vmatpush1.bf16.msra.mxu0 %v1107
    %1800 = vmatprep.subr.bf16.mxu0 %v1117
    %1801 = vmatpush1.bf16.msra.mxu0 %v1116
    %1802 = vmatprep.subr.bf16.mxu0 %v1126
    %1803 = vmatpush1.bf16.msra.mxu0 %v1125
    %1804 = vmatprep.subr.bf16.mxu0 %v1135
    %1805 = vmatpush1.bf16.msra.mxu0 %v1134
    %1806 = vmatprep.subr.bf16.mxu0 %v1144
    %1807 = vmatpush1.bf16.msra.mxu0 %v1143
    %1808 = vmatprep.subr.bf16.mxu0 %v1153
    %1809 = vmatpush1.bf16.msra.mxu0 %v1152
    %1810 = vmatprep.subr.bf16.mxu0 %v1162
    %1811 = vmatpush1.bf16.msra.mxu0 %v1161
    %1812 = vmatprep.subr.bf16.mxu0 %v1171
    %1813 = vmatpush1.bf16.msra.mxu0 %v1170
    %1814 = vmatprep.subr.bf16.mxu0 %v1180
    %1815 = vmatpush1.bf16.msra.mxu0 %v1179
    %1816 = vmatprep.subr.bf16.mxu0 %v1189
    %1817 = vmatpush1.bf16.msra.mxu0 %v1188
    %1818 = vmatprep.subr.bf16.mxu0 %v1198
    %1819 = vmatpush1.bf16.msra.mxu0 %v1197
    %1820 = vmatprep.subr.bf16.mxu0 %v1207
    %1821 = vmatpush1.bf16.msra.mxu0 %v1206
    %1822 = vmatprep.mubr.bf16.mxu0 %v149
    %1823 = vmatmul.mubr.bf16.gmra.mrb[0].mxu0 %v148
    %v1824 = vpop.f32.mrb[0].mxu0
    %v1825 = vadd.f32 %v1526, %v1824
    %v1826 = vpop.f32.mrb[0].mxu0
    %v1827 = vadd.f32 %v1530, %v1826
    %v1828 = vpop.f32.mrb[0].mxu0
    %v1829 = vpop.f32.mrb[0].mxu0
    %1830 = vdwg.mxu0
    %1831 = vmatprep.subr.bf16.mxu0 %v1216
    %1832 = vmatpush1.bf16.msra.mxu0 %v1215
    %1833 = vmatprep.subr.bf16.mxu0 %v1225
    %1834 = vmatpush1.bf16.msra.mxu0 %v1224
    %1835 = vmatprep.subr.bf16.mxu0 %v1234
    %1836 = vmatpush1.bf16.msra.mxu0 %v1233
    %1837 = vmatprep.subr.bf16.mxu0 %v1243
    %1838 = vmatpush1.bf16.msra.mxu0 %v1242
    %1839 = vmatprep.subr.bf16.mxu0 %v1252
    %1840 = vmatpush1.bf16.msra.mxu0 %v1251
    %1841 = vmatprep.subr.bf16.mxu0 %v1261
    %1842 = vmatpush1.bf16.msra.mxu0 %v1260
    %1843 = vmatprep.subr.bf16.mxu0 %v1270
    %1844 = vmatpush1.bf16.msra.mxu0 %v1269
    %1845 = vmatprep.subr.bf16.mxu0 %v1279
    %1846 = vmatpush1.bf16.msra.mxu0 %v1278
    %1847 = vmatprep.subr.bf16.mxu0 0
    %1848 = vmatpush1.bf16.msra.mxu0 0
    %1849 = vmatprep.subr.bf16.mxu0 0
    %1850 = vmatpush1.bf16.msra.mxu0 0
    %1851 = vmatprep.subr.bf16.mxu0 0
    %1852 = vmatpush1.bf16.msra.mxu0 0
    %1853 = vmatprep.subr.bf16.mxu0 0
    %1854 = vmatpush1.bf16.msra.mxu0 0
    %1855 = vmatprep.subr.bf16.mxu0 0
    %1856 = vmatpush1.bf16.msra.mxu0 0
    %1857 = vmatprep.subr.bf16.mxu0 0
    %1858 = vmatpush1.bf16.msra.mxu0 0
    %1859 = vmatprep.subr.bf16.mxu0 0
    %1860 = vmatpush1.bf16.msra.mxu0 0
    %1861 = vmatprep.subr.bf16.mxu0 0
    %1862 = vmatpush1.bf16.msra.mxu0 0
    %1863 = vmatprep.mubr.bf16.mxu0 0
    %1864 = vmatmul.mubr.bf16.gmra.mrb[0].mxu0 %v150
    %v1865 = vpop.f32.mrb[0].mxu0
    %v1866 = vadd.f32 %v1825, %v1865
    %v1867 = vpop.f32.mrb[0].mxu0
    %v1868 = vadd.f32 %v1827, %v1867
    %v1869 = vpop.f32.mrb[0].mxu0
    %v1870 = vpop.f32.mrb[0].mxu0
    %1871 = vdwg.mxu0
    %1872 = vmatprep.subr.bf16.mxu0 0
    %1873 = vmatpush1.bf16.msra.mxu0 %v1073
    %1874 = vmatprep.subr.bf16.mxu0 0
    %1875 = vmatpush1.bf16.msra.mxu0 %v1082
    %1876 = vmatprep.subr.bf16.mxu0 0
    %1877 = vmatpush1.bf16.msra.mxu0 %v1091
    %1878 = vmatprep.subr.bf16.mxu0 0
    %1879 = vmatpush1.bf16.msra.mxu0 %v1100
    %1880 = vmatprep.subr.bf16.mxu0 0
    %1881 = vmatpush1.bf16.msra.mxu0 %v1109
    %1882 = vmatprep.subr.bf16.mxu0 0
    %1883 = vmatpush1.bf16.msra.mxu0 %v1118
    %1884 = vmatprep.subr.bf16.mxu0 0
    %1885 = vmatpush1.bf16.msra.mxu0 %v1127
    %1886 = vmatprep.subr.bf16.mxu0 0
    %1887 = vmatpush1.bf16.msra.mxu0 %v1136
    %1888 = vmatprep.subr.bf16.mxu0 0
    %1889 = vmatpush1.bf16.msra.mxu0 %v1145
    %1890 = vmatprep.subr.bf16.mxu0 0
    %1891 = vmatpush1.bf16.msra.mxu0 %v1154
    %1892 = vmatprep.subr.bf16.mxu0 0
    %1893 = vmatpush1.bf16.msra.mxu0 %v1163
    %1894 = vmatprep.subr.bf16.mxu0 0
    %1895 = vmatpush1.bf16.msra.mxu0 %v1172
    %1896 = vmatprep.subr.bf16.mxu0 0
    %1897 = vmatpush1.bf16.msra.mxu0 %v1181
    %1898 = vmatprep.subr.bf16.mxu0 0
    %1899 = vmatpush1.bf16.msra.mxu0 %v1190
    %1900 = vmatprep.subr.bf16.mxu0 0
    %1901 = vmatpush1.bf16.msra.mxu0 %v1199
    %1902 = vmatprep.subr.bf16.mxu0 0
    %1903 = vmatpush1.bf16.msra.mxu0 %v1208
    %1904 = vmatprep.mubr.bf16.mxu0 %v149
    %1905 = vmatmul.mubr.bf16.gmra.mrb[0].mxu0 %v148
    %v1906 = vpop.f32.mrb[0].mxu0
    %v1907 = vadd.f32 %v1534, %v1906
    %v1908 = vpop.f32.mrb[0].mxu0
    %v1909 = vpop.f32.mrb[0].mxu0
    %v1910 = vpop.f32.mrb[0].mxu0
    %1911 = vdwg.mxu0
    %1912 = vmatprep.subr.bf16.mxu0 0
    %1913 = vmatpush1.bf16.msra.mxu0 %v1217
    %1914 = vmatprep.subr.bf16.mxu0 0
    %1915 = vmatpush1.bf16.msra.mxu0 %v1226
    %1916 = vmatprep.subr.bf16.mxu0 0
    %1917 = vmatpush1.bf16.msra.mxu0 %v1235
    %1918 = vmatprep.subr.bf16.mxu0 0
    %1919 = vmatpush1.bf16.msra.mxu0 %v1244
    %1920 = vmatprep.subr.bf16.mxu0 0
    %1921 = vmatpush1.bf16.msra.mxu0 %v1253
    %1922 = vmatprep.subr.bf16.mxu0 0
    %1923 = vmatpush1.bf16.msra.mxu0 %v1262
    %1924 = vmatprep.subr.bf16.mxu0 0
    %1925 = vmatpush1.bf16.msra.mxu0 %v1271
    %1926 = vmatprep.subr.bf16.mxu0 0
    %1927 = vmatpush1.bf16.msra.mxu0 %v1280
    %1928 = vmatprep.subr.bf16.mxu0 0
    %1929 = vmatpush1.bf16.msra.mxu0 0
    %1930 = vmatprep.subr.bf16.mxu0 0
    %1931 = vmatpush1.bf16.msra.mxu0 0
    %1932 = vmatprep.subr.bf16.mxu0 0
    %1933 = vmatpush1.bf16.msra.mxu0 0
    %1934 = vmatprep.subr.bf16.mxu0 0
    %1935 = vmatpush1.bf16.msra.mxu0 0
    %1936 = vmatprep.subr.bf16.mxu0 0
    %1937 = vmatpush1.bf16.msra.mxu0 0
    %1938 = vmatprep.subr.bf16.mxu0 0
    %1939 = vmatpush1.bf16.msra.mxu0 0
    %1940 = vmatprep.subr.bf16.mxu0 0
    %1941 = vmatpush1.bf16.msra.mxu0 0
    %1942 = vmatprep.subr.bf16.mxu0 0
    %1943 = vmatpush1.bf16.msra.mxu0 0
    %1944 = vmatprep.mubr.bf16.mxu0 0
    %1945 = vmatmul.mubr.bf16.gmra.mrb[0].mxu0 %v150
    %v1946 = vpop.f32.mrb[0].mxu0
    %v1947 = vadd.f32 %v1907, %v1946
    %v1948 = vpop.f32.mrb[0].mxu0
    %v1949 = vpop.f32.mrb[0].mxu0
    %v1950 = vpop.f32.mrb[0].mxu0
    %1951 = vdwg.mxu0
    %s1952 = scalar_lea.vmem %s2, 1
    %v1953 = vld [vmem:[%s1952] ss:$4 sm:$0x7]
    %v1955 = vlaneseq
    %v1956 = vshrl.u32 %v1955, 7
    %v1957 = vsub.s32 0, %v1956
    %v1958 = vrot.slane %v1953, %v1957
    %v1959 = vlaneseq
    %v1960 = vshrl.u32 %v1959, 7
    %v1961 = vsub.s32 1, %v1960
    %v1962 = vrot.slane %v1953, %v1961
    %v1963 = vlaneseq
    %v1964 = vshrl.u32 %v1963, 7
    %v1965 = vsub.s32 2, %v1964
    %v1966 = vrot.slane %v1953, %v1965
    %v1970 = vpack.c.bf16 %v1958, %v1958
    %v1971 = vpack.c.bf16 %v1962, %v1962
    %v1972 = vpack.c.bf16 %v1966, %v1966
    %s1973 = scalar_lea.vmem [#allocation8], 1728
    %v1974 = vld [vmem:[%s1973] sm:$0xff]
    %v1975 = vld [vmem:[%s1973 + $0x8] sm:$0xff]
    %v1976 = vld [vmem:[%s1973 + $0x10] sm:$0xff]
    %v1977 = vld [vmem:[%s1973 + $0x18] sm:$0xff]
    %v1978 = vld [vmem:[%s1973 + $0x20] sm:$0xf]
    %v1979 = vld [vmem:[%s1973 + $0x24] sm:$0xff]
    %v1980 = vld [vmem:[%s1973 + $0x2c] sm:$0xff]
    %v1981 = vld [vmem:[%s1973 + $0x34] sm:$0xff]
    %v1982 = vld [vmem:[%s1973 + $0x3c] sm:$0xff]
    %v1983 = vld [vmem:[%s1973 + $0x44] sm:$0xf]
    %v1984 = vld [vmem:[%s1973 + $0x48] sm:$0xff]
    %v1985 = vld [vmem:[%s1973 + $0x50] sm:$0xff]
    %v1986 = vld [vmem:[%s1973 + $0x58] sm:$0xff]
    %v1987 = vld [vmem:[%s1973 + $0x60] sm:$0xff]
    %v1988 = vld [vmem:[%s1973 + $0x68] sm:$0xf]
    %v1989 = vld [vmem:[%s1973 + $0x6c] sm:$0xff]
    %v1990 = vld [vmem:[%s1973 + $0x74] sm:$0xff]
    %v1991 = vld [vmem:[%s1973 + $0x7c] sm:$0xff]
    %v1992 = vld [vmem:[%s1973 + $0x84] sm:$0xff]
    %v1993 = vld [vmem:[%s1973 + $0x8c] sm:$0xf]
    %v1994 = vld [vmem:[%s1973 + $0x90] sm:$0xff]
    %v1995 = vld [vmem:[%s1973 + $0x98] sm:$0xff]
    %v1996 = vld [vmem:[%s1973 + $0xa0] sm:$0xff]
    %v1997 = vld [vmem:[%s1973 + $0xa8] sm:$0xff]
    %v1998 = vld [vmem:[%s1973 + $0xb0] sm:$0xf]
    %v1999 = vld [vmem:[%s1973 + $0xb4] sm:$0xff]
    %v2000 = vld [vmem:[%s1973 + $0xbc] sm:$0xff]
    %v2001 = vld [vmem:[%s1973 + $0xc4] sm:$0xff]
    %v2002 = vld [vmem:[%s1973 + $0xcc] sm:$0xff]
    %v2003 = vld [vmem:[%s1973 + $0xd4] sm:$0xf]
    %v2004 = vld [vmem:[%s1973 + $0xd8] sm:$0xff]
    %v2005 = vld [vmem:[%s1973 + $0xe0] sm:$0xff]
    %v2006 = vld [vmem:[%s1973 + $0xe8] sm:$0xff]
    %v2007 = vld [vmem:[%s1973 + $0xf0] sm:$0xff]
    %v2008 = vld [vmem:[%s1973 + $0xf8] sm:$0xf]
    %v2009 = vld [vmem:[%s1973 + $0xfc] sm:$0xff]
    %v2010 = vld [vmem:[%s1973 + $0x104] sm:$0xff]
    %v2011 = vld [vmem:[%s1973 + $0x10c] sm:$0xff]
    %v2012 = vld [vmem:[%s1973 + $0x114] sm:$0xff]
    %v2013 = vld [vmem:[%s1973 + $0x11c] sm:$0xf]
    %v2014 = vld [vmem:[%s1973 + $0x120] sm:$0xff]
    %v2015 = vld [vmem:[%s1973 + $0x128] sm:$0xff]
    %v2016 = vld [vmem:[%s1973 + $0x130] sm:$0xff]
    %v2017 = vld [vmem:[%s1973 + $0x138] sm:$0xff]
    %v2018 = vld [vmem:[%s1973 + $0x140] sm:$0xf]
    %v2019 = vld [vmem:[%s1973 + $0x144] sm:$0xff]
    %v2020 = vld [vmem:[%s1973 + $0x14c] sm:$0xff]
    %v2021 = vld [vmem:[%s1973 + $0x154] sm:$0xff]
    %v2022 = vld [vmem:[%s1973 + $0x15c] sm:$0xff]
    %v2023 = vld [vmem:[%s1973 + $0x164] sm:$0xf]
    %v2024 = vld [vmem:[%s1973 + $0x168] sm:$0xff]
    %v2025 = vld [vmem:[%s1973 + $0x170] sm:$0xff]
    %v2026 = vld [vmem:[%s1973 + $0x178] sm:$0xff]
    %v2027 = vld [vmem:[%s1973 + $0x180] sm:$0xff]
    %v2028 = vld [vmem:[%s1973 + $0x188] sm:$0xf]
    %v2029 = vld [vmem:[%s1973 + $0x18c] sm:$0xff]
    %v2030 = vld [vmem:[%s1973 + $0x194] sm:$0xff]
    %v2031 = vld [vmem:[%s1973 + $0x19c] sm:$0xff]
    %v2032 = vld [vmem:[%s1973 + $0x1a4] sm:$0xff]
    %v2033 = vld [vmem:[%s1973 + $0x1ac] sm:$0xf]
    %v2034 = vld [vmem:[%s1973 + $0x1b0] sm:$0xff]
    %v2035 = vld [vmem:[%s1973 + $0x1b8] sm:$0xff]
    %v2036 = vld [vmem:[%s1973 + $0x1c0] sm:$0xff]
    %v2037 = vld [vmem:[%s1973 + $0x1c8] sm:$0xff]
    %v2038 = vld [vmem:[%s1973 + $0x1d0] sm:$0xf]
    %v2039 = vld [vmem:[%s1973 + $0x1d4] sm:$0xff]
    %v2040 = vld [vmem:[%s1973 + $0x1dc] sm:$0xff]
    %v2041 = vld [vmem:[%s1973 + $0x1e4] sm:$0xff]
    %v2042 = vld [vmem:[%s1973 + $0x1ec] sm:$0xff]
    %v2043 = vld [vmem:[%s1973 + $0x1f4] sm:$0xf]
    %v2044 = vld [vmem:[%s1973 + $0x1f8] sm:$0xff]
    %v2045 = vld [vmem:[%s1973 + $0x200] sm:$0xff]
    %v2046 = vld [vmem:[%s1973 + $0x208] sm:$0xff]
    %v2047 = vld [vmem:[%s1973 + $0x210] sm:$0xff]
    %v2048 = vld [vmem:[%s1973 + $0x218] sm:$0xf]
    %v2049 = vld [vmem:[%s1973 + $0x21c] sm:$0xff]
    %v2050 = vld [vmem:[%s1973 + $0x224] sm:$0xff]
    %v2051 = vld [vmem:[%s1973 + $0x22c] sm:$0xff]
    %v2052 = vld [vmem:[%s1973 + $0x234] sm:$0xff]
    %v2053 = vld [vmem:[%s1973 + $0x23c] sm:$0xf]
    %v2054 = vld [vmem:[%s1973 + $0x240] sm:$0xff]
    %v2055 = vld [vmem:[%s1973 + $0x248] sm:$0xff]
    %v2056 = vld [vmem:[%s1973 + $0x250] sm:$0xff]
    %v2057 = vld [vmem:[%s1973 + $0x258] sm:$0xff]
    %v2058 = vld [vmem:[%s1973 + $0x260] sm:$0xf]
    %v2059 = vld [vmem:[%s1973 + $0x264] sm:$0xff]
    %v2060 = vld [vmem:[%s1973 + $0x26c] sm:$0xff]
    %v2061 = vld [vmem:[%s1973 + $0x274] sm:$0xff]
    %v2062 = vld [vmem:[%s1973 + $0x27c] sm:$0xff]
    %v2063 = vld [vmem:[%s1973 + $0x284] sm:$0xf]
    %v2064 = vld [vmem:[%s1973 + $0x288] sm:$0xff]
    %v2065 = vld [vmem:[%s1973 + $0x290] sm:$0xff]
    %v2066 = vld [vmem:[%s1973 + $0x298] sm:$0xff]
    %v2067 = vld [vmem:[%s1973 + $0x2a0] sm:$0xff]
    %v2068 = vld [vmem:[%s1973 + $0x2a8] sm:$0xf]
    %v2069 = vld [vmem:[%s1973 + $0x2ac] sm:$0xff]
    %v2070 = vld [vmem:[%s1973 + $0x2b4] sm:$0xff]
    %v2071 = vld [vmem:[%s1973 + $0x2bc] sm:$0xff]
    %v2072 = vld [vmem:[%s1973 + $0x2c4] sm:$0xff]
    %v2073 = vld [vmem:[%s1973 + $0x2cc] sm:$0xf]
    %v2074 = vld [vmem:[%s1973 + $0x2d0] sm:$0xff]
    %v2075 = vld [vmem:[%s1973 + $0x2d8] sm:$0xff]
    %v2076 = vld [vmem:[%s1973 + $0x2e0] sm:$0xff]
    %v2077 = vld [vmem:[%s1973 + $0x2e8] sm:$0xff]
    %v2078 = vld [vmem:[%s1973 + $0x2f0] sm:$0xf]
    %v2079 = vld [vmem:[%s1973 + $0x2f4] sm:$0xff]
    %v2080 = vld [vmem:[%s1973 + $0x2fc] sm:$0xff]
    %v2081 = vld [vmem:[%s1973 + $0x304] sm:$0xff]
    %v2082 = vld [vmem:[%s1973 + $0x30c] sm:$0xff]
    %v2083 = vld [vmem:[%s1973 + $0x314] sm:$0xf]
    %v2084 = vld [vmem:[%s1973 + $0x318] sm:$0xff]
    %v2085 = vld [vmem:[%s1973 + $0x320] sm:$0xff]
    %v2086 = vld [vmem:[%s1973 + $0x328] sm:$0xff]
    %v2087 = vld [vmem:[%s1973 + $0x330] sm:$0xff]
    %v2088 = vld [vmem:[%s1973 + $0x338] sm:$0xf]
    %v2089 = vld [vmem:[%s1973 + $0x33c] sm:$0xff]
    %v2090 = vld [vmem:[%s1973 + $0x344] sm:$0xff]
    %v2091 = vld [vmem:[%s1973 + $0x34c] sm:$0xff]
    %v2092 = vld [vmem:[%s1973 + $0x354] sm:$0xff]
    %v2093 = vld [vmem:[%s1973 + $0x35c] sm:$0xf]
    %v2094 = vld [vmem:[%s1973 + $0x360] sm:$0xff]
    %v2095 = vld [vmem:[%s1973 + $0x368] sm:$0xff]
    %v2096 = vld [vmem:[%s1973 + $0x370] sm:$0xff]
    %v2097 = vld [vmem:[%s1973 + $0x378] sm:$0xff]
    %v2098 = vld [vmem:[%s1973 + $0x380] sm:$0xf]
    %v2099 = vld [vmem:[%s1973 + $0x384] sm:$0xff]
    %v2100 = vld [vmem:[%s1973 + $0x38c] sm:$0xff]
    %v2101 = vld [vmem:[%s1973 + $0x394] sm:$0xff]
    %v2102 = vld [vmem:[%s1973 + $0x39c] sm:$0xff]
    %v2103 = vld [vmem:[%s1973 + $0x3a4] sm:$0xf]
    %v2104 = vld [vmem:[%s1973 + $0x3a8] sm:$0xff]
    %v2105 = vld [vmem:[%s1973 + $0x3b0] sm:$0xff]
    %v2106 = vld [vmem:[%s1973 + $0x3b8] sm:$0xff]
    %v2107 = vld [vmem:[%s1973 + $0x3c0] sm:$0xff]
    %v2108 = vld [vmem:[%s1973 + $0x3c8] sm:$0xf]
    %v2109 = vld [vmem:[%s1973 + $0x3cc] sm:$0xff]
    %v2110 = vld [vmem:[%s1973 + $0x3d4] sm:$0xff]
    %v2111 = vld [vmem:[%s1973 + $0x3dc] sm:$0xff]
    %v2112 = vld [vmem:[%s1973 + $0x3e4] sm:$0xff]
    %v2113 = vld [vmem:[%s1973 + $0x3ec] sm:$0xf]
    %v2114 = vld [vmem:[%s1973 + $0x3f0] sm:$0xff]
    %v2115 = vld [vmem:[%s1973 + $0x3f8] sm:$0xff]
    %v2116 = vld [vmem:[%s1973 + $0x400] sm:$0xff]
    %v2117 = vld [vmem:[%s1973 + $0x408] sm:$0xff]
    %v2118 = vld [vmem:[%s1973 + $0x410] sm:$0xf]
    %v2119 = vld [vmem:[%s1973 + $0x414] sm:$0xff]
    %v2120 = vld [vmem:[%s1973 + $0x41c] sm:$0xff]
    %v2121 = vld [vmem:[%s1973 + $0x424] sm:$0xff]
    %v2122 = vld [vmem:[%s1973 + $0x42c] sm:$0xff]
    %v2123 = vld [vmem:[%s1973 + $0x434] sm:$0xf]
    %v2124 = vld [vmem:[%s1973 + $0x438] sm:$0xff]
    %v2125 = vld [vmem:[%s1973 + $0x440] sm:$0xff]
    %v2126 = vld [vmem:[%s1973 + $0x448] sm:$0xff]
    %v2127 = vld [vmem:[%s1973 + $0x450] sm:$0xff]
    %v2128 = vld [vmem:[%s1973 + $0x458] sm:$0xf]
    %v2129 = vld [vmem:[%s1973 + $0x45c] sm:$0xff]
    %v2130 = vld [vmem:[%s1973 + $0x464] sm:$0xff]
    %v2131 = vld [vmem:[%s1973 + $0x46c] sm:$0xff]
    %v2132 = vld [vmem:[%s1973 + $0x474] sm:$0xff]
    %v2133 = vld [vmem:[%s1973 + $0x47c] sm:$0xf]
    %v2134 = vld [vmem:[%s1973 + $0x480] sm:$0xff]
    %v2135 = vld [vmem:[%s1973 + $0x488] sm:$0xff]
    %v2136 = vld [vmem:[%s1973 + $0x490] sm:$0xff]
    %v2137 = vld [vmem:[%s1973 + $0x498] sm:$0xff]
    %v2138 = vld [vmem:[%s1973 + $0x4a0] sm:$0xf]
    %v2139 = vld [vmem:[%s1973 + $0x4a4] sm:$0xff]
    %v2140 = vld [vmem:[%s1973 + $0x4ac] sm:$0xff]
    %v2141 = vld [vmem:[%s1973 + $0x4b4] sm:$0xff]
    %v2142 = vld [vmem:[%s1973 + $0x4bc] sm:$0xff]
    %v2143 = vld [vmem:[%s1973 + $0x4c4] sm:$0xf]
    %v2144 = vld [vmem:[%s1973 + $0x4c8] sm:$0xff]
    %v2145 = vld [vmem:[%s1973 + $0x4d0] sm:$0xff]
    %v2146 = vld [vmem:[%s1973 + $0x4d8] sm:$0xff]
    %v2147 = vld [vmem:[%s1973 + $0x4e0] sm:$0xff]
    %v2148 = vld [vmem:[%s1973 + $0x4e8] sm:$0xf]
    %v2149 = vld [vmem:[%s1973 + $0x4ec] sm:$0xff]
    %v2150 = vld [vmem:[%s1973 + $0x4f4] sm:$0xff]
    %v2151 = vld [vmem:[%s1973 + $0x4fc] sm:$0xff]
    %v2152 = vld [vmem:[%s1973 + $0x504] sm:$0xff]
    %v2153 = vld [vmem:[%s1973 + $0x50c] sm:$0xf]
    %v2154 = vld [vmem:[%s1973 + $0x510] sm:$0xff]
    %v2155 = vld [vmem:[%s1973 + $0x518] sm:$0xff]
    %v2156 = vld [vmem:[%s1973 + $0x520] sm:$0xff]
    %v2157 = vld [vmem:[%s1973 + $0x528] sm:$0xff]
    %v2158 = vld [vmem:[%s1973 + $0x530] sm:$0xf]
    %v2159 = vld [vmem:[%s1973 + $0x534] sm:$0xff]
    %v2160 = vld [vmem:[%s1973 + $0x53c] sm:$0xff]
    %v2161 = vld [vmem:[%s1973 + $0x544] sm:$0xff]
    %v2162 = vld [vmem:[%s1973 + $0x54c] sm:$0xff]
    %v2163 = vld [vmem:[%s1973 + $0x554] sm:$0xf]
    %v2164 = vld [vmem:[%s1973 + $0x558] sm:$0xff]
    %v2165 = vld [vmem:[%s1973 + $0x560] sm:$0xff]
    %v2166 = vld [vmem:[%s1973 + $0x568] sm:$0xff]
    %v2167 = vld [vmem:[%s1973 + $0x570] sm:$0xff]
    %v2168 = vld [vmem:[%s1973 + $0x578] sm:$0xf]
    %v2169 = vld [vmem:[%s1973 + $0x57c] sm:$0xff]
    %v2170 = vld [vmem:[%s1973 + $0x584] sm:$0xff]
    %v2171 = vld [vmem:[%s1973 + $0x58c] sm:$0xff]
    %v2172 = vld [vmem:[%s1973 + $0x594] sm:$0xff]
    %v2173 = vld [vmem:[%s1973 + $0x59c] sm:$0xf]
    %v2174 = vld [vmem:[%s1973 + $0x5a0] sm:$0xff]
    %v2175 = vld [vmem:[%s1973 + $0x5a8] sm:$0xff]
    %v2176 = vld [vmem:[%s1973 + $0x5b0] sm:$0xff]
    %v2177 = vld [vmem:[%s1973 + $0x5b8] sm:$0xff]
    %v2178 = vld [vmem:[%s1973 + $0x5c0] sm:$0xf]
    %v2179 = vld [vmem:[%s1973 + $0x5c4] sm:$0xff]
    %v2180 = vld [vmem:[%s1973 + $0x5cc] sm:$0xff]
    %v2181 = vld [vmem:[%s1973 + $0x5d4] sm:$0xff]
    %v2182 = vld [vmem:[%s1973 + $0x5dc] sm:$0xff]
    %v2183 = vld [vmem:[%s1973 + $0x5e4] sm:$0xf]
    %v2184 = vld [vmem:[%s1973 + $0x5e8] sm:$0xff]
    %v2185 = vld [vmem:[%s1973 + $0x5f0] sm:$0xff]
    %v2186 = vld [vmem:[%s1973 + $0x5f8] sm:$0xff]
    %v2187 = vld [vmem:[%s1973 + $0x600] sm:$0xff]
    %v2188 = vld [vmem:[%s1973 + $0x608] sm:$0xf]
    %v2189 = vld [vmem:[%s1973 + $0x60c] sm:$0xff]
    %v2190 = vld [vmem:[%s1973 + $0x614] sm:$0xff]
    %v2191 = vld [vmem:[%s1973 + $0x61c] sm:$0xff]
    %v2192 = vld [vmem:[%s1973 + $0x624] sm:$0xff]
    %v2193 = vld [vmem:[%s1973 + $0x62c] sm:$0xf]
    %v2194 = vld [vmem:[%s1973 + $0x630] sm:$0xff]
    %v2195 = vld [vmem:[%s1973 + $0x638] sm:$0xff]
    %v2196 = vld [vmem:[%s1973 + $0x640] sm:$0xff]
    %v2197 = vld [vmem:[%s1973 + $0x648] sm:$0xff]
    %v2198 = vld [vmem:[%s1973 + $0x650] sm:$0xf]
    %v2199 = vld [vmem:[%s1973 + $0x654] sm:$0xff]
    %v2200 = vld [vmem:[%s1973 + $0x65c] sm:$0xff]
    %v2201 = vld [vmem:[%s1973 + $0x664] sm:$0xff]
    %v2202 = vld [vmem:[%s1973 + $0x66c] sm:$0xff]
    %v2203 = vld [vmem:[%s1973 + $0x674] sm:$0xf]
    %v2204 = vld [vmem:[%s1973 + $0x678] sm:$0xff]
    %v2205 = vld [vmem:[%s1973 + $0x680] sm:$0xff]
    %v2206 = vld [vmem:[%s1973 + $0x688] sm:$0xff]
    %v2207 = vld [vmem:[%s1973 + $0x690] sm:$0xff]
    %v2208 = vld [vmem:[%s1973 + $0x698] sm:$0xf]
    %v2209 = vld [vmem:[%s1973 + $0x69c] sm:$0xff]
    %v2210 = vld [vmem:[%s1973 + $0x6a4] sm:$0xff]
    %v2211 = vld [vmem:[%s1973 + $0x6ac] sm:$0xff]
    %v2212 = vld [vmem:[%s1973 + $0x6b4] sm:$0xff]
    %v2213 = vld [vmem:[%s1973 + $0x6bc] sm:$0xf]
    %s2214 = scalar_lea.vmem [#allocation11], 9
    %v2215 = vld [vmem:[%s2214] sm:$0xff]
    %v2216 = vld [vmem:[%s2214 + $0x8] sm:$0x1]
    %v2457 = vunpack.c.l.b16 %v1974
    %v2458 = vunpack.c.h.b16 %v1974
    %v2459 = vunpack.c.l.b16 %v1975
    %v2460 = vunpack.c.h.b16 %v1975
    %v2461 = vunpack.c.l.b16 %v1976
    %v2462 = vunpack.c.h.b16 %v1976
    %v2463 = vunpack.c.l.b16 %v1977
    %v2464 = vunpack.c.h.b16 %v1977
    %v2465 = vunpack.c.l.b16 %v1978
    %v2466 = vunpack.c.l.b16 %v1979
    %v2467 = vunpack.c.h.b16 %v1979
    %v2468 = vunpack.c.l.b16 %v1980
    %v2469 = vunpack.c.h.b16 %v1980
    %v2470 = vunpack.c.l.b16 %v1981
    %v2471 = vunpack.c.h.b16 %v1981
    %v2472 = vunpack.c.l.b16 %v1982
    %v2473 = vunpack.c.h.b16 %v1982
    %v2474 = vunpack.c.l.b16 %v1983
    %v2475 = vunpack.c.l.b16 %v1984
    %v2476 = vunpack.c.h.b16 %v1984
    %v2477 = vunpack.c.l.b16 %v1985
    %v2478 = vunpack.c.h.b16 %v1985
    %v2479 = vunpack.c.l.b16 %v1986
    %v2480 = vunpack.c.h.b16 %v1986
    %v2481 = vunpack.c.l.b16 %v1987
    %v2482 = vunpack.c.h.b16 %v1987
    %v2483 = vunpack.c.l.b16 %v1988
    %v2484 = vunpack.c.l.b16 %v1989
    %v2485 = vunpack.c.h.b16 %v1989
    %v2486 = vunpack.c.l.b16 %v1990
    %v2487 = vunpack.c.h.b16 %v1990
    %v2488 = vunpack.c.l.b16 %v1991
    %v2489 = vunpack.c.h.b16 %v1991
    %v2490 = vunpack.c.l.b16 %v1992
    %v2491 = vunpack.c.h.b16 %v1992
    %v2492 = vunpack.c.l.b16 %v1993
    %v2493 = vunpack.c.l.b16 %v1994
    %v2494 = vunpack.c.h.b16 %v1994
    %v2495 = vunpack.c.l.b16 %v1995
    %v2496 = vunpack.c.h.b16 %v1995
    %v2497 = vunpack.c.l.b16 %v1996
    %v2498 = vunpack.c.h.b16 %v1996
    %v2499 = vunpack.c.l.b16 %v1997
    %v2500 = vunpack.c.h.b16 %v1997
    %v2501 = vunpack.c.l.b16 %v1998
    %v2502 = vunpack.c.l.b16 %v1999
    %v2503 = vunpack.c.h.b16 %v1999
    %v2504 = vunpack.c.l.b16 %v2000
    %v2505 = vunpack.c.h.b16 %v2000
    %v2506 = vunpack.c.l.b16 %v2001
    %v2507 = vunpack.c.h.b16 %v2001
    %v2508 = vunpack.c.l.b16 %v2002
    %v2509 = vunpack.c.h.b16 %v2002
    %v2510 = vunpack.c.l.b16 %v2003
    %v2511 = vunpack.c.l.b16 %v2004
    %v2512 = vunpack.c.h.b16 %v2004
    %v2513 = vunpack.c.l.b16 %v2005
    %v2514 = vunpack.c.h.b16 %v2005
    %v2515 = vunpack.c.l.b16 %v2006
    %v2516 = vunpack.c.h.b16 %v2006
    %v2517 = vunpack.c.l.b16 %v2007
    %v2518 = vunpack.c.h.b16 %v2007
    %v2519 = vunpack.c.l.b16 %v2008
    %v2520 = vunpack.c.l.b16 %v2009
    %v2521 = vunpack.c.h.b16 %v2009
    %v2522 = vunpack.c.l.b16 %v2010
    %v2523 = vunpack.c.h.b16 %v2010
    %v2524 = vunpack.c.l.b16 %v2011
    %v2525 = vunpack.c.h.b16 %v2011
    %v2526 = vunpack.c.l.b16 %v2012
    %v2527 = vunpack.c.h.b16 %v2012
    %v2528 = vunpack.c.l.b16 %v2013
    %v2529 = vunpack.c.l.b16 %v2014
    %v2530 = vunpack.c.h.b16 %v2014
    %v2531 = vunpack.c.l.b16 %v2015
    %v2532 = vunpack.c.h.b16 %v2015
    %v2533 = vunpack.c.l.b16 %v2016
    %v2534 = vunpack.c.h.b16 %v2016
    %v2535 = vunpack.c.l.b16 %v2017
    %v2536 = vunpack.c.h.b16 %v2017
    %v2537 = vunpack.c.l.b16 %v2018
    %v2538 = vunpack.c.l.b16 %v2019
    %v2539 = vunpack.c.h.b16 %v2019
    %v2540 = vunpack.c.l.b16 %v2020
    %v2541 = vunpack.c.h.b16 %v2020
    %v2542 = vunpack.c.l.b16 %v2021
    %v2543 = vunpack.c.h.b16 %v2021
    %v2544 = vunpack.c.l.b16 %v2022
    %v2545 = vunpack.c.h.b16 %v2022
    %v2546 = vunpack.c.l.b16 %v2023
    %v2547 = vunpack.c.l.b16 %v2024
    %v2548 = vunpack.c.h.b16 %v2024
    %v2549 = vunpack.c.l.b16 %v2025
    %v2550 = vunpack.c.h.b16 %v2025
    %v2551 = vunpack.c.l.b16 %v2026
    %v2552 = vunpack.c.h.b16 %v2026
    %v2553 = vunpack.c.l.b16 %v2027
    %v2554 = vunpack.c.h.b16 %v2027
    %v2555 = vunpack.c.l.b16 %v2028
    %v2556 = vunpack.c.l.b16 %v2029
    %v2557 = vunpack.c.h.b16 %v2029
    %v2558 = vunpack.c.l.b16 %v2030
    %v2559 = vunpack.c.h.b16 %v2030
    %v2560 = vunpack.c.l.b16 %v2031
    %v2561 = vunpack.c.h.b16 %v2031
    %v2562 = vunpack.c.l.b16 %v2032
    %v2563 = vunpack.c.h.b16 %v2032
    %v2564 = vunpack.c.l.b16 %v2033
    %v2565 = vunpack.c.l.b16 %v2034
    %v2566 = vunpack.c.h.b16 %v2034
    %v2567 = vunpack.c.l.b16 %v2035
    %v2568 = vunpack.c.h.b16 %v2035
    %v2569 = vunpack.c.l.b16 %v2036
    %v2570 = vunpack.c.h.b16 %v2036
    %v2571 = vunpack.c.l.b16 %v2037
    %v2572 = vunpack.c.h.b16 %v2037
    %v2573 = vunpack.c.l.b16 %v2038
    %v2574 = vunpack.c.l.b16 %v2039
    %v2575 = vunpack.c.h.b16 %v2039
    %v2576 = vunpack.c.l.b16 %v2040
    %v2577 = vunpack.c.h.b16 %v2040
    %v2578 = vunpack.c.l.b16 %v2041
    %v2579 = vunpack.c.h.b16 %v2041
    %v2580 = vunpack.c.l.b16 %v2042
    %v2581 = vunpack.c.h.b16 %v2042
    %v2582 = vunpack.c.l.b16 %v2043
    %v2583 = vunpack.c.l.b16 %v2044
    %v2584 = vunpack.c.h.b16 %v2044
    %v2585 = vunpack.c.l.b16 %v2045
    %v2586 = vunpack.c.h.b16 %v2045
    %v2587 = vunpack.c.l.b16 %v2046
    %v2588 = vunpack.c.h.b16 %v2046
    %v2589 = vunpack.c.l.b16 %v2047
    %v2590 = vunpack.c.h.b16 %v2047
    %v2591 = vunpack.c.l.b16 %v2048
    %v2592 = vunpack.c.l.b16 %v2049
    %v2593 = vunpack.c.h.b16 %v2049
    %v2594 = vunpack.c.l.b16 %v2050
    %v2595 = vunpack.c.h.b16 %v2050
    %v2596 = vunpack.c.l.b16 %v2051
    %v2597 = vunpack.c.h.b16 %v2051
    %v2598 = vunpack.c.l.b16 %v2052
    %v2599 = vunpack.c.h.b16 %v2052
    %v2600 = vunpack.c.l.b16 %v2053
    %v2601 = vunpack.c.l.b16 %v2054
    %v2602 = vunpack.c.h.b16 %v2054
    %v2603 = vunpack.c.l.b16 %v2055
    %v2604 = vunpack.c.h.b16 %v2055
    %v2605 = vunpack.c.l.b16 %v2056
    %v2606 = vunpack.c.h.b16 %v2056
    %v2607 = vunpack.c.l.b16 %v2057
    %v2608 = vunpack.c.h.b16 %v2057
    %v2609 = vunpack.c.l.b16 %v2058
    %v2610 = vunpack.c.l.b16 %v2059
    %v2611 = vunpack.c.h.b16 %v2059
    %v2612 = vunpack.c.l.b16 %v2060
    %v2613 = vunpack.c.h.b16 %v2060
    %v2614 = vunpack.c.l.b16 %v2061
    %v2615 = vunpack.c.h.b16 %v2061
    %v2616 = vunpack.c.l.b16 %v2062
    %v2617 = vunpack.c.h.b16 %v2062
    %v2618 = vunpack.c.l.b16 %v2063
    %v2619 = vunpack.c.l.b16 %v2064
    %v2620 = vunpack.c.h.b16 %v2064
    %v2621 = vunpack.c.l.b16 %v2065
    %v2622 = vunpack.c.h.b16 %v2065
    %v2623 = vunpack.c.l.b16 %v2066
    %v2624 = vunpack.c.h.b16 %v2066
    %v2625 = vunpack.c.l.b16 %v2067
    %v2626 = vunpack.c.h.b16 %v2067
    %v2627 = vunpack.c.l.b16 %v2068
    %v2628 = vunpack.c.l.b16 %v2069
    %v2629 = vunpack.c.h.b16 %v2069
    %v2630 = vunpack.c.l.b16 %v2070
    %v2631 = vunpack.c.h.b16 %v2070
    %v2632 = vunpack.c.l.b16 %v2071
    %v2633 = vunpack.c.h.b16 %v2071
    %v2634 = vunpack.c.l.b16 %v2072
    %v2635 = vunpack.c.h.b16 %v2072
    %v2636 = vunpack.c.l.b16 %v2073
    %v2637 = vunpack.c.l.b16 %v2074
    %v2638 = vunpack.c.h.b16 %v2074
    %v2639 = vunpack.c.l.b16 %v2075
    %v2640 = vunpack.c.h.b16 %v2075
    %v2641 = vunpack.c.l.b16 %v2076
    %v2642 = vunpack.c.h.b16 %v2076
    %v2643 = vunpack.c.l.b16 %v2077
    %v2644 = vunpack.c.h.b16 %v2077
    %v2645 = vunpack.c.l.b16 %v2078
    %v2646 = vunpack.c.l.b16 %v2079
    %v2647 = vunpack.c.h.b16 %v2079
    %v2648 = vunpack.c.l.b16 %v2080
    %v2649 = vunpack.c.h.b16 %v2080
    %v2650 = vunpack.c.l.b16 %v2081
    %v2651 = vunpack.c.h.b16 %v2081
    %v2652 = vunpack.c.l.b16 %v2082
    %v2653 = vunpack.c.h.b16 %v2082
    %v2654 = vunpack.c.l.b16 %v2083
    %v2655 = vunpack.c.l.b16 %v2084
    %v2656 = vunpack.c.h.b16 %v2084
    %v2657 = vunpack.c.l.b16 %v2085
    %v2658 = vunpack.c.h.b16 %v2085
    %v2659 = vunpack.c.l.b16 %v2086
    %v2660 = vunpack.c.h.b16 %v2086
    %v2661 = vunpack.c.l.b16 %v2087
    %v2662 = vunpack.c.h.b16 %v2087
    %v2663 = vunpack.c.l.b16 %v2088
    %v2664 = vunpack.c.l.b16 %v2089
    %v2665 = vunpack.c.h.b16 %v2089
    %v2666 = vunpack.c.l.b16 %v2090
    %v2667 = vunpack.c.h.b16 %v2090
    %v2668 = vunpack.c.l.b16 %v2091
    %v2669 = vunpack.c.h.b16 %v2091
    %v2670 = vunpack.c.l.b16 %v2092
    %v2671 = vunpack.c.h.b16 %v2092
    %v2672 = vunpack.c.l.b16 %v2093
    %v2673 = vunpack.c.l.b16 %v2094
    %v2674 = vunpack.c.h.b16 %v2094
    %v2675 = vunpack.c.l.b16 %v2095
    %v2676 = vunpack.c.h.b16 %v2095
    %v2677 = vunpack.c.l.b16 %v2096
    %v2678 = vunpack.c.h.b16 %v2096
    %v2679 = vunpack.c.l.b16 %v2097
    %v2680 = vunpack.c.h.b16 %v2097
    %v2681 = vunpack.c.l.b16 %v2098
    %v2682 = vunpack.c.l.b16 %v2099
    %v2683 = vunpack.c.h.b16 %v2099
    %v2684 = vunpack.c.l.b16 %v2100
    %v2685 = vunpack.c.h.b16 %v2100
    %v2686 = vunpack.c.l.b16 %v2101
    %v2687 = vunpack.c.h.b16 %v2101
    %v2688 = vunpack.c.l.b16 %v2102
    %v2689 = vunpack.c.h.b16 %v2102
    %v2690 = vunpack.c.l.b16 %v2103
    %v2691 = vunpack.c.l.b16 %v2104
    %v2692 = vunpack.c.h.b16 %v2104
    %v2693 = vunpack.c.l.b16 %v2105
    %v2694 = vunpack.c.h.b16 %v2105
    %v2695 = vunpack.c.l.b16 %v2106
    %v2696 = vunpack.c.h.b16 %v2106
    %v2697 = vunpack.c.l.b16 %v2107
    %v2698 = vunpack.c.h.b16 %v2107
    %v2699 = vunpack.c.l.b16 %v2108
    %v2700 = vunpack.c.l.b16 %v2109
    %v2701 = vunpack.c.h.b16 %v2109
    %v2702 = vunpack.c.l.b16 %v2110
    %v2703 = vunpack.c.h.b16 %v2110
    %v2704 = vunpack.c.l.b16 %v2111
    %v2705 = vunpack.c.h.b16 %v2111
    %v2706 = vunpack.c.l.b16 %v2112
    %v2707 = vunpack.c.h.b16 %v2112
    %v2708 = vunpack.c.l.b16 %v2113
    %v2709 = vunpack.c.l.b16 %v2114
    %v2710 = vunpack.c.h.b16 %v2114
    %v2711 = vunpack.c.l.b16 %v2115
    %v2712 = vunpack.c.h.b16 %v2115
    %v2713 = vunpack.c.l.b16 %v2116
    %v2714 = vunpack.c.h.b16 %v2116
    %v2715 = vunpack.c.l.b16 %v2117
    %v2716 = vunpack.c.h.b16 %v2117
    %v2717 = vunpack.c.l.b16 %v2118
    %v2718 = vunpack.c.l.b16 %v2119
    %v2719 = vunpack.c.h.b16 %v2119
    %v2720 = vunpack.c.l.b16 %v2120
    %v2721 = vunpack.c.h.b16 %v2120
    %v2722 = vunpack.c.l.b16 %v2121
    %v2723 = vunpack.c.h.b16 %v2121
    %v2724 = vunpack.c.l.b16 %v2122
    %v2725 = vunpack.c.h.b16 %v2122
    %v2726 = vunpack.c.l.b16 %v2123
    %v2727 = vunpack.c.l.b16 %v2124
    %v2728 = vunpack.c.h.b16 %v2124
    %v2729 = vunpack.c.l.b16 %v2125
    %v2730 = vunpack.c.h.b16 %v2125
    %v2731 = vunpack.c.l.b16 %v2126
    %v2732 = vunpack.c.h.b16 %v2126
    %v2733 = vunpack.c.l.b16 %v2127
    %v2734 = vunpack.c.h.b16 %v2127
    %v2735 = vunpack.c.l.b16 %v2128
    %v2736 = vunpack.c.l.b16 %v2129
    %v2737 = vunpack.c.h.b16 %v2129
    %v2738 = vunpack.c.l.b16 %v2130
    %v2739 = vunpack.c.h.b16 %v2130
    %v2740 = vunpack.c.l.b16 %v2131
    %v2741 = vunpack.c.h.b16 %v2131
    %v2742 = vunpack.c.l.b16 %v2132
    %v2743 = vunpack.c.h.b16 %v2132
    %v2744 = vunpack.c.l.b16 %v2133
    %v2745 = vunpack.c.l.b16 %v2134
    %v2746 = vunpack.c.h.b16 %v2134
    %v2747 = vunpack.c.l.b16 %v2135
    %v2748 = vunpack.c.h.b16 %v2135
    %v2749 = vunpack.c.l.b16 %v2136
    %v2750 = vunpack.c.h.b16 %v2136
    %v2751 = vunpack.c.l.b16 %v2137
    %v2752 = vunpack.c.h.b16 %v2137
    %v2753 = vunpack.c.l.b16 %v2138
    %v2754 = vunpack.c.l.b16 %v2139
    %v2755 = vunpack.c.h.b16 %v2139
    %v2756 = vunpack.c.l.b16 %v2140
    %v2757 = vunpack.c.h.b16 %v2140
    %v2758 = vunpack.c.l.b16 %v2141
    %v2759 = vunpack.c.h.b16 %v2141
    %v2760 = vunpack.c.l.b16 %v2142
    %v2761 = vunpack.c.h.b16 %v2142
    %v2762 = vunpack.c.l.b16 %v2143
    %v2763 = vunpack.c.l.b16 %v2144
    %v2764 = vunpack.c.h.b16 %v2144
    %v2765 = vunpack.c.l.b16 %v2145
    %v2766 = vunpack.c.h.b16 %v2145
    %v2767 = vunpack.c.l.b16 %v2146
    %v2768 = vunpack.c.h.b16 %v2146
    %v2769 = vunpack.c.l.b16 %v2147
    %v2770 = vunpack.c.h.b16 %v2147
    %v2771 = vunpack.c.l.b16 %v2148
    %v2772 = vunpack.c.l.b16 %v2149
    %v2773 = vunpack.c.h.b16 %v2149
    %v2774 = vunpack.c.l.b16 %v2150
    %v2775 = vunpack.c.h.b16 %v2150
    %v2776 = vunpack.c.l.b16 %v2151
    %v2777 = vunpack.c.h.b16 %v2151
    %v2778 = vunpack.c.l.b16 %v2152
    %v2779 = vunpack.c.h.b16 %v2152
    %v2780 = vunpack.c.l.b16 %v2153
    %v2781 = vunpack.c.l.b16 %v2154
    %v2782 = vunpack.c.h.b16 %v2154
    %v2783 = vunpack.c.l.b16 %v2155
    %v2784 = vunpack.c.h.b16 %v2155
    %v2785 = vunpack.c.l.b16 %v2156
    %v2786 = vunpack.c.h.b16 %v2156
    %v2787 = vunpack.c.l.b16 %v2157
    %v2788 = vunpack.c.h.b16 %v2157
    %v2789 = vunpack.c.l.b16 %v2158
    %v2790 = vunpack.c.l.b16 %v2159
    %v2791 = vunpack.c.h.b16 %v2159
    %v2792 = vunpack.c.l.b16 %v2160
    %v2793 = vunpack.c.h.b16 %v2160
    %v2794 = vunpack.c.l.b16 %v2161
    %v2795 = vunpack.c.h.b16 %v2161
    %v2796 = vunpack.c.l.b16 %v2162
    %v2797 = vunpack.c.h.b16 %v2162
    %v2798 = vunpack.c.l.b16 %v2163
    %v2799 = vunpack.c.l.b16 %v2164
    %v2800 = vunpack.c.h.b16 %v2164
    %v2801 = vunpack.c.l.b16 %v2165
    %v2802 = vunpack.c.h.b16 %v2165
    %v2803 = vunpack.c.l.b16 %v2166
    %v2804 = vunpack.c.h.b16 %v2166
    %v2805 = vunpack.c.l.b16 %v2167
    %v2806 = vunpack.c.h.b16 %v2167
    %v2807 = vunpack.c.l.b16 %v2168
    %v2808 = vunpack.c.l.b16 %v2169
    %v2809 = vunpack.c.h.b16 %v2169
    %v2810 = vunpack.c.l.b16 %v2170
    %v2811 = vunpack.c.h.b16 %v2170
    %v2812 = vunpack.c.l.b16 %v2171
    %v2813 = vunpack.c.h.b16 %v2171
    %v2814 = vunpack.c.l.b16 %v2172
    %v2815 = vunpack.c.h.b16 %v2172
    %v2816 = vunpack.c.l.b16 %v2173
    %v2817 = vunpack.c.l.b16 %v2174
    %v2818 = vunpack.c.h.b16 %v2174
    %v2819 = vunpack.c.l.b16 %v2175
    %v2820 = vunpack.c.h.b16 %v2175
    %v2821 = vunpack.c.l.b16 %v2176
    %v2822 = vunpack.c.h.b16 %v2176
    %v2823 = vunpack.c.l.b16 %v2177
    %v2824 = vunpack.c.h.b16 %v2177
    %v2825 = vunpack.c.l.b16 %v2178
    %v2826 = vunpack.c.l.b16 %v2179
    %v2827 = vunpack.c.h.b16 %v2179
    %v2828 = vunpack.c.l.b16 %v2180
    %v2829 = vunpack.c.h.b16 %v2180
    %v2830 = vunpack.c.l.b16 %v2181
    %v2831 = vunpack.c.h.b16 %v2181
    %v2832 = vunpack.c.l.b16 %v2182
    %v2833 = vunpack.c.h.b16 %v2182
    %v2834 = vunpack.c.l.b16 %v2183
    %v2835 = vunpack.c.l.b16 %v2184
    %v2836 = vunpack.c.h.b16 %v2184
    %v2837 = vunpack.c.l.b16 %v2185
    %v2838 = vunpack.c.h.b16 %v2185
    %v2839 = vunpack.c.l.b16 %v2186
    %v2840 = vunpack.c.h.b16 %v2186
    %v2841 = vunpack.c.l.b16 %v2187
    %v2842 = vunpack.c.h.b16 %v2187
    %v2843 = vunpack.c.l.b16 %v2188
    %v2844 = vunpack.c.l.b16 %v2189
    %v2845 = vunpack.c.h.b16 %v2189
    %v2846 = vunpack.c.l.b16 %v2190
    %v2847 = vunpack.c.h.b16 %v2190
    %v2848 = vunpack.c.l.b16 %v2191
    %v2849 = vunpack.c.h.b16 %v2191
    %v2850 = vunpack.c.l.b16 %v2192
    %v2851 = vunpack.c.h.b16 %v2192
    %v2852 = vunpack.c.l.b16 %v2193
    %v2853 = vunpack.c.l.b16 %v2194
    %v2854 = vunpack.c.h.b16 %v2194
    %v2855 = vunpack.c.l.b16 %v2195
    %v2856 = vunpack.c.h.b16 %v2195
    %v2857 = vunpack.c.l.b16 %v2196
    %v2858 = vunpack.c.h.b16 %v2196
    %v2859 = vunpack.c.l.b16 %v2197
    %v2860 = vunpack.c.h.b16 %v2197
    %v2861 = vunpack.c.l.b16 %v2198
    %v2862 = vunpack.c.l.b16 %v2199
    %v2863 = vunpack.c.h.b16 %v2199
    %v2864 = vunpack.c.l.b16 %v2200
    %v2865 = vunpack.c.h.b16 %v2200
    %v2866 = vunpack.c.l.b16 %v2201
    %v2867 = vunpack.c.h.b16 %v2201
    %v2868 = vunpack.c.l.b16 %v2202
    %v2869 = vunpack.c.h.b16 %v2202
    %v2870 = vunpack.c.l.b16 %v2203
    %v2871 = vunpack.c.l.b16 %v2204
    %v2872 = vunpack.c.h.b16 %v2204
    %v2873 = vunpack.c.l.b16 %v2205
    %v2874 = vunpack.c.h.b16 %v2205
    %v2875 = vunpack.c.l.b16 %v2206
    %v2876 = vunpack.c.h.b16 %v2206
    %v2877 = vunpack.c.l.b16 %v2207
    %v2878 = vunpack.c.h.b16 %v2207
    %v2879 = vunpack.c.l.b16 %v2208
    %v2880 = vunpack.c.l.b16 %v2209
    %v2881 = vunpack.c.h.b16 %v2209
    %v2882 = vunpack.c.l.b16 %v2210
    %v2883 = vunpack.c.h.b16 %v2210
    %v2884 = vunpack.c.l.b16 %v2211
    %v2885 = vunpack.c.h.b16 %v2211
    %v2886 = vunpack.c.l.b16 %v2212
    %v2887 = vunpack.c.h.b16 %v2212
    %v2888 = vunpack.c.l.b16 %v2213
    %v2889 = vpack.c.b16 %v2466, %v2457
    %v2890 = vpack.c.b16 %v2467, %v2458
    %v2891 = vpack.c.b16 %v2468, %v2459
    %v2892 = vpack.c.b16 %v2469, %v2460
    %v2893 = vpack.c.b16 %v2470, %v2461
    %v2894 = vpack.c.b16 %v2471, %v2462
    %v2895 = vpack.c.b16 %v2472, %v2463
    %v2896 = vpack.c.b16 %v2473, %v2464
    %v2897 = vpack.c.b16 %v2474, %v2465
    %v2898 = vpack.c.b16 %v2484, %v2475
    %v2899 = vpack.c.b16 %v2485, %v2476
    %v2900 = vpack.c.b16 %v2486, %v2477
    %v2901 = vpack.c.b16 %v2487, %v2478
    %v2902 = vpack.c.b16 %v2488, %v2479
    %v2903 = vpack.c.b16 %v2489, %v2480
    %v2904 = vpack.c.b16 %v2490, %v2481
    %v2905 = vpack.c.b16 %v2491, %v2482
    %v2906 = vpack.c.b16 %v2492, %v2483
    %v2907 = vpack.c.b16 %v2502, %v2493
    %v2908 = vpack.c.b16 %v2503, %v2494
    %v2909 = vpack.c.b16 %v2504, %v2495
    %v2910 = vpack.c.b16 %v2505, %v2496
    %v2911 = vpack.c.b16 %v2506, %v2497
    %v2912 = vpack.c.b16 %v2507, %v2498
    %v2913 = vpack.c.b16 %v2508, %v2499
    %v2914 = vpack.c.b16 %v2509, %v2500
    %v2915 = vpack.c.b16 %v2510, %v2501
    %v2916 = vpack.c.b16 %v2520, %v2511
    %v2917 = vpack.c.b16 %v2521, %v2512
    %v2918 = vpack.c.b16 %v2522, %v2513
    %v2919 = vpack.c.b16 %v2523, %v2514
    %v2920 = vpack.c.b16 %v2524, %v2515
    %v2921 = vpack.c.b16 %v2525, %v2516
    %v2922 = vpack.c.b16 %v2526, %v2517
    %v2923 = vpack.c.b16 %v2527, %v2518
    %v2924 = vpack.c.b16 %v2528, %v2519
    %v2925 = vpack.c.b16 %v2538, %v2529
    %v2926 = vpack.c.b16 %v2539, %v2530
    %v2927 = vpack.c.b16 %v2540, %v2531
    %v2928 = vpack.c.b16 %v2541, %v2532
    %v2929 = vpack.c.b16 %v2542, %v2533
    %v2930 = vpack.c.b16 %v2543, %v2534
    %v2931 = vpack.c.b16 %v2544, %v2535
    %v2932 = vpack.c.b16 %v2545, %v2536
    %v2933 = vpack.c.b16 %v2546, %v2537
    %v2934 = vpack.c.b16 %v2556, %v2547
    %v2935 = vpack.c.b16 %v2557, %v2548
    %v2936 = vpack.c.b16 %v2558, %v2549
    %v2937 = vpack.c.b16 %v2559, %v2550
    %v2938 = vpack.c.b16 %v2560, %v2551
    %v2939 = vpack.c.b16 %v2561, %v2552
    %v2940 = vpack.c.b16 %v2562, %v2553
    %v2941 = vpack.c.b16 %v2563, %v2554
    %v2942 = vpack.c.b16 %v2564, %v2555
    %v2943 = vpack.c.b16 %v2574, %v2565
    %v2944 = vpack.c.b16 %v2575, %v2566
    %v2945 = vpack.c.b16 %v2576, %v2567
    %v2946 = vpack.c.b16 %v2577, %v2568
    %v2947 = vpack.c.b16 %v2578, %v2569
    %v2948 = vpack.c.b16 %v2579, %v2570
    %v2949 = vpack.c.b16 %v2580, %v2571
    %v2950 = vpack.c.b16 %v2581, %v2572
    %v2951 = vpack.c.b16 %v2582, %v2573
    %v2952 = vpack.c.b16 %v2592, %v2583
    %v2953 = vpack.c.b16 %v2593, %v2584
    %v2954 = vpack.c.b16 %v2594, %v2585
    %v2955 = vpack.c.b16 %v2595, %v2586
    %v2956 = vpack.c.b16 %v2596, %v2587
    %v2957 = vpack.c.b16 %v2597, %v2588
    %v2958 = vpack.c.b16 %v2598, %v2589
    %v2959 = vpack.c.b16 %v2599, %v2590
    %v2960 = vpack.c.b16 %v2600, %v2591
    %v2961 = vpack.c.b16 %v2610, %v2601
    %v2962 = vpack.c.b16 %v2611, %v2602
    %v2963 = vpack.c.b16 %v2612, %v2603
    %v2964 = vpack.c.b16 %v2613, %v2604
    %v2965 = vpack.c.b16 %v2614, %v2605
    %v2966 = vpack.c.b16 %v2615, %v2606
    %v2967 = vpack.c.b16 %v2616, %v2607
    %v2968 = vpack.c.b16 %v2617, %v2608
    %v2969 = vpack.c.b16 %v2618, %v2609
    %v2970 = vpack.c.b16 %v2628, %v2619
    %v2971 = vpack.c.b16 %v2629, %v2620
    %v2972 = vpack.c.b16 %v2630, %v2621
    %v2973 = vpack.c.b16 %v2631, %v2622
    %v2974 = vpack.c.b16 %v2632, %v2623
    %v2975 = vpack.c.b16 %v2633, %v2624
    %v2976 = vpack.c.b16 %v2634, %v2625
    %v2977 = vpack.c.b16 %v2635, %v2626
    %v2978 = vpack.c.b16 %v2636, %v2627
    %v2979 = vpack.c.b16 %v2646, %v2637
    %v2980 = vpack.c.b16 %v2647, %v2638
    %v2981 = vpack.c.b16 %v2648, %v2639
    %v2982 = vpack.c.b16 %v2649, %v2640
    %v2983 = vpack.c.b16 %v2650, %v2641
    %v2984 = vpack.c.b16 %v2651, %v2642
    %v2985 = vpack.c.b16 %v2652, %v2643
    %v2986 = vpack.c.b16 %v2653, %v2644
    %v2987 = vpack.c.b16 %v2654, %v2645
    %v2988 = vpack.c.b16 %v2664, %v2655
    %v2989 = vpack.c.b16 %v2665, %v2656
    %v2990 = vpack.c.b16 %v2666, %v2657
    %v2991 = vpack.c.b16 %v2667, %v2658
    %v2992 = vpack.c.b16 %v2668, %v2659
    %v2993 = vpack.c.b16 %v2669, %v2660
    %v2994 = vpack.c.b16 %v2670, %v2661
    %v2995 = vpack.c.b16 %v2671, %v2662
    %v2996 = vpack.c.b16 %v2672, %v2663
    %v2997 = vpack.c.b16 %v2682, %v2673
    %v2998 = vpack.c.b16 %v2683, %v2674
    %v2999 = vpack.c.b16 %v2684, %v2675
    %v3000 = vpack.c.b16 %v2685, %v2676
    %v3001 = vpack.c.b16 %v2686, %v2677
    %v3002 = vpack.c.b16 %v2687, %v2678
    %v3003 = vpack.c.b16 %v2688, %v2679
    %v3004 = vpack.c.b16 %v2689, %v2680
    %v3005 = vpack.c.b16 %v2690, %v2681
    %v3006 = vpack.c.b16 %v2700, %v2691
    %v3007 = vpack.c.b16 %v2701, %v2692
    %v3008 = vpack.c.b16 %v2702, %v2693
    %v3009 = vpack.c.b16 %v2703, %v2694
    %v3010 = vpack.c.b16 %v2704, %v2695
    %v3011 = vpack.c.b16 %v2705, %v2696
    %v3012 = vpack.c.b16 %v2706, %v2697
    %v3013 = vpack.c.b16 %v2707, %v2698
    %v3014 = vpack.c.b16 %v2708, %v2699
    %v3015 = vpack.c.b16 %v2718, %v2709
    %v3016 = vpack.c.b16 %v2719, %v2710
    %v3017 = vpack.c.b16 %v2720, %v2711
    %v3018 = vpack.c.b16 %v2721, %v2712
    %v3019 = vpack.c.b16 %v2722, %v2713
    %v3020 = vpack.c.b16 %v2723, %v2714
    %v3021 = vpack.c.b16 %v2724, %v2715
    %v3022 = vpack.c.b16 %v2725, %v2716
    %v3023 = vpack.c.b16 %v2726, %v2717
    %v3024 = vpack.c.b16 %v2736, %v2727
    %v3025 = vpack.c.b16 %v2737, %v2728
    %v3026 = vpack.c.b16 %v2738, %v2729
    %v3027 = vpack.c.b16 %v2739, %v2730
    %v3028 = vpack.c.b16 %v2740, %v2731
    %v3029 = vpack.c.b16 %v2741, %v2732
    %v3030 = vpack.c.b16 %v2742, %v2733
    %v3031 = vpack.c.b16 %v2743, %v2734
    %v3032 = vpack.c.b16 %v2744, %v2735
    %v3033 = vpack.c.b16 %v2754, %v2745
    %v3034 = vpack.c.b16 %v2755, %v2746
    %v3035 = vpack.c.b16 %v2756, %v2747
    %v3036 = vpack.c.b16 %v2757, %v2748
    %v3037 = vpack.c.b16 %v2758, %v2749
    %v3038 = vpack.c.b16 %v2759, %v2750
    %v3039 = vpack.c.b16 %v2760, %v2751
    %v3040 = vpack.c.b16 %v2761, %v2752
    %v3041 = vpack.c.b16 %v2762, %v2753
    %v3042 = vpack.c.b16 %v2772, %v2763
    %v3043 = vpack.c.b16 %v2773, %v2764
    %v3044 = vpack.c.b16 %v2774, %v2765
    %v3045 = vpack.c.b16 %v2775, %v2766
    %v3046 = vpack.c.b16 %v2776, %v2767
    %v3047 = vpack.c.b16 %v2777, %v2768
    %v3048 = vpack.c.b16 %v2778, %v2769
    %v3049 = vpack.c.b16 %v2779, %v2770
    %v3050 = vpack.c.b16 %v2780, %v2771
    %v3051 = vpack.c.b16 %v2790, %v2781
    %v3052 = vpack.c.b16 %v2791, %v2782
    %v3053 = vpack.c.b16 %v2792, %v2783
    %v3054 = vpack.c.b16 %v2793, %v2784
    %v3055 = vpack.c.b16 %v2794, %v2785
    %v3056 = vpack.c.b16 %v2795, %v2786
    %v3057 = vpack.c.b16 %v2796, %v2787
    %v3058 = vpack.c.b16 %v2797, %v2788
    %v3059 = vpack.c.b16 %v2798, %v2789
    %v3060 = vpack.c.b16 %v2808, %v2799
    %v3061 = vpack.c.b16 %v2809, %v2800
    %v3062 = vpack.c.b16 %v2810, %v2801
    %v3063 = vpack.c.b16 %v2811, %v2802
    %v3064 = vpack.c.b16 %v2812, %v2803
    %v3065 = vpack.c.b16 %v2813, %v2804
    %v3066 = vpack.c.b16 %v2814, %v2805
    %v3067 = vpack.c.b16 %v2815, %v2806
    %v3068 = vpack.c.b16 %v2816, %v2807
    %v3069 = vpack.c.b16 %v2826, %v2817
    %v3070 = vpack.c.b16 %v2827, %v2818
    %v3071 = vpack.c.b16 %v2828, %v2819
    %v3072 = vpack.c.b16 %v2829, %v2820
    %v3073 = vpack.c.b16 %v2830, %v2821
    %v3074 = vpack.c.b16 %v2831, %v2822
    %v3075 = vpack.c.b16 %v2832, %v2823
    %v3076 = vpack.c.b16 %v2833, %v2824
    %v3077 = vpack.c.b16 %v2834, %v2825
    %v3078 = vpack.c.b16 %v2844, %v2835
    %v3079 = vpack.c.b16 %v2845, %v2836
    %v3080 = vpack.c.b16 %v2846, %v2837
    %v3081 = vpack.c.b16 %v2847, %v2838
    %v3082 = vpack.c.b16 %v2848, %v2839
    %v3083 = vpack.c.b16 %v2849, %v2840
    %v3084 = vpack.c.b16 %v2850, %v2841
    %v3085 = vpack.c.b16 %v2851, %v2842
    %v3086 = vpack.c.b16 %v2852, %v2843
    %v3087 = vpack.c.b16 %v2862, %v2853
    %v3088 = vpack.c.b16 %v2863, %v2854
    %v3089 = vpack.c.b16 %v2864, %v2855
    %v3090 = vpack.c.b16 %v2865, %v2856
    %v3091 = vpack.c.b16 %v2866, %v2857
    %v3092 = vpack.c.b16 %v2867, %v2858
    %v3093 = vpack.c.b16 %v2868, %v2859
    %v3094 = vpack.c.b16 %v2869, %v2860
    %v3095 = vpack.c.b16 %v2870, %v2861
    %v3096 = vpack.c.b16 %v2880, %v2871
    %v3097 = vpack.c.b16 %v2881, %v2872
    %v3098 = vpack.c.b16 %v2882, %v2873
    %v3099 = vpack.c.b16 %v2883, %v2874
    %v3100 = vpack.c.b16 %v2884, %v2875
    %v3101 = vpack.c.b16 %v2885, %v2876
    %v3102 = vpack.c.b16 %v2886, %v2877
    %v3103 = vpack.c.b16 %v2887, %v2878
    %v3104 = vpack.c.b16 %v2888, %v2879
    %v3323 = vlaneseq
    %v3324 = vshrl.u32 %v3323, 7
    %v3325 = vsub.s32 0, %v3324
    %v3326 = vrot.slane %v2215, %v3325
    %v3327 = vlaneseq
    %v3328 = vshrl.u32 %v3327, 7
    %v3329 = vsub.s32 1, %v3328
    %v3330 = vrot.slane %v2215, %v3329
    %v3331 = vlaneseq
    %v3332 = vshrl.u32 %v3331, 7
    %v3333 = vsub.s32 2, %v3332
    %v3334 = vrot.slane %v2215, %v3333
    %v3335 = vlaneseq
    %v3336 = vshrl.u32 %v3335, 7
    %v3337 = vsub.s32 3, %v3336
    %v3338 = vrot.slane %v2215, %v3337
    %v3339 = vlaneseq
    %v3340 = vshrl.u32 %v3339, 7
    %v3341 = vsub.s32 4, %v3340
    %v3342 = vrot.slane %v2215, %v3341
    %v3343 = vlaneseq
    %v3344 = vshrl.u32 %v3343, 7
    %v3345 = vsub.s32 5, %v3344
    %v3346 = vrot.slane %v2215, %v3345
    %v3347 = vlaneseq
    %v3348 = vshrl.u32 %v3347, 7
    %v3349 = vsub.s32 6, %v3348
    %v3350 = vrot.slane %v2215, %v3349
    %v3351 = vlaneseq
    %v3352 = vshrl.u32 %v3351, 7
    %v3353 = vsub.s32 7, %v3352
    %v3354 = vrot.slane %v2215, %v3353
    %v3355 = vlaneseq
    %v3356 = vshrl.u32 %v3355, 7
    %v3357 = vsub.s32 0, %v3356
    %v3358 = vrot.slane %v2216, %v3357
    %3368 = vmatprep.subr.bf16.mxu0 %v2890
    %3369 = vmatpush1.bf16.msra.mxu0 %v2889
    %3370 = vmatprep.subr.bf16.mxu0 %v2899
    %3371 = vmatpush1.bf16.msra.mxu0 %v2898
    %3372 = vmatprep.subr.bf16.mxu0 %v2908
    %3373 = vmatpush1.bf16.msra.mxu0 %v2907
    %3374 = vmatprep.subr.bf16.mxu0 %v2917
    %3375 = vmatpush1.bf16.msra.mxu0 %v2916
    %3376 = vmatprep.subr.bf16.mxu0 %v2926
    %3377 = vmatpush1.bf16.msra.mxu0 %v2925
    %3378 = vmatprep.subr.bf16.mxu0 %v2935
    %3379 = vmatpush1.bf16.msra.mxu0 %v2934
    %3380 = vmatprep.subr.bf16.mxu0 %v2944
    %3381 = vmatpush1.bf16.msra.mxu0 %v2943
    %3382 = vmatprep.subr.bf16.mxu0 %v2953
    %3383 = vmatpush1.bf16.msra.mxu0 %v2952
    %3384 = vmatprep.subr.bf16.mxu0 %v2962
    %3385 = vmatpush1.bf16.msra.mxu0 %v2961
    %3386 = vmatprep.subr.bf16.mxu0 %v2971
    %3387 = vmatpush1.bf16.msra.mxu0 %v2970
    %3388 = vmatprep.subr.bf16.mxu0 %v2980
    %3389 = vmatpush1.bf16.msra.mxu0 %v2979
    %3390 = vmatprep.subr.bf16.mxu0 %v2989
    %3391 = vmatpush1.bf16.msra.mxu0 %v2988
    %3392 = vmatprep.subr.bf16.mxu0 %v2998
    %3393 = vmatpush1.bf16.msra.mxu0 %v2997
    %3394 = vmatprep.subr.bf16.mxu0 %v3007
    %3395 = vmatpush1.bf16.msra.mxu0 %v3006
    %3396 = vmatprep.subr.bf16.mxu0 %v3016
    %3397 = vmatpush1.bf16.msra.mxu0 %v3015
    %3398 = vmatprep.subr.bf16.mxu0 %v3025
    %3399 = vmatpush1.bf16.msra.mxu0 %v3024
    %3400 = vmatprep.mubr.bf16.mxu0 %v1971
    %3401 = vmatmul.mubr.bf16.gmra.mrb[0].mxu0 %v1970
    %v3402 = vpop.f32.mrb[0].mxu0
    %v3403 = vadd.f32 %v3326, %v3402
    %v3404 = vpop.f32.mrb[0].mxu0
    %v3405 = vadd.f32 %v3330, %v3404
    %v3406 = vpop.f32.mrb[0].mxu0
    %v3407 = vpop.f32.mrb[0].mxu0
    %3408 = vdwg.mxu0
    %3409 = vmatprep.subr.bf16.mxu0 %v3034
    %3410 = vmatpush1.bf16.msra.mxu0 %v3033
    %3411 = vmatprep.subr.bf16.mxu0 %v3043
    %3412 = vmatpush1.bf16.msra.mxu0 %v3042
    %3413 = vmatprep.subr.bf16.mxu0 %v3052
    %3414 = vmatpush1.bf16.msra.mxu0 %v3051
    %3415 = vmatprep.subr.bf16.mxu0 %v3061
    %3416 = vmatpush1.bf16.msra.mxu0 %v3060
    %3417 = vmatprep.subr.bf16.mxu0 %v3070
    %3418 = vmatpush1.bf16.msra.mxu0 %v3069
    %3419 = vmatprep.subr.bf16.mxu0 %v3079
    %3420 = vmatpush1.bf16.msra.mxu0 %v3078
    %3421 = vmatprep.subr.bf16.mxu0 %v3088
    %3422 = vmatpush1.bf16.msra.mxu0 %v3087
    %3423 = vmatprep.subr.bf16.mxu0 %v3097
    %3424 = vmatpush1.bf16.msra.mxu0 %v3096
    %3425 = vmatprep.subr.bf16.mxu0 0
    %3426 = vmatpush1.bf16.msra.mxu0 0
    %3427 = vmatprep.subr.bf16.mxu0 0
    %3428 = vmatpush1.bf16.msra.mxu0 0
    %3429 = vmatprep.subr.bf16.mxu0 0
    %3430 = vmatpush1.bf16.msra.mxu0 0
    %3431 = vmatprep.subr.bf16.mxu0 0
    %3432 = vmatpush1.bf16.msra.mxu0 0
    %3433 = vmatprep.subr.bf16.mxu0 0
    %3434 = vmatpush1.bf16.msra.mxu0 0
    %3435 = vmatprep.subr.bf16.mxu0 0
    %3436 = vmatpush1.bf16.msra.mxu0 0
    %3437 = vmatprep.subr.bf16.mxu0 0
    %3438 = vmatpush1.bf16.msra.mxu0 0
    %3439 = vmatprep.subr.bf16.mxu0 0
    %3440 = vmatpush1.bf16.msra.mxu0 0
    %3441 = vmatprep.mubr.bf16.mxu0 0
    %3442 = vmatmul.mubr.bf16.gmra.mrb[0].mxu0 %v1972
    %v3443 = vpop.f32.mrb[0].mxu0
    %v3444 = vadd.f32 %v3403, %v3443
    %v3445 = vpop.f32.mrb[0].mxu0
    %v3446 = vadd.f32 %v3405, %v3445
    %v3447 = vpop.f32.mrb[0].mxu0
    %v3448 = vpop.f32.mrb[0].mxu0
    %3449 = vdwg.mxu0
    %3450 = vmatprep.subr.bf16.mxu0 %v2892
    %3451 = vmatpush1.bf16.msra.mxu0 %v2891
    %3452 = vmatprep.subr.bf16.mxu0 %v2901
    %3453 = vmatpush1.bf16.msra.mxu0 %v2900
    %3454 = vmatprep.subr.bf16.mxu0 %v2910
    %3455 = vmatpush1.bf16.msra.mxu0 %v2909
    %3456 = vmatprep.subr.bf16.mxu0 %v2919
    %3457 = vmatpush1.bf16.msra.mxu0 %v2918
    %3458 = vmatprep.subr.bf16.mxu0 %v2928
    %3459 = vmatpush1.bf16.msra.mxu0 %v2927
    %3460 = vmatprep.subr.bf16.mxu0 %v2937
    %3461 = vmatpush1.bf16.msra.mxu0 %v2936
    %3462 = vmatprep.subr.bf16.mxu0 %v2946
    %3463 = vmatpush1.bf16.msra.mxu0 %v2945
    %3464 = vmatprep.subr.bf16.mxu0 %v2955
    %3465 = vmatpush1.bf16.msra.mxu0 %v2954
    %3466 = vmatprep.subr.bf16.mxu0 %v2964
    %3467 = vmatpush1.bf16.msra.mxu0 %v2963
    %3468 = vmatprep.subr.bf16.mxu0 %v2973
    %3469 = vmatpush1.bf16.msra.mxu0 %v2972
    %3470 = vmatprep.subr.bf16.mxu0 %v2982
    %3471 = vmatpush1.bf16.msra.mxu0 %v2981
    %3472 = vmatprep.subr.bf16.mxu0 %v2991
    %3473 = vmatpush1.bf16.msra.mxu0 %v2990
    %3474 = vmatprep.subr.bf16.mxu0 %v3000
    %3475 = vmatpush1.bf16.msra.mxu0 %v2999
    %3476 = vmatprep.subr.bf16.mxu0 %v3009
    %3477 = vmatpush1.bf16.msra.mxu0 %v3008
    %3478 = vmatprep.subr.bf16.mxu0 %v3018
    %3479 = vmatpush1.bf16.msra.mxu0 %v3017
    %3480 = vmatprep.subr.bf16.mxu0 %v3027
    %3481 = vmatpush1.bf16.msra.mxu0 %v3026
    %3482 = vmatprep.mubr.bf16.mxu0 %v1971
    %3483 = vmatmul.mubr.bf16.gmra.mrb[0].mxu0 %v1970
    %v3484 = vpop.f32.mrb[0].mxu0
    %v3485 = vadd.f32 %v3334, %v3484
    %v3486 = vpop.f32.mrb[0].mxu0
    %v3487 = vadd.f32 %v3338, %v3486
    %v3488 = vpop.f32.mrb[0].mxu0
    %v3489 = vpop.f32.mrb[0].mxu0
    %3490 = vdwg.mxu0
    %3491 = vmatprep.subr.bf16.mxu0 %v3036
    %3492 = vmatpush1.bf16.msra.mxu0 %v3035
    %3493 = vmatprep.subr.bf16.mxu0 %v3045
    %3494 = vmatpush1.bf16.msra.mxu0 %v3044
    %3495 = vmatprep.subr.bf16.mxu0 %v3054
    %3496 = vmatpush1.bf16.msra.mxu0 %v3053
    %3497 = vmatprep.subr.bf16.mxu0 %v3063
    %3498 = vmatpush1.bf16.msra.mxu0 %v3062
    %3499 = vmatprep.subr.bf16.mxu0 %v3072
    %3500 = vmatpush1.bf16.msra.mxu0 %v3071
    %3501 = vmatprep.subr.bf16.mxu0 %v3081
    %3502 = vmatpush1.bf16.msra.mxu0 %v3080
    %3503 = vmatprep.subr.bf16.mxu0 %v3090
    %3504 = vmatpush1.bf16.msra.mxu0 %v3089
    %3505 = vmatprep.subr.bf16.mxu0 %v3099
    %3506 = vmatpush1.bf16.msra.mxu0 %v3098
    %3507 = vmatprep.subr.bf16.mxu0 0
    %3508 = vmatpush1.bf16.msra.mxu0 0
    %3509 = vmatprep.subr.bf16.mxu0 0
    %3510 = vmatpush1.bf16.msra.mxu0 0
    %3511 = vmatprep.subr.bf16.mxu0 0
    %3512 = vmatpush1.bf16.msra.mxu0 0
    %3513 = vmatprep.subr.bf16.mxu0 0
    %3514 = vmatpush1.bf16.msra.mxu0 0
    %3515 = vmatprep.subr.bf16.mxu0 0
    %3516 = vmatpush1.bf16.msra.mxu0 0
    %3517 = vmatprep.subr.bf16.mxu0 0
    %3518 = vmatpush1.bf16.msra.mxu0 0
    %3519 = vmatprep.subr.bf16.mxu0 0
    %3520 = vmatpush1.bf16.msra.mxu0 0
    %3521 = vmatprep.subr.bf16.mxu0 0
    %3522 = vmatpush1.bf16.msra.mxu0 0
    %3523 = vmatprep.mubr.bf16.mxu0 0
    %3524 = vmatmul.mubr.bf16.gmra.mrb[0].mxu0 %v1972
    %v3525 = vpop.f32.mrb[0].mxu0
    %v3526 = vadd.f32 %v3485, %v3525
    %v3527 = vpop.f32.mrb[0].mxu0
    %v3528 = vadd.f32 %v3487, %v3527
    %v3529 = vpop.f32.mrb[0].mxu0
    %v3530 = vpop.f32.mrb[0].mxu0
    %3531 = vdwg.mxu0
    %3532 = vmatprep.subr.bf16.mxu0 %v2894
    %3533 = vmatpush1.bf16.msra.mxu0 %v2893
    %3534 = vmatprep.subr.bf16.mxu0 %v2903
    %3535 = vmatpush1.bf16.msra.mxu0 %v2902
    %3536 = vmatprep.subr.bf16.mxu0 %v2912
    %3537 = vmatpush1.bf16.msra.mxu0 %v2911
    %3538 = vmatprep.subr.bf16.mxu0 %v2921
    %3539 = vmatpush1.bf16.msra.mxu0 %v2920
    %3540 = vmatprep.subr.bf16.mxu0 %v2930
    %3541 = vmatpush1.bf16.msra.mxu0 %v2929
    %3542 = vmatprep.subr.bf16.mxu0 %v2939
    %3543 = vmatpush1.bf16.msra.mxu0 %v2938
    %3544 = vmatprep.subr.bf16.mxu0 %v2948
    %3545 = vmatpush1.bf16.msra.mxu0 %v2947
    %3546 = vmatprep.subr.bf16.mxu0 %v2957
    %3547 = vmatpush1.bf16.msra.mxu0 %v2956
    %3548 = vmatprep.subr.bf16.mxu0 %v2966
    %3549 = vmatpush1.bf16.msra.mxu0 %v2965
    %3550 = vmatprep.subr.bf16.mxu0 %v2975
    %3551 = vmatpush1.bf16.msra.mxu0 %v2974
    %3552 = vmatprep.subr.bf16.mxu0 %v2984
    %3553 = vmatpush1.bf16.msra.mxu0 %v2983
    %3554 = vmatprep.subr.bf16.mxu0 %v2993
    %3555 = vmatpush1.bf16.msra.mxu0 %v2992
    %3556 = vmatprep.subr.bf16.mxu0 %v3002
    %3557 = vmatpush1.bf16.msra.mxu0 %v3001
    %3558 = vmatprep.subr.bf16.mxu0 %v3011
    %3559 = vmatpush1.bf16.msra.mxu0 %v3010
    %3560 = vmatprep.subr.bf16.mxu0 %v3020
    %3561 = vmatpush1.bf16.msra.mxu0 %v3019
    %3562 = vmatprep.subr.bf16.mxu0 %v3029
    %3563 = vmatpush1.bf16.msra.mxu0 %v3028
    %3564 = vmatprep.mubr.bf16.mxu0 %v1971
    %3565 = vmatmul.mubr.bf16.gmra.mrb[0].mxu0 %v1970
    %v3566 = vpop.f32.mrb[0].mxu0
    %v3567 = vadd.f32 %v3342, %v3566
    %v3568 = vpop.f32.mrb[0].mxu0
    %v3569 = vadd.f32 %v3346, %v3568
    %v3570 = vpop.f32.mrb[0].mxu0
    %v3571 = vpop.f32.mrb[0].mxu0
    %3572 = vdwg.mxu0
    %3573 = vmatprep.subr.bf16.mxu0 %v3038
    %3574 = vmatpush1.bf16.msra.mxu0 %v3037
    %3575 = vmatprep.subr.bf16.mxu0 %v3047
    %3576 = vmatpush1.bf16.msra.mxu0 %v3046
    %3577 = vmatprep.subr.bf16.mxu0 %v3056
    %3578 = vmatpush1.bf16.msra.mxu0 %v3055
    %3579 = vmatprep.subr.bf16.mxu0 %v3065
    %3580 = vmatpush1.bf16.msra.mxu0 %v3064
    %3581 = vmatprep.subr.bf16.mxu0 %v3074
    %3582 = vmatpush1.bf16.msra.mxu0 %v3073
    %3583 = vmatprep.subr.bf16.mxu0 %v3083
    %3584 = vmatpush1.bf16.msra.mxu0 %v3082
    %3585 = vmatprep.subr.bf16.mxu0 %v3092
    %3586 = vmatpush1.bf16.msra.mxu0 %v3091
    %3587 = vmatprep.subr.bf16.mxu0 %v3101
    %3588 = vmatpush1.bf16.msra.mxu0 %v3100
    %3589 = vmatprep.subr.bf16.mxu0 0
    %3590 = vmatpush1.bf16.msra.mxu0 0
    %3591 = vmatprep.subr.bf16.mxu0 0
    %3592 = vmatpush1.bf16.msra.mxu0 0
    %3593 = vmatprep.subr.bf16.mxu0 0
    %3594 = vmatpush1.bf16.msra.mxu0 0
    %3595 = vmatprep.subr.bf16.mxu0 0
    %3596 = vmatpush1.bf16.msra.mxu0 0
    %3597 = vmatprep.subr.bf16.mxu0 0
    %3598 = vmatpush1.bf16.msra.mxu0 0
    %3599 = vmatprep.subr.bf16.mxu0 0
    %3600 = vmatpush1.bf16.msra.mxu0 0
    %3601 = vmatprep.subr.bf16.mxu0 0
    %3602 = vmatpush1.bf16.msra.mxu0 0
    %3603 = vmatprep.subr.bf16.mxu0 0
    %3604 = vmatpush1.bf16.msra.mxu0 0
    %3605 = vmatprep.mubr.bf16.mxu0 0
    %3606 = vmatmul.mubr.bf16.gmra.mrb[0].mxu0 %v1972
    %v3607 = vpop.f32.mrb[0].mxu0
    %v3608 = vadd.f32 %v3567, %v3607
    %v3609 = vpop.f32.mrb[0].mxu0
    %v3610 = vadd.f32 %v3569, %v3609
    %v3611 = vpop.f32.mrb[0].mxu0
    %v3612 = vpop.f32.mrb[0].mxu0
    %3613 = vdwg.mxu0
    %3614 = vmatprep.subr.bf16.mxu0 %v2896
    %3615 = vmatpush1.bf16.msra.mxu0 %v2895
    %3616 = vmatprep.subr.bf16.mxu0 %v2905
    %3617 = vmatpush1.bf16.msra.mxu0 %v2904
    %3618 = vmatprep.subr.bf16.mxu0 %v2914
    %3619 = vmatpush1.bf16.msra.mxu0 %v2913
    %3620 = vmatprep.subr.bf16.mxu0 %v2923
    %3621 = vmatpush1.bf16.msra.mxu0 %v2922
    %3622 = vmatprep.subr.bf16.mxu0 %v2932
    %3623 = vmatpush1.bf16.msra.mxu0 %v2931
    %3624 = vmatprep.subr.bf16.mxu0 %v2941
    %3625 = vmatpush1.bf16.msra.mxu0 %v2940
    %3626 = vmatprep.subr.bf16.mxu0 %v2950
    %3627 = vmatpush1.bf16.msra.mxu0 %v2949
    %3628 = vmatprep.subr.bf16.mxu0 %v2959
    %3629 = vmatpush1.bf16.msra.mxu0 %v2958
    %3630 = vmatprep.subr.bf16.mxu0 %v2968
    %3631 = vmatpush1.bf16.msra.mxu0 %v2967
    %3632 = vmatprep.subr.bf16.mxu0 %v2977
    %3633 = vmatpush1.bf16.msra.mxu0 %v2976
    %3634 = vmatprep.subr.bf16.mxu0 %v2986
    %3635 = vmatpush1.bf16.msra.mxu0 %v2985
    %3636 = vmatprep.subr.bf16.mxu0 %v2995
    %3637 = vmatpush1.bf16.msra.mxu0 %v2994
    %3638 = vmatprep.subr.bf16.mxu0 %v3004
    %3639 = vmatpush1.bf16.msra.mxu0 %v3003
    %3640 = vmatprep.subr.bf16.mxu0 %v3013
    %3641 = vmatpush1.bf16.msra.mxu0 %v3012
    %3642 = vmatprep.subr.bf16.mxu0 %v3022
    %3643 = vmatpush1.bf16.msra.mxu0 %v3021
    %3644 = vmatprep.subr.bf16.mxu0 %v3031
    %3645 = vmatpush1.bf16.msra.mxu0 %v3030
    %3646 = vmatprep.mubr.bf16.mxu0 %v1971
    %3647 = vmatmul.mubr.bf16.gmra.mrb[0].mxu0 %v1970
    %v3648 = vpop.f32.mrb[0].mxu0
    %v3649 = vadd.f32 %v3350, %v3648
    %v3650 = vpop.f32.mrb[0].mxu0
    %v3651 = vadd.f32 %v3354, %v3650
    %v3652 = vpop.f32.mrb[0].mxu0
    %v3653 = vpop.f32.mrb[0].mxu0
    %3654 = vdwg.mxu0
    %3655 = vmatprep.subr.bf16.mxu0 %v3040
    %3656 = vmatpush1.bf16.msra.mxu0 %v3039
    %3657 = vmatprep.subr.bf16.mxu0 %v3049
    %3658 = vmatpush1.bf16.msra.mxu0 %v3048
    %3659 = vmatprep.subr.bf16.mxu0 %v3058
    %3660 = vmatpush1.bf16.msra.mxu0 %v3057
    %3661 = vmatprep.subr.bf16.mxu0 %v3067
    %3662 = vmatpush1.bf16.msra.mxu0 %v3066
    %3663 = vmatprep.subr.bf16.mxu0 %v3076
    %3664 = vmatpush1.bf16.msra.mxu0 %v3075
    %3665 = vmatprep.subr.bf16.mxu0 %v3085
    %3666 = vmatpush1.bf16.msra.mxu0 %v3084
    %3667 = vmatprep.subr.bf16.mxu0 %v3094
    %3668 = vmatpush1.bf16.msra.mxu0 %v3093
    %3669 = vmatprep.subr.bf16.mxu0 %v3103
    %3670 = vmatpush1.bf16.msra.mxu0 %v3102
    %3671 = vmatprep.subr.bf16.mxu0 0
    %3672 = vmatpush1.bf16.msra.mxu0 0
    %3673 = vmatprep.subr.bf16.mxu0 0
    %3674 = vmatpush1.bf16.msra.mxu0 0
    %3675 = vmatprep.subr.bf16.mxu0 0
    %3676 = vmatpush1.bf16.msra.mxu0 0
    %3677 = vmatprep.subr.bf16.mxu0 0
    %3678 = vmatpush1.bf16.msra.mxu0 0
    %3679 = vmatprep.subr.bf16.mxu0 0
    %3680 = vmatpush1.bf16.msra.mxu0 0
    %3681 = vmatprep.subr.bf16.mxu0 0
    %3682 = vmatpush1.bf16.msra.mxu0 0
    %3683 = vmatprep.subr.bf16.mxu0 0
    %3684 = vmatpush1.bf16.msra.mxu0 0
    %3685 = vmatprep.subr.bf16.mxu0 0
    %3686 = vmatpush1.bf16.msra.mxu0 0
    %3687 = vmatprep.mubr.bf16.mxu0 0
    %3688 = vmatmul.mubr.bf16.gmra.mrb[0].mxu0 %v1972
    %v3689 = vpop.f32.mrb[0].mxu0
    %v3690 = vadd.f32 %v3649, %v3689
    %v3691 = vpop.f32.mrb[0].mxu0
    %v3692 = vadd.f32 %v3651, %v3691
    %v3693 = vpop.f32.mrb[0].mxu0
    %v3694 = vpop.f32.mrb[0].mxu0
    %3695 = vdwg.mxu0
    %3696 = vmatprep.subr.bf16.mxu0 0
    %3697 = vmatpush1.bf16.msra.mxu0 %v2897
    %3698 = vmatprep.subr.bf16.mxu0 0
    %3699 = vmatpush1.bf16.msra.mxu0 %v2906
    %3700 = vmatprep.subr.bf16.mxu0 0
    %3701 = vmatpush1.bf16.msra.mxu0 %v2915
    %3702 = vmatprep.subr.bf16.mxu0 0
    %3703 = vmatpush1.bf16.msra.mxu0 %v2924
    %3704 = vmatprep.subr.bf16.mxu0 0
    %3705 = vmatpush1.bf16.msra.mxu0 %v2933
    %3706 = vmatprep.subr.bf16.mxu0 0
    %3707 = vmatpush1.bf16.msra.mxu0 %v2942
    %3708 = vmatprep.subr.bf16.mxu0 0
    %3709 = vmatpush1.bf16.msra.mxu0 %v2951
    %3710 = vmatprep.subr.bf16.mxu0 0
    %3711 = vmatpush1.bf16.msra.mxu0 %v2960
    %3712 = vmatprep.subr.bf16.mxu0 0
    %3713 = vmatpush1.bf16.msra.mxu0 %v2969
    %3714 = vmatprep.subr.bf16.mxu0 0
    %3715 = vmatpush1.bf16.msra.mxu0 %v2978
    %3716 = vmatprep.subr.bf16.mxu0 0
    %3717 = vmatpush1.bf16.msra.mxu0 %v2987
    %3718 = vmatprep.subr.bf16.mxu0 0
    %3719 = vmatpush1.bf16.msra.mxu0 %v2996
    %3720 = vmatprep.subr.bf16.mxu0 0
    %3721 = vmatpush1.bf16.msra.mxu0 %v3005
    %3722 = vmatprep.subr.bf16.mxu0 0
    %3723 = vmatpush1.bf16.msra.mxu0 %v3014
    %3724 = vmatprep.subr.bf16.mxu0 0
    %3725 = vmatpush1.bf16.msra.mxu0 %v3023
    %3726 = vmatprep.subr.bf16.mxu0 0
    %3727 = vmatpush1.bf16.msra.mxu0 %v3032
    %3728 = vmatprep.mubr.bf16.mxu0 %v1971
    %3729 = vmatmul.mubr.bf16.gmra.mrb[0].mxu0 %v1970
    %v3730 = vpop.f32.mrb[0].mxu0
    %v3731 = vadd.f32 %v3358, %v3730
    %v3732 = vpop.f32.mrb[0].mxu0
    %v3733 = vpop.f32.mrb[0].mxu0
    %v3734 = vpop.f32.mrb[0].mxu0
    %3735 = vdwg.mxu0
    %3736 = vmatprep.subr.bf16.mxu0 0
    %3737 = vmatpush1.bf16.msra.mxu0 %v3041
    %3738 = vmatprep.subr.bf16.mxu0 0
    %3739 = vmatpush1.bf16.msra.mxu0 %v3050
    %3740 = vmatprep.subr.bf16.mxu0 0
    %3741 = vmatpush1.bf16.msra.mxu0 %v3059
    %3742 = vmatprep.subr.bf16.mxu0 0
    %3743 = vmatpush1.bf16.msra.mxu0 %v3068
    %3744 = vmatprep.subr.bf16.mxu0 0
    %3745 = vmatpush1.bf16.msra.mxu0 %v3077
    %3746 = vmatprep.subr.bf16.mxu0 0
    %3747 = vmatpush1.bf16.msra.mxu0 %v3086
    %3748 = vmatprep.subr.bf16.mxu0 0
    %3749 = vmatpush1.bf16.msra.mxu0 %v3095
    %3750 = vmatprep.subr.bf16.mxu0 0
    %3751 = vmatpush1.bf16.msra.mxu0 %v3104
    %3752 = vmatprep.subr.bf16.mxu0 0
    %3753 = vmatpush1.bf16.msra.mxu0 0
    %3754 = vmatprep.subr.bf16.mxu0 0
    %3755 = vmatpush1.bf16.msra.mxu0 0
    %3756 = vmatprep.subr.bf16.mxu0 0
    %3757 = vmatpush1.bf16.msra.mxu0 0
    %3758 = vmatprep.subr.bf16.mxu0 0
    %3759 = vmatpush1.bf16.msra.mxu0 0
    %3760 = vmatprep.subr.bf16.mxu0 0
    %3761 = vmatpush1.bf16.msra.mxu0 0
    %3762 = vmatprep.subr.bf16.mxu0 0
    %3763 = vmatpush1.bf16.msra.mxu0 0
    %3764 = vmatprep.subr.bf16.mxu0 0
    %3765 = vmatpush1.bf16.msra.mxu0 0
    %3766 = vmatprep.subr.bf16.mxu0 0
    %3767 = vmatpush1.bf16.msra.mxu0 0
    %3768 = vmatprep.mubr.bf16.mxu0 0
    %3769 = vmatmul.mubr.bf16.gmra.mrb[0].mxu0 %v1972
    %v3770 = vpop.f32.mrb[0].mxu0
    %v3771 = vadd.f32 %v3731, %v3770
    %v3772 = vpop.f32.mrb[0].mxu0
    %v3773 = vpop.f32.mrb[0].mxu0
    %v3774 = vpop.f32.mrb[0].mxu0
    %3775 = vdwg.mxu0
    %s3776 = scalar_lea.vmem %s2, 2
    %v3777 = vld [vmem:[%s3776] ss:$4 sm:$0x7]
    %v3779 = vlaneseq
    %v3780 = vshrl.u32 %v3779, 7
    %v3781 = vsub.s32 0, %v3780
    %v3782 = vrot.slane %v3777, %v3781
    %v3783 = vlaneseq
    %v3784 = vshrl.u32 %v3783, 7
    %v3785 = vsub.s32 1, %v3784
    %v3786 = vrot.slane %v3777, %v3785
    %v3787 = vlaneseq
    %v3788 = vshrl.u32 %v3787, 7
    %v3789 = vsub.s32 2, %v3788
    %v3790 = vrot.slane %v3777, %v3789
    %v3794 = vpack.c.bf16 %v3782, %v3782
    %v3795 = vpack.c.bf16 %v3786, %v3786
    %v3796 = vpack.c.bf16 %v3790, %v3790
    %s3797 = scalar_lea.vmem [#allocation8], 3456
    %v3798 = vld [vmem:[%s3797] sm:$0xff]
    %v3799 = vld [vmem:[%s3797 + $0x8] sm:$0xff]
    %v3800 = vld [vmem:[%s3797 + $0x10] sm:$0xff]
    %v3801 = vld [vmem:[%s3797 + $0x18] sm:$0xff]
    %v3802 = vld [vmem:[%s3797 + $0x20] sm:$0xf]
    %v3803 = vld [vmem:[%s3797 + $0x24] sm:$0xff]
    %v3804 = vld [vmem:[%s3797 + $0x2c] sm:$0xff]
    %v3805 = vld [vmem:[%s3797 + $0x34] sm:$0xff]
    %v3806 = vld [vmem:[%s3797 + $0x3c] sm:$0xff]
    %v3807 = vld [vmem:[%s3797 + $0x44] sm:$0xf]
    %v3808 = vld [vmem:[%s3797 + $0x48] sm:$0xff]
    %v3809 = vld [vmem:[%s3797 + $0x50] sm:$0xff]
    %v3810 = vld [vmem:[%s3797 + $0x58] sm:$0xff]
    %v3811 = vld [vmem:[%s3797 + $0x60] sm:$0xff]
    %v3812 = vld [vmem:[%s3797 + $0x68] sm:$0xf]
    %v3813 = vld [vmem:[%s3797 + $0x6c] sm:$0xff]
    %v3814 = vld [vmem:[%s3797 + $0x74] sm:$0xff]
    %v3815 = vld [vmem:[%s3797 + $0x7c] sm:$0xff]
    %v3816 = vld [vmem:[%s3797 + $0x84] sm:$0xff]
    %v3817 = vld [vmem:[%s3797 + $0x8c] sm:$0xf]
    %v3818 = vld [vmem:[%s3797 + $0x90] sm:$0xff]
    %v3819 = vld [vmem:[%s3797 + $0x98] sm:$0xff]
    %v3820 = vld [vmem:[%s3797 + $0xa0] sm:$0xff]
    %v3821 = vld [vmem:[%s3797 + $0xa8] sm:$0xff]
    %v3822 = vld [vmem:[%s3797 + $0xb0] sm:$0xf]
    %v3823 = vld [vmem:[%s3797 + $0xb4] sm:$0xff]
    %v3824 = vld [vmem:[%s3797 + $0xbc] sm:$0xff]
    %v3825 = vld [vmem:[%s3797 + $0xc4] sm:$0xff]
    %v3826 = vld [vmem:[%s3797 + $0xcc] sm:$0xff]
    %v3827 = vld [vmem:[%s3797 + $0xd4] sm:$0xf]
    %v3828 = vld [vmem:[%s3797 + $0xd8] sm:$0xff]
    %v3829 = vld [vmem:[%s3797 + $0xe0] sm:$0xff]
    %v3830 = vld [vmem:[%s3797 + $0xe8] sm:$0xff]
    %v3831 = vld [vmem:[%s3797 + $0xf0] sm:$0xff]
    %v3832 = vld [vmem:[%s3797 + $0xf8] sm:$0xf]
    %v3833 = vld [vmem:[%s3797 + $0xfc] sm:$0xff]
    %v3834 = vld [vmem:[%s3797 + $0x104] sm:$0xff]
    %v3835 = vld [vmem:[%s3797 + $0x10c] sm:$0xff]
    %v3836 = vld [vmem:[%s3797 + $0x114] sm:$0xff]
    %v3837 = vld [vmem:[%s3797 + $0x11c] sm:$0xf]
    %v3838 = vld [vmem:[%s3797 + $0x120] sm:$0xff]
    %v3839 = vld [vmem:[%s3797 + $0x128] sm:$0xff]
    %v3840 = vld [vmem:[%s3797 + $0x130] sm:$0xff]
    %v3841 = vld [vmem:[%s3797 + $0x138] sm:$0xff]
    %v3842 = vld [vmem:[%s3797 + $0x140] sm:$0xf]
    %v3843 = vld [vmem:[%s3797 + $0x144] sm:$0xff]
    %v3844 = vld [vmem:[%s3797 + $0x14c] sm:$0xff]
    %v3845 = vld [vmem:[%s3797 + $0x154] sm:$0xff]
    %v3846 = vld [vmem:[%s3797 + $0x15c] sm:$0xff]
    %v3847 = vld [vmem:[%s3797 + $0x164] sm:$0xf]
    %v3848 = vld [vmem:[%s3797 + $0x168] sm:$0xff]
    %v3849 = vld [vmem:[%s3797 + $0x170] sm:$0xff]
    %v3850 = vld [vmem:[%s3797 + $0x178] sm:$0xff]
    %v3851 = vld [vmem:[%s3797 + $0x180] sm:$0xff]
    %v3852 = vld [vmem:[%s3797 + $0x188] sm:$0xf]
    %v3853 = vld [vmem:[%s3797 + $0x18c] sm:$0xff]
    %v3854 = vld [vmem:[%s3797 + $0x194] sm:$0xff]
    %v3855 = vld [vmem:[%s3797 + $0x19c] sm:$0xff]
    %v3856 = vld [vmem:[%s3797 + $0x1a4] sm:$0xff]
    %v3857 = vld [vmem:[%s3797 + $0x1ac] sm:$0xf]
    %v3858 = vld [vmem:[%s3797 + $0x1b0] sm:$0xff]
    %v3859 = vld [vmem:[%s3797 + $0x1b8] sm:$0xff]
    %v3860 = vld [vmem:[%s3797 + $0x1c0] sm:$0xff]
    %v3861 = vld [vmem:[%s3797 + $0x1c8] sm:$0xff]
    %v3862 = vld [vmem:[%s3797 + $0x1d0] sm:$0xf]
    %v3863 = vld [vmem:[%s3797 + $0x1d4] sm:$0xff]
    %v3864 = vld [vmem:[%s3797 + $0x1dc] sm:$0xff]
    %v3865 = vld [vmem:[%s3797 + $0x1e4] sm:$0xff]
    %v3866 = vld [vmem:[%s3797 + $0x1ec] sm:$0xff]
    %v3867 = vld [vmem:[%s3797 + $0x1f4] sm:$0xf]
    %v3868 = vld [vmem:[%s3797 + $0x1f8] sm:$0xff]
    %v3869 = vld [vmem:[%s3797 + $0x200] sm:$0xff]
    %v3870 = vld [vmem:[%s3797 + $0x208] sm:$0xff]
    %v3871 = vld [vmem:[%s3797 + $0x210] sm:$0xff]
    %v3872 = vld [vmem:[%s3797 + $0x218] sm:$0xf]
    %v3873 = vld [vmem:[%s3797 + $0x21c] sm:$0xff]
    %v3874 = vld [vmem:[%s3797 + $0x224] sm:$0xff]
    %v3875 = vld [vmem:[%s3797 + $0x22c] sm:$0xff]
    %v3876 = vld [vmem:[%s3797 + $0x234] sm:$0xff]
    %v3877 = vld [vmem:[%s3797 + $0x23c] sm:$0xf]
    %v3878 = vld [vmem:[%s3797 + $0x240] sm:$0xff]
    %v3879 = vld [vmem:[%s3797 + $0x248] sm:$0xff]
    %v3880 = vld [vmem:[%s3797 + $0x250] sm:$0xff]
    %v3881 = vld [vmem:[%s3797 + $0x258] sm:$0xff]
    %v3882 = vld [vmem:[%s3797 + $0x260] sm:$0xf]
    %v3883 = vld [vmem:[%s3797 + $0x264] sm:$0xff]
    %v3884 = vld [vmem:[%s3797 + $0x26c] sm:$0xff]
    %v3885 = vld [vmem:[%s3797 + $0x274] sm:$0xff]
    %v3886 = vld [vmem:[%s3797 + $0x27c] sm:$0xff]
    %v3887 = vld [vmem:[%s3797 + $0x284] sm:$0xf]
    %v3888 = vld [vmem:[%s3797 + $0x288] sm:$0xff]
    %v3889 = vld [vmem:[%s3797 + $0x290] sm:$0xff]
    %v3890 = vld [vmem:[%s3797 + $0x298] sm:$0xff]
    %v3891 = vld [vmem:[%s3797 + $0x2a0] sm:$0xff]
    %v3892 = vld [vmem:[%s3797 + $0x2a8] sm:$0xf]
    %v3893 = vld [vmem:[%s3797 + $0x2ac] sm:$0xff]
    %v3894 = vld [vmem:[%s3797 + $0x2b4] sm:$0xff]
    %v3895 = vld [vmem:[%s3797 + $0x2bc] sm:$0xff]
    %v3896 = vld [vmem:[%s3797 + $0x2c4] sm:$0xff]
    %v3897 = vld [vmem:[%s3797 + $0x2cc] sm:$0xf]
    %v3898 = vld [vmem:[%s3797 + $0x2d0] sm:$0xff]
    %v3899 = vld [vmem:[%s3797 + $0x2d8] sm:$0xff]
    %v3900 = vld [vmem:[%s3797 + $0x2e0] sm:$0xff]
    %v3901 = vld [vmem:[%s3797 + $0x2e8] sm:$0xff]
    %v3902 = vld [vmem:[%s3797 + $0x2f0] sm:$0xf]
    %v3903 = vld [vmem:[%s3797 + $0x2f4] sm:$0xff]
    %v3904 = vld [vmem:[%s3797 + $0x2fc] sm:$0xff]
    %v3905 = vld [vmem:[%s3797 + $0x304] sm:$0xff]
    %v3906 = vld [vmem:[%s3797 + $0x30c] sm:$0xff]
    %v3907 = vld [vmem:[%s3797 + $0x314] sm:$0xf]
    %v3908 = vld [vmem:[%s3797 + $0x318] sm:$0xff]
    %v3909 = vld [vmem:[%s3797 + $0x320] sm:$0xff]
    %v3910 = vld [vmem:[%s3797 + $0x328] sm:$0xff]
    %v3911 = vld [vmem:[%s3797 + $0x330] sm:$0xff]
    %v3912 = vld [vmem:[%s3797 + $0x338] sm:$0xf]
    %v3913 = vld [vmem:[%s3797 + $0x33c] sm:$0xff]
    %v3914 = vld [vmem:[%s3797 + $0x344] sm:$0xff]
    %v3915 = vld [vmem:[%s3797 + $0x34c] sm:$0xff]
    %v3916 = vld [vmem:[%s3797 + $0x354] sm:$0xff]
    %v3917 = vld [vmem:[%s3797 + $0x35c] sm:$0xf]
    %v3918 = vld [vmem:[%s3797 + $0x360] sm:$0xff]
    %v3919 = vld [vmem:[%s3797 + $0x368] sm:$0xff]
    %v3920 = vld [vmem:[%s3797 + $0x370] sm:$0xff]
    %v3921 = vld [vmem:[%s3797 + $0x378] sm:$0xff]
    %v3922 = vld [vmem:[%s3797 + $0x380] sm:$0xf]
    %v3923 = vld [vmem:[%s3797 + $0x384] sm:$0xff]
    %v3924 = vld [vmem:[%s3797 + $0x38c] sm:$0xff]
    %v3925 = vld [vmem:[%s3797 + $0x394] sm:$0xff]
    %v3926 = vld [vmem:[%s3797 + $0x39c] sm:$0xff]
    %v3927 = vld [vmem:[%s3797 + $0x3a4] sm:$0xf]
    %v3928 = vld [vmem:[%s3797 + $0x3a8] sm:$0xff]
    %v3929 = vld [vmem:[%s3797 + $0x3b0] sm:$0xff]
    %v3930 = vld [vmem:[%s3797 + $0x3b8] sm:$0xff]
    %v3931 = vld [vmem:[%s3797 + $0x3c0] sm:$0xff]
    %v3932 = vld [vmem:[%s3797 + $0x3c8] sm:$0xf]
    %v3933 = vld [vmem:[%s3797 + $0x3cc] sm:$0xff]
    %v3934 = vld [vmem:[%s3797 + $0x3d4] sm:$0xff]
    %v3935 = vld [vmem:[%s3797 + $0x3dc] sm:$0xff]
    %v3936 = vld [vmem:[%s3797 + $0x3e4] sm:$0xff]
    %v3937 = vld [vmem:[%s3797 + $0x3ec] sm:$0xf]
    %v3938 = vld [vmem:[%s3797 + $0x3f0] sm:$0xff]
    %v3939 = vld [vmem:[%s3797 + $0x3f8] sm:$0xff]
    %v3940 = vld [vmem:[%s3797 + $0x400] sm:$0xff]
    %v3941 = vld [vmem:[%s3797 + $0x408] sm:$0xff]
    %v3942 = vld [vmem:[%s3797 + $0x410] sm:$0xf]
    %v3943 = vld [vmem:[%s3797 + $0x414] sm:$0xff]
    %v3944 = vld [vmem:[%s3797 + $0x41c] sm:$0xff]
    %v3945 = vld [vmem:[%s3797 + $0x424] sm:$0xff]
    %v3946 = vld [vmem:[%s3797 + $0x42c] sm:$0xff]
    %v3947 = vld [vmem:[%s3797 + $0x434] sm:$0xf]
    %v3948 = vld [vmem:[%s3797 + $0x438] sm:$0xff]
    %v3949 = vld [vmem:[%s3797 + $0x440] sm:$0xff]
    %v3950 = vld [vmem:[%s3797 + $0x448] sm:$0xff]
    %v3951 = vld [vmem:[%s3797 + $0x450] sm:$0xff]
    %v3952 = vld [vmem:[%s3797 + $0x458] sm:$0xf]
    %v3953 = vld [vmem:[%s3797 + $0x45c] sm:$0xff]
    %v3954 = vld [vmem:[%s3797 + $0x464] sm:$0xff]
    %v3955 = vld [vmem:[%s3797 + $0x46c] sm:$0xff]
    %v3956 = vld [vmem:[%s3797 + $0x474] sm:$0xff]
    %v3957 = vld [vmem:[%s3797 + $0x47c] sm:$0xf]
    %v3958 = vld [vmem:[%s3797 + $0x480] sm:$0xff]
    %v3959 = vld [vmem:[%s3797 + $0x488] sm:$0xff]
    %v3960 = vld [vmem:[%s3797 + $0x490] sm:$0xff]
    %v3961 = vld [vmem:[%s3797 + $0x498] sm:$0xff]
    %v3962 = vld [vmem:[%s3797 + $0x4a0] sm:$0xf]
    %v3963 = vld [vmem:[%s3797 + $0x4a4] sm:$0xff]
    %v3964 = vld [vmem:[%s3797 + $0x4ac] sm:$0xff]
    %v3965 = vld [vmem:[%s3797 + $0x4b4] sm:$0xff]
    %v3966 = vld [vmem:[%s3797 + $0x4bc] sm:$0xff]
    %v3967 = vld [vmem:[%s3797 + $0x4c4] sm:$0xf]
    %v3968 = vld [vmem:[%s3797 + $0x4c8] sm:$0xff]
    %v3969 = vld [vmem:[%s3797 + $0x4d0] sm:$0xff]
    %v3970 = vld [vmem:[%s3797 + $0x4d8] sm:$0xff]
    %v3971 = vld [vmem:[%s3797 + $0x4e0] sm:$0xff]
    %v3972 = vld [vmem:[%s3797 + $0x4e8] sm:$0xf]
    %v3973 = vld [vmem:[%s3797 + $0x4ec] sm:$0xff]
    %v3974 = vld [vmem:[%s3797 + $0x4f4] sm:$0xff]
    %v3975 = vld [vmem:[%s3797 + $0x4fc] sm:$0xff]
    %v3976 = vld [vmem:[%s3797 + $0x504] sm:$0xff]
    %v3977 = vld [vmem:[%s3797 + $0x50c] sm:$0xf]
    %v3978 = vld [vmem:[%s3797 + $0x510] sm:$0xff]
    %v3979 = vld [vmem:[%s3797 + $0x518] sm:$0xff]
    %v3980 = vld [vmem:[%s3797 + $0x520] sm:$0xff]
    %v3981 = vld [vmem:[%s3797 + $0x528] sm:$0xff]
    %v3982 = vld [vmem:[%s3797 + $0x530] sm:$0xf]
    %v3983 = vld [vmem:[%s3797 + $0x534] sm:$0xff]
    %v3984 = vld [vmem:[%s3797 + $0x53c] sm:$0xff]
    %v3985 = vld [vmem:[%s3797 + $0x544] sm:$0xff]
    %v3986 = vld [vmem:[%s3797 + $0x54c] sm:$0xff]
    %v3987 = vld [vmem:[%s3797 + $0x554] sm:$0xf]
    %v3988 = vld [vmem:[%s3797 + $0x558] sm:$0xff]
    %v3989 = vld [vmem:[%s3797 + $0x560] sm:$0xff]
    %v3990 = vld [vmem:[%s3797 + $0x568] sm:$0xff]
    %v3991 = vld [vmem:[%s3797 + $0x570] sm:$0xff]
    %v3992 = vld [vmem:[%s3797 + $0x578] sm:$0xf]
    %v3993 = vld [vmem:[%s3797 + $0x57c] sm:$0xff]
    %v3994 = vld [vmem:[%s3797 + $0x584] sm:$0xff]
    %v3995 = vld [vmem:[%s3797 + $0x58c] sm:$0xff]
    %v3996 = vld [vmem:[%s3797 + $0x594] sm:$0xff]
    %v3997 = vld [vmem:[%s3797 + $0x59c] sm:$0xf]
    %v3998 = vld [vmem:[%s3797 + $0x5a0] sm:$0xff]
    %v3999 = vld [vmem:[%s3797 + $0x5a8] sm:$0xff]
    %v4000 = vld [vmem:[%s3797 + $0x5b0] sm:$0xff]
    %v4001 = vld [vmem:[%s3797 + $0x5b8] sm:$0xff]
    %v4002 = vld [vmem:[%s3797 + $0x5c0] sm:$0xf]
    %v4003 = vld [vmem:[%s3797 + $0x5c4] sm:$0xff]
    %v4004 = vld [vmem:[%s3797 + $0x5cc] sm:$0xff]
    %v4005 = vld [vmem:[%s3797 + $0x5d4] sm:$0xff]
    %v4006 = vld [vmem:[%s3797 + $0x5dc] sm:$0xff]
    %v4007 = vld [vmem:[%s3797 + $0x5e4] sm:$0xf]
    %v4008 = vld [vmem:[%s3797 + $0x5e8] sm:$0xff]
    %v4009 = vld [vmem:[%s3797 + $0x5f0] sm:$0xff]
    %v4010 = vld [vmem:[%s3797 + $0x5f8] sm:$0xff]
    %v4011 = vld [vmem:[%s3797 + $0x600] sm:$0xff]
    %v4012 = vld [vmem:[%s3797 + $0x608] sm:$0xf]
    %v4013 = vld [vmem:[%s3797 + $0x60c] sm:$0xff]
    %v4014 = vld [vmem:[%s3797 + $0x614] sm:$0xff]
    %v4015 = vld [vmem:[%s3797 + $0x61c] sm:$0xff]
    %v4016 = vld [vmem:[%s3797 + $0x624] sm:$0xff]
    %v4017 = vld [vmem:[%s3797 + $0x62c] sm:$0xf]
    %v4018 = vld [vmem:[%s3797 + $0x630] sm:$0xff]
    %v4019 = vld [vmem:[%s3797 + $0x638] sm:$0xff]
    %v4020 = vld [vmem:[%s3797 + $0x640] sm:$0xff]
    %v4021 = vld [vmem:[%s3797 + $0x648] sm:$0xff]
    %v4022 = vld [vmem:[%s3797 + $0x650] sm:$0xf]
    %v4023 = vld [vmem:[%s3797 + $0x654] sm:$0xff]
    %v4024 = vld [vmem:[%s3797 + $0x65c] sm:$0xff]
    %v4025 = vld [vmem:[%s3797 + $0x664] sm:$0xff]
    %v4026 = vld [vmem:[%s3797 + $0x66c] sm:$0xff]
    %v4027 = vld [vmem:[%s3797 + $0x674] sm:$0xf]
    %v4028 = vld [vmem:[%s3797 + $0x678] sm:$0xff]
    %v4029 = vld [vmem:[%s3797 + $0x680] sm:$0xff]
    %v4030 = vld [vmem:[%s3797 + $0x688] sm:$0xff]
    %v4031 = vld [vmem:[%s3797 + $0x690] sm:$0xff]
    %v4032 = vld [vmem:[%s3797 + $0x698] sm:$0xf]
    %v4033 = vld [vmem:[%s3797 + $0x69c] sm:$0xff]
    %v4034 = vld [vmem:[%s3797 + $0x6a4] sm:$0xff]
    %v4035 = vld [vmem:[%s3797 + $0x6ac] sm:$0xff]
    %v4036 = vld [vmem:[%s3797 + $0x6b4] sm:$0xff]
    %v4037 = vld [vmem:[%s3797 + $0x6bc] sm:$0xf]
    %s4038 = scalar_lea.vmem [#allocation11], 18
    %v4039 = vld [vmem:[%s4038] sm:$0xff]
    %v4040 = vld [vmem:[%s4038 + $0x8] sm:$0x1]
    %v4281 = vunpack.c.l.b16 %v3798
    %v4282 = vunpack.c.h.b16 %v3798
    %v4283 = vunpack.c.l.b16 %v3799
    %v4284 = vunpack.c.h.b16 %v3799
    %v4285 = vunpack.c.l.b16 %v3800
    %v4286 = vunpack.c.h.b16 %v3800
    %v4287 = vunpack.c.l.b16 %v3801
    %v4288 = vunpack.c.h.b16 %v3801
    %v4289 = vunpack.c.l.b16 %v3802
    %v4290 = vunpack.c.l.b16 %v3803
    %v4291 = vunpack.c.h.b16 %v3803
    %v4292 = vunpack.c.l.b16 %v3804
    %v4293 = vunpack.c.h.b16 %v3804
    %v4294 = vunpack.c.l.b16 %v3805
    %v4295 = vunpack.c.h.b16 %v3805
    %v4296 = vunpack.c.l.b16 %v3806
    %v4297 = vunpack.c.h.b16 %v3806
    %v4298 = vunpack.c.l.b16 %v3807
    %v4299 = vunpack.c.l.b16 %v3808
    %v4300 = vunpack.c.h.b16 %v3808
    %v4301 = vunpack.c.l.b16 %v3809
    %v4302 = vunpack.c.h.b16 %v3809
    %v4303 = vunpack.c.l.b16 %v3810
    %v4304 = vunpack.c.h.b16 %v3810
    %v4305 = vunpack.c.l.b16 %v3811
    %v4306 = vunpack.c.h.b16 %v3811
    %v4307 = vunpack.c.l.b16 %v3812
    %v4308 = vunpack.c.l.b16 %v3813
    %v4309 = vunpack.c.h.b16 %v3813
    %v4310 = vunpack.c.l.b16 %v3814
    %v4311 = vunpack.c.h.b16 %v3814
    %v4312 = vunpack.c.l.b16 %v3815
    %v4313 = vunpack.c.h.b16 %v3815
    %v4314 = vunpack.c.l.b16 %v3816
    %v4315 = vunpack.c.h.b16 %v3816
    %v4316 = vunpack.c.l.b16 %v3817
    %v4317 = vunpack.c.l.b16 %v3818
    %v4318 = vunpack.c.h.b16 %v3818
    %v4319 = vunpack.c.l.b16 %v3819
    %v4320 = vunpack.c.h.b16 %v3819
    %v4321 = vunpack.c.l.b16 %v3820
    %v4322 = vunpack.c.h.b16 %v3820
    %v4323 = vunpack.c.l.b16 %v3821
    %v4324 = vunpack.c.h.b16 %v3821
    %v4325 = vunpack.c.l.b16 %v3822
    %v4326 = vunpack.c.l.b16 %v3823
    %v4327 = vunpack.c.h.b16 %v3823
    %v4328 = vunpack.c.l.b16 %v3824
    %v4329 = vunpack.c.h.b16 %v3824
    %v4330 = vunpack.c.l.b16 %v3825
    %v4331 = vunpack.c.h.b16 %v3825
    %v4332 = vunpack.c.l.b16 %v3826
    %v4333 = vunpack.c.h.b16 %v3826
    %v4334 = vunpack.c.l.b16 %v3827
    %v4335 = vunpack.c.l.b16 %v3828
    %v4336 = vunpack.c.h.b16 %v3828
    %v4337 = vunpack.c.l.b16 %v3829
    %v4338 = vunpack.c.h.b16 %v3829
    %v4339 = vunpack.c.l.b16 %v3830
    %v4340 = vunpack.c.h.b16 %v3830
    %v4341 = vunpack.c.l.b16 %v3831
    %v4342 = vunpack.c.h.b16 %v3831
    %v4343 = vunpack.c.l.b16 %v3832
    %v4344 = vunpack.c.l.b16 %v3833
    %v4345 = vunpack.c.h.b16 %v3833
    %v4346 = vunpack.c.l.b16 %v3834
    %v4347 = vunpack.c.h.b16 %v3834
    %v4348 = vunpack.c.l.b16 %v3835
    %v4349 = vunpack.c.h.b16 %v3835
    %v4350 = vunpack.c.l.b16 %v3836
    %v4351 = vunpack.c.h.b16 %v3836
    %v4352 = vunpack.c.l.b16 %v3837
    %v4353 = vunpack.c.l.b16 %v3838
    %v4354 = vunpack.c.h.b16 %v3838
    %v4355 = vunpack.c.l.b16 %v3839
    %v4356 = vunpack.c.h.b16 %v3839
    %v4357 = vunpack.c.l.b16 %v3840
    %v4358 = vunpack.c.h.b16 %v3840
    %v4359 = vunpack.c.l.b16 %v3841
    %v4360 = vunpack.c.h.b16 %v3841
    %v4361 = vunpack.c.l.b16 %v3842
    %v4362 = vunpack.c.l.b16 %v3843
    %v4363 = vunpack.c.h.b16 %v3843
    %v4364 = vunpack.c.l.b16 %v3844
    %v4365 = vunpack.c.h.b16 %v3844
    %v4366 = vunpack.c.l.b16 %v3845
    %v4367 = vunpack.c.h.b16 %v3845
    %v4368 = vunpack.c.l.b16 %v3846
    %v4369 = vunpack.c.h.b16 %v3846
    %v4370 = vunpack.c.l.b16 %v3847
    %v4371 = vunpack.c.l.b16 %v3848
    %v4372 = vunpack.c.h.b16 %v3848
    %v4373 = vunpack.c.l.b16 %v3849
    %v4374 = vunpack.c.h.b16 %v3849
    %v4375 = vunpack.c.l.b16 %v3850
    %v4376 = vunpack.c.h.b16 %v3850
    %v4377 = vunpack.c.l.b16 %v3851
    %v4378 = vunpack.c.h.b16 %v3851
    %v4379 = vunpack.c.l.b16 %v3852
    %v4380 = vunpack.c.l.b16 %v3853
    %v4381 = vunpack.c.h.b16 %v3853
    %v4382 = vunpack.c.l.b16 %v3854
    %v4383 = vunpack.c.h.b16 %v3854
    %v4384 = vunpack.c.l.b16 %v3855
    %v4385 = vunpack.c.h.b16 %v3855
    %v4386 = vunpack.c.l.b16 %v3856
    %v4387 = vunpack.c.h.b16 %v3856
    %v4388 = vunpack.c.l.b16 %v3857
    %v4389 = vunpack.c.l.b16 %v3858
    %v4390 = vunpack.c.h.b16 %v3858
    %v4391 = vunpack.c.l.b16 %v3859
    %v4392 = vunpack.c.h.b16 %v3859
    %v4393 = vunpack.c.l.b16 %v3860
    %v4394 = vunpack.c.h.b16 %v3860
    %v4395 = vunpack.c.l.b16 %v3861
    %v4396 = vunpack.c.h.b16 %v3861
    %v4397 = vunpack.c.l.b16 %v3862
    %v4398 = vunpack.c.l.b16 %v3863
    %v4399 = vunpack.c.h.b16 %v3863
    %v4400 = vunpack.c.l.b16 %v3864
    %v4401 = vunpack.c.h.b16 %v3864
    %v4402 = vunpack.c.l.b16 %v3865
    %v4403 = vunpack.c.h.b16 %v3865
    %v4404 = vunpack.c.l.b16 %v3866
    %v4405 = vunpack.c.h.b16 %v3866
    %v4406 = vunpack.c.l.b16 %v3867
    %v4407 = vunpack.c.l.b16 %v3868
    %v4408 = vunpack.c.h.b16 %v3868
    %v4409 = vunpack.c.l.b16 %v3869
    %v4410 = vunpack.c.h.b16 %v3869
    %v4411 = vunpack.c.l.b16 %v3870
    %v4412 = vunpack.c.h.b16 %v3870
    %v4413 = vunpack.c.l.b16 %v3871
    %v4414 = vunpack.c.h.b16 %v3871
    %v4415 = vunpack.c.l.b16 %v3872
    %v4416 = vunpack.c.l.b16 %v3873
    %v4417 = vunpack.c.h.b16 %v3873
    %v4418 = vunpack.c.l.b16 %v3874
    %v4419 = vunpack.c.h.b16 %v3874
    %v4420 = vunpack.c.l.b16 %v3875
    %v4421 = vunpack.c.h.b16 %v3875
    %v4422 = vunpack.c.l.b16 %v3876
    %v4423 = vunpack.c.h.b16 %v3876
    %v4424 = vunpack.c.l.b16 %v3877
    %v4425 = vunpack.c.l.b16 %v3878
    %v4426 = vunpack.c.h.b16 %v3878
    %v4427 = vunpack.c.l.b16 %v3879
    %v4428 = vunpack.c.h.b16 %v3879
    %v4429 = vunpack.c.l.b16 %v3880
    %v4430 = vunpack.c.h.b16 %v3880
    %v4431 = vunpack.c.l.b16 %v3881
    %v4432 = vunpack.c.h.b16 %v3881
    %v4433 = vunpack.c.l.b16 %v3882
    %v4434 = vunpack.c.l.b16 %v3883
    %v4435 = vunpack.c.h.b16 %v3883
    %v4436 = vunpack.c.l.b16 %v3884
    %v4437 = vunpack.c.h.b16 %v3884
    %v4438 = vunpack.c.l.b16 %v3885
    %v4439 = vunpack.c.h.b16 %v3885
    %v4440 = vunpack.c.l.b16 %v3886
    %v4441 = vunpack.c.h.b16 %v3886
    %v4442 = vunpack.c.l.b16 %v3887
    %v4443 = vunpack.c.l.b16 %v3888
    %v4444 = vunpack.c.h.b16 %v3888
    %v4445 = vunpack.c.l.b16 %v3889
    %v4446 = vunpack.c.h.b16 %v3889
    %v4447 = vunpack.c.l.b16 %v3890
    %v4448 = vunpack.c.h.b16 %v3890
    %v4449 = vunpack.c.l.b16 %v3891
    %v4450 = vunpack.c.h.b16 %v3891
    %v4451 = vunpack.c.l.b16 %v3892
    %v4452 = vunpack.c.l.b16 %v3893
    %v4453 = vunpack.c.h.b16 %v3893
    %v4454 = vunpack.c.l.b16 %v3894
    %v4455 = vunpack.c.h.b16 %v3894
    %v4456 = vunpack.c.l.b16 %v3895
    %v4457 = vunpack.c.h.b16 %v3895
    %v4458 = vunpack.c.l.b16 %v3896
    %v4459 = vunpack.c.h.b16 %v3896
    %v4460 = vunpack.c.l.b16 %v3897
    %v4461 = vunpack.c.l.b16 %v3898
    %v4462 = vunpack.c.h.b16 %v3898
    %v4463 = vunpack.c.l.b16 %v3899
    %v4464 = vunpack.c.h.b16 %v3899
    %v4465 = vunpack.c.l.b16 %v3900
    %v4466 = vunpack.c.h.b16 %v3900
    %v4467 = vunpack.c.l.b16 %v3901
    %v4468 = vunpack.c.h.b16 %v3901
    %v4469 = vunpack.c.l.b16 %v3902
    %v4470 = vunpack.c.l.b16 %v3903
    %v4471 = vunpack.c.h.b16 %v3903
    %v4472 = vunpack.c.l.b16 %v3904
    %v4473 = vunpack.c.h.b16 %v3904
    %v4474 = vunpack.c.l.b16 %v3905
    %v4475 = vunpack.c.h.b16 %v3905
    %v4476 = vunpack.c.l.b16 %v3906
    %v4477 = vunpack.c.h.b16 %v3906
    %v4478 = vunpack.c.l.b16 %v3907
    %v4479 = vunpack.c.l.b16 %v3908
    %v4480 = vunpack.c.h.b16 %v3908
    %v4481 = vunpack.c.l.b16 %v3909
    %v4482 = vunpack.c.h.b16 %v3909
    %v4483 = vunpack.c.l.b16 %v3910
    %v4484 = vunpack.c.h.b16 %v3910
    %v4485 = vunpack.c.l.b16 %v3911
    %v4486 = vunpack.c.h.b16 %v3911
    %v4487 = vunpack.c.l.b16 %v3912
    %v4488 = vunpack.c.l.b16 %v3913
    %v4489 = vunpack.c.h.b16 %v3913
    %v4490 = vunpack.c.l.b16 %v3914
    %v4491 = vunpack.c.h.b16 %v3914
    %v4492 = vunpack.c.l.b16 %v3915
    %v4493 = vunpack.c.h.b16 %v3915
    %v4494 = vunpack.c.l.b16 %v3916
    %v4495 = vunpack.c.h.b16 %v3916
    %v4496 = vunpack.c.l.b16 %v3917
    %v4497 = vunpack.c.l.b16 %v3918
    %v4498 = vunpack.c.h.b16 %v3918
    %v4499 = vunpack.c.l.b16 %v3919
    %v4500 = vunpack.c.h.b16 %v3919
    %v4501 = vunpack.c.l.b16 %v3920
    %v4502 = vunpack.c.h.b16 %v3920
    %v4503 = vunpack.c.l.b16 %v3921
    %v4504 = vunpack.c.h.b16 %v3921
    %v4505 = vunpack.c.l.b16 %v3922
    %v4506 = vunpack.c.l.b16 %v3923
    %v4507 = vunpack.c.h.b16 %v3923
    %v4508 = vunpack.c.l.b16 %v3924
    %v4509 = vunpack.c.h.b16 %v3924
    %v4510 = vunpack.c.l.b16 %v3925
    %v4511 = vunpack.c.h.b16 %v3925
    %v4512 = vunpack.c.l.b16 %v3926
    %v4513 = vunpack.c.h.b16 %v3926
    %v4514 = vunpack.c.l.b16 %v3927
    %v4515 = vunpack.c.l.b16 %v3928
    %v4516 = vunpack.c.h.b16 %v3928
    %v4517 = vunpack.c.l.b16 %v3929
    %v4518 = vunpack.c.h.b16 %v3929
    %v4519 = vunpack.c.l.b16 %v3930
    %v4520 = vunpack.c.h.b16 %v3930
    %v4521 = vunpack.c.l.b16 %v3931
    %v4522 = vunpack.c.h.b16 %v3931
    %v4523 = vunpack.c.l.b16 %v3932
    %v4524 = vunpack.c.l.b16 %v3933
    %v4525 = vunpack.c.h.b16 %v3933
    %v4526 = vunpack.c.l.b16 %v3934
    %v4527 = vunpack.c.h.b16 %v3934
    %v4528 = vunpack.c.l.b16 %v3935
    %v4529 = vunpack.c.h.b16 %v3935
    %v4530 = vunpack.c.l.b16 %v3936
    %v4531 = vunpack.c.h.b16 %v3936
    %v4532 = vunpack.c.l.b16 %v3937
    %v4533 = vunpack.c.l.b16 %v3938
    %v4534 = vunpack.c.h.b16 %v3938
    %v4535 = vunpack.c.l.b16 %v3939
    %v4536 = vunpack.c.h.b16 %v3939
    %v4537 = vunpack.c.l.b16 %v3940
    %v4538 = vunpack.c.h.b16 %v3940
    %v4539 = vunpack.c.l.b16 %v3941
    %v4540 = vunpack.c.h.b16 %v3941
    %v4541 = vunpack.c.l.b16 %v3942
    %v4542 = vunpack.c.l.b16 %v3943
    %v4543 = vunpack.c.h.b16 %v3943
    %v4544 = vunpack.c.l.b16 %v3944
    %v4545 = vunpack.c.h.b16 %v3944
    %v4546 = vunpack.c.l.b16 %v3945
    %v4547 = vunpack.c.h.b16 %v3945
    %v4548 = vunpack.c.l.b16 %v3946
    %v4549 = vunpack.c.h.b16 %v3946
    %v4550 = vunpack.c.l.b16 %v3947
    %v4551 = vunpack.c.l.b16 %v3948
    %v4552 = vunpack.c.h.b16 %v3948
    %v4553 = vunpack.c.l.b16 %v3949
    %v4554 = vunpack.c.h.b16 %v3949
    %v4555 = vunpack.c.l.b16 %v3950
    %v4556 = vunpack.c.h.b16 %v3950
    %v4557 = vunpack.c.l.b16 %v3951
    %v4558 = vunpack.c.h.b16 %v3951
    %v4559 = vunpack.c.l.b16 %v3952
    %v4560 = vunpack.c.l.b16 %v3953
    %v4561 = vunpack.c.h.b16 %v3953
    %v4562 = vunpack.c.l.b16 %v3954
    %v4563 = vunpack.c.h.b16 %v3954
    %v4564 = vunpack.c.l.b16 %v3955
    %v4565 = vunpack.c.h.b16 %v3955
    %v4566 = vunpack.c.l.b16 %v3956
    %v4567 = vunpack.c.h.b16 %v3956
    %v4568 = vunpack.c.l.b16 %v3957
    %v4569 = vunpack.c.l.b16 %v3958
    %v4570 = vunpack.c.h.b16 %v3958
    %v4571 = vunpack.c.l.b16 %v3959
    %v4572 = vunpack.c.h.b16 %v3959
    %v4573 = vunpack.c.l.b16 %v3960
    %v4574 = vunpack.c.h.b16 %v3960
    %v4575 = vunpack.c.l.b16 %v3961
    %v4576 = vunpack.c.h.b16 %v3961
    %v4577 = vunpack.c.l.b16 %v3962
    %v4578 = vunpack.c.l.b16 %v3963
    %v4579 = vunpack.c.h.b16 %v3963
    %v4580 = vunpack.c.l.b16 %v3964
    %v4581 = vunpack.c.h.b16 %v3964
    %v4582 = vunpack.c.l.b16 %v3965
    %v4583 = vunpack.c.h.b16 %v3965
    %v4584 = vunpack.c.l.b16 %v3966
    %v4585 = vunpack.c.h.b16 %v3966
    %v4586 = vunpack.c.l.b16 %v3967
    %v4587 = vunpack.c.l.b16 %v3968
    %v4588 = vunpack.c.h.b16 %v3968
    %v4589 = vunpack.c.l.b16 %v3969
    %v4590 = vunpack.c.h.b16 %v3969
    %v4591 = vunpack.c.l.b16 %v3970
    %v4592 = vunpack.c.h.b16 %v3970
    %v4593 = vunpack.c.l.b16 %v3971
    %v4594 = vunpack.c.h.b16 %v3971
    %v4595 = vunpack.c.l.b16 %v3972
    %v4596 = vunpack.c.l.b16 %v3973
    %v4597 = vunpack.c.h.b16 %v3973
    %v4598 = vunpack.c.l.b16 %v3974
    %v4599 = vunpack.c.h.b16 %v3974
    %v4600 = vunpack.c.l.b16 %v3975
    %v4601 = vunpack.c.h.b16 %v3975
    %v4602 = vunpack.c.l.b16 %v3976
    %v4603 = vunpack.c.h.b16 %v3976
    %v4604 = vunpack.c.l.b16 %v3977
    %v4605 = vunpack.c.l.b16 %v3978
    %v4606 = vunpack.c.h.b16 %v3978
    %v4607 = vunpack.c.l.b16 %v3979
    %v4608 = vunpack.c.h.b16 %v3979
    %v4609 = vunpack.c.l.b16 %v3980
    %v4610 = vunpack.c.h.b16 %v3980
    %v4611 = vunpack.c.l.b16 %v3981
    %v4612 = vunpack.c.h.b16 %v3981
    %v4613 = vunpack.c.l.b16 %v3982
    %v4614 = vunpack.c.l.b16 %v3983
    %v4615 = vunpack.c.h.b16 %v3983
    %v4616 = vunpack.c.l.b16 %v3984
    %v4617 = vunpack.c.h.b16 %v3984
    %v4618 = vunpack.c.l.b16 %v3985
    %v4619 = vunpack.c.h.b16 %v3985
    %v4620 = vunpack.c.l.b16 %v3986
    %v4621 = vunpack.c.h.b16 %v3986
    %v4622 = vunpack.c.l.b16 %v3987
    %v4623 = vunpack.c.l.b16 %v3988
    %v4624 = vunpack.c.h.b16 %v3988
    %v4625 = vunpack.c.l.b16 %v3989
    %v4626 = vunpack.c.h.b16 %v3989
    %v4627 = vunpack.c.l.b16 %v3990
    %v4628 = vunpack.c.h.b16 %v3990
    %v4629 = vunpack.c.l.b16 %v3991
    %v4630 = vunpack.c.h.b16 %v3991
    %v4631 = vunpack.c.l.b16 %v3992
    %v4632 = vunpack.c.l.b16 %v3993
    %v4633 = vunpack.c.h.b16 %v3993
    %v4634 = vunpack.c.l.b16 %v3994
    %v4635 = vunpack.c.h.b16 %v3994
    %v4636 = vunpack.c.l.b16 %v3995
    %v4637 = vunpack.c.h.b16 %v3995
    %v4638 = vunpack.c.l.b16 %v3996
    %v4639 = vunpack.c.h.b16 %v3996
    %v4640 = vunpack.c.l.b16 %v3997
    %v4641 = vunpack.c.l.b16 %v3998
    %v4642 = vunpack.c.h.b16 %v3998
    %v4643 = vunpack.c.l.b16 %v3999
    %v4644 = vunpack.c.h.b16 %v3999
    %v4645 = vunpack.c.l.b16 %v4000
    %v4646 = vunpack.c.h.b16 %v4000
    %v4647 = vunpack.c.l.b16 %v4001
    %v4648 = vunpack.c.h.b16 %v4001
    %v4649 = vunpack.c.l.b16 %v4002
    %v4650 = vunpack.c.l.b16 %v4003
    %v4651 = vunpack.c.h.b16 %v4003
    %v4652 = vunpack.c.l.b16 %v4004
    %v4653 = vunpack.c.h.b16 %v4004
    %v4654 = vunpack.c.l.b16 %v4005
    %v4655 = vunpack.c.h.b16 %v4005
    %v4656 = vunpack.c.l.b16 %v4006
    %v4657 = vunpack.c.h.b16 %v4006
    %v4658 = vunpack.c.l.b16 %v4007
    %v4659 = vunpack.c.l.b16 %v4008
    %v4660 = vunpack.c.h.b16 %v4008
    %v4661 = vunpack.c.l.b16 %v4009
    %v4662 = vunpack.c.h.b16 %v4009
    %v4663 = vunpack.c.l.b16 %v4010
    %v4664 = vunpack.c.h.b16 %v4010
    %v4665 = vunpack.c.l.b16 %v4011
    %v4666 = vunpack.c.h.b16 %v4011
    %v4667 = vunpack.c.l.b16 %v4012
    %v4668 = vunpack.c.l.b16 %v4013
    %v4669 = vunpack.c.h.b16 %v4013
    %v4670 = vunpack.c.l.b16 %v4014
    %v4671 = vunpack.c.h.b16 %v4014
    %v4672 = vunpack.c.l.b16 %v4015
    %v4673 = vunpack.c.h.b16 %v4015
    %v4674 = vunpack.c.l.b16 %v4016
    %v4675 = vunpack.c.h.b16 %v4016
    %v4676 = vunpack.c.l.b16 %v4017
    %v4677 = vunpack.c.l.b16 %v4018
    %v4678 = vunpack.c.h.b16 %v4018
    %v4679 = vunpack.c.l.b16 %v4019
    %v4680 = vunpack.c.h.b16 %v4019
    %v4681 = vunpack.c.l.b16 %v4020
    %v4682 = vunpack.c.h.b16 %v4020
    %v4683 = vunpack.c.l.b16 %v4021
    %v4684 = vunpack.c.h.b16 %v4021
    %v4685 = vunpack.c.l.b16 %v4022
    %v4686 = vunpack.c.l.b16 %v4023
    %v4687 = vunpack.c.h.b16 %v4023
    %v4688 = vunpack.c.l.b16 %v4024
    %v4689 = vunpack.c.h.b16 %v4024
    %v4690 = vunpack.c.l.b16 %v4025
    %v4691 = vunpack.c.h.b16 %v4025
    %v4692 = vunpack.c.l.b16 %v4026
    %v4693 = vunpack.c.h.b16 %v4026
    %v4694 = vunpack.c.l.b16 %v4027
    %v4695 = vunpack.c.l.b16 %v4028
    %v4696 = vunpack.c.h.b16 %v4028
    %v4697 = vunpack.c.l.b16 %v4029
    %v4698 = vunpack.c.h.b16 %v4029
    %v4699 = vunpack.c.l.b16 %v4030
    %v4700 = vunpack.c.h.b16 %v4030
    %v4701 = vunpack.c.l.b16 %v4031
    %v4702 = vunpack.c.h.b16 %v4031
    %v4703 = vunpack.c.l.b16 %v4032
    %v4704 = vunpack.c.l.b16 %v4033
    %v4705 = vunpack.c.h.b16 %v4033
    %v4706 = vunpack.c.l.b16 %v4034
    %v4707 = vunpack.c.h.b16 %v4034
    %v4708 = vunpack.c.l.b16 %v4035
    %v4709 = vunpack.c.h.b16 %v4035
    %v4710 = vunpack.c.l.b16 %v4036
    %v4711 = vunpack.c.h.b16 %v4036
    %v4712 = vunpack.c.l.b16 %v4037
    %v4713 = vpack.c.b16 %v4290, %v4281
    %v4714 = vpack.c.b16 %v4291, %v4282
    %v4715 = vpack.c.b16 %v4292, %v4283
    %v4716 = vpack.c.b16 %v4293, %v4284
    %v4717 = vpack.c.b16 %v4294, %v4285
    %v4718 = vpack.c.b16 %v4295, %v4286
    %v4719 = vpack.c.b16 %v4296, %v4287
    %v4720 = vpack.c.b16 %v4297, %v4288
    %v4721 = vpack.c.b16 %v4298, %v4289
    %v4722 = vpack.c.b16 %v4308, %v4299
    %v4723 = vpack.c.b16 %v4309, %v4300
    %v4724 = vpack.c.b16 %v4310, %v4301
    %v4725 = vpack.c.b16 %v4311, %v4302
    %v4726 = vpack.c.b16 %v4312, %v4303
    %v4727 = vpack.c.b16 %v4313, %v4304
    %v4728 = vpack.c.b16 %v4314, %v4305
    %v4729 = vpack.c.b16 %v4315, %v4306
    %v4730 = vpack.c.b16 %v4316, %v4307
    %v4731 = vpack.c.b16 %v4326, %v4317
    %v4732 = vpack.c.b16 %v4327, %v4318
    %v4733 = vpack.c.b16 %v4328, %v4319
    %v4734 = vpack.c.b16 %v4329, %v4320
    %v4735 = vpack.c.b16 %v4330, %v4321
    %v4736 = vpack.c.b16 %v4331, %v4322
    %v4737 = vpack.c.b16 %v4332, %v4323
    %v4738 = vpack.c.b16 %v4333, %v4324
    %v4739 = vpack.c.b16 %v4334, %v4325
    %v4740 = vpack.c.b16 %v4344, %v4335
    %v4741 = vpack.c.b16 %v4345, %v4336
    %v4742 = vpack.c.b16 %v4346, %v4337
    %v4743 = vpack.c.b16 %v4347, %v4338
    %v4744 = vpack.c.b16 %v4348, %v4339
    %v4745 = vpack.c.b16 %v4349, %v4340
    %v4746 = vpack.c.b16 %v4350, %v4341
    %v4747 = vpack.c.b16 %v4351, %v4342
    %v4748 = vpack.c.b16 %v4352, %v4343
    %v4749 = vpack.c.b16 %v4362, %v4353
    %v4750 = vpack.c.b16 %v4363, %v4354
    %v4751 = vpack.c.b16 %v4364, %v4355
    %v4752 = vpack.c.b16 %v4365, %v4356
    %v4753 = vpack.c.b16 %v4366, %v4357
    %v4754 = vpack.c.b16 %v4367, %v4358
    %v4755 = vpack.c.b16 %v4368, %v4359
    %v4756 = vpack.c.b16 %v4369, %v4360
    %v4757 = vpack.c.b16 %v4370, %v4361
    %v4758 = vpack.c.b16 %v4380, %v4371
    %v4759 = vpack.c.b16 %v4381, %v4372
    %v4760 = vpack.c.b16 %v4382, %v4373
    %v4761 = vpack.c.b16 %v4383, %v4374
    %v4762 = vpack.c.b16 %v4384, %v4375
    %v4763 = vpack.c.b16 %v4385, %v4376
    %v4764 = vpack.c.b16 %v4386, %v4377
    %v4765 = vpack.c.b16 %v4387, %v4378
    %v4766 = vpack.c.b16 %v4388, %v4379
    %v4767 = vpack.c.b16 %v4398, %v4389
    %v4768 = vpack.c.b16 %v4399, %v4390
    %v4769 = vpack.c.b16 %v4400, %v4391
    %v4770 = vpack.c.b16 %v4401, %v4392
    %v4771 = vpack.c.b16 %v4402, %v4393
    %v4772 = vpack.c.b16 %v4403, %v4394
    %v4773 = vpack.c.b16 %v4404, %v4395
    %v4774 = vpack.c.b16 %v4405, %v4396
    %v4775 = vpack.c.b16 %v4406, %v4397
    %v4776 = vpack.c.b16 %v4416, %v4407
    %v4777 = vpack.c.b16 %v4417, %v4408
    %v4778 = vpack.c.b16 %v4418, %v4409
    %v4779 = vpack.c.b16 %v4419, %v4410
    %v4780 = vpack.c.b16 %v4420, %v4411
    %v4781 = vpack.c.b16 %v4421, %v4412
    %v4782 = vpack.c.b16 %v4422, %v4413
    %v4783 = vpack.c.b16 %v4423, %v4414
    %v4784 = vpack.c.b16 %v4424, %v4415
    %v4785 = vpack.c.b16 %v4434, %v4425
    %v4786 = vpack.c.b16 %v4435, %v4426
    %v4787 = vpack.c.b16 %v4436, %v4427
    %v4788 = vpack.c.b16 %v4437, %v4428
    %v4789 = vpack.c.b16 %v4438, %v4429
    %v4790 = vpack.c.b16 %v4439, %v4430
    %v4791 = vpack.c.b16 %v4440, %v4431
    %v4792 = vpack.c.b16 %v4441, %v4432
    %v4793 = vpack.c.b16 %v4442, %v4433
    %v4794 = vpack.c.b16 %v4452, %v4443
    %v4795 = vpack.c.b16 %v4453, %v4444
    %v4796 = vpack.c.b16 %v4454, %v4445
    %v4797 = vpack.c.b16 %v4455, %v4446
    %v4798 = vpack.c.b16 %v4456, %v4447
    %v4799 = vpack.c.b16 %v4457, %v4448
    %v4800 = vpack.c.b16 %v4458, %v4449
    %v4801 = vpack.c.b16 %v4459, %v4450
    %v4802 = vpack.c.b16 %v4460, %v4451
    %v4803 = vpack.c.b16 %v4470, %v4461
    %v4804 = vpack.c.b16 %v4471, %v4462
    %v4805 = vpack.c.b16 %v4472, %v4463
    %v4806 = vpack.c.b16 %v4473, %v4464
    %v4807 = vpack.c.b16 %v4474, %v4465
    %v4808 = vpack.c.b16 %v4475, %v4466
    %v4809 = vpack.c.b16 %v4476, %v4467
    %v4810 = vpack.c.b16 %v4477, %v4468
    %v4811 = vpack.c.b16 %v4478, %v4469
    %v4812 = vpack.c.b16 %v4488, %v4479
    %v4813 = vpack.c.b16 %v4489, %v4480
    %v4814 = vpack.c.b16 %v4490, %v4481
    %v4815 = vpack.c.b16 %v4491, %v4482
    %v4816 = vpack.c.b16 %v4492, %v4483
    %v4817 = vpack.c.b16 %v4493, %v4484
    %v4818 = vpack.c.b16 %v4494, %v4485
    %v4819 = vpack.c.b16 %v4495, %v4486
    %v4820 = vpack.c.b16 %v4496, %v4487
    %v4821 = vpack.c.b16 %v4506, %v4497
    %v4822 = vpack.c.b16 %v4507, %v4498
    %v4823 = vpack.c.b16 %v4508, %v4499
    %v4824 = vpack.c.b16 %v4509, %v4500
    %v4825 = vpack.c.b16 %v4510, %v4501
    %v4826 = vpack.c.b16 %v4511, %v4502
    %v4827 = vpack.c.b16 %v4512, %v4503
    %v4828 = vpack.c.b16 %v4513, %v4504
    %v4829 = vpack.c.b16 %v4514, %v4505
    %v4830 = vpack.c.b16 %v4524, %v4515
    %v4831 = vpack.c.b16 %v4525, %v4516
    %v4832 = vpack.c.b16 %v4526, %v4517
    %v4833 = vpack.c.b16 %v4527, %v4518
    %v4834 = vpack.c.b16 %v4528, %v4519
    %v4835 = vpack.c.b16 %v4529, %v4520
    %v4836 = vpack.c.b16 %v4530, %v4521
    %v4837 = vpack.c.b16 %v4531, %v4522
    %v4838 = vpack.c.b16 %v4532, %v4523
    %v4839 = vpack.c.b16 %v4542, %v4533
    %v4840 = vpack.c.b16 %v4543, %v4534
    %v4841 = vpack.c.b16 %v4544, %v4535
    %v4842 = vpack.c.b16 %v4545, %v4536
    %v4843 = vpack.c.b16 %v4546, %v4537
    %v4844 = vpack.c.b16 %v4547, %v4538
    %v4845 = vpack.c.b16 %v4548, %v4539
    %v4846 = vpack.c.b16 %v4549, %v4540
    %v4847 = vpack.c.b16 %v4550, %v4541
    %v4848 = vpack.c.b16 %v4560, %v4551
    %v4849 = vpack.c.b16 %v4561, %v4552
    %v4850 = vpack.c.b16 %v4562, %v4553
    %v4851 = vpack.c.b16 %v4563, %v4554
    %v4852 = vpack.c.b16 %v4564, %v4555
    %v4853 = vpack.c.b16 %v4565, %v4556
    %v4854 = vpack.c.b16 %v4566, %v4557
    %v4855 = vpack.c.b16 %v4567, %v4558
    %v4856 = vpack.c.b16 %v4568, %v4559
    %v4857 = vpack.c.b16 %v4578, %v4569
    %v4858 = vpack.c.b16 %v4579, %v4570
    %v4859 = vpack.c.b16 %v4580, %v4571
    %v4860 = vpack.c.b16 %v4581, %v4572
    %v4861 = vpack.c.b16 %v4582, %v4573
    %v4862 = vpack.c.b16 %v4583, %v4574
    %v4863 = vpack.c.b16 %v4584, %v4575
    %v4864 = vpack.c.b16 %v4585, %v4576
    %v4865 = vpack.c.b16 %v4586, %v4577
    %v4866 = vpack.c.b16 %v4596, %v4587
    %v4867 = vpack.c.b16 %v4597, %v4588
    %v4868 = vpack.c.b16 %v4598, %v4589
    %v4869 = vpack.c.b16 %v4599, %v4590
    %v4870 = vpack.c.b16 %v4600, %v4591
    %v4871 = vpack.c.b16 %v4601, %v4592
    %v4872 = vpack.c.b16 %v4602, %v4593
    %v4873 = vpack.c.b16 %v4603, %v4594
    %v4874 = vpack.c.b16 %v4604, %v4595
    %v4875 = vpack.c.b16 %v4614, %v4605
    %v4876 = vpack.c.b16 %v4615, %v4606
    %v4877 = vpack.c.b16 %v4616, %v4607
    %v4878 = vpack.c.b16 %v4617, %v4608
    %v4879 = vpack.c.b16 %v4618, %v4609
    %v4880 = vpack.c.b16 %v4619, %v4610
    %v4881 = vpack.c.b16 %v4620, %v4611
    %v4882 = vpack.c.b16 %v4621, %v4612
    %v4883 = vpack.c.b16 %v4622, %v4613
    %v4884 = vpack.c.b16 %v4632, %v4623
    %v4885 = vpack.c.b16 %v4633, %v4624
    %v4886 = vpack.c.b16 %v4634, %v4625
    %v4887 = vpack.c.b16 %v4635, %v4626
    %v4888 = vpack.c.b16 %v4636, %v4627
    %v4889 = vpack.c.b16 %v4637, %v4628
    %v4890 = vpack.c.b16 %v4638, %v4629
    %v4891 = vpack.c.b16 %v4639, %v4630
    %v4892 = vpack.c.b16 %v4640, %v4631
    %v4893 = vpack.c.b16 %v4650, %v4641
    %v4894 = vpack.c.b16 %v4651, %v4642
    %v4895 = vpack.c.b16 %v4652, %v4643
    %v4896 = vpack.c.b16 %v4653, %v4644
    %v4897 = vpack.c.b16 %v4654, %v4645
    %v4898 = vpack.c.b16 %v4655, %v4646
    %v4899 = vpack.c.b16 %v4656, %v4647
    %v4900 = vpack.c.b16 %v4657, %v4648
    %v4901 = vpack.c.b16 %v4658, %v4649
    %v4902 = vpack.c.b16 %v4668, %v4659
    %v4903 = vpack.c.b16 %v4669, %v4660
    %v4904 = vpack.c.b16 %v4670, %v4661
    %v4905 = vpack.c.b16 %v4671, %v4662
    %v4906 = vpack.c.b16 %v4672, %v4663
    %v4907 = vpack.c.b16 %v4673, %v4664
    %v4908 = vpack.c.b16 %v4674, %v4665
    %v4909 = vpack.c.b16 %v4675, %v4666
    %v4910 = vpack.c.b16 %v4676, %v4667
    %v4911 = vpack.c.b16 %v4686, %v4677
    %v4912 = vpack.c.b16 %v4687, %v4678
    %v4913 = vpack.c.b16 %v4688, %v4679
    %v4914 = vpack.c.b16 %v4689, %v4680
    %v4915 = vpack.c.b16 %v4690, %v4681
    %v4916 = vpack.c.b16 %v4691, %v4682
    %v4917 = vpack.c.b16 %v4692, %v4683
    %v4918 = vpack.c.b16 %v4693, %v4684
    %v4919 = vpack.c.b16 %v4694, %v4685
    %v4920 = vpack.c.b16 %v4704, %v4695
    %v4921 = vpack.c.b16 %v4705, %v4696
    %v4922 = vpack.c.b16 %v4706, %v4697
    %v4923 = vpack.c.b16 %v4707, %v4698
    %v4924 = vpack.c.b16 %v4708, %v4699
    %v4925 = vpack.c.b16 %v4709, %v4700
    %v4926 = vpack.c.b16 %v4710, %v4701
    %v4927 = vpack.c.b16 %v4711, %v4702
    %v4928 = vpack.c.b16 %v4712, %v4703
    %v5147 = vlaneseq
    %v5148 = vshrl.u32 %v5147, 7
    %v5149 = vsub.s32 0, %v5148
    %v5150 = vrot.slane %v4039, %v5149
    %v5151 = vlaneseq
    %v5152 = vshrl.u32 %v5151, 7
    %v5153 = vsub.s32 1, %v5152
    %v5154 = vrot.slane %v4039, %v5153
    %v5155 = vlaneseq
    %v5156 = vshrl.u32 %v5155, 7
    %v5157 = vsub.s32 2, %v5156
    %v5158 = vrot.slane %v4039, %v5157
    %v5159 = vlaneseq
    %v5160 = vshrl.u32 %v5159, 7
    %v5161 = vsub.s32 3, %v5160
    %v5162 = vrot.slane %v4039, %v5161
    %v5163 = vlaneseq
    %v5164 = vshrl.u32 %v5163, 7
    %v5165 = vsub.s32 4, %v5164
    %v5166 = vrot.slane %v4039, %v5165
    %v5167 = vlaneseq
    %v5168 = vshrl.u32 %v5167, 7
    %v5169 = vsub.s32 5, %v5168
    %v5170 = vrot.slane %v4039, %v5169
    %v5171 = vlaneseq
    %v5172 = vshrl.u32 %v5171, 7
    %v5173 = vsub.s32 6, %v5172
    %v5174 = vrot.slane %v4039, %v5173
    %v5175 = vlaneseq
    %v5176 = vshrl.u32 %v5175, 7
    %v5177 = vsub.s32 7, %v5176
    %v5178 = vrot.slane %v4039, %v5177
    %v5179 = vlaneseq
    %v5180 = vshrl.u32 %v5179, 7
    %v5181 = vsub.s32 0, %v5180
    %v5182 = vrot.slane %v4040, %v5181
    %5192 = vmatprep.subr.bf16.mxu0 %v4714
    %5193 = vmatpush1.bf16.msra.mxu0 %v4713
    %5194 = vmatprep.subr.bf16.mxu0 %v4723
    %5195 = vmatpush1.bf16.msra.mxu0 %v4722
    %5196 = vmatprep.subr.bf16.mxu0 %v4732
    %5197 = vmatpush1.bf16.msra.mxu0 %v4731
    %5198 = vmatprep.subr.bf16.mxu0 %v4741
    %5199 = vmatpush1.bf16.msra.mxu0 %v4740
    %5200 = vmatprep.subr.bf16.mxu0 %v4750
    %5201 = vmatpush1.bf16.msra.mxu0 %v4749
    %5202 = vmatprep.subr.bf16.mxu0 %v4759
    %5203 = vmatpush1.bf16.msra.mxu0 %v4758
    %5204 = vmatprep.subr.bf16.mxu0 %v4768
    %5205 = vmatpush1.bf16.msra.mxu0 %v4767
    %5206 = vmatprep.subr.bf16.mxu0 %v4777
    %5207 = vmatpush1.bf16.msra.mxu0 %v4776
    %5208 = vmatprep.subr.bf16.mxu0 %v4786
    %5209 = vmatpush1.bf16.msra.mxu0 %v4785
    %5210 = vmatprep.subr.bf16.mxu0 %v4795
    %5211 = vmatpush1.bf16.msra.mxu0 %v4794
    %5212 = vmatprep.subr.bf16.mxu0 %v4804
    %5213 = vmatpush1.bf16.msra.mxu0 %v4803
    %5214 = vmatprep.subr.bf16.mxu0 %v4813
    %5215 = vmatpush1.bf16.msra.mxu0 %v4812
    %5216 = vmatprep.subr.bf16.mxu0 %v4822
    %5217 = vmatpush1.bf16.msra.mxu0 %v4821
    %5218 = vmatprep.subr.bf16.mxu0 %v4831
    %5219 = vmatpush1.bf16.msra.mxu0 %v4830
    %5220 = vmatprep.subr.bf16.mxu0 %v4840
    %5221 = vmatpush1.bf16.msra.mxu0 %v4839
    %5222 = vmatprep.subr.bf16.mxu0 %v4849
    %5223 = vmatpush1.bf16.msra.mxu0 %v4848
    %5224 = vmatprep.mubr.bf16.mxu0 %v3795
    %5225 = vmatmul.mubr.bf16.gmra.mrb[0].mxu0 %v3794
    %v5226 = vpop.f32.mrb[0].mxu0
    %v5227 = vadd.f32 %v5150, %v5226
    %v5228 = vpop.f32.mrb[0].mxu0
    %v5229 = vadd.f32 %v5154, %v5228
    %v5230 = vpop.f32.mrb[0].mxu0
    %v5231 = vpop.f32.mrb[0].mxu0
    %5232 = vdwg.mxu0
    %5233 = vmatprep.subr.bf16.mxu0 %v4858
    %5234 = vmatpush1.bf16.msra.mxu0 %v4857
    %5235 = vmatprep.subr.bf16.mxu0 %v4867
    %5236 = vmatpush1.bf16.msra.mxu0 %v4866
    %5237 = vmatprep.subr.bf16.mxu0 %v4876
    %5238 = vmatpush1.bf16.msra.mxu0 %v4875
    %5239 = vmatprep.subr.bf16.mxu0 %v4885
    %5240 = vmatpush1.bf16.msra.mxu0 %v4884
    %5241 = vmatprep.subr.bf16.mxu0 %v4894
    %5242 = vmatpush1.bf16.msra.mxu0 %v4893
    %5243 = vmatprep.subr.bf16.mxu0 %v4903
    %5244 = vmatpush1.bf16.msra.mxu0 %v4902
    %5245 = vmatprep.subr.bf16.mxu0 %v4912
    %5246 = vmatpush1.bf16.msra.mxu0 %v4911
    %5247 = vmatprep.subr.bf16.mxu0 %v4921
    %5248 = vmatpush1.bf16.msra.mxu0 %v4920
    %5249 = vmatprep.subr.bf16.mxu0 0
    %5250 = vmatpush1.bf16.msra.mxu0 0
    %5251 = vmatprep.subr.bf16.mxu0 0
    %5252 = vmatpush1.bf16.msra.mxu0 0
    %5253 = vmatprep.subr.bf16.mxu0 0
    %5254 = vmatpush1.bf16.msra.mxu0 0
    %5255 = vmatprep.subr.bf16.mxu0 0
    %5256 = vmatpush1.bf16.msra.mxu0 0
    %5257 = vmatprep.subr.bf16.mxu0 0
    %5258 = vmatpush1.bf16.msra.mxu0 0
    %5259 = vmatprep.subr.bf16.mxu0 0
    %5260 = vmatpush1.bf16.msra.mxu0 0
    %5261 = vmatprep.subr.bf16.mxu0 0
    %5262 = vmatpush1.bf16.msra.mxu0 0
    %5263 = vmatprep.subr.bf16.mxu0 0
    %5264 = vmatpush1.bf16.msra.mxu0 0
    %5265 = vmatprep.mubr.bf16.mxu0 0
    %5266 = vmatmul.mubr.bf16.gmra.mrb[0].mxu0 %v3796
    %v5267 = vpop.f32.mrb[0].mxu0
    %v5268 = vadd.f32 %v5227, %v5267
    %v5269 = vpop.f32.mrb[0].mxu0
    %v5270 = vadd.f32 %v5229, %v5269
    %v5271 = vpop.f32.mrb[0].mxu0
    %v5272 = vpop.f32.mrb[0].mxu0
    %5273 = vdwg.mxu0
    %5274 = vmatprep.subr.bf16.mxu0 %v4716
    %5275 = vmatpush1.bf16.msra.mxu0 %v4715
    %5276 = vmatprep.subr.bf16.mxu0 %v4725
    %5277 = vmatpush1.bf16.msra.mxu0 %v4724
    %5278 = vmatprep.subr.bf16.mxu0 %v4734
    %5279 = vmatpush1.bf16.msra.mxu0 %v4733
    %5280 = vmatprep.subr.bf16.mxu0 %v4743
    %5281 = vmatpush1.bf16.msra.mxu0 %v4742
    %5282 = vmatprep.subr.bf16.mxu0 %v4752
    %5283 = vmatpush1.bf16.msra.mxu0 %v4751
    %5284 = vmatprep.subr.bf16.mxu0 %v4761
    %5285 = vmatpush1.bf16.msra.mxu0 %v4760
    %5286 = vmatprep.subr.bf16.mxu0 %v4770
    %5287 = vmatpush1.bf16.msra.mxu0 %v4769
    %5288 = vmatprep.subr.bf16.mxu0 %v4779
    %5289 = vmatpush1.bf16.msra.mxu0 %v4778
    %5290 = vmatprep.subr.bf16.mxu0 %v4788
    %5291 = vmatpush1.bf16.msra.mxu0 %v4787
    %5292 = vmatprep.subr.bf16.mxu0 %v4797
    %5293 = vmatpush1.bf16.msra.mxu0 %v4796
    %5294 = vmatprep.subr.bf16.mxu0 %v4806
    %5295 = vmatpush1.bf16.msra.mxu0 %v4805
    %5296 = vmatprep.subr.bf16.mxu0 %v4815
    %5297 = vmatpush1.bf16.msra.mxu0 %v4814
    %5298 = vmatprep.subr.bf16.mxu0 %v4824
    %5299 = vmatpush1.bf16.msra.mxu0 %v4823
    %5300 = vmatprep.subr.bf16.mxu0 %v4833
    %5301 = vmatpush1.bf16.msra.mxu0 %v4832
    %5302 = vmatprep.subr.bf16.mxu0 %v4842
    %5303 = vmatpush1.bf16.msra.mxu0 %v4841
    %5304 = vmatprep.subr.bf16.mxu0 %v4851
    %5305 = vmatpush1.bf16.msra.mxu0 %v4850
    %5306 = vmatprep.mubr.bf16.mxu0 %v3795
    %5307 = vmatmul.mubr.bf16.gmra.mrb[0].mxu0 %v3794
    %v5308 = vpop.f32.mrb[0].mxu0
    %v5309 = vadd.f32 %v5158, %v5308
    %v5310 = vpop.f32.mrb[0].mxu0
    %v5311 = vadd.f32 %v5162, %v5310
    %v5312 = vpop.f32.mrb[0].mxu0
    %v5313 = vpop.f32.mrb[0].mxu0
    %5314 = vdwg.mxu0
    %5315 = vmatprep.subr.bf16.mxu0 %v4860
    %5316 = vmatpush1.bf16.msra.mxu0 %v4859
    %5317 = vmatprep.subr.bf16.mxu0 %v4869
    %5318 = vmatpush1.bf16.msra.mxu0 %v4868
    %5319 = vmatprep.subr.bf16.mxu0 %v4878
    %5320 = vmatpush1.bf16.msra.mxu0 %v4877
    %5321 = vmatprep.subr.bf16.mxu0 %v4887
    %5322 = vmatpush1.bf16.msra.mxu0 %v4886
    %5323 = vmatprep.subr.bf16.mxu0 %v4896
    %5324 = vmatpush1.bf16.msra.mxu0 %v4895
    %5325 = vmatprep.subr.bf16.mxu0 %v4905
    %5326 = vmatpush1.bf16.msra.mxu0 %v4904
    %5327 = vmatprep.subr.bf16.mxu0 %v4914
    %5328 = vmatpush1.bf16.msra.mxu0 %v4913
    %5329 = vmatprep.subr.bf16.mxu0 %v4923
    %5330 = vmatpush1.bf16.msra.mxu0 %v4922
    %5331 = vmatprep.subr.bf16.mxu0 0
    %5332 = vmatpush1.bf16.msra.mxu0 0
    %5333 = vmatprep.subr.bf16.mxu0 0
    %5334 = vmatpush1.bf16.msra.mxu0 0
    %5335 = vmatprep.subr.bf16.mxu0 0
    %5336 = vmatpush1.bf16.msra.mxu0 0
    %5337 = vmatprep.subr.bf16.mxu0 0
    %5338 = vmatpush1.bf16.msra.mxu0 0
    %5339 = vmatprep.subr.bf16.mxu0 0
    %5340 = vmatpush1.bf16.msra.mxu0 0
    %5341 = vmatprep.subr.bf16.mxu0 0
    %5342 = vmatpush1.bf16.msra.mxu0 0
    %5343 = vmatprep.subr.bf16.mxu0 0
    %5344 = vmatpush1.bf16.msra.mxu0 0
    %5345 = vmatprep.subr.bf16.mxu0 0
    %5346 = vmatpush1.bf16.msra.mxu0 0
    %5347 = vmatprep.mubr.bf16.mxu0 0
    %5348 = vmatmul.mubr.bf16.gmra.mrb[0].mxu0 %v3796
    %v5349 = vpop.f32.mrb[0].mxu0
    %v5350 = vadd.f32 %v5309, %v5349
    %v5351 = vpop.f32.mrb[0].mxu0
    %v5352 = vadd.f32 %v5311, %v5351
    %v5353 = vpop.f32.mrb[0].mxu0
    %v5354 = vpop.f32.mrb[0].mxu0
    %5355 = vdwg.mxu0
    %5356 = vmatprep.subr.bf16.mxu0 %v4718
    %5357 = vmatpush1.bf16.msra.mxu0 %v4717
    %5358 = vmatprep.subr.bf16.mxu0 %v4727
    %5359 = vmatpush1.bf16.msra.mxu0 %v4726
    %5360 = vmatprep.subr.bf16.mxu0 %v4736
    %5361 = vmatpush1.bf16.msra.mxu0 %v4735
    %5362 = vmatprep.subr.bf16.mxu0 %v4745
    %5363 = vmatpush1.bf16.msra.mxu0 %v4744
    %5364 = vmatprep.subr.bf16.mxu0 %v4754
    %5365 = vmatpush1.bf16.msra.mxu0 %v4753
    %5366 = vmatprep.subr.bf16.mxu0 %v4763
    %5367 = vmatpush1.bf16.msra.mxu0 %v4762
    %5368 = vmatprep.subr.bf16.mxu0 %v4772
    %5369 = vmatpush1.bf16.msra.mxu0 %v4771
    %5370 = vmatprep.subr.bf16.mxu0 %v4781
    %5371 = vmatpush1.bf16.msra.mxu0 %v4780
    %5372 = vmatprep.subr.bf16.mxu0 %v4790
    %5373 = vmatpush1.bf16.msra.mxu0 %v4789
    %5374 = vmatprep.subr.bf16.mxu0 %v4799
    %5375 = vmatpush1.bf16.msra.mxu0 %v4798
    %5376 = vmatprep.subr.bf16.mxu0 %v4808
    %5377 = vmatpush1.bf16.msra.mxu0 %v4807
    %5378 = vmatprep.subr.bf16.mxu0 %v4817
    %5379 = vmatpush1.bf16.msra.mxu0 %v4816
    %5380 = vmatprep.subr.bf16.mxu0 %v4826
    %5381 = vmatpush1.bf16.msra.mxu0 %v4825
    %5382 = vmatprep.subr.bf16.mxu0 %v4835
    %5383 = vmatpush1.bf16.msra.mxu0 %v4834
    %5384 = vmatprep.subr.bf16.mxu0 %v4844
    %5385 = vmatpush1.bf16.msra.mxu0 %v4843
    %5386 = vmatprep.subr.bf16.mxu0 %v4853
    %5387 = vmatpush1.bf16.msra.mxu0 %v4852
    %5388 = vmatprep.mubr.bf16.mxu0 %v3795
    %5389 = vmatmul.mubr.bf16.gmra.mrb[0].mxu0 %v3794
    %v5390 = vpop.f32.mrb[0].mxu0
    %v5391 = vadd.f32 %v5166, %v5390
    %v5392 = vpop.f32.mrb[0].mxu0
    %v5393 = vadd.f32 %v5170, %v5392
    %v5394 = vpop.f32.mrb[0].mxu0
    %v5395 = vpop.f32.mrb[0].mxu0
    %5396 = vdwg.mxu0
    %5397 = vmatprep.subr.bf16.mxu0 %v4862
    %5398 = vmatpush1.bf16.msra.mxu0 %v4861
    %5399 = vmatprep.subr.bf16.mxu0 %v4871
    %5400 = vmatpush1.bf16.msra.mxu0 %v4870
    %5401 = vmatprep.subr.bf16.mxu0 %v4880
    %5402 = vmatpush1.bf16.msra.mxu0 %v4879
    %5403 = vmatprep.subr.bf16.mxu0 %v4889
    %5404 = vmatpush1.bf16.msra.mxu0 %v4888
    %5405 = vmatprep.subr.bf16.mxu0 %v4898
    %5406 = vmatpush1.bf16.msra.mxu0 %v4897
    %5407 = vmatprep.subr.bf16.mxu0 %v4907
    %5408 = vmatpush1.bf16.msra.mxu0 %v4906
    %5409 = vmatprep.subr.bf16.mxu0 %v4916
    %5410 = vmatpush1.bf16.msra.mxu0 %v4915
    %5411 = vmatprep.subr.bf16.mxu0 %v4925
    %5412 = vmatpush1.bf16.msra.mxu0 %v4924
    %5413 = vmatprep.subr.bf16.mxu0 0
    %5414 = vmatpush1.bf16.msra.mxu0 0
    %5415 = vmatprep.subr.bf16.mxu0 0
    %5416 = vmatpush1.bf16.msra.mxu0 0
    %5417 = vmatprep.subr.bf16.mxu0 0
    %5418 = vmatpush1.bf16.msra.mxu0 0
    %5419 = vmatprep.subr.bf16.mxu0 0
    %5420 = vmatpush1.bf16.msra.mxu0 0
    %5421 = vmatprep.subr.bf16.mxu0 0
    %5422 = vmatpush1.bf16.msra.mxu0 0
    %5423 = vmatprep.subr.bf16.mxu0 0
    %5424 = vmatpush1.bf16.msra.mxu0 0
    %5425 = vmatprep.subr.bf16.mxu0 0
    %5426 = vmatpush1.bf16.msra.mxu0 0
    %5427 = vmatprep.subr.bf16.mxu0 0
    %5428 = vmatpush1.bf16.msra.mxu0 0
    %5429 = vmatprep.mubr.bf16.mxu0 0
    %5430 = vmatmul.mubr.bf16.gmra.mrb[0].mxu0 %v3796
    %v5431 = vpop.f32.mrb[0].mxu0
    %v5432 = vadd.f32 %v5391, %v5431
    %v5433 = vpop.f32.mrb[0].mxu0
    %v5434 = vadd.f32 %v5393, %v5433
    %v5435 = vpop.f32.mrb[0].mxu0
    %v5436 = vpop.f32.mrb[0].mxu0
    %5437 = vdwg.mxu0
    %5438 = vmatprep.subr.bf16.mxu0 %v4720
    %5439 = vmatpush1.bf16.msra.mxu0 %v4719
    %5440 = vmatprep.subr.bf16.mxu0 %v4729
    %5441 = vmatpush1.bf16.msra.mxu0 %v4728
    %5442 = vmatprep.subr.bf16.mxu0 %v4738
    %5443 = vmatpush1.bf16.msra.mxu0 %v4737
    %5444 = vmatprep.subr.bf16.mxu0 %v4747
    %5445 = vmatpush1.bf16.msra.mxu0 %v4746
    %5446 = vmatprep.subr.bf16.mxu0 %v4756
    %5447 = vmatpush1.bf16.msra.mxu0 %v4755
    %5448 = vmatprep.subr.bf16.mxu0 %v4765
    %5449 = vmatpush1.bf16.msra.mxu0 %v4764
    %5450 = vmatprep.subr.bf16.mxu0 %v4774
    %5451 = vmatpush1.bf16.msra.mxu0 %v4773
    %5452 = vmatprep.subr.bf16.mxu0 %v4783
    %5453 = vmatpush1.bf16.msra.mxu0 %v4782
    %5454 = vmatprep.subr.bf16.mxu0 %v4792
    %5455 = vmatpush1.bf16.msra.mxu0 %v4791
    %5456 = vmatprep.subr.bf16.mxu0 %v4801
    %5457 = vmatpush1.bf16.msra.mxu0 %v4800
    %5458 = vmatprep.subr.bf16.mxu0 %v4810
    %5459 = vmatpush1.bf16.msra.mxu0 %v4809
    %5460 = vmatprep.subr.bf16.mxu0 %v4819
    %5461 = vmatpush1.bf16.msra.mxu0 %v4818
    %5462 = vmatprep.subr.bf16.mxu0 %v4828
    %5463 = vmatpush1.bf16.msra.mxu0 %v4827
    %5464 = vmatprep.subr.bf16.mxu0 %v4837
    %5465 = vmatpush1.bf16.msra.mxu0 %v4836
    %5466 = vmatprep.subr.bf16.mxu0 %v4846
    %5467 = vmatpush1.bf16.msra.mxu0 %v4845
    %5468 = vmatprep.subr.bf16.mxu0 %v4855
    %5469 = vmatpush1.bf16.msra.mxu0 %v4854
    %5470 = vmatprep.mubr.bf16.mxu0 %v3795
    %5471 = vmatmul.mubr.bf16.gmra.mrb[0].mxu0 %v3794
    %v5472 = vpop.f32.mrb[0].mxu0
    %v5473 = vadd.f32 %v5174, %v5472
    %v5474 = vpop.f32.mrb[0].mxu0
    %v5475 = vadd.f32 %v5178, %v5474
    %v5476 = vpop.f32.mrb[0].mxu0
    %v5477 = vpop.f32.mrb[0].mxu0
    %5478 = vdwg.mxu0
    %5479 = vmatprep.subr.bf16.mxu0 %v4864
    %5480 = vmatpush1.bf16.msra.mxu0 %v4863
    %5481 = vmatprep.subr.bf16.mxu0 %v4873
    %5482 = vmatpush1.bf16.msra.mxu0 %v4872
    %5483 = vmatprep.subr.bf16.mxu0 %v4882
    %5484 = vmatpush1.bf16.msra.mxu0 %v4881
    %5485 = vmatprep.subr.bf16.mxu0 %v4891
    %5486 = vmatpush1.bf16.msra.mxu0 %v4890
    %5487 = vmatprep.subr.bf16.mxu0 %v4900
    %5488 = vmatpush1.bf16.msra.mxu0 %v4899
    %5489 = vmatprep.subr.bf16.mxu0 %v4909
    %5490 = vmatpush1.bf16.msra.mxu0 %v4908
    %5491 = vmatprep.subr.bf16.mxu0 %v4918
    %5492 = vmatpush1.bf16.msra.mxu0 %v4917
    %5493 = vmatprep.subr.bf16.mxu0 %v4927
    %5494 = vmatpush1.bf16.msra.mxu0 %v4926
    %5495 = vmatprep.subr.bf16.mxu0 0
    %5496 = vmatpush1.bf16.msra.mxu0 0
    %5497 = vmatprep.subr.bf16.mxu0 0
    %5498 = vmatpush1.bf16.msra.mxu0 0
    %5499 = vmatprep.subr.bf16.mxu0 0
    %5500 = vmatpush1.bf16.msra.mxu0 0
    %5501 = vmatprep.subr.bf16.mxu0 0
    %5502 = vmatpush1.bf16.msra.mxu0 0
    %5503 = vmatprep.subr.bf16.mxu0 0
    %5504 = vmatpush1.bf16.msra.mxu0 0
    %5505 = vmatprep.subr.bf16.mxu0 0
    %5506 = vmatpush1.bf16.msra.mxu0 0
    %5507 = vmatprep.subr.bf16.mxu0 0
    %5508 = vmatpush1.bf16.msra.mxu0 0
    %5509 = vmatprep.subr.bf16.mxu0 0
    %5510 = vmatpush1.bf16.msra.mxu0 0
    %5511 = vmatprep.mubr.bf16.mxu0 0
    %5512 = vmatmul.mubr.bf16.gmra.mrb[0].mxu0 %v3796
    %v5513 = vpop.f32.mrb[0].mxu0
    %v5514 = vadd.f32 %v5473, %v5513
    %v5515 = vpop.f32.mrb[0].mxu0
    %v5516 = vadd.f32 %v5475, %v5515
    %v5517 = vpop.f32.mrb[0].mxu0
    %v5518 = vpop.f32.mrb[0].mxu0
    %5519 = vdwg.mxu0
    %5520 = vmatprep.subr.bf16.mxu0 0
    %5521 = vmatpush1.bf16.msra.mxu0 %v4721
    %5522 = vmatprep.subr.bf16.mxu0 0
    %5523 = vmatpush1.bf16.msra.mxu0 %v4730
    %5524 = vmatprep.subr.bf16.mxu0 0
    %5525 = vmatpush1.bf16.msra.mxu0 %v4739
    %5526 = vmatprep.subr.bf16.mxu0 0
    %5527 = vmatpush1.bf16.msra.mxu0 %v4748
    %5528 = vmatprep.subr.bf16.mxu0 0
    %5529 = vmatpush1.bf16.msra.mxu0 %v4757
    %5530 = vmatprep.subr.bf16.mxu0 0
    %5531 = vmatpush1.bf16.msra.mxu0 %v4766
    %5532 = vmatprep.subr.bf16.mxu0 0
    %5533 = vmatpush1.bf16.msra.mxu0 %v4775
    %5534 = vmatprep.subr.bf16.mxu0 0
    %5535 = vmatpush1.bf16.msra.mxu0 %v4784
    %5536 = vmatprep.subr.bf16.mxu0 0
    %5537 = vmatpush1.bf16.msra.mxu0 %v4793
    %5538 = vmatprep.subr.bf16.mxu0 0
    %5539 = vmatpush1.bf16.msra.mxu0 %v4802
    %5540 = vmatprep.subr.bf16.mxu0 0
    %5541 = vmatpush1.bf16.msra.mxu0 %v4811
    %5542 = vmatprep.subr.bf16.mxu0 0
    %5543 = vmatpush1.bf16.msra.mxu0 %v4820
    %5544 = vmatprep.subr.bf16.mxu0 0
    %5545 = vmatpush1.bf16.msra.mxu0 %v4829
    %5546 = vmatprep.subr.bf16.mxu0 0
    %5547 = vmatpush1.bf16.msra.mxu0 %v4838
    %5548 = vmatprep.subr.bf16.mxu0 0
    %5549 = vmatpush1.bf16.msra.mxu0 %v4847
    %5550 = vmatprep.subr.bf16.mxu0 0
    %5551 = vmatpush1.bf16.msra.mxu0 %v4856
    %5552 = vmatprep.mubr.bf16.mxu0 %v3795
    %5553 = vmatmul.mubr.bf16.gmra.mrb[0].mxu0 %v3794
    %v5554 = vpop.f32.mrb[0].mxu0
    %v5555 = vadd.f32 %v5182, %v5554
    %v5556 = vpop.f32.mrb[0].mxu0
    %v5557 = vpop.f32.mrb[0].mxu0
    %v5558 = vpop.f32.mrb[0].mxu0
    %5559 = vdwg.mxu0
    %5560 = vmatprep.subr.bf16.mxu0 0
    %5561 = vmatpush1.bf16.msra.mxu0 %v4865
    %5562 = vmatprep.subr.bf16.mxu0 0
    %5563 = vmatpush1.bf16.msra.mxu0 %v4874
    %5564 = vmatprep.subr.bf16.mxu0 0
    %5565 = vmatpush1.bf16.msra.mxu0 %v4883
    %5566 = vmatprep.subr.bf16.mxu0 0
    %5567 = vmatpush1.bf16.msra.mxu0 %v4892
    %5568 = vmatprep.subr.bf16.mxu0 0
    %5569 = vmatpush1.bf16.msra.mxu0 %v4901
    %5570 = vmatprep.subr.bf16.mxu0 0
    %5571 = vmatpush1.bf16.msra.mxu0 %v4910
    %5572 = vmatprep.subr.bf16.mxu0 0
    %5573 = vmatpush1.bf16.msra.mxu0 %v4919
    %5574 = vmatprep.subr.bf16.mxu0 0
    %5575 = vmatpush1.bf16.msra.mxu0 %v4928
    %5576 = vmatprep.subr.bf16.mxu0 0
    %5577 = vmatpush1.bf16.msra.mxu0 0
    %5578 = vmatprep.subr.bf16.mxu0 0
    %5579 = vmatpush1.bf16.msra.mxu0 0
    %5580 = vmatprep.subr.bf16.mxu0 0
    %5581 = vmatpush1.bf16.msra.mxu0 0
    %5582 = vmatprep.subr.bf16.mxu0 0
    %5583 = vmatpush1.bf16.msra.mxu0 0
    %5584 = vmatprep.subr.bf16.mxu0 0
    %5585 = vmatpush1.bf16.msra.mxu0 0
    %5586 = vmatprep.subr.bf16.mxu0 0
    %5587 = vmatpush1.bf16.msra.mxu0 0
    %5588 = vmatprep.subr.bf16.mxu0 0
    %5589 = vmatpush1.bf16.msra.mxu0 0
    %5590 = vmatprep.subr.bf16.mxu0 0
    %5591 = vmatpush1.bf16.msra.mxu0 0
    %5592 = vmatprep.mubr.bf16.mxu0 0
    %5593 = vmatmul.mubr.bf16.gmra.mrb[0].mxu0 %v3796
    %v5594 = vpop.f32.mrb[0].mxu0
    %v5595 = vadd.f32 %v5555, %v5594
    %v5596 = vpop.f32.mrb[0].mxu0
    %v5597 = vpop.f32.mrb[0].mxu0
    %v5598 = vpop.f32.mrb[0].mxu0
    %5599 = vdwg.mxu0
    %v5601 = vlaneseq
    %v5602 = vshrl.u32 %v5601, 7
    %v5603 = vsub.s32 0, %v5602
    %v5604 = vrot.slane %v130, %v5603
    %v5605 = vlaneseq
    %v5606 = vshrl.u32 %v5605, 7
    %v5607 = vsub.s32 1, %v5606
    %v5608 = vrot.slane %v130, %v5607
    %v5609 = vlaneseq
    %v5610 = vshrl.u32 %v5609, 7
    %v5611 = vsub.s32 2, %v5610
    %v5612 = vrot.slane %v130, %v5611
    %v5616 = vpack.c.bf16 %v5604, %v5604
    %v5617 = vpack.c.bf16 %v5608, %v5608
    %v5618 = vpack.c.bf16 %v5612, %v5612
    %v5619 = vld [vmem:[#allocation6] sm:$0xff]
    %v5620 = vld [vmem:[#allocation6 + $0x8] sm:$0xff]
    %v5621 = vld [vmem:[#allocation6 + $0x10] sm:$0xff]
    %v5622 = vld [vmem:[#allocation6 + $0x18] sm:$0xff]
    %v5623 = vld [vmem:[#allocation6 + $0x20] sm:$0xf]
    %v5624 = vld [vmem:[#allocation6 + $0x24] sm:$0xff]
    %v5625 = vld [vmem:[#allocation6 + $0x2c] sm:$0xff]
    %v5626 = vld [vmem:[#allocation6 + $0x34] sm:$0xff]
    %v5627 = vld [vmem:[#allocation6 + $0x3c] sm:$0xff]
    %v5628 = vld [vmem:[#allocation6 + $0x44] sm:$0xf]
    %v5629 = vld [vmem:[#allocation6 + $0x48] sm:$0xff]
    %v5630 = vld [vmem:[#allocation6 + $0x50] sm:$0xff]
    %v5631 = vld [vmem:[#allocation6 + $0x58] sm:$0xff]
    %v5632 = vld [vmem:[#allocation6 + $0x60] sm:$0xff]
    %v5633 = vld [vmem:[#allocation6 + $0x68] sm:$0xf]
    %v5634 = vld [vmem:[#allocation6 + $0x6c] sm:$0xff]
    %v5635 = vld [vmem:[#allocation6 + $0x74] sm:$0xff]
    %v5636 = vld [vmem:[#allocation6 + $0x7c] sm:$0xff]
    %v5637 = vld [vmem:[#allocation6 + $0x84] sm:$0xff]
    %v5638 = vld [vmem:[#allocation6 + $0x8c] sm:$0xf]
    %v5639 = vld [vmem:[#allocation6 + $0x90] sm:$0xff]
    %v5640 = vld [vmem:[#allocation6 + $0x98] sm:$0xff]
    %v5641 = vld [vmem:[#allocation6 + $0xa0] sm:$0xff]
    %v5642 = vld [vmem:[#allocation6 + $0xa8] sm:$0xff]
    %v5643 = vld [vmem:[#allocation6 + $0xb0] sm:$0xf]
    %v5644 = vld [vmem:[#allocation6 + $0xb4] sm:$0xff]
    %v5645 = vld [vmem:[#allocation6 + $0xbc] sm:$0xff]
    %v5646 = vld [vmem:[#allocation6 + $0xc4] sm:$0xff]
    %v5647 = vld [vmem:[#allocation6 + $0xcc] sm:$0xff]
    %v5648 = vld [vmem:[#allocation6 + $0xd4] sm:$0xf]
    %v5649 = vld [vmem:[#allocation6 + $0xd8] sm:$0xff]
    %v5650 = vld [vmem:[#allocation6 + $0xe0] sm:$0xff]
    %v5651 = vld [vmem:[#allocation6 + $0xe8] sm:$0xff]
    %v5652 = vld [vmem:[#allocation6 + $0xf0] sm:$0xff]
    %v5653 = vld [vmem:[#allocation6 + $0xf8] sm:$0xf]
    %v5654 = vld [vmem:[#allocation6 + $0xfc] sm:$0xff]
    %v5655 = vld [vmem:[#allocation6 + $0x104] sm:$0xff]
    %v5656 = vld [vmem:[#allocation6 + $0x10c] sm:$0xff]
    %v5657 = vld [vmem:[#allocation6 + $0x114] sm:$0xff]
    %v5658 = vld [vmem:[#allocation6 + $0x11c] sm:$0xf]
    %v5659 = vld [vmem:[#allocation6 + $0x120] sm:$0xff]
    %v5660 = vld [vmem:[#allocation6 + $0x128] sm:$0xff]
    %v5661 = vld [vmem:[#allocation6 + $0x130] sm:$0xff]
    %v5662 = vld [vmem:[#allocation6 + $0x138] sm:$0xff]
    %v5663 = vld [vmem:[#allocation6 + $0x140] sm:$0xf]
    %v5664 = vld [vmem:[#allocation6 + $0x144] sm:$0xff]
    %v5665 = vld [vmem:[#allocation6 + $0x14c] sm:$0xff]
    %v5666 = vld [vmem:[#allocation6 + $0x154] sm:$0xff]
    %v5667 = vld [vmem:[#allocation6 + $0x15c] sm:$0xff]
    %v5668 = vld [vmem:[#allocation6 + $0x164] sm:$0xf]
    %v5669 = vld [vmem:[#allocation6 + $0x168] sm:$0xff]
    %v5670 = vld [vmem:[#allocation6 + $0x170] sm:$0xff]
    %v5671 = vld [vmem:[#allocation6 + $0x178] sm:$0xff]
    %v5672 = vld [vmem:[#allocation6 + $0x180] sm:$0xff]
    %v5673 = vld [vmem:[#allocation6 + $0x188] sm:$0xf]
    %v5674 = vld [vmem:[#allocation6 + $0x18c] sm:$0xff]
    %v5675 = vld [vmem:[#allocation6 + $0x194] sm:$0xff]
    %v5676 = vld [vmem:[#allocation6 + $0x19c] sm:$0xff]
    %v5677 = vld [vmem:[#allocation6 + $0x1a4] sm:$0xff]
    %v5678 = vld [vmem:[#allocation6 + $0x1ac] sm:$0xf]
    %v5679 = vld [vmem:[#allocation6 + $0x1b0] sm:$0xff]
    %v5680 = vld [vmem:[#allocation6 + $0x1b8] sm:$0xff]
    %v5681 = vld [vmem:[#allocation6 + $0x1c0] sm:$0xff]
    %v5682 = vld [vmem:[#allocation6 + $0x1c8] sm:$0xff]
    %v5683 = vld [vmem:[#allocation6 + $0x1d0] sm:$0xf]
    %v5684 = vld [vmem:[#allocation6 + $0x1d4] sm:$0xff]
    %v5685 = vld [vmem:[#allocation6 + $0x1dc] sm:$0xff]
    %v5686 = vld [vmem:[#allocation6 + $0x1e4] sm:$0xff]
    %v5687 = vld [vmem:[#allocation6 + $0x1ec] sm:$0xff]
    %v5688 = vld [vmem:[#allocation6 + $0x1f4] sm:$0xf]
    %v5689 = vld [vmem:[#allocation6 + $0x1f8] sm:$0xff]
    %v5690 = vld [vmem:[#allocation6 + $0x200] sm:$0xff]
    %v5691 = vld [vmem:[#allocation6 + $0x208] sm:$0xff]
    %v5692 = vld [vmem:[#allocation6 + $0x210] sm:$0xff]
    %v5693 = vld [vmem:[#allocation6 + $0x218] sm:$0xf]
    %v5694 = vld [vmem:[#allocation6 + $0x21c] sm:$0xff]
    %v5695 = vld [vmem:[#allocation6 + $0x224] sm:$0xff]
    %v5696 = vld [vmem:[#allocation6 + $0x22c] sm:$0xff]
    %v5697 = vld [vmem:[#allocation6 + $0x234] sm:$0xff]
    %v5698 = vld [vmem:[#allocation6 + $0x23c] sm:$0xf]
    %v5699 = vld [vmem:[#allocation6 + $0x240] sm:$0xff]
    %v5700 = vld [vmem:[#allocation6 + $0x248] sm:$0xff]
    %v5701 = vld [vmem:[#allocation6 + $0x250] sm:$0xff]
    %v5702 = vld [vmem:[#allocation6 + $0x258] sm:$0xff]
    %v5703 = vld [vmem:[#allocation6 + $0x260] sm:$0xf]
    %v5704 = vld [vmem:[#allocation6 + $0x264] sm:$0xff]
    %v5705 = vld [vmem:[#allocation6 + $0x26c] sm:$0xff]
    %v5706 = vld [vmem:[#allocation6 + $0x274] sm:$0xff]
    %v5707 = vld [vmem:[#allocation6 + $0x27c] sm:$0xff]
    %v5708 = vld [vmem:[#allocation6 + $0x284] sm:$0xf]
    %v5709 = vld [vmem:[#allocation6 + $0x288] sm:$0xff]
    %v5710 = vld [vmem:[#allocation6 + $0x290] sm:$0xff]
    %v5711 = vld [vmem:[#allocation6 + $0x298] sm:$0xff]
    %v5712 = vld [vmem:[#allocation6 + $0x2a0] sm:$0xff]
    %v5713 = vld [vmem:[#allocation6 + $0x2a8] sm:$0xf]
    %v5714 = vld [vmem:[#allocation6 + $0x2ac] sm:$0xff]
    %v5715 = vld [vmem:[#allocation6 + $0x2b4] sm:$0xff]
    %v5716 = vld [vmem:[#allocation6 + $0x2bc] sm:$0xff]
    %v5717 = vld [vmem:[#allocation6 + $0x2c4] sm:$0xff]
    %v5718 = vld [vmem:[#allocation6 + $0x2cc] sm:$0xf]
    %v5719 = vld [vmem:[#allocation6 + $0x2d0] sm:$0xff]
    %v5720 = vld [vmem:[#allocation6 + $0x2d8] sm:$0xff]
    %v5721 = vld [vmem:[#allocation6 + $0x2e0] sm:$0xff]
    %v5722 = vld [vmem:[#allocation6 + $0x2e8] sm:$0xff]
    %v5723 = vld [vmem:[#allocation6 + $0x2f0] sm:$0xf]
    %v5724 = vld [vmem:[#allocation6 + $0x2f4] sm:$0xff]
    %v5725 = vld [vmem:[#allocation6 + $0x2fc] sm:$0xff]
    %v5726 = vld [vmem:[#allocation6 + $0x304] sm:$0xff]
    %v5727 = vld [vmem:[#allocation6 + $0x30c] sm:$0xff]
    %v5728 = vld [vmem:[#allocation6 + $0x314] sm:$0xf]
    %v5729 = vld [vmem:[#allocation6 + $0x318] sm:$0xff]
    %v5730 = vld [vmem:[#allocation6 + $0x320] sm:$0xff]
    %v5731 = vld [vmem:[#allocation6 + $0x328] sm:$0xff]
    %v5732 = vld [vmem:[#allocation6 + $0x330] sm:$0xff]
    %v5733 = vld [vmem:[#allocation6 + $0x338] sm:$0xf]
    %v5734 = vld [vmem:[#allocation6 + $0x33c] sm:$0xff]
    %v5735 = vld [vmem:[#allocation6 + $0x344] sm:$0xff]
    %v5736 = vld [vmem:[#allocation6 + $0x34c] sm:$0xff]
    %v5737 = vld [vmem:[#allocation6 + $0x354] sm:$0xff]
    %v5738 = vld [vmem:[#allocation6 + $0x35c] sm:$0xf]
    %v5739 = vld [vmem:[#allocation6 + $0x360] sm:$0xff]
    %v5740 = vld [vmem:[#allocation6 + $0x368] sm:$0xff]
    %v5741 = vld [vmem:[#allocation6 + $0x370] sm:$0xff]
    %v5742 = vld [vmem:[#allocation6 + $0x378] sm:$0xff]
    %v5743 = vld [vmem:[#allocation6 + $0x380] sm:$0xf]
    %v5744 = vld [vmem:[#allocation6 + $0x384] sm:$0xff]
    %v5745 = vld [vmem:[#allocation6 + $0x38c] sm:$0xff]
    %v5746 = vld [vmem:[#allocation6 + $0x394] sm:$0xff]
    %v5747 = vld [vmem:[#allocation6 + $0x39c] sm:$0xff]
    %v5748 = vld [vmem:[#allocation6 + $0x3a4] sm:$0xf]
    %v5749 = vld [vmem:[#allocation6 + $0x3a8] sm:$0xff]
    %v5750 = vld [vmem:[#allocation6 + $0x3b0] sm:$0xff]
    %v5751 = vld [vmem:[#allocation6 + $0x3b8] sm:$0xff]
    %v5752 = vld [vmem:[#allocation6 + $0x3c0] sm:$0xff]
    %v5753 = vld [vmem:[#allocation6 + $0x3c8] sm:$0xf]
    %v5754 = vld [vmem:[#allocation6 + $0x3cc] sm:$0xff]
    %v5755 = vld [vmem:[#allocation6 + $0x3d4] sm:$0xff]
    %v5756 = vld [vmem:[#allocation6 + $0x3dc] sm:$0xff]
    %v5757 = vld [vmem:[#allocation6 + $0x3e4] sm:$0xff]
    %v5758 = vld [vmem:[#allocation6 + $0x3ec] sm:$0xf]
    %v5759 = vld [vmem:[#allocation6 + $0x3f0] sm:$0xff]
    %v5760 = vld [vmem:[#allocation6 + $0x3f8] sm:$0xff]
    %v5761 = vld [vmem:[#allocation6 + $0x400] sm:$0xff]
    %v5762 = vld [vmem:[#allocation6 + $0x408] sm:$0xff]
    %v5763 = vld [vmem:[#allocation6 + $0x410] sm:$0xf]
    %v5764 = vld [vmem:[#allocation6 + $0x414] sm:$0xff]
    %v5765 = vld [vmem:[#allocation6 + $0x41c] sm:$0xff]
    %v5766 = vld [vmem:[#allocation6 + $0x424] sm:$0xff]
    %v5767 = vld [vmem:[#allocation6 + $0x42c] sm:$0xff]
    %v5768 = vld [vmem:[#allocation6 + $0x434] sm:$0xf]
    %v5769 = vld [vmem:[#allocation6 + $0x438] sm:$0xff]
    %v5770 = vld [vmem:[#allocation6 + $0x440] sm:$0xff]
    %v5771 = vld [vmem:[#allocation6 + $0x448] sm:$0xff]
    %v5772 = vld [vmem:[#allocation6 + $0x450] sm:$0xff]
    %v5773 = vld [vmem:[#allocation6 + $0x458] sm:$0xf]
    %v5774 = vld [vmem:[#allocation6 + $0x45c] sm:$0xff]
    %v5775 = vld [vmem:[#allocation6 + $0x464] sm:$0xff]
    %v5776 = vld [vmem:[#allocation6 + $0x46c] sm:$0xff]
    %v5777 = vld [vmem:[#allocation6 + $0x474] sm:$0xff]
    %v5778 = vld [vmem:[#allocation6 + $0x47c] sm:$0xf]
    %v5779 = vld [vmem:[#allocation6 + $0x480] sm:$0xff]
    %v5780 = vld [vmem:[#allocation6 + $0x488] sm:$0xff]
    %v5781 = vld [vmem:[#allocation6 + $0x490] sm:$0xff]
    %v5782 = vld [vmem:[#allocation6 + $0x498] sm:$0xff]
    %v5783 = vld [vmem:[#allocation6 + $0x4a0] sm:$0xf]
    %v5784 = vld [vmem:[#allocation6 + $0x4a4] sm:$0xff]
    %v5785 = vld [vmem:[#allocation6 + $0x4ac] sm:$0xff]
    %v5786 = vld [vmem:[#allocation6 + $0x4b4] sm:$0xff]
    %v5787 = vld [vmem:[#allocation6 + $0x4bc] sm:$0xff]
    %v5788 = vld [vmem:[#allocation6 + $0x4c4] sm:$0xf]
    %v5789 = vld [vmem:[#allocation6 + $0x4c8] sm:$0xff]
    %v5790 = vld [vmem:[#allocation6 + $0x4d0] sm:$0xff]
    %v5791 = vld [vmem:[#allocation6 + $0x4d8] sm:$0xff]
    %v5792 = vld [vmem:[#allocation6 + $0x4e0] sm:$0xff]
    %v5793 = vld [vmem:[#allocation6 + $0x4e8] sm:$0xf]
    %v5794 = vld [vmem:[#allocation6 + $0x4ec] sm:$0xff]
    %v5795 = vld [vmem:[#allocation6 + $0x4f4] sm:$0xff]
    %v5796 = vld [vmem:[#allocation6 + $0x4fc] sm:$0xff]
    %v5797 = vld [vmem:[#allocation6 + $0x504] sm:$0xff]
    %v5798 = vld [vmem:[#allocation6 + $0x50c] sm:$0xf]
    %v5799 = vld [vmem:[#allocation6 + $0x510] sm:$0xff]
    %v5800 = vld [vmem:[#allocation6 + $0x518] sm:$0xff]
    %v5801 = vld [vmem:[#allocation6 + $0x520] sm:$0xff]
    %v5802 = vld [vmem:[#allocation6 + $0x528] sm:$0xff]
    %v5803 = vld [vmem:[#allocation6 + $0x530] sm:$0xf]
    %v5804 = vld [vmem:[#allocation6 + $0x534] sm:$0xff]
    %v5805 = vld [vmem:[#allocation6 + $0x53c] sm:$0xff]
    %v5806 = vld [vmem:[#allocation6 + $0x544] sm:$0xff]
    %v5807 = vld [vmem:[#allocation6 + $0x54c] sm:$0xff]
    %v5808 = vld [vmem:[#allocation6 + $0x554] sm:$0xf]
    %v5809 = vld [vmem:[#allocation6 + $0x558] sm:$0xff]
    %v5810 = vld [vmem:[#allocation6 + $0x560] sm:$0xff]
    %v5811 = vld [vmem:[#allocation6 + $0x568] sm:$0xff]
    %v5812 = vld [vmem:[#allocation6 + $0x570] sm:$0xff]
    %v5813 = vld [vmem:[#allocation6 + $0x578] sm:$0xf]
    %v5814 = vld [vmem:[#allocation6 + $0x57c] sm:$0xff]
    %v5815 = vld [vmem:[#allocation6 + $0x584] sm:$0xff]
    %v5816 = vld [vmem:[#allocation6 + $0x58c] sm:$0xff]
    %v5817 = vld [vmem:[#allocation6 + $0x594] sm:$0xff]
    %v5818 = vld [vmem:[#allocation6 + $0x59c] sm:$0xf]
    %v5819 = vld [vmem:[#allocation6 + $0x5a0] sm:$0xff]
    %v5820 = vld [vmem:[#allocation6 + $0x5a8] sm:$0xff]
    %v5821 = vld [vmem:[#allocation6 + $0x5b0] sm:$0xff]
    %v5822 = vld [vmem:[#allocation6 + $0x5b8] sm:$0xff]
    %v5823 = vld [vmem:[#allocation6 + $0x5c0] sm:$0xf]
    %v5824 = vld [vmem:[#allocation6 + $0x5c4] sm:$0xff]
    %v5825 = vld [vmem:[#allocation6 + $0x5cc] sm:$0xff]
    %v5826 = vld [vmem:[#allocation6 + $0x5d4] sm:$0xff]
    %v5827 = vld [vmem:[#allocation6 + $0x5dc] sm:$0xff]
    %v5828 = vld [vmem:[#allocation6 + $0x5e4] sm:$0xf]
    %v5829 = vld [vmem:[#allocation6 + $0x5e8] sm:$0xff]
    %v5830 = vld [vmem:[#allocation6 + $0x5f0] sm:$0xff]
    %v5831 = vld [vmem:[#allocation6 + $0x5f8] sm:$0xff]
    %v5832 = vld [vmem:[#allocation6 + $0x600] sm:$0xff]
    %v5833 = vld [vmem:[#allocation6 + $0x608] sm:$0xf]
    %v5834 = vld [vmem:[#allocation6 + $0x60c] sm:$0xff]
    %v5835 = vld [vmem:[#allocation6 + $0x614] sm:$0xff]
    %v5836 = vld [vmem:[#allocation6 + $0x61c] sm:$0xff]
    %v5837 = vld [vmem:[#allocation6 + $0x624] sm:$0xff]
    %v5838 = vld [vmem:[#allocation6 + $0x62c] sm:$0xf]
    %v5839 = vld [vmem:[#allocation6 + $0x630] sm:$0xff]
    %v5840 = vld [vmem:[#allocation6 + $0x638] sm:$0xff]
    %v5841 = vld [vmem:[#allocation6 + $0x640] sm:$0xff]
    %v5842 = vld [vmem:[#allocation6 + $0x648] sm:$0xff]
    %v5843 = vld [vmem:[#allocation6 + $0x650] sm:$0xf]
    %v5844 = vld [vmem:[#allocation6 + $0x654] sm:$0xff]
    %v5845 = vld [vmem:[#allocation6 + $0x65c] sm:$0xff]
    %v5846 = vld [vmem:[#allocation6 + $0x664] sm:$0xff]
    %v5847 = vld [vmem:[#allocation6 + $0x66c] sm:$0xff]
    %v5848 = vld [vmem:[#allocation6 + $0x674] sm:$0xf]
    %v5849 = vld [vmem:[#allocation6 + $0x678] sm:$0xff]
    %v5850 = vld [vmem:[#allocation6 + $0x680] sm:$0xff]
    %v5851 = vld [vmem:[#allocation6 + $0x688] sm:$0xff]
    %v5852 = vld [vmem:[#allocation6 + $0x690] sm:$0xff]
    %v5853 = vld [vmem:[#allocation6 + $0x698] sm:$0xf]
    %v5854 = vld [vmem:[#allocation6 + $0x69c] sm:$0xff]
    %v5855 = vld [vmem:[#allocation6 + $0x6a4] sm:$0xff]
    %v5856 = vld [vmem:[#allocation6 + $0x6ac] sm:$0xff]
    %v5857 = vld [vmem:[#allocation6 + $0x6b4] sm:$0xff]
    %v5858 = vld [vmem:[#allocation6 + $0x6bc] sm:$0xf]
    %v5859 = vld [vmem:[#allocation9] sm:$0xff]
    %v5860 = vld [vmem:[#allocation9 + $0x8] sm:$0x1]
    %v6101 = vunpack.c.l.b16 %v5619
    %v6102 = vunpack.c.h.b16 %v5619
    %v6103 = vunpack.c.l.b16 %v5620
    %v6104 = vunpack.c.h.b16 %v5620
    %v6105 = vunpack.c.l.b16 %v5621
    %v6106 = vunpack.c.h.b16 %v5621
    %v6107 = vunpack.c.l.b16 %v5622
    %v6108 = vunpack.c.h.b16 %v5622
    %v6109 = vunpack.c.l.b16 %v5623
    %v6110 = vunpack.c.l.b16 %v5624
    %v6111 = vunpack.c.h.b16 %v5624
    %v6112 = vunpack.c.l.b16 %v5625
    %v6113 = vunpack.c.h.b16 %v5625
    %v6114 = vunpack.c.l.b16 %v5626
    %v6115 = vunpack.c.h.b16 %v5626
    %v6116 = vunpack.c.l.b16 %v5627
    %v6117 = vunpack.c.h.b16 %v5627
    %v6118 = vunpack.c.l.b16 %v5628
    %v6119 = vunpack.c.l.b16 %v5629
    %v6120 = vunpack.c.h.b16 %v5629
    %v6121 = vunpack.c.l.b16 %v5630
    %v6122 = vunpack.c.h.b16 %v5630
    %v6123 = vunpack.c.l.b16 %v5631
    %v6124 = vunpack.c.h.b16 %v5631
    %v6125 = vunpack.c.l.b16 %v5632
    %v6126 = vunpack.c.h.b16 %v5632
    %v6127 = vunpack.c.l.b16 %v5633
    %v6128 = vunpack.c.l.b16 %v5634
    %v6129 = vunpack.c.h.b16 %v5634
    %v6130 = vunpack.c.l.b16 %v5635
    %v6131 = vunpack.c.h.b16 %v5635
    %v6132 = vunpack.c.l.b16 %v5636
    %v6133 = vunpack.c.h.b16 %v5636
    %v6134 = vunpack.c.l.b16 %v5637
    %v6135 = vunpack.c.h.b16 %v5637
    %v6136 = vunpack.c.l.b16 %v5638
    %v6137 = vunpack.c.l.b16 %v5639
    %v6138 = vunpack.c.h.b16 %v5639
    %v6139 = vunpack.c.l.b16 %v5640
    %v6140 = vunpack.c.h.b16 %v5640
    %v6141 = vunpack.c.l.b16 %v5641
    %v6142 = vunpack.c.h.b16 %v5641
    %v6143 = vunpack.c.l.b16 %v5642
    %v6144 = vunpack.c.h.b16 %v5642
    %v6145 = vunpack.c.l.b16 %v5643
    %v6146 = vunpack.c.l.b16 %v5644
    %v6147 = vunpack.c.h.b16 %v5644
    %v6148 = vunpack.c.l.b16 %v5645
    %v6149 = vunpack.c.h.b16 %v5645
    %v6150 = vunpack.c.l.b16 %v5646
    %v6151 = vunpack.c.h.b16 %v5646
    %v6152 = vunpack.c.l.b16 %v5647
    %v6153 = vunpack.c.h.b16 %v5647
    %v6154 = vunpack.c.l.b16 %v5648
    %v6155 = vunpack.c.l.b16 %v5649
    %v6156 = vunpack.c.h.b16 %v5649
    %v6157 = vunpack.c.l.b16 %v5650
    %v6158 = vunpack.c.h.b16 %v5650
    %v6159 = vunpack.c.l.b16 %v5651
    %v6160 = vunpack.c.h.b16 %v5651
    %v6161 = vunpack.c.l.b16 %v5652
    %v6162 = vunpack.c.h.b16 %v5652
    %v6163 = vunpack.c.l.b16 %v5653
    %v6164 = vunpack.c.l.b16 %v5654
    %v6165 = vunpack.c.h.b16 %v5654
    %v6166 = vunpack.c.l.b16 %v5655
    %v6167 = vunpack.c.h.b16 %v5655
    %v6168 = vunpack.c.l.b16 %v5656
    %v6169 = vunpack.c.h.b16 %v5656
    %v6170 = vunpack.c.l.b16 %v5657
    %v6171 = vunpack.c.h.b16 %v5657
    %v6172 = vunpack.c.l.b16 %v5658
    %v6173 = vunpack.c.l.b16 %v5659
    %v6174 = vunpack.c.h.b16 %v5659
    %v6175 = vunpack.c.l.b16 %v5660
    %v6176 = vunpack.c.h.b16 %v5660
    %v6177 = vunpack.c.l.b16 %v5661
    %v6178 = vunpack.c.h.b16 %v5661
    %v6179 = vunpack.c.l.b16 %v5662
    %v6180 = vunpack.c.h.b16 %v5662
    %v6181 = vunpack.c.l.b16 %v5663
    %v6182 = vunpack.c.l.b16 %v5664
    %v6183 = vunpack.c.h.b16 %v5664
    %v6184 = vunpack.c.l.b16 %v5665
    %v6185 = vunpack.c.h.b16 %v5665
    %v6186 = vunpack.c.l.b16 %v5666
    %v6187 = vunpack.c.h.b16 %v5666
    %v6188 = vunpack.c.l.b16 %v5667
    %v6189 = vunpack.c.h.b16 %v5667
    %v6190 = vunpack.c.l.b16 %v5668
    %v6191 = vunpack.c.l.b16 %v5669
    %v6192 = vunpack.c.h.b16 %v5669
    %v6193 = vunpack.c.l.b16 %v5670
    %v6194 = vunpack.c.h.b16 %v5670
    %v6195 = vunpack.c.l.b16 %v5671
    %v6196 = vunpack.c.h.b16 %v5671
    %v6197 = vunpack.c.l.b16 %v5672
    %v6198 = vunpack.c.h.b16 %v5672
    %v6199 = vunpack.c.l.b16 %v5673
    %v6200 = vunpack.c.l.b16 %v5674
    %v6201 = vunpack.c.h.b16 %v5674
    %v6202 = vunpack.c.l.b16 %v5675
    %v6203 = vunpack.c.h.b16 %v5675
    %v6204 = vunpack.c.l.b16 %v5676
    %v6205 = vunpack.c.h.b16 %v5676
    %v6206 = vunpack.c.l.b16 %v5677
    %v6207 = vunpack.c.h.b16 %v5677
    %v6208 = vunpack.c.l.b16 %v5678
    %v6209 = vunpack.c.l.b16 %v5679
    %v6210 = vunpack.c.h.b16 %v5679
    %v6211 = vunpack.c.l.b16 %v5680
    %v6212 = vunpack.c.h.b16 %v5680
    %v6213 = vunpack.c.l.b16 %v5681
    %v6214 = vunpack.c.h.b16 %v5681
    %v6215 = vunpack.c.l.b16 %v5682
    %v6216 = vunpack.c.h.b16 %v5682
    %v6217 = vunpack.c.l.b16 %v5683
    %v6218 = vunpack.c.l.b16 %v5684
    %v6219 = vunpack.c.h.b16 %v5684
    %v6220 = vunpack.c.l.b16 %v5685
    %v6221 = vunpack.c.h.b16 %v5685
    %v6222 = vunpack.c.l.b16 %v5686
    %v6223 = vunpack.c.h.b16 %v5686
    %v6224 = vunpack.c.l.b16 %v5687
    %v6225 = vunpack.c.h.b16 %v5687
    %v6226 = vunpack.c.l.b16 %v5688
    %v6227 = vunpack.c.l.b16 %v5689
    %v6228 = vunpack.c.h.b16 %v5689
    %v6229 = vunpack.c.l.b16 %v5690
    %v6230 = vunpack.c.h.b16 %v5690
    %v6231 = vunpack.c.l.b16 %v5691
    %v6232 = vunpack.c.h.b16 %v5691
    %v6233 = vunpack.c.l.b16 %v5692
    %v6234 = vunpack.c.h.b16 %v5692
    %v6235 = vunpack.c.l.b16 %v5693
    %v6236 = vunpack.c.l.b16 %v5694
    %v6237 = vunpack.c.h.b16 %v5694
    %v6238 = vunpack.c.l.b16 %v5695
    %v6239 = vunpack.c.h.b16 %v5695
    %v6240 = vunpack.c.l.b16 %v5696
    %v6241 = vunpack.c.h.b16 %v5696
    %v6242 = vunpack.c.l.b16 %v5697
    %v6243 = vunpack.c.h.b16 %v5697
    %v6244 = vunpack.c.l.b16 %v5698
    %v6245 = vunpack.c.l.b16 %v5699
    %v6246 = vunpack.c.h.b16 %v5699
    %v6247 = vunpack.c.l.b16 %v5700
    %v6248 = vunpack.c.h.b16 %v5700
    %v6249 = vunpack.c.l.b16 %v5701
    %v6250 = vunpack.c.h.b16 %v5701
    %v6251 = vunpack.c.l.b16 %v5702
    %v6252 = vunpack.c.h.b16 %v5702
    %v6253 = vunpack.c.l.b16 %v5703
    %v6254 = vunpack.c.l.b16 %v5704
    %v6255 = vunpack.c.h.b16 %v5704
    %v6256 = vunpack.c.l.b16 %v5705
    %v6257 = vunpack.c.h.b16 %v5705
    %v6258 = vunpack.c.l.b16 %v5706
    %v6259 = vunpack.c.h.b16 %v5706
    %v6260 = vunpack.c.l.b16 %v5707
    %v6261 = vunpack.c.h.b16 %v5707
    %v6262 = vunpack.c.l.b16 %v5708
    %v6263 = vunpack.c.l.b16 %v5709
    %v6264 = vunpack.c.h.b16 %v5709
    %v6265 = vunpack.c.l.b16 %v5710
    %v6266 = vunpack.c.h.b16 %v5710
    %v6267 = vunpack.c.l.b16 %v5711
    %v6268 = vunpack.c.h.b16 %v5711
    %v6269 = vunpack.c.l.b16 %v5712
    %v6270 = vunpack.c.h.b16 %v5712
    %v6271 = vunpack.c.l.b16 %v5713
    %v6272 = vunpack.c.l.b16 %v5714
    %v6273 = vunpack.c.h.b16 %v5714
    %v6274 = vunpack.c.l.b16 %v5715
    %v6275 = vunpack.c.h.b16 %v5715
    %v6276 = vunpack.c.l.b16 %v5716
    %v6277 = vunpack.c.h.b16 %v5716
    %v6278 = vunpack.c.l.b16 %v5717
    %v6279 = vunpack.c.h.b16 %v5717
    %v6280 = vunpack.c.l.b16 %v5718
    %v6281 = vunpack.c.l.b16 %v5719
    %v6282 = vunpack.c.h.b16 %v5719
    %v6283 = vunpack.c.l.b16 %v5720
    %v6284 = vunpack.c.h.b16 %v5720
    %v6285 = vunpack.c.l.b16 %v5721
    %v6286 = vunpack.c.h.b16 %v5721
    %v6287 = vunpack.c.l.b16 %v5722
    %v6288 = vunpack.c.h.b16 %v5722
    %v6289 = vunpack.c.l.b16 %v5723
    %v6290 = vunpack.c.l.b16 %v5724
    %v6291 = vunpack.c.h.b16 %v5724
    %v6292 = vunpack.c.l.b16 %v5725
    %v6293 = vunpack.c.h.b16 %v5725
    %v6294 = vunpack.c.l.b16 %v5726
    %v6295 = vunpack.c.h.b16 %v5726
    %v6296 = vunpack.c.l.b16 %v5727
    %v6297 = vunpack.c.h.b16 %v5727
    %v6298 = vunpack.c.l.b16 %v5728
    %v6299 = vunpack.c.l.b16 %v5729
    %v6300 = vunpack.c.h.b16 %v5729
    %v6301 = vunpack.c.l.b16 %v5730
    %v6302 = vunpack.c.h.b16 %v5730
    %v6303 = vunpack.c.l.b16 %v5731
    %v6304 = vunpack.c.h.b16 %v5731
    %v6305 = vunpack.c.l.b16 %v5732
    %v6306 = vunpack.c.h.b16 %v5732
    %v6307 = vunpack.c.l.b16 %v5733
    %v6308 = vunpack.c.l.b16 %v5734
    %v6309 = vunpack.c.h.b16 %v5734
    %v6310 = vunpack.c.l.b16 %v5735
    %v6311 = vunpack.c.h.b16 %v5735
    %v6312 = vunpack.c.l.b16 %v5736
    %v6313 = vunpack.c.h.b16 %v5736
    %v6314 = vunpack.c.l.b16 %v5737
    %v6315 = vunpack.c.h.b16 %v5737
    %v6316 = vunpack.c.l.b16 %v5738
    %v6317 = vunpack.c.l.b16 %v5739
    %v6318 = vunpack.c.h.b16 %v5739
    %v6319 = vunpack.c.l.b16 %v5740
    %v6320 = vunpack.c.h.b16 %v5740
    %v6321 = vunpack.c.l.b16 %v5741
    %v6322 = vunpack.c.h.b16 %v5741
    %v6323 = vunpack.c.l.b16 %v5742
    %v6324 = vunpack.c.h.b16 %v5742
    %v6325 = vunpack.c.l.b16 %v5743
    %v6326 = vunpack.c.l.b16 %v5744
    %v6327 = vunpack.c.h.b16 %v5744
    %v6328 = vunpack.c.l.b16 %v5745
    %v6329 = vunpack.c.h.b16 %v5745
    %v6330 = vunpack.c.l.b16 %v5746
    %v6331 = vunpack.c.h.b16 %v5746
    %v6332 = vunpack.c.l.b16 %v5747
    %v6333 = vunpack.c.h.b16 %v5747
    %v6334 = vunpack.c.l.b16 %v5748
    %v6335 = vunpack.c.l.b16 %v5749
    %v6336 = vunpack.c.h.b16 %v5749
    %v6337 = vunpack.c.l.b16 %v5750
    %v6338 = vunpack.c.h.b16 %v5750
    %v6339 = vunpack.c.l.b16 %v5751
    %v6340 = vunpack.c.h.b16 %v5751
    %v6341 = vunpack.c.l.b16 %v5752
    %v6342 = vunpack.c.h.b16 %v5752
    %v6343 = vunpack.c.l.b16 %v5753
    %v6344 = vunpack.c.l.b16 %v5754
    %v6345 = vunpack.c.h.b16 %v5754
    %v6346 = vunpack.c.l.b16 %v5755
    %v6347 = vunpack.c.h.b16 %v5755
    %v6348 = vunpack.c.l.b16 %v5756
    %v6349 = vunpack.c.h.b16 %v5756
    %v6350 = vunpack.c.l.b16 %v5757
    %v6351 = vunpack.c.h.b16 %v5757
    %v6352 = vunpack.c.l.b16 %v5758
    %v6353 = vunpack.c.l.b16 %v5759
    %v6354 = vunpack.c.h.b16 %v5759
    %v6355 = vunpack.c.l.b16 %v5760
    %v6356 = vunpack.c.h.b16 %v5760
    %v6357 = vunpack.c.l.b16 %v5761
    %v6358 = vunpack.c.h.b16 %v5761
    %v6359 = vunpack.c.l.b16 %v5762
    %v6360 = vunpack.c.h.b16 %v5762
    %v6361 = vunpack.c.l.b16 %v5763
    %v6362 = vunpack.c.l.b16 %v5764
    %v6363 = vunpack.c.h.b16 %v5764
    %v6364 = vunpack.c.l.b16 %v5765
    %v6365 = vunpack.c.h.b16 %v5765
    %v6366 = vunpack.c.l.b16 %v5766
    %v6367 = vunpack.c.h.b16 %v5766
    %v6368 = vunpack.c.l.b16 %v5767
    %v6369 = vunpack.c.h.b16 %v5767
    %v6370 = vunpack.c.l.b16 %v5768
    %v6371 = vunpack.c.l.b16 %v5769
    %v6372 = vunpack.c.h.b16 %v5769
    %v6373 = vunpack.c.l.b16 %v5770
    %v6374 = vunpack.c.h.b16 %v5770
    %v6375 = vunpack.c.l.b16 %v5771
    %v6376 = vunpack.c.h.b16 %v5771
    %v6377 = vunpack.c.l.b16 %v5772
    %v6378 = vunpack.c.h.b16 %v5772
    %v6379 = vunpack.c.l.b16 %v5773
    %v6380 = vunpack.c.l.b16 %v5774
    %v6381 = vunpack.c.h.b16 %v5774
    %v6382 = vunpack.c.l.b16 %v5775
    %v6383 = vunpack.c.h.b16 %v5775
    %v6384 = vunpack.c.l.b16 %v5776
    %v6385 = vunpack.c.h.b16 %v5776
    %v6386 = vunpack.c.l.b16 %v5777
    %v6387 = vunpack.c.h.b16 %v5777
    %v6388 = vunpack.c.l.b16 %v5778
    %v6389 = vunpack.c.l.b16 %v5779
    %v6390 = vunpack.c.h.b16 %v5779
    %v6391 = vunpack.c.l.b16 %v5780
    %v6392 = vunpack.c.h.b16 %v5780
    %v6393 = vunpack.c.l.b16 %v5781
    %v6394 = vunpack.c.h.b16 %v5781
    %v6395 = vunpack.c.l.b16 %v5782
    %v6396 = vunpack.c.h.b16 %v5782
    %v6397 = vunpack.c.l.b16 %v5783
    %v6398 = vunpack.c.l.b16 %v5784
    %v6399 = vunpack.c.h.b16 %v5784
    %v6400 = vunpack.c.l.b16 %v5785
    %v6401 = vunpack.c.h.b16 %v5785
    %v6402 = vunpack.c.l.b16 %v5786
    %v6403 = vunpack.c.h.b16 %v5786
    %v6404 = vunpack.c.l.b16 %v5787
    %v6405 = vunpack.c.h.b16 %v5787
    %v6406 = vunpack.c.l.b16 %v5788
    %v6407 = vunpack.c.l.b16 %v5789
    %v6408 = vunpack.c.h.b16 %v5789
    %v6409 = vunpack.c.l.b16 %v5790
    %v6410 = vunpack.c.h.b16 %v5790
    %v6411 = vunpack.c.l.b16 %v5791
    %v6412 = vunpack.c.h.b16 %v5791
    %v6413 = vunpack.c.l.b16 %v5792
    %v6414 = vunpack.c.h.b16 %v5792
    %v6415 = vunpack.c.l.b16 %v5793
    %v6416 = vunpack.c.l.b16 %v5794
    %v6417 = vunpack.c.h.b16 %v5794
    %v6418 = vunpack.c.l.b16 %v5795
    %v6419 = vunpack.c.h.b16 %v5795
    %v6420 = vunpack.c.l.b16 %v5796
    %v6421 = vunpack.c.h.b16 %v5796
    %v6422 = vunpack.c.l.b16 %v5797
    %v6423 = vunpack.c.h.b16 %v5797
    %v6424 = vunpack.c.l.b16 %v5798
    %v6425 = vunpack.c.l.b16 %v5799
    %v6426 = vunpack.c.h.b16 %v5799
    %v6427 = vunpack.c.l.b16 %v5800
    %v6428 = vunpack.c.h.b16 %v5800
    %v6429 = vunpack.c.l.b16 %v5801
    %v6430 = vunpack.c.h.b16 %v5801
    %v6431 = vunpack.c.l.b16 %v5802
    %v6432 = vunpack.c.h.b16 %v5802
    %v6433 = vunpack.c.l.b16 %v5803
    %v6434 = vunpack.c.l.b16 %v5804
    %v6435 = vunpack.c.h.b16 %v5804
    %v6436 = vunpack.c.l.b16 %v5805
    %v6437 = vunpack.c.h.b16 %v5805
    %v6438 = vunpack.c.l.b16 %v5806
    %v6439 = vunpack.c.h.b16 %v5806
    %v6440 = vunpack.c.l.b16 %v5807
    %v6441 = vunpack.c.h.b16 %v5807
    %v6442 = vunpack.c.l.b16 %v5808
    %v6443 = vunpack.c.l.b16 %v5809
    %v6444 = vunpack.c.h.b16 %v5809
    %v6445 = vunpack.c.l.b16 %v5810
    %v6446 = vunpack.c.h.b16 %v5810
    %v6447 = vunpack.c.l.b16 %v5811
    %v6448 = vunpack.c.h.b16 %v5811
    %v6449 = vunpack.c.l.b16 %v5812
    %v6450 = vunpack.c.h.b16 %v5812
    %v6451 = vunpack.c.l.b16 %v5813
    %v6452 = vunpack.c.l.b16 %v5814
    %v6453 = vunpack.c.h.b16 %v5814
    %v6454 = vunpack.c.l.b16 %v5815
    %v6455 = vunpack.c.h.b16 %v5815
    %v6456 = vunpack.c.l.b16 %v5816
    %v6457 = vunpack.c.h.b16 %v5816
    %v6458 = vunpack.c.l.b16 %v5817
    %v6459 = vunpack.c.h.b16 %v5817
    %v6460 = vunpack.c.l.b16 %v5818
    %v6461 = vunpack.c.l.b16 %v5819
    %v6462 = vunpack.c.h.b16 %v5819
    %v6463 = vunpack.c.l.b16 %v5820
    %v6464 = vunpack.c.h.b16 %v5820
    %v6465 = vunpack.c.l.b16 %v5821
    %v6466 = vunpack.c.h.b16 %v5821
    %v6467 = vunpack.c.l.b16 %v5822
    %v6468 = vunpack.c.h.b16 %v5822
    %v6469 = vunpack.c.l.b16 %v5823
    %v6470 = vunpack.c.l.b16 %v5824
    %v6471 = vunpack.c.h.b16 %v5824
    %v6472 = vunpack.c.l.b16 %v5825
    %v6473 = vunpack.c.h.b16 %v5825
    %v6474 = vunpack.c.l.b16 %v5826
    %v6475 = vunpack.c.h.b16 %v5826
    %v6476 = vunpack.c.l.b16 %v5827
    %v6477 = vunpack.c.h.b16 %v5827
    %v6478 = vunpack.c.l.b16 %v5828
    %v6479 = vunpack.c.l.b16 %v5829
    %v6480 = vunpack.c.h.b16 %v5829
    %v6481 = vunpack.c.l.b16 %v5830
    %v6482 = vunpack.c.h.b16 %v5830
    %v6483 = vunpack.c.l.b16 %v5831
    %v6484 = vunpack.c.h.b16 %v5831
    %v6485 = vunpack.c.l.b16 %v5832
    %v6486 = vunpack.c.h.b16 %v5832
    %v6487 = vunpack.c.l.b16 %v5833
    %v6488 = vunpack.c.l.b16 %v5834
    %v6489 = vunpack.c.h.b16 %v5834
    %v6490 = vunpack.c.l.b16 %v5835
    %v6491 = vunpack.c.h.b16 %v5835
    %v6492 = vunpack.c.l.b16 %v5836
    %v6493 = vunpack.c.h.b16 %v5836
    %v6494 = vunpack.c.l.b16 %v5837
    %v6495 = vunpack.c.h.b16 %v5837
    %v6496 = vunpack.c.l.b16 %v5838
    %v6497 = vunpack.c.l.b16 %v5839
    %v6498 = vunpack.c.h.b16 %v5839
    %v6499 = vunpack.c.l.b16 %v5840
    %v6500 = vunpack.c.h.b16 %v5840
    %v6501 = vunpack.c.l.b16 %v5841
    %v6502 = vunpack.c.h.b16 %v5841
    %v6503 = vunpack.c.l.b16 %v5842
    %v6504 = vunpack.c.h.b16 %v5842
    %v6505 = vunpack.c.l.b16 %v5843
    %v6506 = vunpack.c.l.b16 %v5844
    %v6507 = vunpack.c.h.b16 %v5844
    %v6508 = vunpack.c.l.b16 %v5845
    %v6509 = vunpack.c.h.b16 %v5845
    %v6510 = vunpack.c.l.b16 %v5846
    %v6511 = vunpack.c.h.b16 %v5846
    %v6512 = vunpack.c.l.b16 %v5847
    %v6513 = vunpack.c.h.b16 %v5847
    %v6514 = vunpack.c.l.b16 %v5848
    %v6515 = vunpack.c.l.b16 %v5849
    %v6516 = vunpack.c.h.b16 %v5849
    %v6517 = vunpack.c.l.b16 %v5850
    %v6518 = vunpack.c.h.b16 %v5850
    %v6519 = vunpack.c.l.b16 %v5851
    %v6520 = vunpack.c.h.b16 %v5851
    %v6521 = vunpack.c.l.b16 %v5852
    %v6522 = vunpack.c.h.b16 %v5852
    %v6523 = vunpack.c.l.b16 %v5853
    %v6524 = vunpack.c.l.b16 %v5854
    %v6525 = vunpack.c.h.b16 %v5854
    %v6526 = vunpack.c.l.b16 %v5855
    %v6527 = vunpack.c.h.b16 %v5855
    %v6528 = vunpack.c.l.b16 %v5856
    %v6529 = vunpack.c.h.b16 %v5856
    %v6530 = vunpack.c.l.b16 %v5857
    %v6531 = vunpack.c.h.b16 %v5857
    %v6532 = vunpack.c.l.b16 %v5858
    %v6533 = vpack.c.b16 %v6110, %v6101
    %v6534 = vpack.c.b16 %v6111, %v6102
    %v6535 = vpack.c.b16 %v6112, %v6103
    %v6536 = vpack.c.b16 %v6113, %v6104
    %v6537 = vpack.c.b16 %v6114, %v6105
    %v6538 = vpack.c.b16 %v6115, %v6106
    %v6539 = vpack.c.b16 %v6116, %v6107
    %v6540 = vpack.c.b16 %v6117, %v6108
    %v6541 = vpack.c.b16 %v6118, %v6109
    %v6542 = vpack.c.b16 %v6128, %v6119
    %v6543 = vpack.c.b16 %v6129, %v6120
    %v6544 = vpack.c.b16 %v6130, %v6121
    %v6545 = vpack.c.b16 %v6131, %v6122
    %v6546 = vpack.c.b16 %v6132, %v6123
    %v6547 = vpack.c.b16 %v6133, %v6124
    %v6548 = vpack.c.b16 %v6134, %v6125
    %v6549 = vpack.c.b16 %v6135, %v6126
    %v6550 = vpack.c.b16 %v6136, %v6127
    %v6551 = vpack.c.b16 %v6146, %v6137
    %v6552 = vpack.c.b16 %v6147, %v6138
    %v6553 = vpack.c.b16 %v6148, %v6139
    %v6554 = vpack.c.b16 %v6149, %v6140
    %v6555 = vpack.c.b16 %v6150, %v6141
    %v6556 = vpack.c.b16 %v6151, %v6142
    %v6557 = vpack.c.b16 %v6152, %v6143
    %v6558 = vpack.c.b16 %v6153, %v6144
    %v6559 = vpack.c.b16 %v6154, %v6145
    %v6560 = vpack.c.b16 %v6164, %v6155
    %v6561 = vpack.c.b16 %v6165, %v6156
    %v6562 = vpack.c.b16 %v6166, %v6157
    %v6563 = vpack.c.b16 %v6167, %v6158
    %v6564 = vpack.c.b16 %v6168, %v6159
    %v6565 = vpack.c.b16 %v6169, %v6160
    %v6566 = vpack.c.b16 %v6170, %v6161
    %v6567 = vpack.c.b16 %v6171, %v6162
    %v6568 = vpack.c.b16 %v6172, %v6163
    %v6569 = vpack.c.b16 %v6182, %v6173
    %v6570 = vpack.c.b16 %v6183, %v6174
    %v6571 = vpack.c.b16 %v6184, %v6175
    %v6572 = vpack.c.b16 %v6185, %v6176
    %v6573 = vpack.c.b16 %v6186, %v6177
    %v6574 = vpack.c.b16 %v6187, %v6178
    %v6575 = vpack.c.b16 %v6188, %v6179
    %v6576 = vpack.c.b16 %v6189, %v6180
    %v6577 = vpack.c.b16 %v6190, %v6181
    %v6578 = vpack.c.b16 %v6200, %v6191
    %v6579 = vpack.c.b16 %v6201, %v6192
    %v6580 = vpack.c.b16 %v6202, %v6193
    %v6581 = vpack.c.b16 %v6203, %v6194
    %v6582 = vpack.c.b16 %v6204, %v6195
    %v6583 = vpack.c.b16 %v6205, %v6196
    %v6584 = vpack.c.b16 %v6206, %v6197
    %v6585 = vpack.c.b16 %v6207, %v6198
    %v6586 = vpack.c.b16 %v6208, %v6199
    %v6587 = vpack.c.b16 %v6218, %v6209
    %v6588 = vpack.c.b16 %v6219, %v6210
    %v6589 = vpack.c.b16 %v6220, %v6211
    %v6590 = vpack.c.b16 %v6221, %v6212
    %v6591 = vpack.c.b16 %v6222, %v6213
    %v6592 = vpack.c.b16 %v6223, %v6214
    %v6593 = vpack.c.b16 %v6224, %v6215
    %v6594 = vpack.c.b16 %v6225, %v6216
    %v6595 = vpack.c.b16 %v6226, %v6217
    %v6596 = vpack.c.b16 %v6236, %v6227
    %v6597 = vpack.c.b16 %v6237, %v6228
    %v6598 = vpack.c.b16 %v6238, %v6229
    %v6599 = vpack.c.b16 %v6239, %v6230
    %v6600 = vpack.c.b16 %v6240, %v6231
    %v6601 = vpack.c.b16 %v6241, %v6232
    %v6602 = vpack.c.b16 %v6242, %v6233
    %v6603 = vpack.c.b16 %v6243, %v6234
    %v6604 = vpack.c.b16 %v6244, %v6235
    %v6605 = vpack.c.b16 %v6254, %v6245
    %v6606 = vpack.c.b16 %v6255, %v6246
    %v6607 = vpack.c.b16 %v6256, %v6247
    %v6608 = vpack.c.b16 %v6257, %v6248
    %v6609 = vpack.c.b16 %v6258, %v6249
    %v6610 = vpack.c.b16 %v6259, %v6250
    %v6611 = vpack.c.b16 %v6260, %v6251
    %v6612 = vpack.c.b16 %v6261, %v6252
    %v6613 = vpack.c.b16 %v6262, %v6253
    %v6614 = vpack.c.b16 %v6272, %v6263
    %v6615 = vpack.c.b16 %v6273, %v6264
    %v6616 = vpack.c.b16 %v6274, %v6265
    %v6617 = vpack.c.b16 %v6275, %v6266
    %v6618 = vpack.c.b16 %v6276, %v6267
    %v6619 = vpack.c.b16 %v6277, %v6268
    %v6620 = vpack.c.b16 %v6278, %v6269
    %v6621 = vpack.c.b16 %v6279, %v6270
    %v6622 = vpack.c.b16 %v6280, %v6271
    %v6623 = vpack.c.b16 %v6290, %v6281
    %v6624 = vpack.c.b16 %v6291, %v6282
    %v6625 = vpack.c.b16 %v6292, %v6283
    %v6626 = vpack.c.b16 %v6293, %v6284
    %v6627 = vpack.c.b16 %v6294, %v6285
    %v6628 = vpack.c.b16 %v6295, %v6286
    %v6629 = vpack.c.b16 %v6296, %v6287
    %v6630 = vpack.c.b16 %v6297, %v6288
    %v6631 = vpack.c.b16 %v6298, %v6289
    %v6632 = vpack.c.b16 %v6308, %v6299
    %v6633 = vpack.c.b16 %v6309, %v6300
    %v6634 = vpack.c.b16 %v6310, %v6301
    %v6635 = vpack.c.b16 %v6311, %v6302
    %v6636 = vpack.c.b16 %v6312, %v6303
    %v6637 = vpack.c.b16 %v6313, %v6304
    %v6638 = vpack.c.b16 %v6314, %v6305
    %v6639 = vpack.c.b16 %v6315, %v6306
    %v6640 = vpack.c.b16 %v6316, %v6307
    %v6641 = vpack.c.b16 %v6326, %v6317
    %v6642 = vpack.c.b16 %v6327, %v6318
    %v6643 = vpack.c.b16 %v6328, %v6319
    %v6644 = vpack.c.b16 %v6329, %v6320
    %v6645 = vpack.c.b16 %v6330, %v6321
    %v6646 = vpack.c.b16 %v6331, %v6322
    %v6647 = vpack.c.b16 %v6332, %v6323
    %v6648 = vpack.c.b16 %v6333, %v6324
    %v6649 = vpack.c.b16 %v6334, %v6325
    %v6650 = vpack.c.b16 %v6344, %v6335
    %v6651 = vpack.c.b16 %v6345, %v6336
    %v6652 = vpack.c.b16 %v6346, %v6337
    %v6653 = vpack.c.b16 %v6347, %v6338
    %v6654 = vpack.c.b16 %v6348, %v6339
    %v6655 = vpack.c.b16 %v6349, %v6340
    %v6656 = vpack.c.b16 %v6350, %v6341
    %v6657 = vpack.c.b16 %v6351, %v6342
    %v6658 = vpack.c.b16 %v6352, %v6343
    %v6659 = vpack.c.b16 %v6362, %v6353
    %v6660 = vpack.c.b16 %v6363, %v6354
    %v6661 = vpack.c.b16 %v6364, %v6355
    %v6662 = vpack.c.b16 %v6365, %v6356
    %v6663 = vpack.c.b16 %v6366, %v6357
    %v6664 = vpack.c.b16 %v6367, %v6358
    %v6665 = vpack.c.b16 %v6368, %v6359
    %v6666 = vpack.c.b16 %v6369, %v6360
    %v6667 = vpack.c.b16 %v6370, %v6361
    %v6668 = vpack.c.b16 %v6380, %v6371
    %v6669 = vpack.c.b16 %v6381, %v6372
    %v6670 = vpack.c.b16 %v6382, %v6373
    %v6671 = vpack.c.b16 %v6383, %v6374
    %v6672 = vpack.c.b16 %v6384, %v6375
    %v6673 = vpack.c.b16 %v6385, %v6376
    %v6674 = vpack.c.b16 %v6386, %v6377
    %v6675 = vpack.c.b16 %v6387, %v6378
    %v6676 = vpack.c.b16 %v6388, %v6379
    %v6677 = vpack.c.b16 %v6398, %v6389
    %v6678 = vpack.c.b16 %v6399, %v6390
    %v6679 = vpack.c.b16 %v6400, %v6391
    %v6680 = vpack.c.b16 %v6401, %v6392
    %v6681 = vpack.c.b16 %v6402, %v6393
    %v6682 = vpack.c.b16 %v6403, %v6394
    %v6683 = vpack.c.b16 %v6404, %v6395
    %v6684 = vpack.c.b16 %v6405, %v6396
    %v6685 = vpack.c.b16 %v6406, %v6397
    %v6686 = vpack.c.b16 %v6416, %v6407
    %v6687 = vpack.c.b16 %v6417, %v6408
    %v6688 = vpack.c.b16 %v6418, %v6409
    %v6689 = vpack.c.b16 %v6419, %v6410
    %v6690 = vpack.c.b16 %v6420, %v6411
    %v6691 = vpack.c.b16 %v6421, %v6412
    %v6692 = vpack.c.b16 %v6422, %v6413
    %v6693 = vpack.c.b16 %v6423, %v6414
    %v6694 = vpack.c.b16 %v6424, %v6415
    %v6695 = vpack.c.b16 %v6434, %v6425
    %v6696 = vpack.c.b16 %v6435, %v6426
    %v6697 = vpack.c.b16 %v6436, %v6427
    %v6698 = vpack.c.b16 %v6437, %v6428
    %v6699 = vpack.c.b16 %v6438, %v6429
    %v6700 = vpack.c.b16 %v6439, %v6430
    %v6701 = vpack.c.b16 %v6440, %v6431
    %v6702 = vpack.c.b16 %v6441, %v6432
    %v6703 = vpack.c.b16 %v6442, %v6433
    %v6704 = vpack.c.b16 %v6452, %v6443
    %v6705 = vpack.c.b16 %v6453, %v6444
    %v6706 = vpack.c.b16 %v6454, %v6445
    %v6707 = vpack.c.b16 %v6455, %v6446
    %v6708 = vpack.c.b16 %v6456, %v6447
    %v6709 = vpack.c.b16 %v6457, %v6448
    %v6710 = vpack.c.b16 %v6458, %v6449
    %v6711 = vpack.c.b16 %v6459, %v6450
    %v6712 = vpack.c.b16 %v6460, %v6451
    %v6713 = vpack.c.b16 %v6470, %v6461
    %v6714 = vpack.c.b16 %v6471, %v6462
    %v6715 = vpack.c.b16 %v6472, %v6463
    %v6716 = vpack.c.b16 %v6473, %v6464
    %v6717 = vpack.c.b16 %v6474, %v6465
    %v6718 = vpack.c.b16 %v6475, %v6466
    %v6719 = vpack.c.b16 %v6476, %v6467
    %v6720 = vpack.c.b16 %v6477, %v6468
    %v6721 = vpack.c.b16 %v6478, %v6469
    %v6722 = vpack.c.b16 %v6488, %v6479
    %v6723 = vpack.c.b16 %v6489, %v6480
    %v6724 = vpack.c.b16 %v6490, %v6481
    %v6725 = vpack.c.b16 %v6491, %v6482
    %v6726 = vpack.c.b16 %v6492, %v6483
    %v6727 = vpack.c.b16 %v6493, %v6484
    %v6728 = vpack.c.b16 %v6494, %v6485
    %v6729 = vpack.c.b16 %v6495, %v6486
    %v6730 = vpack.c.b16 %v6496, %v6487
    %v6731 = vpack.c.b16 %v6506, %v6497
    %v6732 = vpack.c.b16 %v6507, %v6498
    %v6733 = vpack.c.b16 %v6508, %v6499
    %v6734 = vpack.c.b16 %v6509, %v6500
    %v6735 = vpack.c.b16 %v6510, %v6501
    %v6736 = vpack.c.b16 %v6511, %v6502
    %v6737 = vpack.c.b16 %v6512, %v6503
    %v6738 = vpack.c.b16 %v6513, %v6504
    %v6739 = vpack.c.b16 %v6514, %v6505
    %v6740 = vpack.c.b16 %v6524, %v6515
    %v6741 = vpack.c.b16 %v6525, %v6516
    %v6742 = vpack.c.b16 %v6526, %v6517
    %v6743 = vpack.c.b16 %v6527, %v6518
    %v6744 = vpack.c.b16 %v6528, %v6519
    %v6745 = vpack.c.b16 %v6529, %v6520
    %v6746 = vpack.c.b16 %v6530, %v6521
    %v6747 = vpack.c.b16 %v6531, %v6522
    %v6748 = vpack.c.b16 %v6532, %v6523
    %v6967 = vlaneseq
    %v6968 = vshrl.u32 %v6967, 7
    %v6969 = vsub.s32 0, %v6968
    %v6970 = vrot.slane %v5859, %v6969
    %v6971 = vlaneseq
    %v6972 = vshrl.u32 %v6971, 7
    %v6973 = vsub.s32 1, %v6972
    %v6974 = vrot.slane %v5859, %v6973
    %v6975 = vlaneseq
    %v6976 = vshrl.u32 %v6975, 7
    %v6977 = vsub.s32 2, %v6976
    %v6978 = vrot.slane %v5859, %v6977
    %v6979 = vlaneseq
    %v6980 = vshrl.u32 %v6979, 7
    %v6981 = vsub.s32 3, %v6980
    %v6982 = vrot.slane %v5859, %v6981
    %v6983 = vlaneseq
    %v6984 = vshrl.u32 %v6983, 7
    %v6985 = vsub.s32 4, %v6984
    %v6986 = vrot.slane %v5859, %v6985
    %v6987 = vlaneseq
    %v6988 = vshrl.u32 %v6987, 7
    %v6989 = vsub.s32 5, %v6988
    %v6990 = vrot.slane %v5859, %v6989
    %v6991 = vlaneseq
    %v6992 = vshrl.u32 %v6991, 7
    %v6993 = vsub.s32 6, %v6992
    %v6994 = vrot.slane %v5859, %v6993
    %v6995 = vlaneseq
    %v6996 = vshrl.u32 %v6995, 7
    %v6997 = vsub.s32 7, %v6996
    %v6998 = vrot.slane %v5859, %v6997
    %v6999 = vlaneseq
    %v7000 = vshrl.u32 %v6999, 7
    %v7001 = vsub.s32 0, %v7000
    %v7002 = vrot.slane %v5860, %v7001
    %7012 = vmatprep.subr.bf16.mxu0 %v6534
    %7013 = vmatpush1.bf16.msra.mxu0 %v6533
    %7014 = vmatprep.subr.bf16.mxu0 %v6543
    %7015 = vmatpush1.bf16.msra.mxu0 %v6542
    %7016 = vmatprep.subr.bf16.mxu0 %v6552
    %7017 = vmatpush1.bf16.msra.mxu0 %v6551
    %7018 = vmatprep.subr.bf16.mxu0 %v6561
    %7019 = vmatpush1.bf16.msra.mxu0 %v6560
    %7020 = vmatprep.subr.bf16.mxu0 %v6570
    %7021 = vmatpush1.bf16.msra.mxu0 %v6569
    %7022 = vmatprep.subr.bf16.mxu0 %v6579
    %7023 = vmatpush1.bf16.msra.mxu0 %v6578
    %7024 = vmatprep.subr.bf16.mxu0 %v6588
    %7025 = vmatpush1.bf16.msra.mxu0 %v6587
    %7026 = vmatprep.subr.bf16.mxu0 %v6597
    %7027 = vmatpush1.bf16.msra.mxu0 %v6596
    %7028 = vmatprep.subr.bf16.mxu0 %v6606
    %7029 = vmatpush1.bf16.msra.mxu0 %v6605
    %7030 = vmatprep.subr.bf16.mxu0 %v6615
    %7031 = vmatpush1.bf16.msra.mxu0 %v6614
    %7032 = vmatprep.subr.bf16.mxu0 %v6624
    %7033 = vmatpush1.bf16.msra.mxu0 %v6623
    %7034 = vmatprep.subr.bf16.mxu0 %v6633
    %7035 = vmatpush1.bf16.msra.mxu0 %v6632
    %7036 = vmatprep.subr.bf16.mxu0 %v6642
    %7037 = vmatpush1.bf16.msra.mxu0 %v6641
    %7038 = vmatprep.subr.bf16.mxu0 %v6651
    %7039 = vmatpush1.bf16.msra.mxu0 %v6650
    %7040 = vmatprep.subr.bf16.mxu0 %v6660
    %7041 = vmatpush1.bf16.msra.mxu0 %v6659
    %7042 = vmatprep.subr.bf16.mxu0 %v6669
    %7043 = vmatpush1.bf16.msra.mxu0 %v6668
    %7044 = vmatprep.mubr.bf16.mxu0 %v5617
    %7045 = vmatmul.mubr.bf16.gmra.mrb[0].mxu0 %v5616
    %v7046 = vpop.f32.mrb[0].mxu0
    %v7047 = vadd.f32 %v6970, %v7046
    %v7048 = vpop.f32.mrb[0].mxu0
    %v7049 = vadd.f32 %v6974, %v7048
    %v7050 = vpop.f32.mrb[0].mxu0
    %v7051 = vpop.f32.mrb[0].mxu0
    %7052 = vdwg.mxu0
    %7053 = vmatprep.subr.bf16.mxu0 %v6678
    %7054 = vmatpush1.bf16.msra.mxu0 %v6677
    %7055 = vmatprep.subr.bf16.mxu0 %v6687
    %7056 = vmatpush1.bf16.msra.mxu0 %v6686
    %7057 = vmatprep.subr.bf16.mxu0 %v6696
    %7058 = vmatpush1.bf16.msra.mxu0 %v6695
    %7059 = vmatprep.subr.bf16.mxu0 %v6705
    %7060 = vmatpush1.bf16.msra.mxu0 %v6704
    %7061 = vmatprep.subr.bf16.mxu0 %v6714
    %7062 = vmatpush1.bf16.msra.mxu0 %v6713
    %7063 = vmatprep.subr.bf16.mxu0 %v6723
    %7064 = vmatpush1.bf16.msra.mxu0 %v6722
    %7065 = vmatprep.subr.bf16.mxu0 %v6732
    %7066 = vmatpush1.bf16.msra.mxu0 %v6731
    %7067 = vmatprep.subr.bf16.mxu0 %v6741
    %7068 = vmatpush1.bf16.msra.mxu0 %v6740
    %7069 = vmatprep.subr.bf16.mxu0 0
    %7070 = vmatpush1.bf16.msra.mxu0 0
    %7071 = vmatprep.subr.bf16.mxu0 0
    %7072 = vmatpush1.bf16.msra.mxu0 0
    %7073 = vmatprep.subr.bf16.mxu0 0
    %7074 = vmatpush1.bf16.msra.mxu0 0
    %7075 = vmatprep.subr.bf16.mxu0 0
    %7076 = vmatpush1.bf16.msra.mxu0 0
    %7077 = vmatprep.subr.bf16.mxu0 0
    %7078 = vmatpush1.bf16.msra.mxu0 0
    %7079 = vmatprep.subr.bf16.mxu0 0
    %7080 = vmatpush1.bf16.msra.mxu0 0
    %7081 = vmatprep.subr.bf16.mxu0 0
    %7082 = vmatpush1.bf16.msra.mxu0 0
    %7083 = vmatprep.subr.bf16.mxu0 0
    %7084 = vmatpush1.bf16.msra.mxu0 0
    %7085 = vmatprep.mubr.bf16.mxu0 0
    %7086 = vmatmul.mubr.bf16.gmra.mrb[0].mxu0 %v5618
    %v7087 = vpop.f32.mrb[0].mxu0
    %v7088 = vadd.f32 %v7047, %v7087
    %v7089 = vpop.f32.mrb[0].mxu0
    %v7090 = vadd.f32 %v7049, %v7089
    %v7091 = vpop.f32.mrb[0].mxu0
    %v7092 = vpop.f32.mrb[0].mxu0
    %7093 = vdwg.mxu0
    %7094 = vmatprep.subr.bf16.mxu0 %v6536
    %7095 = vmatpush1.bf16.msra.mxu0 %v6535
    %7096 = vmatprep.subr.bf16.mxu0 %v6545
    %7097 = vmatpush1.bf16.msra.mxu0 %v6544
    %7098 = vmatprep.subr.bf16.mxu0 %v6554
    %7099 = vmatpush1.bf16.msra.mxu0 %v6553
    %7100 = vmatprep.subr.bf16.mxu0 %v6563
    %7101 = vmatpush1.bf16.msra.mxu0 %v6562
    %7102 = vmatprep.subr.bf16.mxu0 %v6572
    %7103 = vmatpush1.bf16.msra.mxu0 %v6571
    %7104 = vmatprep.subr.bf16.mxu0 %v6581
    %7105 = vmatpush1.bf16.msra.mxu0 %v6580
    %7106 = vmatprep.subr.bf16.mxu0 %v6590
    %7107 = vmatpush1.bf16.msra.mxu0 %v6589
    %7108 = vmatprep.subr.bf16.mxu0 %v6599
    %7109 = vmatpush1.bf16.msra.mxu0 %v6598
    %7110 = vmatprep.subr.bf16.mxu0 %v6608
    %7111 = vmatpush1.bf16.msra.mxu0 %v6607
    %7112 = vmatprep.subr.bf16.mxu0 %v6617
    %7113 = vmatpush1.bf16.msra.mxu0 %v6616
    %7114 = vmatprep.subr.bf16.mxu0 %v6626
    %7115 = vmatpush1.bf16.msra.mxu0 %v6625
    %7116 = vmatprep.subr.bf16.mxu0 %v6635
    %7117 = vmatpush1.bf16.msra.mxu0 %v6634
    %7118 = vmatprep.subr.bf16.mxu0 %v6644
    %7119 = vmatpush1.bf16.msra.mxu0 %v6643
    %7120 = vmatprep.subr.bf16.mxu0 %v6653
    %7121 = vmatpush1.bf16.msra.mxu0 %v6652
    %7122 = vmatprep.subr.bf16.mxu0 %v6662
    %7123 = vmatpush1.bf16.msra.mxu0 %v6661
    %7124 = vmatprep.subr.bf16.mxu0 %v6671
    %7125 = vmatpush1.bf16.msra.mxu0 %v6670
    %7126 = vmatprep.mubr.bf16.mxu0 %v5617
    %7127 = vmatmul.mubr.bf16.gmra.mrb[0].mxu0 %v5616
    %v7128 = vpop.f32.mrb[0].mxu0
    %v7129 = vadd.f32 %v6978, %v7128
    %v7130 = vpop.f32.mrb[0].mxu0
    %v7131 = vadd.f32 %v6982, %v7130
    %v7132 = vpop.f32.mrb[0].mxu0
    %v7133 = vpop.f32.mrb[0].mxu0
    %7134 = vdwg.mxu0
    %7135 = vmatprep.subr.bf16.mxu0 %v6680
    %7136 = vmatpush1.bf16.msra.mxu0 %v6679
    %7137 = vmatprep.subr.bf16.mxu0 %v6689
    %7138 = vmatpush1.bf16.msra.mxu0 %v6688
    %7139 = vmatprep.subr.bf16.mxu0 %v6698
    %7140 = vmatpush1.bf16.msra.mxu0 %v6697
    %7141 = vmatprep.subr.bf16.mxu0 %v6707
    %7142 = vmatpush1.bf16.msra.mxu0 %v6706
    %7143 = vmatprep.subr.bf16.mxu0 %v6716
    %7144 = vmatpush1.bf16.msra.mxu0 %v6715
    %7145 = vmatprep.subr.bf16.mxu0 %v6725
    %7146 = vmatpush1.bf16.msra.mxu0 %v6724
    %7147 = vmatprep.subr.bf16.mxu0 %v6734
    %7148 = vmatpush1.bf16.msra.mxu0 %v6733
    %7149 = vmatprep.subr.bf16.mxu0 %v6743
    %7150 = vmatpush1.bf16.msra.mxu0 %v6742
    %7151 = vmatprep.subr.bf16.mxu0 0
    %7152 = vmatpush1.bf16.msra.mxu0 0
    %7153 = vmatprep.subr.bf16.mxu0 0
    %7154 = vmatpush1.bf16.msra.mxu0 0
    %7155 = vmatprep.subr.bf16.mxu0 0
    %7156 = vmatpush1.bf16.msra.mxu0 0
    %7157 = vmatprep.subr.bf16.mxu0 0
    %7158 = vmatpush1.bf16.msra.mxu0 0
    %7159 = vmatprep.subr.bf16.mxu0 0
    %7160 = vmatpush1.bf16.msra.mxu0 0
    %7161 = vmatprep.subr.bf16.mxu0 0
    %7162 = vmatpush1.bf16.msra.mxu0 0
    %7163 = vmatprep.subr.bf16.mxu0 0
    %7164 = vmatpush1.bf16.msra.mxu0 0
    %7165 = vmatprep.subr.bf16.mxu0 0
    %7166 = vmatpush1.bf16.msra.mxu0 0
    %7167 = vmatprep.mubr.bf16.mxu0 0
    %7168 = vmatmul.mubr.bf16.gmra.mrb[0].mxu0 %v5618
    %v7169 = vpop.f32.mrb[0].mxu0
    %v7170 = vadd.f32 %v7129, %v7169
    %v7171 = vpop.f32.mrb[0].mxu0
    %v7172 = vadd.f32 %v7131, %v7171
    %v7173 = vpop.f32.mrb[0].mxu0
    %v7174 = vpop.f32.mrb[0].mxu0
    %7175 = vdwg.mxu0
    %7176 = vmatprep.subr.bf16.mxu0 %v6538
    %7177 = vmatpush1.bf16.msra.mxu0 %v6537
    %7178 = vmatprep.subr.bf16.mxu0 %v6547
    %7179 = vmatpush1.bf16.msra.mxu0 %v6546
    %7180 = vmatprep.subr.bf16.mxu0 %v6556
    %7181 = vmatpush1.bf16.msra.mxu0 %v6555
    %7182 = vmatprep.subr.bf16.mxu0 %v6565
    %7183 = vmatpush1.bf16.msra.mxu0 %v6564
    %7184 = vmatprep.subr.bf16.mxu0 %v6574
    %7185 = vmatpush1.bf16.msra.mxu0 %v6573
    %7186 = vmatprep.subr.bf16.mxu0 %v6583
    %7187 = vmatpush1.bf16.msra.mxu0 %v6582
    %7188 = vmatprep.subr.bf16.mxu0 %v6592
    %7189 = vmatpush1.bf16.msra.mxu0 %v6591
    %7190 = vmatprep.subr.bf16.mxu0 %v6601
    %7191 = vmatpush1.bf16.msra.mxu0 %v6600
    %7192 = vmatprep.subr.bf16.mxu0 %v6610
    %7193 = vmatpush1.bf16.msra.mxu0 %v6609
    %7194 = vmatprep.subr.bf16.mxu0 %v6619
    %7195 = vmatpush1.bf16.msra.mxu0 %v6618
    %7196 = vmatprep.subr.bf16.mxu0 %v6628
    %7197 = vmatpush1.bf16.msra.mxu0 %v6627
    %7198 = vmatprep.subr.bf16.mxu0 %v6637
    %7199 = vmatpush1.bf16.msra.mxu0 %v6636
    %7200 = vmatprep.subr.bf16.mxu0 %v6646
    %7201 = vmatpush1.bf16.msra.mxu0 %v6645
    %7202 = vmatprep.subr.bf16.mxu0 %v6655
    %7203 = vmatpush1.bf16.msra.mxu0 %v6654
    %7204 = vmatprep.subr.bf16.mxu0 %v6664
    %7205 = vmatpush1.bf16.msra.mxu0 %v6663
    %7206 = vmatprep.subr.bf16.mxu0 %v6673
    %7207 = vmatpush1.bf16.msra.mxu0 %v6672
    %7208 = vmatprep.mubr.bf16.mxu0 %v5617
    %7209 = vmatmul.mubr.bf16.gmra.mrb[0].mxu0 %v5616
    %v7210 = vpop.f32.mrb[0].mxu0
    %v7211 = vadd.f32 %v6986, %v7210
    %v7212 = vpop.f32.mrb[0].mxu0
    %v7213 = vadd.f32 %v6990, %v7212
    %v7214 = vpop.f32.mrb[0].mxu0
    %v7215 = vpop.f32.mrb[0].mxu0
    %7216 = vdwg.mxu0
    %7217 = vmatprep.subr.bf16.mxu0 %v6682
    %7218 = vmatpush1.bf16.msra.mxu0 %v6681
    %7219 = vmatprep.subr.bf16.mxu0 %v6691
    %7220 = vmatpush1.bf16.msra.mxu0 %v6690
    %7221 = vmatprep.subr.bf16.mxu0 %v6700
    %7222 = vmatpush1.bf16.msra.mxu0 %v6699
    %7223 = vmatprep.subr.bf16.mxu0 %v6709
    %7224 = vmatpush1.bf16.msra.mxu0 %v6708
    %7225 = vmatprep.subr.bf16.mxu0 %v6718
    %7226 = vmatpush1.bf16.msra.mxu0 %v6717
    %7227 = vmatprep.subr.bf16.mxu0 %v6727
    %7228 = vmatpush1.bf16.msra.mxu0 %v6726
    %7229 = vmatprep.subr.bf16.mxu0 %v6736
    %7230 = vmatpush1.bf16.msra.mxu0 %v6735
    %7231 = vmatprep.subr.bf16.mxu0 %v6745
    %7232 = vmatpush1.bf16.msra.mxu0 %v6744
    %7233 = vmatprep.subr.bf16.mxu0 0
    %7234 = vmatpush1.bf16.msra.mxu0 0
    %7235 = vmatprep.subr.bf16.mxu0 0
    %7236 = vmatpush1.bf16.msra.mxu0 0
    %7237 = vmatprep.subr.bf16.mxu0 0
    %7238 = vmatpush1.bf16.msra.mxu0 0
    %7239 = vmatprep.subr.bf16.mxu0 0
    %7240 = vmatpush1.bf16.msra.mxu0 0
    %7241 = vmatprep.subr.bf16.mxu0 0
    %7242 = vmatpush1.bf16.msra.mxu0 0
    %7243 = vmatprep.subr.bf16.mxu0 0
    %7244 = vmatpush1.bf16.msra.mxu0 0
    %7245 = vmatprep.subr.bf16.mxu0 0
    %7246 = vmatpush1.bf16.msra.mxu0 0
    %7247 = vmatprep.subr.bf16.mxu0 0
    %7248 = vmatpush1.bf16.msra.mxu0 0
    %7249 = vmatprep.mubr.bf16.mxu0 0
    %7250 = vmatmul.mubr.bf16.gmra.mrb[0].mxu0 %v5618
    %v7251 = vpop.f32.mrb[0].mxu0
    %v7252 = vadd.f32 %v7211, %v7251
    %v7253 = vpop.f32.mrb[0].mxu0
    %v7254 = vadd.f32 %v7213, %v7253
    %v7255 = vpop.f32.mrb[0].mxu0
    %v7256 = vpop.f32.mrb[0].mxu0
    %7257 = vdwg.mxu0
    %7258 = vmatprep.subr.bf16.mxu0 %v6540
    %7259 = vmatpush1.bf16.msra.mxu0 %v6539
    %7260 = vmatprep.subr.bf16.mxu0 %v6549
    %7261 = vmatpush1.bf16.msra.mxu0 %v6548
    %7262 = vmatprep.subr.bf16.mxu0 %v6558
    %7263 = vmatpush1.bf16.msra.mxu0 %v6557
    %7264 = vmatprep.subr.bf16.mxu0 %v6567
    %7265 = vmatpush1.bf16.msra.mxu0 %v6566
    %7266 = vmatprep.subr.bf16.mxu0 %v6576
    %7267 = vmatpush1.bf16.msra.mxu0 %v6575
    %7268 = vmatprep.subr.bf16.mxu0 %v6585
    %7269 = vmatpush1.bf16.msra.mxu0 %v6584
    %7270 = vmatprep.subr.bf16.mxu0 %v6594
    %7271 = vmatpush1.bf16.msra.mxu0 %v6593
    %7272 = vmatprep.subr.bf16.mxu0 %v6603
    %7273 = vmatpush1.bf16.msra.mxu0 %v6602
    %7274 = vmatprep.subr.bf16.mxu0 %v6612
    %7275 = vmatpush1.bf16.msra.mxu0 %v6611
    %7276 = vmatprep.subr.bf16.mxu0 %v6621
    %7277 = vmatpush1.bf16.msra.mxu0 %v6620
    %7278 = vmatprep.subr.bf16.mxu0 %v6630
    %7279 = vmatpush1.bf16.msra.mxu0 %v6629
    %7280 = vmatprep.subr.bf16.mxu0 %v6639
    %7281 = vmatpush1.bf16.msra.mxu0 %v6638
    %7282 = vmatprep.subr.bf16.mxu0 %v6648
    %7283 = vmatpush1.bf16.msra.mxu0 %v6647
    %7284 = vmatprep.subr.bf16.mxu0 %v6657
    %7285 = vmatpush1.bf16.msra.mxu0 %v6656
    %7286 = vmatprep.subr.bf16.mxu0 %v6666
    %7287 = vmatpush1.bf16.msra.mxu0 %v6665
    %7288 = vmatprep.subr.bf16.mxu0 %v6675
    %7289 = vmatpush1.bf16.msra.mxu0 %v6674
    %7290 = vmatprep.mubr.bf16.mxu0 %v5617
    %7291 = vmatmul.mubr.bf16.gmra.mrb[0].mxu0 %v5616
    %v7292 = vpop.f32.mrb[0].mxu0
    %v7293 = vadd.f32 %v6994, %v7292
    %v7294 = vpop.f32.mrb[0].mxu0
    %v7295 = vadd.f32 %v6998, %v7294
    %v7296 = vpop.f32.mrb[0].mxu0
    %v7297 = vpop.f32.mrb[0].mxu0
    %7298 = vdwg.mxu0
    %7299 = vmatprep.subr.bf16.mxu0 %v6684
    %7300 = vmatpush1.bf16.msra.mxu0 %v6683
    %7301 = vmatprep.subr.bf16.mxu0 %v6693
    %7302 = vmatpush1.bf16.msra.mxu0 %v6692
    %7303 = vmatprep.subr.bf16.mxu0 %v6702
    %7304 = vmatpush1.bf16.msra.mxu0 %v6701
    %7305 = vmatprep.subr.bf16.mxu0 %v6711
    %7306 = vmatpush1.bf16.msra.mxu0 %v6710
    %7307 = vmatprep.subr.bf16.mxu0 %v6720
    %7308 = vmatpush1.bf16.msra.mxu0 %v6719
    %7309 = vmatprep.subr.bf16.mxu0 %v6729
    %7310 = vmatpush1.bf16.msra.mxu0 %v6728
    %7311 = vmatprep.subr.bf16.mxu0 %v6738
    %7312 = vmatpush1.bf16.msra.mxu0 %v6737
    %7313 = vmatprep.subr.bf16.mxu0 %v6747
    %7314 = vmatpush1.bf16.msra.mxu0 %v6746
    %7315 = vmatprep.subr.bf16.mxu0 0
    %7316 = vmatpush1.bf16.msra.mxu0 0
    %7317 = vmatprep.subr.bf16.mxu0 0
    %7318 = vmatpush1.bf16.msra.mxu0 0
    %7319 = vmatprep.subr.bf16.mxu0 0
    %7320 = vmatpush1.bf16.msra.mxu0 0
    %7321 = vmatprep.subr.bf16.mxu0 0
    %7322 = vmatpush1.bf16.msra.mxu0 0
    %7323 = vmatprep.subr.bf16.mxu0 0
    %7324 = vmatpush1.bf16.msra.mxu0 0
    %7325 = vmatprep.subr.bf16.mxu0 0
    %7326 = vmatpush1.bf16.msra.mxu0 0
    %7327 = vmatprep.subr.bf16.mxu0 0
    %7328 = vmatpush1.bf16.msra.mxu0 0
    %7329 = vmatprep.subr.bf16.mxu0 0
    %7330 = vmatpush1.bf16.msra.mxu0 0
    %7331 = vmatprep.mubr.bf16.mxu0 0
    %7332 = vmatmul.mubr.bf16.gmra.mrb[0].mxu0 %v5618
    %v7333 = vpop.f32.mrb[0].mxu0
    %v7334 = vadd.f32 %v7293, %v7333
    %v7335 = vpop.f32.mrb[0].mxu0
    %v7336 = vadd.f32 %v7295, %v7335
    %v7337 = vpop.f32.mrb[0].mxu0
    %v7338 = vpop.f32.mrb[0].mxu0
    %7339 = vdwg.mxu0
    %7340 = vmatprep.subr.bf16.mxu0 0
    %7341 = vmatpush1.bf16.msra.mxu0 %v6541
    %7342 = vmatprep.subr.bf16.mxu0 0
    %7343 = vmatpush1.bf16.msra.mxu0 %v6550
    %7344 = vmatprep.subr.bf16.mxu0 0
    %7345 = vmatpush1.bf16.msra.mxu0 %v6559
    %7346 = vmatprep.subr.bf16.mxu0 0
    %7347 = vmatpush1.bf16.msra.mxu0 %v6568
    %7348 = vmatprep.subr.bf16.mxu0 0
    %7349 = vmatpush1.bf16.msra.mxu0 %v6577
    %7350 = vmatprep.subr.bf16.mxu0 0
    %7351 = vmatpush1.bf16.msra.mxu0 %v6586
    %7352 = vmatprep.subr.bf16.mxu0 0
    %7353 = vmatpush1.bf16.msra.mxu0 %v6595
    %7354 = vmatprep.subr.bf16.mxu0 0
    %7355 = vmatpush1.bf16.msra.mxu0 %v6604
    %7356 = vmatprep.subr.bf16.mxu0 0
    %7357 = vmatpush1.bf16.msra.mxu0 %v6613
    %7358 = vmatprep.subr.bf16.mxu0 0
    %7359 = vmatpush1.bf16.msra.mxu0 %v6622
    %7360 = vmatprep.subr.bf16.mxu0 0
    %7361 = vmatpush1.bf16.msra.mxu0 %v6631
    %7362 = vmatprep.subr.bf16.mxu0 0
    %7363 = vmatpush1.bf16.msra.mxu0 %v6640
    %7364 = vmatprep.subr.bf16.mxu0 0
    %7365 = vmatpush1.bf16.msra.mxu0 %v6649
    %7366 = vmatprep.subr.bf16.mxu0 0
    %7367 = vmatpush1.bf16.msra.mxu0 %v6658
    %7368 = vmatprep.subr.bf16.mxu0 0
    %7369 = vmatpush1.bf16.msra.mxu0 %v6667
    %7370 = vmatprep.subr.bf16.mxu0 0
    %7371 = vmatpush1.bf16.msra.mxu0 %v6676
    %7372 = vmatprep.mubr.bf16.mxu0 %v5617
    %7373 = vmatmul.mubr.bf16.gmra.mrb[0].mxu0 %v5616
    %v7374 = vpop.f32.mrb[0].mxu0
    %v7375 = vadd.f32 %v7002, %v7374
    %v7376 = vpop.f32.mrb[0].mxu0
    %v7377 = vpop.f32.mrb[0].mxu0
    %v7378 = vpop.f32.mrb[0].mxu0
    %7379 = vdwg.mxu0
    %7380 = vmatprep.subr.bf16.mxu0 0
    %7381 = vmatpush1.bf16.msra.mxu0 %v6685
    %7382 = vmatprep.subr.bf16.mxu0 0
    %7383 = vmatpush1.bf16.msra.mxu0 %v6694
    %7384 = vmatprep.subr.bf16.mxu0 0
    %7385 = vmatpush1.bf16.msra.mxu0 %v6703
    %7386 = vmatprep.subr.bf16.mxu0 0
    %7387 = vmatpush1.bf16.msra.mxu0 %v6712
    %7388 = vmatprep.subr.bf16.mxu0 0
    %7389 = vmatpush1.bf16.msra.mxu0 %v6721
    %7390 = vmatprep.subr.bf16.mxu0 0
    %7391 = vmatpush1.bf16.msra.mxu0 %v6730
    %7392 = vmatprep.subr.bf16.mxu0 0
    %7393 = vmatpush1.bf16.msra.mxu0 %v6739
    %7394 = vmatprep.subr.bf16.mxu0 0
    %7395 = vmatpush1.bf16.msra.mxu0 %v6748
    %7396 = vmatprep.subr.bf16.mxu0 0
    %7397 = vmatpush1.bf16.msra.mxu0 0
    %7398 = vmatprep.subr.bf16.mxu0 0
    %7399 = vmatpush1.bf16.msra.mxu0 0
    %7400 = vmatprep.subr.bf16.mxu0 0
    %7401 = vmatpush1.bf16.msra.mxu0 0
    %7402 = vmatprep.subr.bf16.mxu0 0
    %7403 = vmatpush1.bf16.msra.mxu0 0
    %7404 = vmatprep.subr.bf16.mxu0 0
    %7405 = vmatpush1.bf16.msra.mxu0 0
    %7406 = vmatprep.subr.bf16.mxu0 0
    %7407 = vmatpush1.bf16.msra.mxu0 0
    %7408 = vmatprep.subr.bf16.mxu0 0
    %7409 = vmatpush1.bf16.msra.mxu0 0
    %7410 = vmatprep.subr.bf16.mxu0 0
    %7411 = vmatpush1.bf16.msra.mxu0 0
    %7412 = vmatprep.mubr.bf16.mxu0 0
    %7413 = vmatmul.mubr.bf16.gmra.mrb[0].mxu0 %v5618
    %v7414 = vpop.f32.mrb[0].mxu0
    %v7415 = vadd.f32 %v7375, %v7414
    %v7416 = vpop.f32.mrb[0].mxu0
    %v7417 = vpop.f32.mrb[0].mxu0
    %v7418 = vpop.f32.mrb[0].mxu0
    %7419 = vdwg.mxu0
    %v7420 = vadd.f32 %v7088, %v1620
    %v7421 = vadd.f32 %v7090, %v1622
    %v7422 = vadd.f32 %v7170, %v1702
    %v7423 = vxor.u32 %v7420, 2147483648
    %v7424 = vxor.u32 %v7421, 2147483648
    %v7425 = vxor.u32 %v7422, 2147483648
    %v7426 = vmul.f32 %v7423, 1.442695
    %v7427 = vpow.pop %v7426
    %v7428 = vmul.f32 %v7424, 1.442695
    %v7429 = vpow.pop %v7428
    %v7430 = vmul.f32 %v7425, 1.442695
    %v7431 = vpow.pop %v7430
    %v7432 = vadd.f32 %v7427, 1.0
    %v7433 = vadd.f32 %v7429, 1.0
    %v7434 = vadd.f32 %v7431, 1.0
    %v7435 = vrcp.pop %v7432
    %v7436 = vmul.f32 1.0, %v7435
    %v7437 = vrcp.pop %v7433
    %v7438 = vmul.f32 1.0, %v7437
    %v7439 = vrcp.pop %v7434
    %v7440 = vmul.f32 1.0, %v7439
    %v7441 = vadd.f32 %v7172, %v1704
    %v7442 = vadd.f32 %v7252, %v1784
    %v7443 = vadd.f32 %v7254, %v1786
    %v7444 = vxor.u32 %v7441, 2147483648
    %v7445 = vxor.u32 %v7442, 2147483648
    %v7446 = vxor.u32 %v7443, 2147483648
    %v7447 = vmul.f32 %v7444, 1.442695
    %v7448 = vpow.pop %v7447
    %v7449 = vmul.f32 %v7445, 1.442695
    %v7450 = vpow.pop %v7449
    %v7451 = vmul.f32 %v7446, 1.442695
    %v7452 = vpow.pop %v7451
    %v7453 = vadd.f32 %v7448, 1.0
    %v7454 = vadd.f32 %v7450, 1.0
    %v7455 = vadd.f32 %v7452, 1.0
    %v7456 = vrcp.pop %v7453
    %v7457 = vmul.f32 1.0, %v7456
    %v7458 = vrcp.pop %v7454
    %v7459 = vmul.f32 1.0, %v7458
    %v7460 = vrcp.pop %v7455
    %v7461 = vmul.f32 1.0, %v7460
    %v7462 = vmul.f32 %v7436, %v1866
    %v7463 = vmul.f32 %v7438, %v1868
    %v7464 = vmul.f32 %v7440, %v1947
    %v7465 = vadd.f32 %v7334, %v7462
    %v7466 = vadd.f32 %v7336, %v7463
    %v7467 = vadd.f32 %v7415, %v7464
    %v7468 = vtanh.pop %v7465
    %v7469 = vtanh.pop %v7466
    %v7470 = vtanh.pop %v7467
    %v7471 = vsub.f32 1.0, %v7457
    %v7472 = vsub.f32 1.0, %v7459
    %v7473 = vsub.f32 1.0, %v7461
    %v7474 = vmul.f32 %v7471, %v7468
    %v7475 = vmul.f32 %v7472, %v7469
    %v7476 = vmul.f32 %v7473, %v7470
    %v7477 = vmul.f32 %v7457, %v136
    %v7478 = vmul.f32 %v7459, %v140
    %v7479 = vmul.f32 %v7461, %v144
    %v7480 = vadd.f32 %v7474, %v7477
    %v7481 = vadd.f32 %v7475, %v7478
    %v7482 = vadd.f32 %v7476, %v7479
    %v7486 = vcombine.low %v7480, %v7481
    %v7488 = vunpack.c.l.s4 1966171168
    %v7489 = vunpack.c.0.s8 %v7488
    %v7490 = vlaneseq
    %v7491 = vshrl.u32 %v7490, 7
    %v7492 = vsub.s32 %v7489, %v7491
    %v7493 = vrot.slane %v7486, %v7492
    %v7495 = vunpack.c.l.s4 1966171168
    %v7496 = vunpack.c.0.s8 %v7495
    %v7497 = vlaneseq
    %v7498 = vshrl.u32 %v7497, 7
    %v7499 = vsub.s32 %v7496, %v7498
    %v7500 = vrot.slane %v7482, %v7499
    %v7501 = vcombine.low %v7493, %v7500
    %v7503 = vunpack.c.l.s4 1966171168
    %v7504 = vunpack.c.0.s8 %v7503
    %v7505 = vlaneseq
    %v7506 = vshrl.u32 %v7505, 7
    %v7507 = vsub.s32 %v7504, %v7506
    %v7508 = vrot.slane %v7501, %v7507
    %v7510 = vlaneseq
    %vm7511 = vcmp.ge.s32.totalorder %v7510, 0
    %vm7512 = vcmp.lt.s32.totalorder %v7510, 384
    %vm7513 = vmand %vm7511, %vm7512
    %7514 = vst.msk [vmem:[%s9] ss:$4 sm:$0x7] %vm7513, %v7508
    %v7515 = vpack.c.bf16 %v7480, %v7480
    %v7516 = vpack.c.bf16 %v7481, %v7481
    %v7517 = vpack.c.bf16 %v7482, %v7482
    %s7518 = scalar_lea.vmem [#allocation6], 1728
    %v7519 = vld [vmem:[%s7518] sm:$0xff]
    %v7520 = vld [vmem:[%s7518 + $0x8] sm:$0xff]
    %v7521 = vld [vmem:[%s7518 + $0x10] sm:$0xff]
    %v7522 = vld [vmem:[%s7518 + $0x18] sm:$0xff]
    %v7523 = vld [vmem:[%s7518 + $0x20] sm:$0xf]
    %v7524 = vld [vmem:[%s7518 + $0x24] sm:$0xff]
    %v7525 = vld [vmem:[%s7518 + $0x2c] sm:$0xff]
    %v7526 = vld [vmem:[%s7518 + $0x34] sm:$0xff]
    %v7527 = vld [vmem:[%s7518 + $0x3c] sm:$0xff]
    %v7528 = vld [vmem:[%s7518 + $0x44] sm:$0xf]
    %v7529 = vld [vmem:[%s7518 + $0x48] sm:$0xff]
    %v7530 = vld [vmem:[%s7518 + $0x50] sm:$0xff]
    %v7531 = vld [vmem:[%s7518 + $0x58] sm:$0xff]
    %v7532 = vld [vmem:[%s7518 + $0x60] sm:$0xff]
    %v7533 = vld [vmem:[%s7518 + $0x68] sm:$0xf]
    %v7534 = vld [vmem:[%s7518 + $0x6c] sm:$0xff]
    %v7535 = vld [vmem:[%s7518 + $0x74] sm:$0xff]
    %v7536 = vld [vmem:[%s7518 + $0x7c] sm:$0xff]
    %v7537 = vld [vmem:[%s7518 + $0x84] sm:$0xff]
    %v7538 = vld [vmem:[%s7518 + $0x8c] sm:$0xf]
    %v7539 = vld [vmem:[%s7518 + $0x90] sm:$0xff]
    %v7540 = vld [vmem:[%s7518 + $0x98] sm:$0xff]
    %v7541 = vld [vmem:[%s7518 + $0xa0] sm:$0xff]
    %v7542 = vld [vmem:[%s7518 + $0xa8] sm:$0xff]
    %v7543 = vld [vmem:[%s7518 + $0xb0] sm:$0xf]
    %v7544 = vld [vmem:[%s7518 + $0xb4] sm:$0xff]
    %v7545 = vld [vmem:[%s7518 + $0xbc] sm:$0xff]
    %v7546 = vld [vmem:[%s7518 + $0xc4] sm:$0xff]
    %v7547 = vld [vmem:[%s7518 + $0xcc] sm:$0xff]
    %v7548 = vld [vmem:[%s7518 + $0xd4] sm:$0xf]
    %v7549 = vld [vmem:[%s7518 + $0xd8] sm:$0xff]
    %v7550 = vld [vmem:[%s7518 + $0xe0] sm:$0xff]
    %v7551 = vld [vmem:[%s7518 + $0xe8] sm:$0xff]
    %v7552 = vld [vmem:[%s7518 + $0xf0] sm:$0xff]
    %v7553 = vld [vmem:[%s7518 + $0xf8] sm:$0xf]
    %v7554 = vld [vmem:[%s7518 + $0xfc] sm:$0xff]
    %v7555 = vld [vmem:[%s7518 + $0x104] sm:$0xff]
    %v7556 = vld [vmem:[%s7518 + $0x10c] sm:$0xff]
    %v7557 = vld [vmem:[%s7518 + $0x114] sm:$0xff]
    %v7558 = vld [vmem:[%s7518 + $0x11c] sm:$0xf]
    %v7559 = vld [vmem:[%s7518 + $0x120] sm:$0xff]
    %v7560 = vld [vmem:[%s7518 + $0x128] sm:$0xff]
    %v7561 = vld [vmem:[%s7518 + $0x130] sm:$0xff]
    %v7562 = vld [vmem:[%s7518 + $0x138] sm:$0xff]
    %v7563 = vld [vmem:[%s7518 + $0x140] sm:$0xf]
    %v7564 = vld [vmem:[%s7518 + $0x144] sm:$0xff]
    %v7565 = vld [vmem:[%s7518 + $0x14c] sm:$0xff]
    %v7566 = vld [vmem:[%s7518 + $0x154] sm:$0xff]
    %v7567 = vld [vmem:[%s7518 + $0x15c] sm:$0xff]
    %v7568 = vld [vmem:[%s7518 + $0x164] sm:$0xf]
    %v7569 = vld [vmem:[%s7518 + $0x168] sm:$0xff]
    %v7570 = vld [vmem:[%s7518 + $0x170] sm:$0xff]
    %v7571 = vld [vmem:[%s7518 + $0x178] sm:$0xff]
    %v7572 = vld [vmem:[%s7518 + $0x180] sm:$0xff]
    %v7573 = vld [vmem:[%s7518 + $0x188] sm:$0xf]
    %v7574 = vld [vmem:[%s7518 + $0x18c] sm:$0xff]
    %v7575 = vld [vmem:[%s7518 + $0x194] sm:$0xff]
    %v7576 = vld [vmem:[%s7518 + $0x19c] sm:$0xff]
    %v7577 = vld [vmem:[%s7518 + $0x1a4] sm:$0xff]
    %v7578 = vld [vmem:[%s7518 + $0x1ac] sm:$0xf]
    %v7579 = vld [vmem:[%s7518 + $0x1b0] sm:$0xff]
    %v7580 = vld [vmem:[%s7518 + $0x1b8] sm:$0xff]
    %v7581 = vld [vmem:[%s7518 + $0x1c0] sm:$0xff]
    %v7582 = vld [vmem:[%s7518 + $0x1c8] sm:$0xff]
    %v7583 = vld [vmem:[%s7518 + $0x1d0] sm:$0xf]
    %v7584 = vld [vmem:[%s7518 + $0x1d4] sm:$0xff]
    %v7585 = vld [vmem:[%s7518 + $0x1dc] sm:$0xff]
    %v7586 = vld [vmem:[%s7518 + $0x1e4] sm:$0xff]
    %v7587 = vld [vmem:[%s7518 + $0x1ec] sm:$0xff]
    %v7588 = vld [vmem:[%s7518 + $0x1f4] sm:$0xf]
    %v7589 = vld [vmem:[%s7518 + $0x1f8] sm:$0xff]
    %v7590 = vld [vmem:[%s7518 + $0x200] sm:$0xff]
    %v7591 = vld [vmem:[%s7518 + $0x208] sm:$0xff]
    %v7592 = vld [vmem:[%s7518 + $0x210] sm:$0xff]
    %v7593 = vld [vmem:[%s7518 + $0x218] sm:$0xf]
    %v7594 = vld [vmem:[%s7518 + $0x21c] sm:$0xff]
    %v7595 = vld [vmem:[%s7518 + $0x224] sm:$0xff]
    %v7596 = vld [vmem:[%s7518 + $0x22c] sm:$0xff]
    %v7597 = vld [vmem:[%s7518 + $0x234] sm:$0xff]
    %v7598 = vld [vmem:[%s7518 + $0x23c] sm:$0xf]
    %v7599 = vld [vmem:[%s7518 + $0x240] sm:$0xff]
    %v7600 = vld [vmem:[%s7518 + $0x248] sm:$0xff]
    %v7601 = vld [vmem:[%s7518 + $0x250] sm:$0xff]
    %v7602 = vld [vmem:[%s7518 + $0x258] sm:$0xff]
    %v7603 = vld [vmem:[%s7518 + $0x260] sm:$0xf]
    %v7604 = vld [vmem:[%s7518 + $0x264] sm:$0xff]
    %v7605 = vld [vmem:[%s7518 + $0x26c] sm:$0xff]
    %v7606 = vld [vmem:[%s7518 + $0x274] sm:$0xff]
    %v7607 = vld [vmem:[%s7518 + $0x27c] sm:$0xff]
    %v7608 = vld [vmem:[%s7518 + $0x284] sm:$0xf]
    %v7609 = vld [vmem:[%s7518 + $0x288] sm:$0xff]
    %v7610 = vld [vmem:[%s7518 + $0x290] sm:$0xff]
    %v7611 = vld [vmem:[%s7518 + $0x298] sm:$0xff]
    %v7612 = vld [vmem:[%s7518 + $0x2a0] sm:$0xff]
    %v7613 = vld [vmem:[%s7518 + $0x2a8] sm:$0xf]
    %v7614 = vld [vmem:[%s7518 + $0x2ac] sm:$0xff]
    %v7615 = vld [vmem:[%s7518 + $0x2b4] sm:$0xff]
    %v7616 = vld [vmem:[%s7518 + $0x2bc] sm:$0xff]
    %v7617 = vld [vmem:[%s7518 + $0x2c4] sm:$0xff]
    %v7618 = vld [vmem:[%s7518 + $0x2cc] sm:$0xf]
    %v7619 = vld [vmem:[%s7518 + $0x2d0] sm:$0xff]
    %v7620 = vld [vmem:[%s7518 + $0x2d8] sm:$0xff]
    %v7621 = vld [vmem:[%s7518 + $0x2e0] sm:$0xff]
    %v7622 = vld [vmem:[%s7518 + $0x2e8] sm:$0xff]
    %v7623 = vld [vmem:[%s7518 + $0x2f0] sm:$0xf]
    %v7624 = vld [vmem:[%s7518 + $0x2f4] sm:$0xff]
    %v7625 = vld [vmem:[%s7518 + $0x2fc] sm:$0xff]
    %v7626 = vld [vmem:[%s7518 + $0x304] sm:$0xff]
    %v7627 = vld [vmem:[%s7518 + $0x30c] sm:$0xff]
    %v7628 = vld [vmem:[%s7518 + $0x314] sm:$0xf]
    %v7629 = vld [vmem:[%s7518 + $0x318] sm:$0xff]
    %v7630 = vld [vmem:[%s7518 + $0x320] sm:$0xff]
    %v7631 = vld [vmem:[%s7518 + $0x328] sm:$0xff]
    %v7632 = vld [vmem:[%s7518 + $0x330] sm:$0xff]
    %v7633 = vld [vmem:[%s7518 + $0x338] sm:$0xf]
    %v7634 = vld [vmem:[%s7518 + $0x33c] sm:$0xff]
    %v7635 = vld [vmem:[%s7518 + $0x344] sm:$0xff]
    %v7636 = vld [vmem:[%s7518 + $0x34c] sm:$0xff]
    %v7637 = vld [vmem:[%s7518 + $0x354] sm:$0xff]
    %v7638 = vld [vmem:[%s7518 + $0x35c] sm:$0xf]
    %v7639 = vld [vmem:[%s7518 + $0x360] sm:$0xff]
    %v7640 = vld [vmem:[%s7518 + $0x368] sm:$0xff]
    %v7641 = vld [vmem:[%s7518 + $0x370] sm:$0xff]
    %v7642 = vld [vmem:[%s7518 + $0x378] sm:$0xff]
    %v7643 = vld [vmem:[%s7518 + $0x380] sm:$0xf]
    %v7644 = vld [vmem:[%s7518 + $0x384] sm:$0xff]
    %v7645 = vld [vmem:[%s7518 + $0x38c] sm:$0xff]
    %v7646 = vld [vmem:[%s7518 + $0x394] sm:$0xff]
    %v7647 = vld [vmem:[%s7518 + $0x39c] sm:$0xff]
    %v7648 = vld [vmem:[%s7518 + $0x3a4] sm:$0xf]
    %v7649 = vld [vmem:[%s7518 + $0x3a8] sm:$0xff]
    %v7650 = vld [vmem:[%s7518 + $0x3b0] sm:$0xff]
    %v7651 = vld [vmem:[%s7518 + $0x3b8] sm:$0xff]
    %v7652 = vld [vmem:[%s7518 + $0x3c0] sm:$0xff]
    %v7653 = vld [vmem:[%s7518 + $0x3c8] sm:$0xf]
    %v7654 = vld [vmem:[%s7518 + $0x3cc] sm:$0xff]
    %v7655 = vld [vmem:[%s7518 + $0x3d4] sm:$0xff]
    %v7656 = vld [vmem:[%s7518 + $0x3dc] sm:$0xff]
    %v7657 = vld [vmem:[%s7518 + $0x3e4] sm:$0xff]
    %v7658 = vld [vmem:[%s7518 + $0x3ec] sm:$0xf]
    %v7659 = vld [vmem:[%s7518 + $0x3f0] sm:$0xff]
    %v7660 = vld [vmem:[%s7518 + $0x3f8] sm:$0xff]
    %v7661 = vld [vmem:[%s7518 + $0x400] sm:$0xff]
    %v7662 = vld [vmem:[%s7518 + $0x408] sm:$0xff]
    %v7663 = vld [vmem:[%s7518 + $0x410] sm:$0xf]
    %v7664 = vld [vmem:[%s7518 + $0x414] sm:$0xff]
    %v7665 = vld [vmem:[%s7518 + $0x41c] sm:$0xff]
    %v7666 = vld [vmem:[%s7518 + $0x424] sm:$0xff]
    %v7667 = vld [vmem:[%s7518 + $0x42c] sm:$0xff]
    %v7668 = vld [vmem:[%s7518 + $0x434] sm:$0xf]
    %v7669 = vld [vmem:[%s7518 + $0x438] sm:$0xff]
    %v7670 = vld [vmem:[%s7518 + $0x440] sm:$0xff]
    %v7671 = vld [vmem:[%s7518 + $0x448] sm:$0xff]
    %v7672 = vld [vmem:[%s7518 + $0x450] sm:$0xff]
    %v7673 = vld [vmem:[%s7518 + $0x458] sm:$0xf]
    %v7674 = vld [vmem:[%s7518 + $0x45c] sm:$0xff]
    %v7675 = vld [vmem:[%s7518 + $0x464] sm:$0xff]
    %v7676 = vld [vmem:[%s7518 + $0x46c] sm:$0xff]
    %v7677 = vld [vmem:[%s7518 + $0x474] sm:$0xff]
    %v7678 = vld [vmem:[%s7518 + $0x47c] sm:$0xf]
    %v7679 = vld [vmem:[%s7518 + $0x480] sm:$0xff]
    %v7680 = vld [vmem:[%s7518 + $0x488] sm:$0xff]
    %v7681 = vld [vmem:[%s7518 + $0x490] sm:$0xff]
    %v7682 = vld [vmem:[%s7518 + $0x498] sm:$0xff]
    %v7683 = vld [vmem:[%s7518 + $0x4a0] sm:$0xf]
    %v7684 = vld [vmem:[%s7518 + $0x4a4] sm:$0xff]
    %v7685 = vld [vmem:[%s7518 + $0x4ac] sm:$0xff]
    %v7686 = vld [vmem:[%s7518 + $0x4b4] sm:$0xff]
    %v7687 = vld [vmem:[%s7518 + $0x4bc] sm:$0xff]
    %v7688 = vld [vmem:[%s7518 + $0x4c4] sm:$0xf]
    %v7689 = vld [vmem:[%s7518 + $0x4c8] sm:$0xff]
    %v7690 = vld [vmem:[%s7518 + $0x4d0] sm:$0xff]
    %v7691 = vld [vmem:[%s7518 + $0x4d8] sm:$0xff]
    %v7692 = vld [vmem:[%s7518 + $0x4e0] sm:$0xff]
    %v7693 = vld [vmem:[%s7518 + $0x4e8] sm:$0xf]
    %v7694 = vld [vmem:[%s7518 + $0x4ec] sm:$0xff]
    %v7695 = vld [vmem:[%s7518 + $0x4f4] sm:$0xff]
    %v7696 = vld [vmem:[%s7518 + $0x4fc] sm:$0xff]
    %v7697 = vld [vmem:[%s7518 + $0x504] sm:$0xff]
    %v7698 = vld [vmem:[%s7518 + $0x50c] sm:$0xf]
    %v7699 = vld [vmem:[%s7518 + $0x510] sm:$0xff]
    %v7700 = vld [vmem:[%s7518 + $0x518] sm:$0xff]
    %v7701 = vld [vmem:[%s7518 + $0x520] sm:$0xff]
    %v7702 = vld [vmem:[%s7518 + $0x528] sm:$0xff]
    %v7703 = vld [vmem:[%s7518 + $0x530] sm:$0xf]
    %v7704 = vld [vmem:[%s7518 + $0x534] sm:$0xff]
    %v7705 = vld [vmem:[%s7518 + $0x53c] sm:$0xff]
    %v7706 = vld [vmem:[%s7518 + $0x544] sm:$0xff]
    %v7707 = vld [vmem:[%s7518 + $0x54c] sm:$0xff]
    %v7708 = vld [vmem:[%s7518 + $0x554] sm:$0xf]
    %v7709 = vld [vmem:[%s7518 + $0x558] sm:$0xff]
    %v7710 = vld [vmem:[%s7518 + $0x560] sm:$0xff]
    %v7711 = vld [vmem:[%s7518 + $0x568] sm:$0xff]
    %v7712 = vld [vmem:[%s7518 + $0x570] sm:$0xff]
    %v7713 = vld [vmem:[%s7518 + $0x578] sm:$0xf]
    %v7714 = vld [vmem:[%s7518 + $0x57c] sm:$0xff]
    %v7715 = vld [vmem:[%s7518 + $0x584] sm:$0xff]
    %v7716 = vld [vmem:[%s7518 + $0x58c] sm:$0xff]
    %v7717 = vld [vmem:[%s7518 + $0x594] sm:$0xff]
    %v7718 = vld [vmem:[%s7518 + $0x59c] sm:$0xf]
    %v7719 = vld [vmem:[%s7518 + $0x5a0] sm:$0xff]
    %v7720 = vld [vmem:[%s7518 + $0x5a8] sm:$0xff]
    %v7721 = vld [vmem:[%s7518 + $0x5b0] sm:$0xff]
    %v7722 = vld [vmem:[%s7518 + $0x5b8] sm:$0xff]
    %v7723 = vld [vmem:[%s7518 + $0x5c0] sm:$0xf]
    %v7724 = vld [vmem:[%s7518 + $0x5c4] sm:$0xff]
    %v7725 = vld [vmem:[%s7518 + $0x5cc] sm:$0xff]
    %v7726 = vld [vmem:[%s7518 + $0x5d4] sm:$0xff]
    %v7727 = vld [vmem:[%s7518 + $0x5dc] sm:$0xff]
    %v7728 = vld [vmem:[%s7518 + $0x5e4] sm:$0xf]
    %v7729 = vld [vmem:[%s7518 + $0x5e8] sm:$0xff]
    %v7730 = vld [vmem:[%s7518 + $0x5f0] sm:$0xff]
    %v7731 = vld [vmem:[%s7518 + $0x5f8] sm:$0xff]
    %v7732 = vld [vmem:[%s7518 + $0x600] sm:$0xff]
    %v7733 = vld [vmem:[%s7518 + $0x608] sm:$0xf]
    %v7734 = vld [vmem:[%s7518 + $0x60c] sm:$0xff]
    %v7735 = vld [vmem:[%s7518 + $0x614] sm:$0xff]
    %v7736 = vld [vmem:[%s7518 + $0x61c] sm:$0xff]
    %v7737 = vld [vmem:[%s7518 + $0x624] sm:$0xff]
    %v7738 = vld [vmem:[%s7518 + $0x62c] sm:$0xf]
    %v7739 = vld [vmem:[%s7518 + $0x630] sm:$0xff]
    %v7740 = vld [vmem:[%s7518 + $0x638] sm:$0xff]
    %v7741 = vld [vmem:[%s7518 + $0x640] sm:$0xff]
    %v7742 = vld [vmem:[%s7518 + $0x648] sm:$0xff]
    %v7743 = vld [vmem:[%s7518 + $0x650] sm:$0xf]
    %v7744 = vld [vmem:[%s7518 + $0x654] sm:$0xff]
    %v7745 = vld [vmem:[%s7518 + $0x65c] sm:$0xff]
    %v7746 = vld [vmem:[%s7518 + $0x664] sm:$0xff]
    %v7747 = vld [vmem:[%s7518 + $0x66c] sm:$0xff]
    %v7748 = vld [vmem:[%s7518 + $0x674] sm:$0xf]
    %v7749 = vld [vmem:[%s7518 + $0x678] sm:$0xff]
    %v7750 = vld [vmem:[%s7518 + $0x680] sm:$0xff]
    %v7751 = vld [vmem:[%s7518 + $0x688] sm:$0xff]
    %v7752 = vld [vmem:[%s7518 + $0x690] sm:$0xff]
    %v7753 = vld [vmem:[%s7518 + $0x698] sm:$0xf]
    %v7754 = vld [vmem:[%s7518 + $0x69c] sm:$0xff]
    %v7755 = vld [vmem:[%s7518 + $0x6a4] sm:$0xff]
    %v7756 = vld [vmem:[%s7518 + $0x6ac] sm:$0xff]
    %v7757 = vld [vmem:[%s7518 + $0x6b4] sm:$0xff]
    %v7758 = vld [vmem:[%s7518 + $0x6bc] sm:$0xf]
    %s7759 = scalar_lea.vmem [#allocation9], 9
    %v7760 = vld [vmem:[%s7759] sm:$0xff]
    %v7761 = vld [vmem:[%s7759 + $0x8] sm:$0x1]
    %v8002 = vunpack.c.l.b16 %v7519
    %v8003 = vunpack.c.h.b16 %v7519
    %v8004 = vunpack.c.l.b16 %v7520
    %v8005 = vunpack.c.h.b16 %v7520
    %v8006 = vunpack.c.l.b16 %v7521
    %v8007 = vunpack.c.h.b16 %v7521
    %v8008 = vunpack.c.l.b16 %v7522
    %v8009 = vunpack.c.h.b16 %v7522
    %v8010 = vunpack.c.l.b16 %v7523
    %v8011 = vunpack.c.l.b16 %v7524
    %v8012 = vunpack.c.h.b16 %v7524
    %v8013 = vunpack.c.l.b16 %v7525
    %v8014 = vunpack.c.h.b16 %v7525
    %v8015 = vunpack.c.l.b16 %v7526
    %v8016 = vunpack.c.h.b16 %v7526
    %v8017 = vunpack.c.l.b16 %v7527
    %v8018 = vunpack.c.h.b16 %v7527
    %v8019 = vunpack.c.l.b16 %v7528
    %v8020 = vunpack.c.l.b16 %v7529
    %v8021 = vunpack.c.h.b16 %v7529
    %v8022 = vunpack.c.l.b16 %v7530
    %v8023 = vunpack.c.h.b16 %v7530
    %v8024 = vunpack.c.l.b16 %v7531
    %v8025 = vunpack.c.h.b16 %v7531
    %v8026 = vunpack.c.l.b16 %v7532
    %v8027 = vunpack.c.h.b16 %v7532
    %v8028 = vunpack.c.l.b16 %v7533
    %v8029 = vunpack.c.l.b16 %v7534
    %v8030 = vunpack.c.h.b16 %v7534
    %v8031 = vunpack.c.l.b16 %v7535
    %v8032 = vunpack.c.h.b16 %v7535
    %v8033 = vunpack.c.l.b16 %v7536
    %v8034 = vunpack.c.h.b16 %v7536
    %v8035 = vunpack.c.l.b16 %v7537
    %v8036 = vunpack.c.h.b16 %v7537
    %v8037 = vunpack.c.l.b16 %v7538
    %v8038 = vunpack.c.l.b16 %v7539
    %v8039 = vunpack.c.h.b16 %v7539
    %v8040 = vunpack.c.l.b16 %v7540
    %v8041 = vunpack.c.h.b16 %v7540
    %v8042 = vunpack.c.l.b16 %v7541
    %v8043 = vunpack.c.h.b16 %v7541
    %v8044 = vunpack.c.l.b16 %v7542
    %v8045 = vunpack.c.h.b16 %v7542
    %v8046 = vunpack.c.l.b16 %v7543
    %v8047 = vunpack.c.l.b16 %v7544
    %v8048 = vunpack.c.h.b16 %v7544
    %v8049 = vunpack.c.l.b16 %v7545
    %v8050 = vunpack.c.h.b16 %v7545
    %v8051 = vunpack.c.l.b16 %v7546
    %v8052 = vunpack.c.h.b16 %v7546
    %v8053 = vunpack.c.l.b16 %v7547
    %v8054 = vunpack.c.h.b16 %v7547
    %v8055 = vunpack.c.l.b16 %v7548
    %v8056 = vunpack.c.l.b16 %v7549
    %v8057 = vunpack.c.h.b16 %v7549
    %v8058 = vunpack.c.l.b16 %v7550
    %v8059 = vunpack.c.h.b16 %v7550
    %v8060 = vunpack.c.l.b16 %v7551
    %v8061 = vunpack.c.h.b16 %v7551
    %v8062 = vunpack.c.l.b16 %v7552
    %v8063 = vunpack.c.h.b16 %v7552
    %v8064 = vunpack.c.l.b16 %v7553
    %v8065 = vunpack.c.l.b16 %v7554
    %v8066 = vunpack.c.h.b16 %v7554
    %v8067 = vunpack.c.l.b16 %v7555
    %v8068 = vunpack.c.h.b16 %v7555
    %v8069 = vunpack.c.l.b16 %v7556
    %v8070 = vunpack.c.h.b16 %v7556
    %v8071 = vunpack.c.l.b16 %v7557
    %v8072 = vunpack.c.h.b16 %v7557
    %v8073 = vunpack.c.l.b16 %v7558
    %v8074 = vunpack.c.l.b16 %v7559
    %v8075 = vunpack.c.h.b16 %v7559
    %v8076 = vunpack.c.l.b16 %v7560
    %v8077 = vunpack.c.h.b16 %v7560
    %v8078 = vunpack.c.l.b16 %v7561
    %v8079 = vunpack.c.h.b16 %v7561
    %v8080 = vunpack.c.l.b16 %v7562
    %v8081 = vunpack.c.h.b16 %v7562
    %v8082 = vunpack.c.l.b16 %v7563
    %v8083 = vunpack.c.l.b16 %v7564
    %v8084 = vunpack.c.h.b16 %v7564
    %v8085 = vunpack.c.l.b16 %v7565
    %v8086 = vunpack.c.h.b16 %v7565
    %v8087 = vunpack.c.l.b16 %v7566
    %v8088 = vunpack.c.h.b16 %v7566
    %v8089 = vunpack.c.l.b16 %v7567
    %v8090 = vunpack.c.h.b16 %v7567
    %v8091 = vunpack.c.l.b16 %v7568
    %v8092 = vunpack.c.l.b16 %v7569
    %v8093 = vunpack.c.h.b16 %v7569
    %v8094 = vunpack.c.l.b16 %v7570
    %v8095 = vunpack.c.h.b16 %v7570
    %v8096 = vunpack.c.l.b16 %v7571
    %v8097 = vunpack.c.h.b16 %v7571
    %v8098 = vunpack.c.l.b16 %v7572
    %v8099 = vunpack.c.h.b16 %v7572
    %v8100 = vunpack.c.l.b16 %v7573
    %v8101 = vunpack.c.l.b16 %v7574
    %v8102 = vunpack.c.h.b16 %v7574
    %v8103 = vunpack.c.l.b16 %v7575
    %v8104 = vunpack.c.h.b16 %v7575
    %v8105 = vunpack.c.l.b16 %v7576
    %v8106 = vunpack.c.h.b16 %v7576
    %v8107 = vunpack.c.l.b16 %v7577
    %v8108 = vunpack.c.h.b16 %v7577
    %v8109 = vunpack.c.l.b16 %v7578
    %v8110 = vunpack.c.l.b16 %v7579
    %v8111 = vunpack.c.h.b16 %v7579
    %v8112 = vunpack.c.l.b16 %v7580
    %v8113 = vunpack.c.h.b16 %v7580
    %v8114 = vunpack.c.l.b16 %v7581
    %v8115 = vunpack.c.h.b16 %v7581
    %v8116 = vunpack.c.l.b16 %v7582
    %v8117 = vunpack.c.h.b16 %v7582
    %v8118 = vunpack.c.l.b16 %v7583
    %v8119 = vunpack.c.l.b16 %v7584
    %v8120 = vunpack.c.h.b16 %v7584
    %v8121 = vunpack.c.l.b16 %v7585
    %v8122 = vunpack.c.h.b16 %v7585
    %v8123 = vunpack.c.l.b16 %v7586
    %v8124 = vunpack.c.h.b16 %v7586
    %v8125 = vunpack.c.l.b16 %v7587
    %v8126 = vunpack.c.h.b16 %v7587
    %v8127 = vunpack.c.l.b16 %v7588
    %v8128 = vunpack.c.l.b16 %v7589
    %v8129 = vunpack.c.h.b16 %v7589
    %v8130 = vunpack.c.l.b16 %v7590
    %v8131 = vunpack.c.h.b16 %v7590
    %v8132 = vunpack.c.l.b16 %v7591
    %v8133 = vunpack.c.h.b16 %v7591
    %v8134 = vunpack.c.l.b16 %v7592
    %v8135 = vunpack.c.h.b16 %v7592
    %v8136 = vunpack.c.l.b16 %v7593
    %v8137 = vunpack.c.l.b16 %v7594
    %v8138 = vunpack.c.h.b16 %v7594
    %v8139 = vunpack.c.l.b16 %v7595
    %v8140 = vunpack.c.h.b16 %v7595
    %v8141 = vunpack.c.l.b16 %v7596
    %v8142 = vunpack.c.h.b16 %v7596
    %v8143 = vunpack.c.l.b16 %v7597
    %v8144 = vunpack.c.h.b16 %v7597
    %v8145 = vunpack.c.l.b16 %v7598
    %v8146 = vunpack.c.l.b16 %v7599
    %v8147 = vunpack.c.h.b16 %v7599
    %v8148 = vunpack.c.l.b16 %v7600
    %v8149 = vunpack.c.h.b16 %v7600
    %v8150 = vunpack.c.l.b16 %v7601
    %v8151 = vunpack.c.h.b16 %v7601
    %v8152 = vunpack.c.l.b16 %v7602
    %v8153 = vunpack.c.h.b16 %v7602
    %v8154 = vunpack.c.l.b16 %v7603
    %v8155 = vunpack.c.l.b16 %v7604
    %v8156 = vunpack.c.h.b16 %v7604
    %v8157 = vunpack.c.l.b16 %v7605
    %v8158 = vunpack.c.h.b16 %v7605
    %v8159 = vunpack.c.l.b16 %v7606
    %v8160 = vunpack.c.h.b16 %v7606
    %v8161 = vunpack.c.l.b16 %v7607
    %v8162 = vunpack.c.h.b16 %v7607
    %v8163 = vunpack.c.l.b16 %v7608
    %v8164 = vunpack.c.l.b16 %v7609
    %v8165 = vunpack.c.h.b16 %v7609
    %v8166 = vunpack.c.l.b16 %v7610
    %v8167 = vunpack.c.h.b16 %v7610
    %v8168 = vunpack.c.l.b16 %v7611
    %v8169 = vunpack.c.h.b16 %v7611
    %v8170 = vunpack.c.l.b16 %v7612
    %v8171 = vunpack.c.h.b16 %v7612
    %v8172 = vunpack.c.l.b16 %v7613
    %v8173 = vunpack.c.l.b16 %v7614
    %v8174 = vunpack.c.h.b16 %v7614
    %v8175 = vunpack.c.l.b16 %v7615
    %v8176 = vunpack.c.h.b16 %v7615
    %v8177 = vunpack.c.l.b16 %v7616
    %v8178 = vunpack.c.h.b16 %v7616
    %v8179 = vunpack.c.l.b16 %v7617
    %v8180 = vunpack.c.h.b16 %v7617
    %v8181 = vunpack.c.l.b16 %v7618
    %v8182 = vunpack.c.l.b16 %v7619
    %v8183 = vunpack.c.h.b16 %v7619
    %v8184 = vunpack.c.l.b16 %v7620
    %v8185 = vunpack.c.h.b16 %v7620
    %v8186 = vunpack.c.l.b16 %v7621
    %v8187 = vunpack.c.h.b16 %v7621
    %v8188 = vunpack.c.l.b16 %v7622
    %v8189 = vunpack.c.h.b16 %v7622
    %v8190 = vunpack.c.l.b16 %v7623
    %v8191 = vunpack.c.l.b16 %v7624
    %v8192 = vunpack.c.h.b16 %v7624
    %v8193 = vunpack.c.l.b16 %v7625
    %v8194 = vunpack.c.h.b16 %v7625
    %v8195 = vunpack.c.l.b16 %v7626
    %v8196 = vunpack.c.h.b16 %v7626
    %v8197 = vunpack.c.l.b16 %v7627
    %v8198 = vunpack.c.h.b16 %v7627
    %v8199 = vunpack.c.l.b16 %v7628
    %v8200 = vunpack.c.l.b16 %v7629
    %v8201 = vunpack.c.h.b16 %v7629
    %v8202 = vunpack.c.l.b16 %v7630
    %v8203 = vunpack.c.h.b16 %v7630
    %v8204 = vunpack.c.l.b16 %v7631
    %v8205 = vunpack.c.h.b16 %v7631
    %v8206 = vunpack.c.l.b16 %v7632
    %v8207 = vunpack.c.h.b16 %v7632
    %v8208 = vunpack.c.l.b16 %v7633
    %v8209 = vunpack.c.l.b16 %v7634
    %v8210 = vunpack.c.h.b16 %v7634
    %v8211 = vunpack.c.l.b16 %v7635
    %v8212 = vunpack.c.h.b16 %v7635
    %v8213 = vunpack.c.l.b16 %v7636
    %v8214 = vunpack.c.h.b16 %v7636
    %v8215 = vunpack.c.l.b16 %v7637
    %v8216 = vunpack.c.h.b16 %v7637
    %v8217 = vunpack.c.l.b16 %v7638
    %v8218 = vunpack.c.l.b16 %v7639
    %v8219 = vunpack.c.h.b16 %v7639
    %v8220 = vunpack.c.l.b16 %v7640
    %v8221 = vunpack.c.h.b16 %v7640
    %v8222 = vunpack.c.l.b16 %v7641
    %v8223 = vunpack.c.h.b16 %v7641
    %v8224 = vunpack.c.l.b16 %v7642
    %v8225 = vunpack.c.h.b16 %v7642
    %v8226 = vunpack.c.l.b16 %v7643
    %v8227 = vunpack.c.l.b16 %v7644
    %v8228 = vunpack.c.h.b16 %v7644
    %v8229 = vunpack.c.l.b16 %v7645
    %v8230 = vunpack.c.h.b16 %v7645
    %v8231 = vunpack.c.l.b16 %v7646
    %v8232 = vunpack.c.h.b16 %v7646
    %v8233 = vunpack.c.l.b16 %v7647
    %v8234 = vunpack.c.h.b16 %v7647
    %v8235 = vunpack.c.l.b16 %v7648
    %v8236 = vunpack.c.l.b16 %v7649
    %v8237 = vunpack.c.h.b16 %v7649
    %v8238 = vunpack.c.l.b16 %v7650
    %v8239 = vunpack.c.h.b16 %v7650
    %v8240 = vunpack.c.l.b16 %v7651
    %v8241 = vunpack.c.h.b16 %v7651
    %v8242 = vunpack.c.l.b16 %v7652
    %v8243 = vunpack.c.h.b16 %v7652
    %v8244 = vunpack.c.l.b16 %v7653
    %v8245 = vunpack.c.l.b16 %v7654
    %v8246 = vunpack.c.h.b16 %v7654
    %v8247 = vunpack.c.l.b16 %v7655
    %v8248 = vunpack.c.h.b16 %v7655
    %v8249 = vunpack.c.l.b16 %v7656
    %v8250 = vunpack.c.h.b16 %v7656
    %v8251 = vunpack.c.l.b16 %v7657
    %v8252 = vunpack.c.h.b16 %v7657
    %v8253 = vunpack.c.l.b16 %v7658
    %v8254 = vunpack.c.l.b16 %v7659
    %v8255 = vunpack.c.h.b16 %v7659
    %v8256 = vunpack.c.l.b16 %v7660
    %v8257 = vunpack.c.h.b16 %v7660
    %v8258 = vunpack.c.l.b16 %v7661
    %v8259 = vunpack.c.h.b16 %v7661
    %v8260 = vunpack.c.l.b16 %v7662
    %v8261 = vunpack.c.h.b16 %v7662
    %v8262 = vunpack.c.l.b16 %v7663
    %v8263 = vunpack.c.l.b16 %v7664
    %v8264 = vunpack.c.h.b16 %v7664
    %v8265 = vunpack.c.l.b16 %v7665
    %v8266 = vunpack.c.h.b16 %v7665
    %v8267 = vunpack.c.l.b16 %v7666
    %v8268 = vunpack.c.h.b16 %v7666
    %v8269 = vunpack.c.l.b16 %v7667
    %v8270 = vunpack.c.h.b16 %v7667
    %v8271 = vunpack.c.l.b16 %v7668
    %v8272 = vunpack.c.l.b16 %v7669
    %v8273 = vunpack.c.h.b16 %v7669
    %v8274 = vunpack.c.l.b16 %v7670
    %v8275 = vunpack.c.h.b16 %v7670
    %v8276 = vunpack.c.l.b16 %v7671
    %v8277 = vunpack.c.h.b16 %v7671
    %v8278 = vunpack.c.l.b16 %v7672
    %v8279 = vunpack.c.h.b16 %v7672
    %v8280 = vunpack.c.l.b16 %v7673
    %v8281 = vunpack.c.l.b16 %v7674
    %v8282 = vunpack.c.h.b16 %v7674
    %v8283 = vunpack.c.l.b16 %v7675
    %v8284 = vunpack.c.h.b16 %v7675
    %v8285 = vunpack.c.l.b16 %v7676
    %v8286 = vunpack.c.h.b16 %v7676
    %v8287 = vunpack.c.l.b16 %v7677
    %v8288 = vunpack.c.h.b16 %v7677
    %v8289 = vunpack.c.l.b16 %v7678
    %v8290 = vunpack.c.l.b16 %v7679
    %v8291 = vunpack.c.h.b16 %v7679
    %v8292 = vunpack.c.l.b16 %v7680
    %v8293 = vunpack.c.h.b16 %v7680
    %v8294 = vunpack.c.l.b16 %v7681
    %v8295 = vunpack.c.h.b16 %v7681
    %v8296 = vunpack.c.l.b16 %v7682
    %v8297 = vunpack.c.h.b16 %v7682
    %v8298 = vunpack.c.l.b16 %v7683
    %v8299 = vunpack.c.l.b16 %v7684
    %v8300 = vunpack.c.h.b16 %v7684
    %v8301 = vunpack.c.l.b16 %v7685
    %v8302 = vunpack.c.h.b16 %v7685
    %v8303 = vunpack.c.l.b16 %v7686
    %v8304 = vunpack.c.h.b16 %v7686
    %v8305 = vunpack.c.l.b16 %v7687
    %v8306 = vunpack.c.h.b16 %v7687
    %v8307 = vunpack.c.l.b16 %v7688
    %v8308 = vunpack.c.l.b16 %v7689
    %v8309 = vunpack.c.h.b16 %v7689
    %v8310 = vunpack.c.l.b16 %v7690
    %v8311 = vunpack.c.h.b16 %v7690
    %v8312 = vunpack.c.l.b16 %v7691
    %v8313 = vunpack.c.h.b16 %v7691
    %v8314 = vunpack.c.l.b16 %v7692
    %v8315 = vunpack.c.h.b16 %v7692
    %v8316 = vunpack.c.l.b16 %v7693
    %v8317 = vunpack.c.l.b16 %v7694
    %v8318 = vunpack.c.h.b16 %v7694
    %v8319 = vunpack.c.l.b16 %v7695
    %v8320 = vunpack.c.h.b16 %v7695
    %v8321 = vunpack.c.l.b16 %v7696
    %v8322 = vunpack.c.h.b16 %v7696
    %v8323 = vunpack.c.l.b16 %v7697
    %v8324 = vunpack.c.h.b16 %v7697
    %v8325 = vunpack.c.l.b16 %v7698
    %v8326 = vunpack.c.l.b16 %v7699
    %v8327 = vunpack.c.h.b16 %v7699
    %v8328 = vunpack.c.l.b16 %v7700
    %v8329 = vunpack.c.h.b16 %v7700
    %v8330 = vunpack.c.l.b16 %v7701
    %v8331 = vunpack.c.h.b16 %v7701
    %v8332 = vunpack.c.l.b16 %v7702
    %v8333 = vunpack.c.h.b16 %v7702
    %v8334 = vunpack.c.l.b16 %v7703
    %v8335 = vunpack.c.l.b16 %v7704
    %v8336 = vunpack.c.h.b16 %v7704
    %v8337 = vunpack.c.l.b16 %v7705
    %v8338 = vunpack.c.h.b16 %v7705
    %v8339 = vunpack.c.l.b16 %v7706
    %v8340 = vunpack.c.h.b16 %v7706
    %v8341 = vunpack.c.l.b16 %v7707
    %v8342 = vunpack.c.h.b16 %v7707
    %v8343 = vunpack.c.l.b16 %v7708
    %v8344 = vunpack.c.l.b16 %v7709
    %v8345 = vunpack.c.h.b16 %v7709
    %v8346 = vunpack.c.l.b16 %v7710
    %v8347 = vunpack.c.h.b16 %v7710
    %v8348 = vunpack.c.l.b16 %v7711
    %v8349 = vunpack.c.h.b16 %v7711
    %v8350 = vunpack.c.l.b16 %v7712
    %v8351 = vunpack.c.h.b16 %v7712
    %v8352 = vunpack.c.l.b16 %v7713
    %v8353 = vunpack.c.l.b16 %v7714
    %v8354 = vunpack.c.h.b16 %v7714
    %v8355 = vunpack.c.l.b16 %v7715
    %v8356 = vunpack.c.h.b16 %v7715
    %v8357 = vunpack.c.l.b16 %v7716
    %v8358 = vunpack.c.h.b16 %v7716
    %v8359 = vunpack.c.l.b16 %v7717
    %v8360 = vunpack.c.h.b16 %v7717
    %v8361 = vunpack.c.l.b16 %v7718
    %v8362 = vunpack.c.l.b16 %v7719
    %v8363 = vunpack.c.h.b16 %v7719
    %v8364 = vunpack.c.l.b16 %v7720
    %v8365 = vunpack.c.h.b16 %v7720
    %v8366 = vunpack.c.l.b16 %v7721
    %v8367 = vunpack.c.h.b16 %v7721
    %v8368 = vunpack.c.l.b16 %v7722
    %v8369 = vunpack.c.h.b16 %v7722
    %v8370 = vunpack.c.l.b16 %v7723
    %v8371 = vunpack.c.l.b16 %v7724
    %v8372 = vunpack.c.h.b16 %v7724
    %v8373 = vunpack.c.l.b16 %v7725
    %v8374 = vunpack.c.h.b16 %v7725
    %v8375 = vunpack.c.l.b16 %v7726
    %v8376 = vunpack.c.h.b16 %v7726
    %v8377 = vunpack.c.l.b16 %v7727
    %v8378 = vunpack.c.h.b16 %v7727
    %v8379 = vunpack.c.l.b16 %v7728
    %v8380 = vunpack.c.l.b16 %v7729
    %v8381 = vunpack.c.h.b16 %v7729
    %v8382 = vunpack.c.l.b16 %v7730
    %v8383 = vunpack.c.h.b16 %v7730
    %v8384 = vunpack.c.l.b16 %v7731
    %v8385 = vunpack.c.h.b16 %v7731
    %v8386 = vunpack.c.l.b16 %v7732
    %v8387 = vunpack.c.h.b16 %v7732
    %v8388 = vunpack.c.l.b16 %v7733
    %v8389 = vunpack.c.l.b16 %v7734
    %v8390 = vunpack.c.h.b16 %v7734
    %v8391 = vunpack.c.l.b16 %v7735
    %v8392 = vunpack.c.h.b16 %v7735
    %v8393 = vunpack.c.l.b16 %v7736
    %v8394 = vunpack.c.h.b16 %v7736
    %v8395 = vunpack.c.l.b16 %v7737
    %v8396 = vunpack.c.h.b16 %v7737
    %v8397 = vunpack.c.l.b16 %v7738
    %v8398 = vunpack.c.l.b16 %v7739
    %v8399 = vunpack.c.h.b16 %v7739
    %v8400 = vunpack.c.l.b16 %v7740
    %v8401 = vunpack.c.h.b16 %v7740
    %v8402 = vunpack.c.l.b16 %v7741
    %v8403 = vunpack.c.h.b16 %v7741
    %v8404 = vunpack.c.l.b16 %v7742
    %v8405 = vunpack.c.h.b16 %v7742
    %v8406 = vunpack.c.l.b16 %v7743
    %v8407 = vunpack.c.l.b16 %v7744
    %v8408 = vunpack.c.h.b16 %v7744
    %v8409 = vunpack.c.l.b16 %v7745
    %v8410 = vunpack.c.h.b16 %v7745
    %v8411 = vunpack.c.l.b16 %v7746
    %v8412 = vunpack.c.h.b16 %v7746
    %v8413 = vunpack.c.l.b16 %v7747
    %v8414 = vunpack.c.h.b16 %v7747
    %v8415 = vunpack.c.l.b16 %v7748
    %v8416 = vunpack.c.l.b16 %v7749
    %v8417 = vunpack.c.h.b16 %v7749
    %v8418 = vunpack.c.l.b16 %v7750
    %v8419 = vunpack.c.h.b16 %v7750
    %v8420 = vunpack.c.l.b16 %v7751
    %v8421 = vunpack.c.h.b16 %v7751
    %v8422 = vunpack.c.l.b16 %v7752
    %v8423 = vunpack.c.h.b16 %v7752
    %v8424 = vunpack.c.l.b16 %v7753
    %v8425 = vunpack.c.l.b16 %v7754
    %v8426 = vunpack.c.h.b16 %v7754
    %v8427 = vunpack.c.l.b16 %v7755
    %v8428 = vunpack.c.h.b16 %v7755
    %v8429 = vunpack.c.l.b16 %v7756
    %v8430 = vunpack.c.h.b16 %v7756
    %v8431 = vunpack.c.l.b16 %v7757
    %v8432 = vunpack.c.h.b16 %v7757
    %v8433 = vunpack.c.l.b16 %v7758
    %v8434 = vpack.c.b16 %v8011, %v8002
    %v8435 = vpack.c.b16 %v8012, %v8003
    %v8436 = vpack.c.b16 %v8013, %v8004
    %v8437 = vpack.c.b16 %v8014, %v8005
    %v8438 = vpack.c.b16 %v8015, %v8006
    %v8439 = vpack.c.b16 %v8016, %v8007
    %v8440 = vpack.c.b16 %v8017, %v8008
    %v8441 = vpack.c.b16 %v8018, %v8009
    %v8442 = vpack.c.b16 %v8019, %v8010
    %v8443 = vpack.c.b16 %v8029, %v8020
    %v8444 = vpack.c.b16 %v8030, %v8021
    %v8445 = vpack.c.b16 %v8031, %v8022
    %v8446 = vpack.c.b16 %v8032, %v8023
    %v8447 = vpack.c.b16 %v8033, %v8024
    %v8448 = vpack.c.b16 %v8034, %v8025
    %v8449 = vpack.c.b16 %v8035, %v8026
    %v8450 = vpack.c.b16 %v8036, %v8027
    %v8451 = vpack.c.b16 %v8037, %v8028
    %v8452 = vpack.c.b16 %v8047, %v8038
    %v8453 = vpack.c.b16 %v8048, %v8039
    %v8454 = vpack.c.b16 %v8049, %v8040
    %v8455 = vpack.c.b16 %v8050, %v8041
    %v8456 = vpack.c.b16 %v8051, %v8042
    %v8457 = vpack.c.b16 %v8052, %v8043
    %v8458 = vpack.c.b16 %v8053, %v8044
    %v8459 = vpack.c.b16 %v8054, %v8045
    %v8460 = vpack.c.b16 %v8055, %v8046
    %v8461 = vpack.c.b16 %v8065, %v8056
    %v8462 = vpack.c.b16 %v8066, %v8057
    %v8463 = vpack.c.b16 %v8067, %v8058
    %v8464 = vpack.c.b16 %v8068, %v8059
    %v8465 = vpack.c.b16 %v8069, %v8060
    %v8466 = vpack.c.b16 %v8070, %v8061
    %v8467 = vpack.c.b16 %v8071, %v8062
    %v8468 = vpack.c.b16 %v8072, %v8063
    %v8469 = vpack.c.b16 %v8073, %v8064
    %v8470 = vpack.c.b16 %v8083, %v8074
    %v8471 = vpack.c.b16 %v8084, %v8075
    %v8472 = vpack.c.b16 %v8085, %v8076
    %v8473 = vpack.c.b16 %v8086, %v8077
    %v8474 = vpack.c.b16 %v8087, %v8078
    %v8475 = vpack.c.b16 %v8088, %v8079
    %v8476 = vpack.c.b16 %v8089, %v8080
    %v8477 = vpack.c.b16 %v8090, %v8081
    %v8478 = vpack.c.b16 %v8091, %v8082
    %v8479 = vpack.c.b16 %v8101, %v8092
    %v8480 = vpack.c.b16 %v8102, %v8093
    %v8481 = vpack.c.b16 %v8103, %v8094
    %v8482 = vpack.c.b16 %v8104, %v8095
    %v8483 = vpack.c.b16 %v8105, %v8096
    %v8484 = vpack.c.b16 %v8106, %v8097
    %v8485 = vpack.c.b16 %v8107, %v8098
    %v8486 = vpack.c.b16 %v8108, %v8099
    %v8487 = vpack.c.b16 %v8109, %v8100
    %v8488 = vpack.c.b16 %v8119, %v8110
    %v8489 = vpack.c.b16 %v8120, %v8111
    %v8490 = vpack.c.b16 %v8121, %v8112
    %v8491 = vpack.c.b16 %v8122, %v8113
    %v8492 = vpack.c.b16 %v8123, %v8114
    %v8493 = vpack.c.b16 %v8124, %v8115
    %v8494 = vpack.c.b16 %v8125, %v8116
    %v8495 = vpack.c.b16 %v8126, %v8117
    %v8496 = vpack.c.b16 %v8127, %v8118
    %v8497 = vpack.c.b16 %v8137, %v8128
    %v8498 = vpack.c.b16 %v8138, %v8129
    %v8499 = vpack.c.b16 %v8139, %v8130
    %v8500 = vpack.c.b16 %v8140, %v8131
    %v8501 = vpack.c.b16 %v8141, %v8132
    %v8502 = vpack.c.b16 %v8142, %v8133
    %v8503 = vpack.c.b16 %v8143, %v8134
    %v8504 = vpack.c.b16 %v8144, %v8135
    %v8505 = vpack.c.b16 %v8145, %v8136
    %v8506 = vpack.c.b16 %v8155, %v8146
    %v8507 = vpack.c.b16 %v8156, %v8147
    %v8508 = vpack.c.b16 %v8157, %v8148
    %v8509 = vpack.c.b16 %v8158, %v8149
    %v8510 = vpack.c.b16 %v8159, %v8150
    %v8511 = vpack.c.b16 %v8160, %v8151
    %v8512 = vpack.c.b16 %v8161, %v8152
    %v8513 = vpack.c.b16 %v8162, %v8153
    %v8514 = vpack.c.b16 %v8163, %v8154
    %v8515 = vpack.c.b16 %v8173, %v8164
    %v8516 = vpack.c.b16 %v8174, %v8165
    %v8517 = vpack.c.b16 %v8175, %v8166
    %v8518 = vpack.c.b16 %v8176, %v8167
    %v8519 = vpack.c.b16 %v8177, %v8168
    %v8520 = vpack.c.b16 %v8178, %v8169
    %v8521 = vpack.c.b16 %v8179, %v8170
    %v8522 = vpack.c.b16 %v8180, %v8171
    %v8523 = vpack.c.b16 %v8181, %v8172
    %v8524 = vpack.c.b16 %v8191, %v8182
    %v8525 = vpack.c.b16 %v8192, %v8183
    %v8526 = vpack.c.b16 %v8193, %v8184
    %v8527 = vpack.c.b16 %v8194, %v8185
    %v8528 = vpack.c.b16 %v8195, %v8186
    %v8529 = vpack.c.b16 %v8196, %v8187
    %v8530 = vpack.c.b16 %v8197, %v8188
    %v8531 = vpack.c.b16 %v8198, %v8189
    %v8532 = vpack.c.b16 %v8199, %v8190
    %v8533 = vpack.c.b16 %v8209, %v8200
    %v8534 = vpack.c.b16 %v8210, %v8201
    %v8535 = vpack.c.b16 %v8211, %v8202
    %v8536 = vpack.c.b16 %v8212, %v8203
    %v8537 = vpack.c.b16 %v8213, %v8204
    %v8538 = vpack.c.b16 %v8214, %v8205
    %v8539 = vpack.c.b16 %v8215, %v8206
    %v8540 = vpack.c.b16 %v8216, %v8207
    %v8541 = vpack.c.b16 %v8217, %v8208
    %v8542 = vpack.c.b16 %v8227, %v8218
    %v8543 = vpack.c.b16 %v8228, %v8219
    %v8544 = vpack.c.b16 %v8229, %v8220
    %v8545 = vpack.c.b16 %v8230, %v8221
    %v8546 = vpack.c.b16 %v8231, %v8222
    %v8547 = vpack.c.b16 %v8232, %v8223
    %v8548 = vpack.c.b16 %v8233, %v8224
    %v8549 = vpack.c.b16 %v8234, %v8225
    %v8550 = vpack.c.b16 %v8235, %v8226
    %v8551 = vpack.c.b16 %v8245, %v8236
    %v8552 = vpack.c.b16 %v8246, %v8237
    %v8553 = vpack.c.b16 %v8247, %v8238
    %v8554 = vpack.c.b16 %v8248, %v8239
    %v8555 = vpack.c.b16 %v8249, %v8240
    %v8556 = vpack.c.b16 %v8250, %v8241
    %v8557 = vpack.c.b16 %v8251, %v8242
    %v8558 = vpack.c.b16 %v8252, %v8243
    %v8559 = vpack.c.b16 %v8253, %v8244
    %v8560 = vpack.c.b16 %v8263, %v8254
    %v8561 = vpack.c.b16 %v8264, %v8255
    %v8562 = vpack.c.b16 %v8265, %v8256
    %v8563 = vpack.c.b16 %v8266, %v8257
    %v8564 = vpack.c.b16 %v8267, %v8258
    %v8565 = vpack.c.b16 %v8268, %v8259
    %v8566 = vpack.c.b16 %v8269, %v8260
    %v8567 = vpack.c.b16 %v8270, %v8261
    %v8568 = vpack.c.b16 %v8271, %v8262
    %v8569 = vpack.c.b16 %v8281, %v8272
    %v8570 = vpack.c.b16 %v8282, %v8273
    %v8571 = vpack.c.b16 %v8283, %v8274
    %v8572 = vpack.c.b16 %v8284, %v8275
    %v8573 = vpack.c.b16 %v8285, %v8276
    %v8574 = vpack.c.b16 %v8286, %v8277
    %v8575 = vpack.c.b16 %v8287, %v8278
    %v8576 = vpack.c.b16 %v8288, %v8279
    %v8577 = vpack.c.b16 %v8289, %v8280
    %v8578 = vpack.c.b16 %v8299, %v8290
    %v8579 = vpack.c.b16 %v8300, %v8291
    %v8580 = vpack.c.b16 %v8301, %v8292
    %v8581 = vpack.c.b16 %v8302, %v8293
    %v8582 = vpack.c.b16 %v8303, %v8294
    %v8583 = vpack.c.b16 %v8304, %v8295
    %v8584 = vpack.c.b16 %v8305, %v8296
    %v8585 = vpack.c.b16 %v8306, %v8297
    %v8586 = vpack.c.b16 %v8307, %v8298
    %v8587 = vpack.c.b16 %v8317, %v8308
    %v8588 = vpack.c.b16 %v8318, %v8309
    %v8589 = vpack.c.b16 %v8319, %v8310
    %v8590 = vpack.c.b16 %v8320, %v8311
    %v8591 = vpack.c.b16 %v8321, %v8312
    %v8592 = vpack.c.b16 %v8322, %v8313
    %v8593 = vpack.c.b16 %v8323, %v8314
    %v8594 = vpack.c.b16 %v8324, %v8315
    %v8595 = vpack.c.b16 %v8325, %v8316
    %v8596 = vpack.c.b16 %v8335, %v8326
    %v8597 = vpack.c.b16 %v8336, %v8327
    %v8598 = vpack.c.b16 %v8337, %v8328
    %v8599 = vpack.c.b16 %v8338, %v8329
    %v8600 = vpack.c.b16 %v8339, %v8330
    %v8601 = vpack.c.b16 %v8340, %v8331
    %v8602 = vpack.c.b16 %v8341, %v8332
    %v8603 = vpack.c.b16 %v8342, %v8333
    %v8604 = vpack.c.b16 %v8343, %v8334
    %v8605 = vpack.c.b16 %v8353, %v8344
    %v8606 = vpack.c.b16 %v8354, %v8345
    %v8607 = vpack.c.b16 %v8355, %v8346
    %v8608 = vpack.c.b16 %v8356, %v8347
    %v8609 = vpack.c.b16 %v8357, %v8348
    %v8610 = vpack.c.b16 %v8358, %v8349
    %v8611 = vpack.c.b16 %v8359, %v8350
    %v8612 = vpack.c.b16 %v8360, %v8351
    %v8613 = vpack.c.b16 %v8361, %v8352
    %v8614 = vpack.c.b16 %v8371, %v8362
    %v8615 = vpack.c.b16 %v8372, %v8363
    %v8616 = vpack.c.b16 %v8373, %v8364
    %v8617 = vpack.c.b16 %v8374, %v8365
    %v8618 = vpack.c.b16 %v8375, %v8366
    %v8619 = vpack.c.b16 %v8376, %v8367
    %v8620 = vpack.c.b16 %v8377, %v8368
    %v8621 = vpack.c.b16 %v8378, %v8369
    %v8622 = vpack.c.b16 %v8379, %v8370
    %v8623 = vpack.c.b16 %v8389, %v8380
    %v8624 = vpack.c.b16 %v8390, %v8381
    %v8625 = vpack.c.b16 %v8391, %v8382
    %v8626 = vpack.c.b16 %v8392, %v8383
    %v8627 = vpack.c.b16 %v8393, %v8384
    %v8628 = vpack.c.b16 %v8394, %v8385
    %v8629 = vpack.c.b16 %v8395, %v8386
    %v8630 = vpack.c.b16 %v8396, %v8387
    %v8631 = vpack.c.b16 %v8397, %v8388
    %v8632 = vpack.c.b16 %v8407, %v8398
    %v8633 = vpack.c.b16 %v8408, %v8399
    %v8634 = vpack.c.b16 %v8409, %v8400
    %v8635 = vpack.c.b16 %v8410, %v8401
    %v8636 = vpack.c.b16 %v8411, %v8402
    %v8637 = vpack.c.b16 %v8412, %v8403
    %v8638 = vpack.c.b16 %v8413, %v8404
    %v8639 = vpack.c.b16 %v8414, %v8405
    %v8640 = vpack.c.b16 %v8415, %v8406
    %v8641 = vpack.c.b16 %v8425, %v8416
    %v8642 = vpack.c.b16 %v8426, %v8417
    %v8643 = vpack.c.b16 %v8427, %v8418
    %v8644 = vpack.c.b16 %v8428, %v8419
    %v8645 = vpack.c.b16 %v8429, %v8420
    %v8646 = vpack.c.b16 %v8430, %v8421
    %v8647 = vpack.c.b16 %v8431, %v8422
    %v8648 = vpack.c.b16 %v8432, %v8423
    %v8649 = vpack.c.b16 %v8433, %v8424
    %v8868 = vlaneseq
    %v8869 = vshrl.u32 %v8868, 7
    %v8870 = vsub.s32 0, %v8869
    %v8871 = vrot.slane %v7760, %v8870
    %v8872 = vlaneseq
    %v8873 = vshrl.u32 %v8872, 7
    %v8874 = vsub.s32 1, %v8873
    %v8875 = vrot.slane %v7760, %v8874
    %v8876 = vlaneseq
    %v8877 = vshrl.u32 %v8876, 7
    %v8878 = vsub.s32 2, %v8877
    %v8879 = vrot.slane %v7760, %v8878
    %v8880 = vlaneseq
    %v8881 = vshrl.u32 %v8880, 7
    %v8882 = vsub.s32 3, %v8881
    %v8883 = vrot.slane %v7760, %v8882
    %v8884 = vlaneseq
    %v8885 = vshrl.u32 %v8884, 7
    %v8886 = vsub.s32 4, %v8885
    %v8887 = vrot.slane %v7760, %v8886
    %v8888 = vlaneseq
    %v8889 = vshrl.u32 %v8888, 7
    %v8890 = vsub.s32 5, %v8889
    %v8891 = vrot.slane %v7760, %v8890
    %v8892 = vlaneseq
    %v8893 = vshrl.u32 %v8892, 7
    %v8894 = vsub.s32 6, %v8893
    %v8895 = vrot.slane %v7760, %v8894
    %v8896 = vlaneseq
    %v8897 = vshrl.u32 %v8896, 7
    %v8898 = vsub.s32 7, %v8897
    %v8899 = vrot.slane %v7760, %v8898
    %v8900 = vlaneseq
    %v8901 = vshrl.u32 %v8900, 7
    %v8902 = vsub.s32 0, %v8901
    %v8903 = vrot.slane %v7761, %v8902
    %8913 = vmatprep.subr.bf16.mxu0 %v8435
    %8914 = vmatpush1.bf16.msra.mxu0 %v8434
    %8915 = vmatprep.subr.bf16.mxu0 %v8444
    %8916 = vmatpush1.bf16.msra.mxu0 %v8443
    %8917 = vmatprep.subr.bf16.mxu0 %v8453
    %8918 = vmatpush1.bf16.msra.mxu0 %v8452
    %8919 = vmatprep.subr.bf16.mxu0 %v8462
    %8920 = vmatpush1.bf16.msra.mxu0 %v8461
    %8921 = vmatprep.subr.bf16.mxu0 %v8471
    %8922 = vmatpush1.bf16.msra.mxu0 %v8470
    %8923 = vmatprep.subr.bf16.mxu0 %v8480
    %8924 = vmatpush1.bf16.msra.mxu0 %v8479
    %8925 = vmatprep.subr.bf16.mxu0 %v8489
    %8926 = vmatpush1.bf16.msra.mxu0 %v8488
    %8927 = vmatprep.subr.bf16.mxu0 %v8498
    %8928 = vmatpush1.bf16.msra.mxu0 %v8497
    %8929 = vmatprep.subr.bf16.mxu0 %v8507
    %8930 = vmatpush1.bf16.msra.mxu0 %v8506
    %8931 = vmatprep.subr.bf16.mxu0 %v8516
    %8932 = vmatpush1.bf16.msra.mxu0 %v8515
    %8933 = vmatprep.subr.bf16.mxu0 %v8525
    %8934 = vmatpush1.bf16.msra.mxu0 %v8524
    %8935 = vmatprep.subr.bf16.mxu0 %v8534
    %8936 = vmatpush1.bf16.msra.mxu0 %v8533
    %8937 = vmatprep.subr.bf16.mxu0 %v8543
    %8938 = vmatpush1.bf16.msra.mxu0 %v8542
    %8939 = vmatprep.subr.bf16.mxu0 %v8552
    %8940 = vmatpush1.bf16.msra.mxu0 %v8551
    %8941 = vmatprep.subr.bf16.mxu0 %v8561
    %8942 = vmatpush1.bf16.msra.mxu0 %v8560
    %8943 = vmatprep.subr.bf16.mxu0 %v8570
    %8944 = vmatpush1.bf16.msra.mxu0 %v8569
    %8945 = vmatprep.mubr.bf16.mxu0 %v7516
    %8946 = vmatmul.mubr.bf16.gmra.mrb[0].mxu0 %v7515
    %v8947 = vpop.f32.mrb[0].mxu0
    %v8948 = vadd.f32 %v8871, %v8947
    %v8949 = vpop.f32.mrb[0].mxu0
    %v8950 = vadd.f32 %v8875, %v8949
    %v8951 = vpop.f32.mrb[0].mxu0
    %v8952 = vpop.f32.mrb[0].mxu0
    %8953 = vdwg.mxu0
    %8954 = vmatprep.subr.bf16.mxu0 %v8579
    %8955 = vmatpush1.bf16.msra.mxu0 %v8578
    %8956 = vmatprep.subr.bf16.mxu0 %v8588
    %8957 = vmatpush1.bf16.msra.mxu0 %v8587
    %8958 = vmatprep.subr.bf16.mxu0 %v8597
    %8959 = vmatpush1.bf16.msra.mxu0 %v8596
    %8960 = vmatprep.subr.bf16.mxu0 %v8606
    %8961 = vmatpush1.bf16.msra.mxu0 %v8605
    %8962 = vmatprep.subr.bf16.mxu0 %v8615
    %8963 = vmatpush1.bf16.msra.mxu0 %v8614
    %8964 = vmatprep.subr.bf16.mxu0 %v8624
    %8965 = vmatpush1.bf16.msra.mxu0 %v8623
    %8966 = vmatprep.subr.bf16.mxu0 %v8633
    %8967 = vmatpush1.bf16.msra.mxu0 %v8632
    %8968 = vmatprep.subr.bf16.mxu0 %v8642
    %8969 = vmatpush1.bf16.msra.mxu0 %v8641
    %8970 = vmatprep.subr.bf16.mxu0 0
    %8971 = vmatpush1.bf16.msra.mxu0 0
    %8972 = vmatprep.subr.bf16.mxu0 0
    %8973 = vmatpush1.bf16.msra.mxu0 0
    %8974 = vmatprep.subr.bf16.mxu0 0
    %8975 = vmatpush1.bf16.msra.mxu0 0
    %8976 = vmatprep.subr.bf16.mxu0 0
    %8977 = vmatpush1.bf16.msra.mxu0 0
    %8978 = vmatprep.subr.bf16.mxu0 0
    %8979 = vmatpush1.bf16.msra.mxu0 0
    %8980 = vmatprep.subr.bf16.mxu0 0
    %8981 = vmatpush1.bf16.msra.mxu0 0
    %8982 = vmatprep.subr.bf16.mxu0 0
    %8983 = vmatpush1.bf16.msra.mxu0 0
    %8984 = vmatprep.subr.bf16.mxu0 0
    %8985 = vmatpush1.bf16.msra.mxu0 0
    %8986 = vmatprep.mubr.bf16.mxu0 0
    %8987 = vmatmul.mubr.bf16.gmra.mrb[0].mxu0 %v7517
    %v8988 = vpop.f32.mrb[0].mxu0
    %v8989 = vadd.f32 %v8948, %v8988
    %v8990 = vpop.f32.mrb[0].mxu0
    %v8991 = vadd.f32 %v8950, %v8990
    %v8992 = vpop.f32.mrb[0].mxu0
    %v8993 = vpop.f32.mrb[0].mxu0
    %8994 = vdwg.mxu0
    %8995 = vmatprep.subr.bf16.mxu0 %v8437
    %8996 = vmatpush1.bf16.msra.mxu0 %v8436
    %8997 = vmatprep.subr.bf16.mxu0 %v8446
    %8998 = vmatpush1.bf16.msra.mxu0 %v8445
    %8999 = vmatprep.subr.bf16.mxu0 %v8455
    %9000 = vmatpush1.bf16.msra.mxu0 %v8454
    %9001 = vmatprep.subr.bf16.mxu0 %v8464
    %9002 = vmatpush1.bf16.msra.mxu0 %v8463
    %9003 = vmatprep.subr.bf16.mxu0 %v8473
    %9004 = vmatpush1.bf16.msra.mxu0 %v8472
    %9005 = vmatprep.subr.bf16.mxu0 %v8482
    %9006 = vmatpush1.bf16.msra.mxu0 %v8481
    %9007 = vmatprep.subr.bf16.mxu0 %v8491
    %9008 = vmatpush1.bf16.msra.mxu0 %v8490
    %9009 = vmatprep.subr.bf16.mxu0 %v8500
    %9010 = vmatpush1.bf16.msra.mxu0 %v8499
    %9011 = vmatprep.subr.bf16.mxu0 %v8509
    %9012 = vmatpush1.bf16.msra.mxu0 %v8508
    %9013 = vmatprep.subr.bf16.mxu0 %v8518
    %9014 = vmatpush1.bf16.msra.mxu0 %v8517
    %9015 = vmatprep.subr.bf16.mxu0 %v8527
    %9016 = vmatpush1.bf16.msra.mxu0 %v8526
    %9017 = vmatprep.subr.bf16.mxu0 %v8536
    %9018 = vmatpush1.bf16.msra.mxu0 %v8535
    %9019 = vmatprep.subr.bf16.mxu0 %v8545
    %9020 = vmatpush1.bf16.msra.mxu0 %v8544
    %9021 = vmatprep.subr.bf16.mxu0 %v8554
    %9022 = vmatpush1.bf16.msra.mxu0 %v8553
    %9023 = vmatprep.subr.bf16.mxu0 %v8563
    %9024 = vmatpush1.bf16.msra.mxu0 %v8562
    %9025 = vmatprep.subr.bf16.mxu0 %v8572
    %9026 = vmatpush1.bf16.msra.mxu0 %v8571
    %9027 = vmatprep.mubr.bf16.mxu0 %v7516
    %9028 = vmatmul.mubr.bf16.gmra.mrb[0].mxu0 %v7515
    %v9029 = vpop.f32.mrb[0].mxu0
    %v9030 = vadd.f32 %v8879, %v9029
    %v9031 = vpop.f32.mrb[0].mxu0
    %v9032 = vadd.f32 %v8883, %v9031
    %v9033 = vpop.f32.mrb[0].mxu0
    %v9034 = vpop.f32.mrb[0].mxu0
    %9035 = vdwg.mxu0
    %9036 = vmatprep.subr.bf16.mxu0 %v8581
    %9037 = vmatpush1.bf16.msra.mxu0 %v8580
    %9038 = vmatprep.subr.bf16.mxu0 %v8590
    %9039 = vmatpush1.bf16.msra.mxu0 %v8589
    %9040 = vmatprep.subr.bf16.mxu0 %v8599
    %9041 = vmatpush1.bf16.msra.mxu0 %v8598
    %9042 = vmatprep.subr.bf16.mxu0 %v8608
    %9043 = vmatpush1.bf16.msra.mxu0 %v8607
    %9044 = vmatprep.subr.bf16.mxu0 %v8617
    %9045 = vmatpush1.bf16.msra.mxu0 %v8616
    %9046 = vmatprep.subr.bf16.mxu0 %v8626
    %9047 = vmatpush1.bf16.msra.mxu0 %v8625
    %9048 = vmatprep.subr.bf16.mxu0 %v8635
    %9049 = vmatpush1.bf16.msra.mxu0 %v8634
    %9050 = vmatprep.subr.bf16.mxu0 %v8644
    %9051 = vmatpush1.bf16.msra.mxu0 %v8643
    %9052 = vmatprep.subr.bf16.mxu0 0
    %9053 = vmatpush1.bf16.msra.mxu0 0
    %9054 = vmatprep.subr.bf16.mxu0 0
    %9055 = vmatpush1.bf16.msra.mxu0 0
    %9056 = vmatprep.subr.bf16.mxu0 0
    %9057 = vmatpush1.bf16.msra.mxu0 0
    %9058 = vmatprep.subr.bf16.mxu0 0
    %9059 = vmatpush1.bf16.msra.mxu0 0
    %9060 = vmatprep.subr.bf16.mxu0 0
    %9061 = vmatpush1.bf16.msra.mxu0 0
    %9062 = vmatprep.subr.bf16.mxu0 0
    %9063 = vmatpush1.bf16.msra.mxu0 0
    %9064 = vmatprep.subr.bf16.mxu0 0
    %9065 = vmatpush1.bf16.msra.mxu0 0
    %9066 = vmatprep.subr.bf16.mxu0 0
    %9067 = vmatpush1.bf16.msra.mxu0 0
    %9068 = vmatprep.mubr.bf16.mxu0 0
    %9069 = vmatmul.mubr.bf16.gmra.mrb[0].mxu0 %v7517
    %v9070 = vpop.f32.mrb[0].mxu0
    %v9071 = vadd.f32 %v9030, %v9070
    %v9072 = vpop.f32.mrb[0].mxu0
    %v9073 = vadd.f32 %v9032, %v9072
    %v9074 = vpop.f32.mrb[0].mxu0
    %v9075 = vpop.f32.mrb[0].mxu0
    %9076 = vdwg.mxu0
    %9077 = vmatprep.subr.bf16.mxu0 %v8439
    %9078 = vmatpush1.bf16.msra.mxu0 %v8438
    %9079 = vmatprep.subr.bf16.mxu0 %v8448
    %9080 = vmatpush1.bf16.msra.mxu0 %v8447
    %9081 = vmatprep.subr.bf16.mxu0 %v8457
    %9082 = vmatpush1.bf16.msra.mxu0 %v8456
    %9083 = vmatprep.subr.bf16.mxu0 %v8466
    %9084 = vmatpush1.bf16.msra.mxu0 %v8465
    %9085 = vmatprep.subr.bf16.mxu0 %v8475
    %9086 = vmatpush1.bf16.msra.mxu0 %v8474
    %9087 = vmatprep.subr.bf16.mxu0 %v8484
    %9088 = vmatpush1.bf16.msra.mxu0 %v8483
    %9089 = vmatprep.subr.bf16.mxu0 %v8493
    %9090 = vmatpush1.bf16.msra.mxu0 %v8492
    %9091 = vmatprep.subr.bf16.mxu0 %v8502
    %9092 = vmatpush1.bf16.msra.mxu0 %v8501
    %9093 = vmatprep.subr.bf16.mxu0 %v8511
    %9094 = vmatpush1.bf16.msra.mxu0 %v8510
    %9095 = vmatprep.subr.bf16.mxu0 %v8520
    %9096 = vmatpush1.bf16.msra.mxu0 %v8519
    %9097 = vmatprep.subr.bf16.mxu0 %v8529
    %9098 = vmatpush1.bf16.msra.mxu0 %v8528
    %9099 = vmatprep.subr.bf16.mxu0 %v8538
    %9100 = vmatpush1.bf16.msra.mxu0 %v8537
    %9101 = vmatprep.subr.bf16.mxu0 %v8547
    %9102 = vmatpush1.bf16.msra.mxu0 %v8546
    %9103 = vmatprep.subr.bf16.mxu0 %v8556
    %9104 = vmatpush1.bf16.msra.mxu0 %v8555
    %9105 = vmatprep.subr.bf16.mxu0 %v8565
    %9106 = vmatpush1.bf16.msra.mxu0 %v8564
    %9107 = vmatprep.subr.bf16.mxu0 %v8574
    %9108 = vmatpush1.bf16.msra.mxu0 %v8573
    %9109 = vmatprep.mubr.bf16.mxu0 %v7516
    %9110 = vmatmul.mubr.bf16.gmra.mrb[0].mxu0 %v7515
    %v9111 = vpop.f32.mrb[0].mxu0
    %v9112 = vadd.f32 %v8887, %v9111
    %v9113 = vpop.f32.mrb[0].mxu0
    %v9114 = vadd.f32 %v8891, %v9113
    %v9115 = vpop.f32.mrb[0].mxu0
    %v9116 = vpop.f32.mrb[0].mxu0
    %9117 = vdwg.mxu0
    %9118 = vmatprep.subr.bf16.mxu0 %v8583
    %9119 = vmatpush1.bf16.msra.mxu0 %v8582
    %9120 = vmatprep.subr.bf16.mxu0 %v8592
    %9121 = vmatpush1.bf16.msra.mxu0 %v8591
    %9122 = vmatprep.subr.bf16.mxu0 %v8601
    %9123 = vmatpush1.bf16.msra.mxu0 %v8600
    %9124 = vmatprep.subr.bf16.mxu0 %v8610
    %9125 = vmatpush1.bf16.msra.mxu0 %v8609
    %9126 = vmatprep.subr.bf16.mxu0 %v8619
    %9127 = vmatpush1.bf16.msra.mxu0 %v8618
    %9128 = vmatprep.subr.bf16.mxu0 %v8628
    %9129 = vmatpush1.bf16.msra.mxu0 %v8627
    %9130 = vmatprep.subr.bf16.mxu0 %v8637
    %9131 = vmatpush1.bf16.msra.mxu0 %v8636
    %9132 = vmatprep.subr.bf16.mxu0 %v8646
    %9133 = vmatpush1.bf16.msra.mxu0 %v8645
    %9134 = vmatprep.subr.bf16.mxu0 0
    %9135 = vmatpush1.bf16.msra.mxu0 0
    %9136 = vmatprep.subr.bf16.mxu0 0
    %9137 = vmatpush1.bf16.msra.mxu0 0
    %9138 = vmatprep.subr.bf16.mxu0 0
    %9139 = vmatpush1.bf16.msra.mxu0 0
    %9140 = vmatprep.subr.bf16.mxu0 0
    %9141 = vmatpush1.bf16.msra.mxu0 0
    %9142 = vmatprep.subr.bf16.mxu0 0
    %9143 = vmatpush1.bf16.msra.mxu0 0
    %9144 = vmatprep.subr.bf16.mxu0 0
    %9145 = vmatpush1.bf16.msra.mxu0 0
    %9146 = vmatprep.subr.bf16.mxu0 0
    %9147 = vmatpush1.bf16.msra.mxu0 0
    %9148 = vmatprep.subr.bf16.mxu0 0
    %9149 = vmatpush1.bf16.msra.mxu0 0
    %9150 = vmatprep.mubr.bf16.mxu0 0
    %9151 = vmatmul.mubr.bf16.gmra.mrb[0].mxu0 %v7517
    %v9152 = vpop.f32.mrb[0].mxu0
    %v9153 = vadd.f32 %v9112, %v9152
    %v9154 = vpop.f32.mrb[0].mxu0
    %v9155 = vadd.f32 %v9114, %v9154
    %v9156 = vpop.f32.mrb[0].mxu0
    %v9157 = vpop.f32.mrb[0].mxu0
    %9158 = vdwg.mxu0
    %9159 = vmatprep.subr.bf16.mxu0 %v8441
    %9160 = vmatpush1.bf16.msra.mxu0 %v8440
    %9161 = vmatprep.subr.bf16.mxu0 %v8450
    %9162 = vmatpush1.bf16.msra.mxu0 %v8449
    %9163 = vmatprep.subr.bf16.mxu0 %v8459
    %9164 = vmatpush1.bf16.msra.mxu0 %v8458
    %9165 = vmatprep.subr.bf16.mxu0 %v8468
    %9166 = vmatpush1.bf16.msra.mxu0 %v8467
    %9167 = vmatprep.subr.bf16.mxu0 %v8477
    %9168 = vmatpush1.bf16.msra.mxu0 %v8476
    %9169 = vmatprep.subr.bf16.mxu0 %v8486
    %9170 = vmatpush1.bf16.msra.mxu0 %v8485
    %9171 = vmatprep.subr.bf16.mxu0 %v8495
    %9172 = vmatpush1.bf16.msra.mxu0 %v8494
    %9173 = vmatprep.subr.bf16.mxu0 %v8504
    %9174 = vmatpush1.bf16.msra.mxu0 %v8503
    %9175 = vmatprep.subr.bf16.mxu0 %v8513
    %9176 = vmatpush1.bf16.msra.mxu0 %v8512
    %9177 = vmatprep.subr.bf16.mxu0 %v8522
    %9178 = vmatpush1.bf16.msra.mxu0 %v8521
    %9179 = vmatprep.subr.bf16.mxu0 %v8531
    %9180 = vmatpush1.bf16.msra.mxu0 %v8530
    %9181 = vmatprep.subr.bf16.mxu0 %v8540
    %9182 = vmatpush1.bf16.msra.mxu0 %v8539
    %9183 = vmatprep.subr.bf16.mxu0 %v8549
    %9184 = vmatpush1.bf16.msra.mxu0 %v8548
    %9185 = vmatprep.subr.bf16.mxu0 %v8558
    %9186 = vmatpush1.bf16.msra.mxu0 %v8557
    %9187 = vmatprep.subr.bf16.mxu0 %v8567
    %9188 = vmatpush1.bf16.msra.mxu0 %v8566
    %9189 = vmatprep.subr.bf16.mxu0 %v8576
    %9190 = vmatpush1.bf16.msra.mxu0 %v8575
    %9191 = vmatprep.mubr.bf16.mxu0 %v7516
    %9192 = vmatmul.mubr.bf16.gmra.mrb[0].mxu0 %v7515
    %v9193 = vpop.f32.mrb[0].mxu0
    %v9194 = vadd.f32 %v8895, %v9193
    %v9195 = vpop.f32.mrb[0].mxu0
    %v9196 = vadd.f32 %v8899, %v9195
    %v9197 = vpop.f32.mrb[0].mxu0
    %v9198 = vpop.f32.mrb[0].mxu0
    %9199 = vdwg.mxu0
    %9200 = vmatprep.subr.bf16.mxu0 %v8585
    %9201 = vmatpush1.bf16.msra.mxu0 %v8584
    %9202 = vmatprep.subr.bf16.mxu0 %v8594
    %9203 = vmatpush1.bf16.msra.mxu0 %v8593
    %9204 = vmatprep.subr.bf16.mxu0 %v8603
    %9205 = vmatpush1.bf16.msra.mxu0 %v8602
    %9206 = vmatprep.subr.bf16.mxu0 %v8612
    %9207 = vmatpush1.bf16.msra.mxu0 %v8611
    %9208 = vmatprep.subr.bf16.mxu0 %v8621
    %9209 = vmatpush1.bf16.msra.mxu0 %v8620
    %9210 = vmatprep.subr.bf16.mxu0 %v8630
    %9211 = vmatpush1.bf16.msra.mxu0 %v8629
    %9212 = vmatprep.subr.bf16.mxu0 %v8639
    %9213 = vmatpush1.bf16.msra.mxu0 %v8638
    %9214 = vmatprep.subr.bf16.mxu0 %v8648
    %9215 = vmatpush1.bf16.msra.mxu0 %v8647
    %9216 = vmatprep.subr.bf16.mxu0 0
    %9217 = vmatpush1.bf16.msra.mxu0 0
    %9218 = vmatprep.subr.bf16.mxu0 0
    %9219 = vmatpush1.bf16.msra.mxu0 0
    %9220 = vmatprep.subr.bf16.mxu0 0
    %9221 = vmatpush1.bf16.msra.mxu0 0
    %9222 = vmatprep.subr.bf16.mxu0 0
    %9223 = vmatpush1.bf16.msra.mxu0 0
    %9224 = vmatprep.subr.bf16.mxu0 0
    %9225 = vmatpush1.bf16.msra.mxu0 0
    %9226 = vmatprep.subr.bf16.mxu0 0
    %9227 = vmatpush1.bf16.msra.mxu0 0
    %9228 = vmatprep.subr.bf16.mxu0 0
    %9229 = vmatpush1.bf16.msra.mxu0 0
    %9230 = vmatprep.subr.bf16.mxu0 0
    %9231 = vmatpush1.bf16.msra.mxu0 0
    %9232 = vmatprep.mubr.bf16.mxu0 0
    %9233 = vmatmul.mubr.bf16.gmra.mrb[0].mxu0 %v7517
    %v9234 = vpop.f32.mrb[0].mxu0
    %v9235 = vadd.f32 %v9194, %v9234
    %v9236 = vpop.f32.mrb[0].mxu0
    %v9237 = vadd.f32 %v9196, %v9236
    %v9238 = vpop.f32.mrb[0].mxu0
    %v9239 = vpop.f32.mrb[0].mxu0
    %9240 = vdwg.mxu0
    %9241 = vmatprep.subr.bf16.mxu0 0
    %9242 = vmatpush1.bf16.msra.mxu0 %v8442
    %9243 = vmatprep.subr.bf16.mxu0 0
    %9244 = vmatpush1.bf16.msra.mxu0 %v8451
    %9245 = vmatprep.subr.bf16.mxu0 0
    %9246 = vmatpush1.bf16.msra.mxu0 %v8460
    %9247 = vmatprep.subr.bf16.mxu0 0
    %9248 = vmatpush1.bf16.msra.mxu0 %v8469
    %9249 = vmatprep.subr.bf16.mxu0 0
    %9250 = vmatpush1.bf16.msra.mxu0 %v8478
    %9251 = vmatprep.subr.bf16.mxu0 0
    %9252 = vmatpush1.bf16.msra.mxu0 %v8487
    %9253 = vmatprep.subr.bf16.mxu0 0
    %9254 = vmatpush1.bf16.msra.mxu0 %v8496
    %9255 = vmatprep.subr.bf16.mxu0 0
    %9256 = vmatpush1.bf16.msra.mxu0 %v8505
    %9257 = vmatprep.subr.bf16.mxu0 0
    %9258 = vmatpush1.bf16.msra.mxu0 %v8514
    %9259 = vmatprep.subr.bf16.mxu0 0
    %9260 = vmatpush1.bf16.msra.mxu0 %v8523
    %9261 = vmatprep.subr.bf16.mxu0 0
    %9262 = vmatpush1.bf16.msra.mxu0 %v8532
    %9263 = vmatprep.subr.bf16.mxu0 0
    %9264 = vmatpush1.bf16.msra.mxu0 %v8541
    %9265 = vmatprep.subr.bf16.mxu0 0
    %9266 = vmatpush1.bf16.msra.mxu0 %v8550
    %9267 = vmatprep.subr.bf16.mxu0 0
    %9268 = vmatpush1.bf16.msra.mxu0 %v8559
    %9269 = vmatprep.subr.bf16.mxu0 0
    %9270 = vmatpush1.bf16.msra.mxu0 %v8568
    %9271 = vmatprep.subr.bf16.mxu0 0
    %9272 = vmatpush1.bf16.msra.mxu0 %v8577
    %9273 = vmatprep.mubr.bf16.mxu0 %v7516
    %9274 = vmatmul.mubr.bf16.gmra.mrb[0].mxu0 %v7515
    %v9275 = vpop.f32.mrb[0].mxu0
    %v9276 = vadd.f32 %v8903, %v9275
    %v9277 = vpop.f32.mrb[0].mxu0
    %v9278 = vpop.f32.mrb[0].mxu0
    %v9279 = vpop.f32.mrb[0].mxu0
    %9280 = vdwg.mxu0
    %9281 = vmatprep.subr.bf16.mxu0 0
    %9282 = vmatpush1.bf16.msra.mxu0 %v8586
    %9283 = vmatprep.subr.bf16.mxu0 0
    %9284 = vmatpush1.bf16.msra.mxu0 %v8595
    %9285 = vmatprep.subr.bf16.mxu0 0
    %9286 = vmatpush1.bf16.msra.mxu0 %v8604
    %9287 = vmatprep.subr.bf16.mxu0 0
    %9288 = vmatpush1.bf16.msra.mxu0 %v8613
    %9289 = vmatprep.subr.bf16.mxu0 0
    %9290 = vmatpush1.bf16.msra.mxu0 %v8622
    %9291 = vmatprep.subr.bf16.mxu0 0
    %9292 = vmatpush1.bf16.msra.mxu0 %v8631
    %9293 = vmatprep.subr.bf16.mxu0 0
    %9294 = vmatpush1.bf16.msra.mxu0 %v8640
    %9295 = vmatprep.subr.bf16.mxu0 0
    %9296 = vmatpush1.bf16.msra.mxu0 %v8649
    %9297 = vmatprep.subr.bf16.mxu0 0
    %9298 = vmatpush1.bf16.msra.mxu0 0
    %9299 = vmatprep.subr.bf16.mxu0 0
    %9300 = vmatpush1.bf16.msra.mxu0 0
    %9301 = vmatprep.subr.bf16.mxu0 0
    %9302 = vmatpush1.bf16.msra.mxu0 0
    %9303 = vmatprep.subr.bf16.mxu0 0
    %9304 = vmatpush1.bf16.msra.mxu0 0
    %9305 = vmatprep.subr.bf16.mxu0 0
    %9306 = vmatpush1.bf16.msra.mxu0 0
    %9307 = vmatprep.subr.bf16.mxu0 0
    %9308 = vmatpush1.bf16.msra.mxu0 0
    %9309 = vmatprep.subr.bf16.mxu0 0
    %9310 = vmatpush1.bf16.msra.mxu0 0
    %9311 = vmatprep.subr.bf16.mxu0 0
    %9312 = vmatpush1.bf16.msra.mxu0 0
    %9313 = vmatprep.mubr.bf16.mxu0 0
    %9314 = vmatmul.mubr.bf16.gmra.mrb[0].mxu0 %v7517
    %v9315 = vpop.f32.mrb[0].mxu0
    %v9316 = vadd.f32 %v9276, %v9315
    %v9317 = vpop.f32.mrb[0].mxu0
    %v9318 = vpop.f32.mrb[0].mxu0
    %v9319 = vpop.f32.mrb[0].mxu0
    %9320 = vdwg.mxu0
    %v9321 = vld [vmem:[%s1952] ss:$4 sm:$0x7]
    %v9322 = vadd.f32 %v8989, %v3444
    %v9323 = vadd.f32 %v8991, %v3446
    %v9324 = vadd.f32 %v9071, %v3526
    %v9325 = vxor.u32 %v9322, 2147483648
    %v9326 = vxor.u32 %v9323, 2147483648
    %v9327 = vxor.u32 %v9324, 2147483648
    %v9328 = vmul.f32 %v9325, 1.442695
    %v9329 = vpow.pop %v9328
    %v9330 = vmul.f32 %v9326, 1.442695
    %v9331 = vpow.pop %v9330
    %v9332 = vmul.f32 %v9327, 1.442695
    %v9333 = vpow.pop %v9332
    %v9334 = vadd.f32 %v9329, 1.0
    %v9335 = vadd.f32 %v9331, 1.0
    %v9336 = vadd.f32 %v9333, 1.0
    %v9337 = vrcp.pop %v9334
    %v9338 = vmul.f32 1.0, %v9337
    %v9339 = vrcp.pop %v9335
    %v9340 = vmul.f32 1.0, %v9339
    %v9341 = vrcp.pop %v9336
    %v9342 = vmul.f32 1.0, %v9341
    %v9343 = vadd.f32 %v9073, %v3528
    %v9344 = vadd.f32 %v9153, %v3608
    %v9345 = vadd.f32 %v9155, %v3610
    %v9346 = vxor.u32 %v9343, 2147483648
    %v9347 = vxor.u32 %v9344, 2147483648
    %v9348 = vxor.u32 %v9345, 2147483648
    %v9349 = vmul.f32 %v9346, 1.442695
    %v9350 = vpow.pop %v9349
    %v9351 = vmul.f32 %v9347, 1.442695
    %v9352 = vpow.pop %v9351
    %v9353 = vmul.f32 %v9348, 1.442695
    %v9354 = vpow.pop %v9353
    %v9355 = vadd.f32 %v9350, 1.0
    %v9356 = vadd.f32 %v9352, 1.0
    %v9357 = vadd.f32 %v9354, 1.0
    %v9358 = vrcp.pop %v9355
    %v9359 = vmul.f32 1.0, %v9358
    %v9360 = vrcp.pop %v9356
    %v9361 = vmul.f32 1.0, %v9360
    %v9362 = vrcp.pop %v9357
    %v9363 = vmul.f32 1.0, %v9362
    %v9364 = vmul.f32 %v9338, %v3690
    %v9365 = vmul.f32 %v9340, %v3692
    %v9366 = vmul.f32 %v9342, %v3771
    %v9367 = vadd.f32 %v9235, %v9364
    %v9368 = vadd.f32 %v9237, %v9365
    %v9369 = vadd.f32 %v9316, %v9366
    %v9370 = vtanh.pop %v9367
    %v9371 = vtanh.pop %v9368
    %v9372 = vtanh.pop %v9369
    %v9373 = vsub.f32 1.0, %v9359
    %v9374 = vsub.f32 1.0, %v9361
    %v9375 = vsub.f32 1.0, %v9363
    %v9376 = vmul.f32 %v9373, %v9370
    %v9377 = vmul.f32 %v9374, %v9371
    %v9378 = vmul.f32 %v9375, %v9372
    %v9380 = vlaneseq
    %v9381 = vshrl.u32 %v9380, 7
    %v9382 = vsub.s32 0, %v9381
    %v9383 = vrot.slane %v9321, %v9382
    %v9384 = vlaneseq
    %v9385 = vshrl.u32 %v9384, 7
    %v9386 = vsub.s32 1, %v9385
    %v9387 = vrot.slane %v9321, %v9386
    %v9388 = vlaneseq
    %v9389 = vshrl.u32 %v9388, 7
    %v9390 = vsub.s32 2, %v9389
    %v9391 = vrot.slane %v9321, %v9390
    %v9395 = vmul.f32 %v9359, %v9383
    %v9396 = vmul.f32 %v9361, %v9387
    %v9397 = vmul.f32 %v9363, %v9391
    %v9398 = vadd.f32 %v9376, %v9395
    %v9399 = vadd.f32 %v9377, %v9396
    %v9400 = vadd.f32 %v9378, %v9397
    %v9404 = vcombine.low %v9398, %v9399
    %v9406 = vunpack.c.l.s4 1966171168
    %v9407 = vunpack.c.0.s8 %v9406
    %v9408 = vlaneseq
    %v9409 = vshrl.u32 %v9408, 7
    %v9410 = vsub.s32 %v9407, %v9409
    %v9411 = vrot.slane %v9404, %v9410
    %v9413 = vunpack.c.l.s4 1966171168
    %v9414 = vunpack.c.0.s8 %v9413
    %v9415 = vlaneseq
    %v9416 = vshrl.u32 %v9415, 7
    %v9417 = vsub.s32 %v9414, %v9416
    %v9418 = vrot.slane %v9400, %v9417
    %v9419 = vcombine.low %v9411, %v9418
    %v9421 = vunpack.c.l.s4 1966171168
    %v9422 = vunpack.c.0.s8 %v9421
    %v9423 = vlaneseq
    %v9424 = vshrl.u32 %v9423, 7
    %v9425 = vsub.s32 %v9422, %v9424
    %v9426 = vrot.slane %v9419, %v9425
    %s9428 = scalar_lea.vmem %s9, 1
    %9429 = vst.msk [vmem:[%s9428] ss:$4 sm:$0x7] %vm7513, %v9426
    %v9430 = vpack.c.bf16 %v9398, %v9398
    %v9431 = vpack.c.bf16 %v9399, %v9399
    %v9432 = vpack.c.bf16 %v9400, %v9400
    %s9433 = scalar_lea.vmem [#allocation6], 3456
    %v9434 = vld [vmem:[%s9433] sm:$0xff]
    %v9435 = vld [vmem:[%s9433 + $0x8] sm:$0xff]
    %v9436 = vld [vmem:[%s9433 + $0x10] sm:$0xff]
    %v9437 = vld [vmem:[%s9433 + $0x18] sm:$0xff]
    %v9438 = vld [vmem:[%s9433 + $0x20] sm:$0xf]
    %v9439 = vld [vmem:[%s9433 + $0x24] sm:$0xff]
    %v9440 = vld [vmem:[%s9433 + $0x2c] sm:$0xff]
    %v9441 = vld [vmem:[%s9433 + $0x34] sm:$0xff]
    %v9442 = vld [vmem:[%s9433 + $0x3c] sm:$0xff]
    %v9443 = vld [vmem:[%s9433 + $0x44] sm:$0xf]
    %v9444 = vld [vmem:[%s9433 + $0x48] sm:$0xff]
    %v9445 = vld [vmem:[%s9433 + $0x50] sm:$0xff]
    %v9446 = vld [vmem:[%s9433 + $0x58] sm:$0xff]
    %v9447 = vld [vmem:[%s9433 + $0x60] sm:$0xff]
    %v9448 = vld [vmem:[%s9433 + $0x68] sm:$0xf]
    %v9449 = vld [vmem:[%s9433 + $0x6c] sm:$0xff]
    %v9450 = vld [vmem:[%s9433 + $0x74] sm:$0xff]
    %v9451 = vld [vmem:[%s9433 + $0x7c] sm:$0xff]
    %v9452 = vld [vmem:[%s9433 + $0x84] sm:$0xff]
    %v9453 = vld [vmem:[%s9433 + $0x8c] sm:$0xf]
    %v9454 = vld [vmem:[%s9433 + $0x90] sm:$0xff]
    %v9455 = vld [vmem:[%s9433 + $0x98] sm:$0xff]
    %v9456 = vld [vmem:[%s9433 + $0xa0] sm:$0xff]
    %v9457 = vld [vmem:[%s9433 + $0xa8] sm:$0xff]
    %v9458 = vld [vmem:[%s9433 + $0xb0] sm:$0xf]
    %v9459 = vld [vmem:[%s9433 + $0xb4] sm:$0xff]
    %v9460 = vld [vmem:[%s9433 + $0xbc] sm:$0xff]
    %v9461 = vld [vmem:[%s9433 + $0xc4] sm:$0xff]
    %v9462 = vld [vmem:[%s9433 + $0xcc] sm:$0xff]
    %v9463 = vld [vmem:[%s9433 + $0xd4] sm:$0xf]
    %v9464 = vld [vmem:[%s9433 + $0xd8] sm:$0xff]
    %v9465 = vld [vmem:[%s9433 + $0xe0] sm:$0xff]
    %v9466 = vld [vmem:[%s9433 + $0xe8] sm:$0xff]
    %v9467 = vld [vmem:[%s9433 + $0xf0] sm:$0xff]
    %v9468 = vld [vmem:[%s9433 + $0xf8] sm:$0xf]
    %v9469 = vld [vmem:[%s9433 + $0xfc] sm:$0xff]
    %v9470 = vld [vmem:[%s9433 + $0x104] sm:$0xff]
    %v9471 = vld [vmem:[%s9433 + $0x10c] sm:$0xff]
    %v9472 = vld [vmem:[%s9433 + $0x114] sm:$0xff]
    %v9473 = vld [vmem:[%s9433 + $0x11c] sm:$0xf]
    %v9474 = vld [vmem:[%s9433 + $0x120] sm:$0xff]
    %v9475 = vld [vmem:[%s9433 + $0x128] sm:$0xff]
    %v9476 = vld [vmem:[%s9433 + $0x130] sm:$0xff]
    %v9477 = vld [vmem:[%s9433 + $0x138] sm:$0xff]
    %v9478 = vld [vmem:[%s9433 + $0x140] sm:$0xf]
    %v9479 = vld [vmem:[%s9433 + $0x144] sm:$0xff]
    %v9480 = vld [vmem:[%s9433 + $0x14c] sm:$0xff]
    %v9481 = vld [vmem:[%s9433 + $0x154] sm:$0xff]
    %v9482 = vld [vmem:[%s9433 + $0x15c] sm:$0xff]
    %v9483 = vld [vmem:[%s9433 + $0x164] sm:$0xf]
    %v9484 = vld [vmem:[%s9433 + $0x168] sm:$0xff]
    %v9485 = vld [vmem:[%s9433 + $0x170] sm:$0xff]
    %v9486 = vld [vmem:[%s9433 + $0x178] sm:$0xff]
    %v9487 = vld [vmem:[%s9433 + $0x180] sm:$0xff]
    %v9488 = vld [vmem:[%s9433 + $0x188] sm:$0xf]
    %v9489 = vld [vmem:[%s9433 + $0x18c] sm:$0xff]
    %v9490 = vld [vmem:[%s9433 + $0x194] sm:$0xff]
    %v9491 = vld [vmem:[%s9433 + $0x19c] sm:$0xff]
    %v9492 = vld [vmem:[%s9433 + $0x1a4] sm:$0xff]
    %v9493 = vld [vmem:[%s9433 + $0x1ac] sm:$0xf]
    %v9494 = vld [vmem:[%s9433 + $0x1b0] sm:$0xff]
    %v9495 = vld [vmem:[%s9433 + $0x1b8] sm:$0xff]
    %v9496 = vld [vmem:[%s9433 + $0x1c0] sm:$0xff]
    %v9497 = vld [vmem:[%s9433 + $0x1c8] sm:$0xff]
    %v9498 = vld [vmem:[%s9433 + $0x1d0] sm:$0xf]
    %v9499 = vld [vmem:[%s9433 + $0x1d4] sm:$0xff]
    %v9500 = vld [vmem:[%s9433 + $0x1dc] sm:$0xff]
    %v9501 = vld [vmem:[%s9433 + $0x1e4] sm:$0xff]
    %v9502 = vld [vmem:[%s9433 + $0x1ec] sm:$0xff]
    %v9503 = vld [vmem:[%s9433 + $0x1f4] sm:$0xf]
    %v9504 = vld [vmem:[%s9433 + $0x1f8] sm:$0xff]
    %v9505 = vld [vmem:[%s9433 + $0x200] sm:$0xff]
    %v9506 = vld [vmem:[%s9433 + $0x208] sm:$0xff]
    %v9507 = vld [vmem:[%s9433 + $0x210] sm:$0xff]
    %v9508 = vld [vmem:[%s9433 + $0x218] sm:$0xf]
    %v9509 = vld [vmem:[%s9433 + $0x21c] sm:$0xff]
    %v9510 = vld [vmem:[%s9433 + $0x224] sm:$0xff]
    %v9511 = vld [vmem:[%s9433 + $0x22c] sm:$0xff]
    %v9512 = vld [vmem:[%s9433 + $0x234] sm:$0xff]
    %v9513 = vld [vmem:[%s9433 + $0x23c] sm:$0xf]
    %v9514 = vld [vmem:[%s9433 + $0x240] sm:$0xff]
    %v9515 = vld [vmem:[%s9433 + $0x248] sm:$0xff]
    %v9516 = vld [vmem:[%s9433 + $0x250] sm:$0xff]
    %v9517 = vld [vmem:[%s9433 + $0x258] sm:$0xff]
    %v9518 = vld [vmem:[%s9433 + $0x260] sm:$0xf]
    %v9519 = vld [vmem:[%s9433 + $0x264] sm:$0xff]
    %v9520 = vld [vmem:[%s9433 + $0x26c] sm:$0xff]
    %v9521 = vld [vmem:[%s9433 + $0x274] sm:$0xff]
    %v9522 = vld [vmem:[%s9433 + $0x27c] sm:$0xff]
    %v9523 = vld [vmem:[%s9433 + $0x284] sm:$0xf]
    %v9524 = vld [vmem:[%s9433 + $0x288] sm:$0xff]
    %v9525 = vld [vmem:[%s9433 + $0x290] sm:$0xff]
    %v9526 = vld [vmem:[%s9433 + $0x298] sm:$0xff]
    %v9527 = vld [vmem:[%s9433 + $0x2a0] sm:$0xff]
    %v9528 = vld [vmem:[%s9433 + $0x2a8] sm:$0xf]
    %v9529 = vld [vmem:[%s9433 + $0x2ac] sm:$0xff]
    %v9530 = vld [vmem:[%s9433 + $0x2b4] sm:$0xff]
    %v9531 = vld [vmem:[%s9433 + $0x2bc] sm:$0xff]
    %v9532 = vld [vmem:[%s9433 + $0x2c4] sm:$0xff]
    %v9533 = vld [vmem:[%s9433 + $0x2cc] sm:$0xf]
    %v9534 = vld [vmem:[%s9433 + $0x2d0] sm:$0xff]
    %v9535 = vld [vmem:[%s9433 + $0x2d8] sm:$0xff]
    %v9536 = vld [vmem:[%s9433 + $0x2e0] sm:$0xff]
    %v9537 = vld [vmem:[%s9433 + $0x2e8] sm:$0xff]
    %v9538 = vld [vmem:[%s9433 + $0x2f0] sm:$0xf]
    %v9539 = vld [vmem:[%s9433 + $0x2f4] sm:$0xff]
    %v9540 = vld [vmem:[%s9433 + $0x2fc] sm:$0xff]
    %v9541 = vld [vmem:[%s9433 + $0x304] sm:$0xff]
    %v9542 = vld [vmem:[%s9433 + $0x30c] sm:$0xff]
    %v9543 = vld [vmem:[%s9433 + $0x314] sm:$0xf]
    %v9544 = vld [vmem:[%s9433 + $0x318] sm:$0xff]
    %v9545 = vld [vmem:[%s9433 + $0x320] sm:$0xff]
    %v9546 = vld [vmem:[%s9433 + $0x328] sm:$0xff]
    %v9547 = vld [vmem:[%s9433 + $0x330] sm:$0xff]
    %v9548 = vld [vmem:[%s9433 + $0x338] sm:$0xf]
    %v9549 = vld [vmem:[%s9433 + $0x33c] sm:$0xff]
    %v9550 = vld [vmem:[%s9433 + $0x344] sm:$0xff]
    %v9551 = vld [vmem:[%s9433 + $0x34c] sm:$0xff]
    %v9552 = vld [vmem:[%s9433 + $0x354] sm:$0xff]
    %v9553 = vld [vmem:[%s9433 + $0x35c] sm:$0xf]
    %v9554 = vld [vmem:[%s9433 + $0x360] sm:$0xff]
    %v9555 = vld [vmem:[%s9433 + $0x368] sm:$0xff]
    %v9556 = vld [vmem:[%s9433 + $0x370] sm:$0xff]
    %v9557 = vld [vmem:[%s9433 + $0x378] sm:$0xff]
    %v9558 = vld [vmem:[%s9433 + $0x380] sm:$0xf]
    %v9559 = vld [vmem:[%s9433 + $0x384] sm:$0xff]
    %v9560 = vld [vmem:[%s9433 + $0x38c] sm:$0xff]
    %v9561 = vld [vmem:[%s9433 + $0x394] sm:$0xff]
    %v9562 = vld [vmem:[%s9433 + $0x39c] sm:$0xff]
    %v9563 = vld [vmem:[%s9433 + $0x3a4] sm:$0xf]
    %v9564 = vld [vmem:[%s9433 + $0x3a8] sm:$0xff]
    %v9565 = vld [vmem:[%s9433 + $0x3b0] sm:$0xff]
    %v9566 = vld [vmem:[%s9433 + $0x3b8] sm:$0xff]
    %v9567 = vld [vmem:[%s9433 + $0x3c0] sm:$0xff]
    %v9568 = vld [vmem:[%s9433 + $0x3c8] sm:$0xf]
    %v9569 = vld [vmem:[%s9433 + $0x3cc] sm:$0xff]
    %v9570 = vld [vmem:[%s9433 + $0x3d4] sm:$0xff]
    %v9571 = vld [vmem:[%s9433 + $0x3dc] sm:$0xff]
    %v9572 = vld [vmem:[%s9433 + $0x3e4] sm:$0xff]
    %v9573 = vld [vmem:[%s9433 + $0x3ec] sm:$0xf]
    %v9574 = vld [vmem:[%s9433 + $0x3f0] sm:$0xff]
    %v9575 = vld [vmem:[%s9433 + $0x3f8] sm:$0xff]
    %v9576 = vld [vmem:[%s9433 + $0x400] sm:$0xff]
    %v9577 = vld [vmem:[%s9433 + $0x408] sm:$0xff]
    %v9578 = vld [vmem:[%s9433 + $0x410] sm:$0xf]
    %v9579 = vld [vmem:[%s9433 + $0x414] sm:$0xff]
    %v9580 = vld [vmem:[%s9433 + $0x41c] sm:$0xff]
    %v9581 = vld [vmem:[%s9433 + $0x424] sm:$0xff]
    %v9582 = vld [vmem:[%s9433 + $0x42c] sm:$0xff]
    %v9583 = vld [vmem:[%s9433 + $0x434] sm:$0xf]
    %v9584 = vld [vmem:[%s9433 + $0x438] sm:$0xff]
    %v9585 = vld [vmem:[%s9433 + $0x440] sm:$0xff]
    %v9586 = vld [vmem:[%s9433 + $0x448] sm:$0xff]
    %v9587 = vld [vmem:[%s9433 + $0x450] sm:$0xff]
    %v9588 = vld [vmem:[%s9433 + $0x458] sm:$0xf]
    %v9589 = vld [vmem:[%s9433 + $0x45c] sm:$0xff]
    %v9590 = vld [vmem:[%s9433 + $0x464] sm:$0xff]
    %v9591 = vld [vmem:[%s9433 + $0x46c] sm:$0xff]
    %v9592 = vld [vmem:[%s9433 + $0x474] sm:$0xff]
    %v9593 = vld [vmem:[%s9433 + $0x47c] sm:$0xf]
    %v9594 = vld [vmem:[%s9433 + $0x480] sm:$0xff]
    %v9595 = vld [vmem:[%s9433 + $0x488] sm:$0xff]
    %v9596 = vld [vmem:[%s9433 + $0x490] sm:$0xff]
    %v9597 = vld [vmem:[%s9433 + $0x498] sm:$0xff]
    %v9598 = vld [vmem:[%s9433 + $0x4a0] sm:$0xf]
    %v9599 = vld [vmem:[%s9433 + $0x4a4] sm:$0xff]
    %v9600 = vld [vmem:[%s9433 + $0x4ac] sm:$0xff]
    %v9601 = vld [vmem:[%s9433 + $0x4b4] sm:$0xff]
    %v9602 = vld [vmem:[%s9433 + $0x4bc] sm:$0xff]
    %v9603 = vld [vmem:[%s9433 + $0x4c4] sm:$0xf]
    %v9604 = vld [vmem:[%s9433 + $0x4c8] sm:$0xff]
    %v9605 = vld [vmem:[%s9433 + $0x4d0] sm:$0xff]
    %v9606 = vld [vmem:[%s9433 + $0x4d8] sm:$0xff]
    %v9607 = vld [vmem:[%s9433 + $0x4e0] sm:$0xff]
    %v9608 = vld [vmem:[%s9433 + $0x4e8] sm:$0xf]
    %v9609 = vld [vmem:[%s9433 + $0x4ec] sm:$0xff]
    %v9610 = vld [vmem:[%s9433 + $0x4f4] sm:$0xff]
    %v9611 = vld [vmem:[%s9433 + $0x4fc] sm:$0xff]
    %v9612 = vld [vmem:[%s9433 + $0x504] sm:$0xff]
    %v9613 = vld [vmem:[%s9433 + $0x50c] sm:$0xf]
    %v9614 = vld [vmem:[%s9433 + $0x510] sm:$0xff]
    %v9615 = vld [vmem:[%s9433 + $0x518] sm:$0xff]
    %v9616 = vld [vmem:[%s9433 + $0x520] sm:$0xff]
    %v9617 = vld [vmem:[%s9433 + $0x528] sm:$0xff]
    %v9618 = vld [vmem:[%s9433 + $0x530] sm:$0xf]
    %v9619 = vld [vmem:[%s9433 + $0x534] sm:$0xff]
    %v9620 = vld [vmem:[%s9433 + $0x53c] sm:$0xff]
    %v9621 = vld [vmem:[%s9433 + $0x544] sm:$0xff]
    %v9622 = vld [vmem:[%s9433 + $0x54c] sm:$0xff]
    %v9623 = vld [vmem:[%s9433 + $0x554] sm:$0xf]
    %v9624 = vld [vmem:[%s9433 + $0x558] sm:$0xff]
    %v9625 = vld [vmem:[%s9433 + $0x560] sm:$0xff]
    %v9626 = vld [vmem:[%s9433 + $0x568] sm:$0xff]
    %v9627 = vld [vmem:[%s9433 + $0x570] sm:$0xff]
    %v9628 = vld [vmem:[%s9433 + $0x578] sm:$0xf]
    %v9629 = vld [vmem:[%s9433 + $0x57c] sm:$0xff]
    %v9630 = vld [vmem:[%s9433 + $0x584] sm:$0xff]
    %v9631 = vld [vmem:[%s9433 + $0x58c] sm:$0xff]
    %v9632 = vld [vmem:[%s9433 + $0x594] sm:$0xff]
    %v9633 = vld [vmem:[%s9433 + $0x59c] sm:$0xf]
    %v9634 = vld [vmem:[%s9433 + $0x5a0] sm:$0xff]
    %v9635 = vld [vmem:[%s9433 + $0x5a8] sm:$0xff]
    %v9636 = vld [vmem:[%s9433 + $0x5b0] sm:$0xff]
    %v9637 = vld [vmem:[%s9433 + $0x5b8] sm:$0xff]
    %v9638 = vld [vmem:[%s9433 + $0x5c0] sm:$0xf]
    %v9639 = vld [vmem:[%s9433 + $0x5c4] sm:$0xff]
    %v9640 = vld [vmem:[%s9433 + $0x5cc] sm:$0xff]
    %v9641 = vld [vmem:[%s9433 + $0x5d4] sm:$0xff]
    %v9642 = vld [vmem:[%s9433 + $0x5dc] sm:$0xff]
    %v9643 = vld [vmem:[%s9433 + $0x5e4] sm:$0xf]
    %v9644 = vld [vmem:[%s9433 + $0x5e8] sm:$0xff]
    %v9645 = vld [vmem:[%s9433 + $0x5f0] sm:$0xff]
    %v9646 = vld [vmem:[%s9433 + $0x5f8] sm:$0xff]
    %v9647 = vld [vmem:[%s9433 + $0x600] sm:$0xff]
    %v9648 = vld [vmem:[%s9433 + $0x608] sm:$0xf]
    %v9649 = vld [vmem:[%s9433 + $0x60c] sm:$0xff]
    %v9650 = vld [vmem:[%s9433 + $0x614] sm:$0xff]
    %v9651 = vld [vmem:[%s9433 + $0x61c] sm:$0xff]
    %v9652 = vld [vmem:[%s9433 + $0x624] sm:$0xff]
    %v9653 = vld [vmem:[%s9433 + $0x62c] sm:$0xf]
    %v9654 = vld [vmem:[%s9433 + $0x630] sm:$0xff]
    %v9655 = vld [vmem:[%s9433 + $0x638] sm:$0xff]
    %v9656 = vld [vmem:[%s9433 + $0x640] sm:$0xff]
    %v9657 = vld [vmem:[%s9433 + $0x648] sm:$0xff]
    %v9658 = vld [vmem:[%s9433 + $0x650] sm:$0xf]
    %v9659 = vld [vmem:[%s9433 + $0x654] sm:$0xff]
    %v9660 = vld [vmem:[%s9433 + $0x65c] sm:$0xff]
    %v9661 = vld [vmem:[%s9433 + $0x664] sm:$0xff]
    %v9662 = vld [vmem:[%s9433 + $0x66c] sm:$0xff]
    %v9663 = vld [vmem:[%s9433 + $0x674] sm:$0xf]
    %v9664 = vld [vmem:[%s9433 + $0x678] sm:$0xff]
    %v9665 = vld [vmem:[%s9433 + $0x680] sm:$0xff]
    %v9666 = vld [vmem:[%s9433 + $0x688] sm:$0xff]
    %v9667 = vld [vmem:[%s9433 + $0x690] sm:$0xff]
    %v9668 = vld [vmem:[%s9433 + $0x698] sm:$0xf]
    %v9669 = vld [vmem:[%s9433 + $0x69c] sm:$0xff]
    %v9670 = vld [vmem:[%s9433 + $0x6a4] sm:$0xff]
    %v9671 = vld [vmem:[%s9433 + $0x6ac] sm:$0xff]
    %v9672 = vld [vmem:[%s9433 + $0x6b4] sm:$0xff]
    %v9673 = vld [vmem:[%s9433 + $0x6bc] sm:$0xf]
    %s9674 = scalar_lea.vmem [#allocation9], 18
    %v9675 = vld [vmem:[%s9674] sm:$0xff]
    %v9676 = vld [vmem:[%s9674 + $0x8] sm:$0x1]
    %v9917 = vunpack.c.l.b16 %v9434
    %v9918 = vunpack.c.h.b16 %v9434
    %v9919 = vunpack.c.l.b16 %v9435
    %v9920 = vunpack.c.h.b16 %v9435
    %v9921 = vunpack.c.l.b16 %v9436
    %v9922 = vunpack.c.h.b16 %v9436
    %v9923 = vunpack.c.l.b16 %v9437
    %v9924 = vunpack.c.h.b16 %v9437
    %v9925 = vunpack.c.l.b16 %v9438
    %v9926 = vunpack.c.l.b16 %v9439
    %v9927 = vunpack.c.h.b16 %v9439
    %v9928 = vunpack.c.l.b16 %v9440
    %v9929 = vunpack.c.h.b16 %v9440
    %v9930 = vunpack.c.l.b16 %v9441
    %v9931 = vunpack.c.h.b16 %v9441
    %v9932 = vunpack.c.l.b16 %v9442
    %v9933 = vunpack.c.h.b16 %v9442
    %v9934 = vunpack.c.l.b16 %v9443
    %v9935 = vunpack.c.l.b16 %v9444
    %v9936 = vunpack.c.h.b16 %v9444
    %v9937 = vunpack.c.l.b16 %v9445
    %v9938 = vunpack.c.h.b16 %v9445
    %v9939 = vunpack.c.l.b16 %v9446
    %v9940 = vunpack.c.h.b16 %v9446
    %v9941 = vunpack.c.l.b16 %v9447
    %v9942 = vunpack.c.h.b16 %v9447
    %v9943 = vunpack.c.l.b16 %v9448
    %v9944 = vunpack.c.l.b16 %v9449
    %v9945 = vunpack.c.h.b16 %v9449
    %v9946 = vunpack.c.l.b16 %v9450
    %v9947 = vunpack.c.h.b16 %v9450
    %v9948 = vunpack.c.l.b16 %v9451
    %v9949 = vunpack.c.h.b16 %v9451
    %v9950 = vunpack.c.l.b16 %v9452
    %v9951 = vunpack.c.h.b16 %v9452
    %v9952 = vunpack.c.l.b16 %v9453
    %v9953 = vunpack.c.l.b16 %v9454
    %v9954 = vunpack.c.h.b16 %v9454
    %v9955 = vunpack.c.l.b16 %v9455
    %v9956 = vunpack.c.h.b16 %v9455
    %v9957 = vunpack.c.l.b16 %v9456
    %v9958 = vunpack.c.h.b16 %v9456
    %v9959 = vunpack.c.l.b16 %v9457
    %v9960 = vunpack.c.h.b16 %v9457
    %v9961 = vunpack.c.l.b16 %v9458
    %v9962 = vunpack.c.l.b16 %v9459
    %v9963 = vunpack.c.h.b16 %v9459
    %v9964 = vunpack.c.l.b16 %v9460
    %v9965 = vunpack.c.h.b16 %v9460
    %v9966 = vunpack.c.l.b16 %v9461
    %v9967 = vunpack.c.h.b16 %v9461
    %v9968 = vunpack.c.l.b16 %v9462
    %v9969 = vunpack.c.h.b16 %v9462
    %v9970 = vunpack.c.l.b16 %v9463
    %v9971 = vunpack.c.l.b16 %v9464
    %v9972 = vunpack.c.h.b16 %v9464
    %v9973 = vunpack.c.l.b16 %v9465
    %v9974 = vunpack.c.h.b16 %v9465
    %v9975 = vunpack.c.l.b16 %v9466
    %v9976 = vunpack.c.h.b16 %v9466
    %v9977 = vunpack.c.l.b16 %v9467
    %v9978 = vunpack.c.h.b16 %v9467
    %v9979 = vunpack.c.l.b16 %v9468
    %v9980 = vunpack.c.l.b16 %v9469
    %v9981 = vunpack.c.h.b16 %v9469
    %v9982 = vunpack.c.l.b16 %v9470
    %v9983 = vunpack.c.h.b16 %v9470
    %v9984 = vunpack.c.l.b16 %v9471
    %v9985 = vunpack.c.h.b16 %v9471
    %v9986 = vunpack.c.l.b16 %v9472
    %v9987 = vunpack.c.h.b16 %v9472
    %v9988 = vunpack.c.l.b16 %v9473
    %v9989 = vunpack.c.l.b16 %v9474
    %v9990 = vunpack.c.h.b16 %v9474
    %v9991 = vunpack.c.l.b16 %v9475
    %v9992 = vunpack.c.h.b16 %v9475
    %v9993 = vunpack.c.l.b16 %v9476
    %v9994 = vunpack.c.h.b16 %v9476
    %v9995 = vunpack.c.l.b16 %v9477
    %v9996 = vunpack.c.h.b16 %v9477
    %v9997 = vunpack.c.l.b16 %v9478
    %v9998 = vunpack.c.l.b16 %v9479
    %v9999 = vunpack.c.h.b16 %v9479
    %v10000 = vunpack.c.l.b16 %v9480
    %v10001 = vunpack.c.h.b16 %v9480
    %v10002 = vunpack.c.l.b16 %v9481
    %v10003 = vunpack.c.h.b16 %v9481
    %v10004 = vunpack.c.l.b16 %v9482
    %v10005 = vunpack.c.h.b16 %v9482
    %v10006 = vunpack.c.l.b16 %v9483
    %v10007 = vunpack.c.l.b16 %v9484
    %v10008 = vunpack.c.h.b16 %v9484
    %v10009 = vunpack.c.l.b16 %v9485
    %v10010 = vunpack.c.h.b16 %v9485
    %v10011 = vunpack.c.l.b16 %v9486
    %v10012 = vunpack.c.h.b16 %v9486
    %v10013 = vunpack.c.l.b16 %v9487
    %v10014 = vunpack.c.h.b16 %v9487
    %v10015 = vunpack.c.l.b16 %v9488
    %v10016 = vunpack.c.l.b16 %v9489
    %v10017 = vunpack.c.h.b16 %v9489
    %v10018 = vunpack.c.l.b16 %v9490
    %v10019 = vunpack.c.h.b16 %v9490
    %v10020 = vunpack.c.l.b16 %v9491
    %v10021 = vunpack.c.h.b16 %v9491
    %v10022 = vunpack.c.l.b16 %v9492
    %v10023 = vunpack.c.h.b16 %v9492
    %v10024 = vunpack.c.l.b16 %v9493
    %v10025 = vunpack.c.l.b16 %v9494
    %v10026 = vunpack.c.h.b16 %v9494
    %v10027 = vunpack.c.l.b16 %v9495
    %v10028 = vunpack.c.h.b16 %v9495
    %v10029 = vunpack.c.l.b16 %v9496
    %v10030 = vunpack.c.h.b16 %v9496
    %v10031 = vunpack.c.l.b16 %v9497
    %v10032 = vunpack.c.h.b16 %v9497
    %v10033 = vunpack.c.l.b16 %v9498
    %v10034 = vunpack.c.l.b16 %v9499
    %v10035 = vunpack.c.h.b16 %v9499
    %v10036 = vunpack.c.l.b16 %v9500
    %v10037 = vunpack.c.h.b16 %v9500
    %v10038 = vunpack.c.l.b16 %v9501
    %v10039 = vunpack.c.h.b16 %v9501
    %v10040 = vunpack.c.l.b16 %v9502
    %v10041 = vunpack.c.h.b16 %v9502
    %v10042 = vunpack.c.l.b16 %v9503
    %v10043 = vunpack.c.l.b16 %v9504
    %v10044 = vunpack.c.h.b16 %v9504
    %v10045 = vunpack.c.l.b16 %v9505
    %v10046 = vunpack.c.h.b16 %v9505
    %v10047 = vunpack.c.l.b16 %v9506
    %v10048 = vunpack.c.h.b16 %v9506
    %v10049 = vunpack.c.l.b16 %v9507
    %v10050 = vunpack.c.h.b16 %v9507
    %v10051 = vunpack.c.l.b16 %v9508
    %v10052 = vunpack.c.l.b16 %v9509
    %v10053 = vunpack.c.h.b16 %v9509
    %v10054 = vunpack.c.l.b16 %v9510
    %v10055 = vunpack.c.h.b16 %v9510
    %v10056 = vunpack.c.l.b16 %v9511
    %v10057 = vunpack.c.h.b16 %v9511
    %v10058 = vunpack.c.l.b16 %v9512
    %v10059 = vunpack.c.h.b16 %v9512
    %v10060 = vunpack.c.l.b16 %v9513
    %v10061 = vunpack.c.l.b16 %v9514
    %v10062 = vunpack.c.h.b16 %v9514
    %v10063 = vunpack.c.l.b16 %v9515
    %v10064 = vunpack.c.h.b16 %v9515
    %v10065 = vunpack.c.l.b16 %v9516
    %v10066 = vunpack.c.h.b16 %v9516
    %v10067 = vunpack.c.l.b16 %v9517
    %v10068 = vunpack.c.h.b16 %v9517
    %v10069 = vunpack.c.l.b16 %v9518
    %v10070 = vunpack.c.l.b16 %v9519
    %v10071 = vunpack.c.h.b16 %v9519
    %v10072 = vunpack.c.l.b16 %v9520
    %v10073 = vunpack.c.h.b16 %v9520
    %v10074 = vunpack.c.l.b16 %v9521
    %v10075 = vunpack.c.h.b16 %v9521
    %v10076 = vunpack.c.l.b16 %v9522
    %v10077 = vunpack.c.h.b16 %v9522
    %v10078 = vunpack.c.l.b16 %v9523
    %v10079 = vunpack.c.l.b16 %v9524
    %v10080 = vunpack.c.h.b16 %v9524
    %v10081 = vunpack.c.l.b16 %v9525
    %v10082 = vunpack.c.h.b16 %v9525
    %v10083 = vunpack.c.l.b16 %v9526
    %v10084 = vunpack.c.h.b16 %v9526
    %v10085 = vunpack.c.l.b16 %v9527
    %v10086 = vunpack.c.h.b16 %v9527
    %v10087 = vunpack.c.l.b16 %v9528
    %v10088 = vunpack.c.l.b16 %v9529
    %v10089 = vunpack.c.h.b16 %v9529
    %v10090 = vunpack.c.l.b16 %v9530
    %v10091 = vunpack.c.h.b16 %v9530
    %v10092 = vunpack.c.l.b16 %v9531
    %v10093 = vunpack.c.h.b16 %v9531
    %v10094 = vunpack.c.l.b16 %v9532
    %v10095 = vunpack.c.h.b16 %v9532
    %v10096 = vunpack.c.l.b16 %v9533
    %v10097 = vunpack.c.l.b16 %v9534
    %v10098 = vunpack.c.h.b16 %v9534
    %v10099 = vunpack.c.l.b16 %v9535
    %v10100 = vunpack.c.h.b16 %v9535
    %v10101 = vunpack.c.l.b16 %v9536
    %v10102 = vunpack.c.h.b16 %v9536
    %v10103 = vunpack.c.l.b16 %v9537
    %v10104 = vunpack.c.h.b16 %v9537
    %v10105 = vunpack.c.l.b16 %v9538
    %v10106 = vunpack.c.l.b16 %v9539
    %v10107 = vunpack.c.h.b16 %v9539
    %v10108 = vunpack.c.l.b16 %v9540
    %v10109 = vunpack.c.h.b16 %v9540
    %v10110 = vunpack.c.l.b16 %v9541
    %v10111 = vunpack.c.h.b16 %v9541
    %v10112 = vunpack.c.l.b16 %v9542
    %v10113 = vunpack.c.h.b16 %v9542
    %v10114 = vunpack.c.l.b16 %v9543
    %v10115 = vunpack.c.l.b16 %v9544
    %v10116 = vunpack.c.h.b16 %v9544
    %v10117 = vunpack.c.l.b16 %v9545
    %v10118 = vunpack.c.h.b16 %v9545
    %v10119 = vunpack.c.l.b16 %v9546
    %v10120 = vunpack.c.h.b16 %v9546
    %v10121 = vunpack.c.l.b16 %v9547
    %v10122 = vunpack.c.h.b16 %v9547
    %v10123 = vunpack.c.l.b16 %v9548
    %v10124 = vunpack.c.l.b16 %v9549
    %v10125 = vunpack.c.h.b16 %v9549
    %v10126 = vunpack.c.l.b16 %v9550
    %v10127 = vunpack.c.h.b16 %v9550
    %v10128 = vunpack.c.l.b16 %v9551
    %v10129 = vunpack.c.h.b16 %v9551
    %v10130 = vunpack.c.l.b16 %v9552
    %v10131 = vunpack.c.h.b16 %v9552
    %v10132 = vunpack.c.l.b16 %v9553
    %v10133 = vunpack.c.l.b16 %v9554
    %v10134 = vunpack.c.h.b16 %v9554
    %v10135 = vunpack.c.l.b16 %v9555
    %v10136 = vunpack.c.h.b16 %v9555
    %v10137 = vunpack.c.l.b16 %v9556
    %v10138 = vunpack.c.h.b16 %v9556
    %v10139 = vunpack.c.l.b16 %v9557
    %v10140 = vunpack.c.h.b16 %v9557
    %v10141 = vunpack.c.l.b16 %v9558
    %v10142 = vunpack.c.l.b16 %v9559
    %v10143 = vunpack.c.h.b16 %v9559
    %v10144 = vunpack.c.l.b16 %v9560
    %v10145 = vunpack.c.h.b16 %v9560
    %v10146 = vunpack.c.l.b16 %v9561
    %v10147 = vunpack.c.h.b16 %v9561
    %v10148 = vunpack.c.l.b16 %v9562
    %v10149 = vunpack.c.h.b16 %v9562
    %v10150 = vunpack.c.l.b16 %v9563
    %v10151 = vunpack.c.l.b16 %v9564
    %v10152 = vunpack.c.h.b16 %v9564
    %v10153 = vunpack.c.l.b16 %v9565
    %v10154 = vunpack.c.h.b16 %v9565
    %v10155 = vunpack.c.l.b16 %v9566
    %v10156 = vunpack.c.h.b16 %v9566
    %v10157 = vunpack.c.l.b16 %v9567
    %v10158 = vunpack.c.h.b16 %v9567
    %v10159 = vunpack.c.l.b16 %v9568
    %v10160 = vunpack.c.l.b16 %v9569
    %v10161 = vunpack.c.h.b16 %v9569
    %v10162 = vunpack.c.l.b16 %v9570
    %v10163 = vunpack.c.h.b16 %v9570
    %v10164 = vunpack.c.l.b16 %v9571
    %v10165 = vunpack.c.h.b16 %v9571
    %v10166 = vunpack.c.l.b16 %v9572
    %v10167 = vunpack.c.h.b16 %v9572
    %v10168 = vunpack.c.l.b16 %v9573
    %v10169 = vunpack.c.l.b16 %v9574
    %v10170 = vunpack.c.h.b16 %v9574
    %v10171 = vunpack.c.l.b16 %v9575
    %v10172 = vunpack.c.h.b16 %v9575
    %v10173 = vunpack.c.l.b16 %v9576
    %v10174 = vunpack.c.h.b16 %v9576
    %v10175 = vunpack.c.l.b16 %v9577
    %v10176 = vunpack.c.h.b16 %v9577
    %v10177 = vunpack.c.l.b16 %v9578
    %v10178 = vunpack.c.l.b16 %v9579
    %v10179 = vunpack.c.h.b16 %v9579
    %v10180 = vunpack.c.l.b16 %v9580
    %v10181 = vunpack.c.h.b16 %v9580
    %v10182 = vunpack.c.l.b16 %v9581
    %v10183 = vunpack.c.h.b16 %v9581
    %v10184 = vunpack.c.l.b16 %v9582
    %v10185 = vunpack.c.h.b16 %v9582
    %v10186 = vunpack.c.l.b16 %v9583
    %v10187 = vunpack.c.l.b16 %v9584
    %v10188 = vunpack.c.h.b16 %v9584
    %v10189 = vunpack.c.l.b16 %v9585
    %v10190 = vunpack.c.h.b16 %v9585
    %v10191 = vunpack.c.l.b16 %v9586
    %v10192 = vunpack.c.h.b16 %v9586
    %v10193 = vunpack.c.l.b16 %v9587
    %v10194 = vunpack.c.h.b16 %v9587
    %v10195 = vunpack.c.l.b16 %v9588
    %v10196 = vunpack.c.l.b16 %v9589
    %v10197 = vunpack.c.h.b16 %v9589
    %v10198 = vunpack.c.l.b16 %v9590
    %v10199 = vunpack.c.h.b16 %v9590
    %v10200 = vunpack.c.l.b16 %v9591
    %v10201 = vunpack.c.h.b16 %v9591
    %v10202 = vunpack.c.l.b16 %v9592
    %v10203 = vunpack.c.h.b16 %v9592
    %v10204 = vunpack.c.l.b16 %v9593
    %v10205 = vunpack.c.l.b16 %v9594
    %v10206 = vunpack.c.h.b16 %v9594
    %v10207 = vunpack.c.l.b16 %v9595
    %v10208 = vunpack.c.h.b16 %v9595
    %v10209 = vunpack.c.l.b16 %v9596
    %v10210 = vunpack.c.h.b16 %v9596
    %v10211 = vunpack.c.l.b16 %v9597
    %v10212 = vunpack.c.h.b16 %v9597
    %v10213 = vunpack.c.l.b16 %v9598
    %v10214 = vunpack.c.l.b16 %v9599
    %v10215 = vunpack.c.h.b16 %v9599
    %v10216 = vunpack.c.l.b16 %v9600
    %v10217 = vunpack.c.h.b16 %v9600
    %v10218 = vunpack.c.l.b16 %v9601
    %v10219 = vunpack.c.h.b16 %v9601
    %v10220 = vunpack.c.l.b16 %v9602
    %v10221 = vunpack.c.h.b16 %v9602
    %v10222 = vunpack.c.l.b16 %v9603
    %v10223 = vunpack.c.l.b16 %v9604
    %v10224 = vunpack.c.h.b16 %v9604
    %v10225 = vunpack.c.l.b16 %v9605
    %v10226 = vunpack.c.h.b16 %v9605
    %v10227 = vunpack.c.l.b16 %v9606
    %v10228 = vunpack.c.h.b16 %v9606
    %v10229 = vunpack.c.l.b16 %v9607
    %v10230 = vunpack.c.h.b16 %v9607
    %v10231 = vunpack.c.l.b16 %v9608
    %v10232 = vunpack.c.l.b16 %v9609
    %v10233 = vunpack.c.h.b16 %v9609
    %v10234 = vunpack.c.l.b16 %v9610
    %v10235 = vunpack.c.h.b16 %v9610
    %v10236 = vunpack.c.l.b16 %v9611
    %v10237 = vunpack.c.h.b16 %v9611
    %v10238 = vunpack.c.l.b16 %v9612
    %v10239 = vunpack.c.h.b16 %v9612
    %v10240 = vunpack.c.l.b16 %v9613
    %v10241 = vunpack.c.l.b16 %v9614
    %v10242 = vunpack.c.h.b16 %v9614
    %v10243 = vunpack.c.l.b16 %v9615
    %v10244 = vunpack.c.h.b16 %v9615
    %v10245 = vunpack.c.l.b16 %v9616
    %v10246 = vunpack.c.h.b16 %v9616
    %v10247 = vunpack.c.l.b16 %v9617
    %v10248 = vunpack.c.h.b16 %v9617
    %v10249 = vunpack.c.l.b16 %v9618
    %v10250 = vunpack.c.l.b16 %v9619
    %v10251 = vunpack.c.h.b16 %v9619
    %v10252 = vunpack.c.l.b16 %v9620
    %v10253 = vunpack.c.h.b16 %v9620
    %v10254 = vunpack.c.l.b16 %v9621
    %v10255 = vunpack.c.h.b16 %v9621
    %v10256 = vunpack.c.l.b16 %v9622
    %v10257 = vunpack.c.h.b16 %v9622
    %v10258 = vunpack.c.l.b16 %v9623
    %v10259 = vunpack.c.l.b16 %v9624
    %v10260 = vunpack.c.h.b16 %v9624
    %v10261 = vunpack.c.l.b16 %v9625
    %v10262 = vunpack.c.h.b16 %v9625
    %v10263 = vunpack.c.l.b16 %v9626
    %v10264 = vunpack.c.h.b16 %v9626
    %v10265 = vunpack.c.l.b16 %v9627
    %v10266 = vunpack.c.h.b16 %v9627
    %v10267 = vunpack.c.l.b16 %v9628
    %v10268 = vunpack.c.l.b16 %v9629
    %v10269 = vunpack.c.h.b16 %v9629
    %v10270 = vunpack.c.l.b16 %v9630
    %v10271 = vunpack.c.h.b16 %v9630
    %v10272 = vunpack.c.l.b16 %v9631
    %v10273 = vunpack.c.h.b16 %v9631
    %v10274 = vunpack.c.l.b16 %v9632
    %v10275 = vunpack.c.h.b16 %v9632
    %v10276 = vunpack.c.l.b16 %v9633
    %v10277 = vunpack.c.l.b16 %v9634
    %v10278 = vunpack.c.h.b16 %v9634
    %v10279 = vunpack.c.l.b16 %v9635
    %v10280 = vunpack.c.h.b16 %v9635
    %v10281 = vunpack.c.l.b16 %v9636
    %v10282 = vunpack.c.h.b16 %v9636
    %v10283 = vunpack.c.l.b16 %v9637
    %v10284 = vunpack.c.h.b16 %v9637
    %v10285 = vunpack.c.l.b16 %v9638
    %v10286 = vunpack.c.l.b16 %v9639
    %v10287 = vunpack.c.h.b16 %v9639
    %v10288 = vunpack.c.l.b16 %v9640
    %v10289 = vunpack.c.h.b16 %v9640
    %v10290 = vunpack.c.l.b16 %v9641
    %v10291 = vunpack.c.h.b16 %v9641
    %v10292 = vunpack.c.l.b16 %v9642
    %v10293 = vunpack.c.h.b16 %v9642
    %v10294 = vunpack.c.l.b16 %v9643
    %v10295 = vunpack.c.l.b16 %v9644
    %v10296 = vunpack.c.h.b16 %v9644
    %v10297 = vunpack.c.l.b16 %v9645
    %v10298 = vunpack.c.h.b16 %v9645
    %v10299 = vunpack.c.l.b16 %v9646
    %v10300 = vunpack.c.h.b16 %v9646
    %v10301 = vunpack.c.l.b16 %v9647
    %v10302 = vunpack.c.h.b16 %v9647
    %v10303 = vunpack.c.l.b16 %v9648
    %v10304 = vunpack.c.l.b16 %v9649
    %v10305 = vunpack.c.h.b16 %v9649
    %v10306 = vunpack.c.l.b16 %v9650
    %v10307 = vunpack.c.h.b16 %v9650
    %v10308 = vunpack.c.l.b16 %v9651
    %v10309 = vunpack.c.h.b16 %v9651
    %v10310 = vunpack.c.l.b16 %v9652
    %v10311 = vunpack.c.h.b16 %v9652
    %v10312 = vunpack.c.l.b16 %v9653
    %v10313 = vunpack.c.l.b16 %v9654
    %v10314 = vunpack.c.h.b16 %v9654
    %v10315 = vunpack.c.l.b16 %v9655
    %v10316 = vunpack.c.h.b16 %v9655
    %v10317 = vunpack.c.l.b16 %v9656
    %v10318 = vunpack.c.h.b16 %v9656
    %v10319 = vunpack.c.l.b16 %v9657
    %v10320 = vunpack.c.h.b16 %v9657
    %v10321 = vunpack.c.l.b16 %v9658
    %v10322 = vunpack.c.l.b16 %v9659
    %v10323 = vunpack.c.h.b16 %v9659
    %v10324 = vunpack.c.l.b16 %v9660
    %v10325 = vunpack.c.h.b16 %v9660
    %v10326 = vunpack.c.l.b16 %v9661
    %v10327 = vunpack.c.h.b16 %v9661
    %v10328 = vunpack.c.l.b16 %v9662
    %v10329 = vunpack.c.h.b16 %v9662
    %v10330 = vunpack.c.l.b16 %v9663
    %v10331 = vunpack.c.l.b16 %v9664
    %v10332 = vunpack.c.h.b16 %v9664
    %v10333 = vunpack.c.l.b16 %v9665
    %v10334 = vunpack.c.h.b16 %v9665
    %v10335 = vunpack.c.l.b16 %v9666
    %v10336 = vunpack.c.h.b16 %v9666
    %v10337 = vunpack.c.l.b16 %v9667
    %v10338 = vunpack.c.h.b16 %v9667
    %v10339 = vunpack.c.l.b16 %v9668
    %v10340 = vunpack.c.l.b16 %v9669
    %v10341 = vunpack.c.h.b16 %v9669
    %v10342 = vunpack.c.l.b16 %v9670
    %v10343 = vunpack.c.h.b16 %v9670
    %v10344 = vunpack.c.l.b16 %v9671
    %v10345 = vunpack.c.h.b16 %v9671
    %v10346 = vunpack.c.l.b16 %v9672
    %v10347 = vunpack.c.h.b16 %v9672
    %v10348 = vunpack.c.l.b16 %v9673
    %v10349 = vpack.c.b16 %v9926, %v9917
    %v10350 = vpack.c.b16 %v9927, %v9918
    %v10351 = vpack.c.b16 %v9928, %v9919
    %v10352 = vpack.c.b16 %v9929, %v9920
    %v10353 = vpack.c.b16 %v9930, %v9921
    %v10354 = vpack.c.b16 %v9931, %v9922
    %v10355 = vpack.c.b16 %v9932, %v9923
    %v10356 = vpack.c.b16 %v9933, %v9924
    %v10357 = vpack.c.b16 %v9934, %v9925
    %v10358 = vpack.c.b16 %v9944, %v9935
    %v10359 = vpack.c.b16 %v9945, %v9936
    %v10360 = vpack.c.b16 %v9946, %v9937
    %v10361 = vpack.c.b16 %v9947, %v9938
    %v10362 = vpack.c.b16 %v9948, %v9939
    %v10363 = vpack.c.b16 %v9949, %v9940
    %v10364 = vpack.c.b16 %v9950, %v9941
    %v10365 = vpack.c.b16 %v9951, %v9942
    %v10366 = vpack.c.b16 %v9952, %v9943
    %v10367 = vpack.c.b16 %v9962, %v9953
    %v10368 = vpack.c.b16 %v9963, %v9954
    %v10369 = vpack.c.b16 %v9964, %v9955
    %v10370 = vpack.c.b16 %v9965, %v9956
    %v10371 = vpack.c.b16 %v9966, %v9957
    %v10372 = vpack.c.b16 %v9967, %v9958
    %v10373 = vpack.c.b16 %v9968, %v9959
    %v10374 = vpack.c.b16 %v9969, %v9960
    %v10375 = vpack.c.b16 %v9970, %v9961
    %v10376 = vpack.c.b16 %v9980, %v9971
    %v10377 = vpack.c.b16 %v9981, %v9972
    %v10378 = vpack.c.b16 %v9982, %v9973
    %v10379 = vpack.c.b16 %v9983, %v9974
    %v10380 = vpack.c.b16 %v9984, %v9975
    %v10381 = vpack.c.b16 %v9985, %v9976
    %v10382 = vpack.c.b16 %v9986, %v9977
    %v10383 = vpack.c.b16 %v9987, %v9978
    %v10384 = vpack.c.b16 %v9988, %v9979
    %v10385 = vpack.c.b16 %v9998, %v9989
    %v10386 = vpack.c.b16 %v9999, %v9990
    %v10387 = vpack.c.b16 %v10000, %v9991
    %v10388 = vpack.c.b16 %v10001, %v9992
    %v10389 = vpack.c.b16 %v10002, %v9993
    %v10390 = vpack.c.b16 %v10003, %v9994
    %v10391 = vpack.c.b16 %v10004, %v9995
    %v10392 = vpack.c.b16 %v10005, %v9996
    %v10393 = vpack.c.b16 %v10006, %v9997
    %v10394 = vpack.c.b16 %v10016, %v10007
    %v10395 = vpack.c.b16 %v10017, %v10008
    %v10396 = vpack.c.b16 %v10018, %v10009
    %v10397 = vpack.c.b16 %v10019, %v10010
    %v10398 = vpack.c.b16 %v10020, %v10011
    %v10399 = vpack.c.b16 %v10021, %v10012
    %v10400 = vpack.c.b16 %v10022, %v10013
    %v10401 = vpack.c.b16 %v10023, %v10014
    %v10402 = vpack.c.b16 %v10024, %v10015
    %v10403 = vpack.c.b16 %v10034, %v10025
    %v10404 = vpack.c.b16 %v10035, %v10026
    %v10405 = vpack.c.b16 %v10036, %v10027
    %v10406 = vpack.c.b16 %v10037, %v10028
    %v10407 = vpack.c.b16 %v10038, %v10029
    %v10408 = vpack.c.b16 %v10039, %v10030
    %v10409 = vpack.c.b16 %v10040, %v10031
    %v10410 = vpack.c.b16 %v10041, %v10032
    %v10411 = vpack.c.b16 %v10042, %v10033
    %v10412 = vpack.c.b16 %v10052, %v10043
    %v10413 = vpack.c.b16 %v10053, %v10044
    %v10414 = vpack.c.b16 %v10054, %v10045
    %v10415 = vpack.c.b16 %v10055, %v10046
    %v10416 = vpack.c.b16 %v10056, %v10047
    %v10417 = vpack.c.b16 %v10057, %v10048
    %v10418 = vpack.c.b16 %v10058, %v10049
    %v10419 = vpack.c.b16 %v10059, %v10050
    %v10420 = vpack.c.b16 %v10060, %v10051
    %v10421 = vpack.c.b16 %v10070, %v10061
    %v10422 = vpack.c.b16 %v10071, %v10062
    %v10423 = vpack.c.b16 %v10072, %v10063
    %v10424 = vpack.c.b16 %v10073, %v10064
    %v10425 = vpack.c.b16 %v10074, %v10065
    %v10426 = vpack.c.b16 %v10075, %v10066
    %v10427 = vpack.c.b16 %v10076, %v10067
    %v10428 = vpack.c.b16 %v10077, %v10068
    %v10429 = vpack.c.b16 %v10078, %v10069
    %v10430 = vpack.c.b16 %v10088, %v10079
    %v10431 = vpack.c.b16 %v10089, %v10080
    %v10432 = vpack.c.b16 %v10090, %v10081
    %v10433 = vpack.c.b16 %v10091, %v10082
    %v10434 = vpack.c.b16 %v10092, %v10083
    %v10435 = vpack.c.b16 %v10093, %v10084
    %v10436 = vpack.c.b16 %v10094, %v10085
    %v10437 = vpack.c.b16 %v10095, %v10086
    %v10438 = vpack.c.b16 %v10096, %v10087
    %v10439 = vpack.c.b16 %v10106, %v10097
    %v10440 = vpack.c.b16 %v10107, %v10098
    %v10441 = vpack.c.b16 %v10108, %v10099
    %v10442 = vpack.c.b16 %v10109, %v10100
    %v10443 = vpack.c.b16 %v10110, %v10101
    %v10444 = vpack.c.b16 %v10111, %v10102
    %v10445 = vpack.c.b16 %v10112, %v10103
    %v10446 = vpack.c.b16 %v10113, %v10104
    %v10447 = vpack.c.b16 %v10114, %v10105
    %v10448 = vpack.c.b16 %v10124, %v10115
    %v10449 = vpack.c.b16 %v10125, %v10116
    %v10450 = vpack.c.b16 %v10126, %v10117
    %v10451 = vpack.c.b16 %v10127, %v10118
    %v10452 = vpack.c.b16 %v10128, %v10119
    %v10453 = vpack.c.b16 %v10129, %v10120
    %v10454 = vpack.c.b16 %v10130, %v10121
    %v10455 = vpack.c.b16 %v10131, %v10122
    %v10456 = vpack.c.b16 %v10132, %v10123
    %v10457 = vpack.c.b16 %v10142, %v10133
    %v10458 = vpack.c.b16 %v10143, %v10134
    %v10459 = vpack.c.b16 %v10144, %v10135
    %v10460 = vpack.c.b16 %v10145, %v10136
    %v10461 = vpack.c.b16 %v10146, %v10137
    %v10462 = vpack.c.b16 %v10147, %v10138
    %v10463 = vpack.c.b16 %v10148, %v10139
    %v10464 = vpack.c.b16 %v10149, %v10140
    %v10465 = vpack.c.b16 %v10150, %v10141
    %v10466 = vpack.c.b16 %v10160, %v10151
    %v10467 = vpack.c.b16 %v10161, %v10152
    %v10468 = vpack.c.b16 %v10162, %v10153
    %v10469 = vpack.c.b16 %v10163, %v10154
    %v10470 = vpack.c.b16 %v10164, %v10155
    %v10471 = vpack.c.b16 %v10165, %v10156
    %v10472 = vpack.c.b16 %v10166, %v10157
    %v10473 = vpack.c.b16 %v10167, %v10158
    %v10474 = vpack.c.b16 %v10168, %v10159
    %v10475 = vpack.c.b16 %v10178, %v10169
    %v10476 = vpack.c.b16 %v10179, %v10170
    %v10477 = vpack.c.b16 %v10180, %v10171
    %v10478 = vpack.c.b16 %v10181, %v10172
    %v10479 = vpack.c.b16 %v10182, %v10173
    %v10480 = vpack.c.b16 %v10183, %v10174
    %v10481 = vpack.c.b16 %v10184, %v10175
    %v10482 = vpack.c.b16 %v10185, %v10176
    %v10483 = vpack.c.b16 %v10186, %v10177
    %v10484 = vpack.c.b16 %v10196, %v10187
    %v10485 = vpack.c.b16 %v10197, %v10188
    %v10486 = vpack.c.b16 %v10198, %v10189
    %v10487 = vpack.c.b16 %v10199, %v10190
    %v10488 = vpack.c.b16 %v10200, %v10191
    %v10489 = vpack.c.b16 %v10201, %v10192
    %v10490 = vpack.c.b16 %v10202, %v10193
    %v10491 = vpack.c.b16 %v10203, %v10194
    %v10492 = vpack.c.b16 %v10204, %v10195
    %v10493 = vpack.c.b16 %v10214, %v10205
    %v10494 = vpack.c.b16 %v10215, %v10206
    %v10495 = vpack.c.b16 %v10216, %v10207
    %v10496 = vpack.c.b16 %v10217, %v10208
    %v10497 = vpack.c.b16 %v10218, %v10209
    %v10498 = vpack.c.b16 %v10219, %v10210
    %v10499 = vpack.c.b16 %v10220, %v10211
    %v10500 = vpack.c.b16 %v10221, %v10212
    %v10501 = vpack.c.b16 %v10222, %v10213
    %v10502 = vpack.c.b16 %v10232, %v10223
    %v10503 = vpack.c.b16 %v10233, %v10224
    %v10504 = vpack.c.b16 %v10234, %v10225
    %v10505 = vpack.c.b16 %v10235, %v10226
    %v10506 = vpack.c.b16 %v10236, %v10227
    %v10507 = vpack.c.b16 %v10237, %v10228
    %v10508 = vpack.c.b16 %v10238, %v10229
    %v10509 = vpack.c.b16 %v10239, %v10230
    %v10510 = vpack.c.b16 %v10240, %v10231
    %v10511 = vpack.c.b16 %v10250, %v10241
    %v10512 = vpack.c.b16 %v10251, %v10242
    %v10513 = vpack.c.b16 %v10252, %v10243
    %v10514 = vpack.c.b16 %v10253, %v10244
    %v10515 = vpack.c.b16 %v10254, %v10245
    %v10516 = vpack.c.b16 %v10255, %v10246
    %v10517 = vpack.c.b16 %v10256, %v10247
    %v10518 = vpack.c.b16 %v10257, %v10248
    %v10519 = vpack.c.b16 %v10258, %v10249
    %v10520 = vpack.c.b16 %v10268, %v10259
    %v10521 = vpack.c.b16 %v10269, %v10260
    %v10522 = vpack.c.b16 %v10270, %v10261
    %v10523 = vpack.c.b16 %v10271, %v10262
    %v10524 = vpack.c.b16 %v10272, %v10263
    %v10525 = vpack.c.b16 %v10273, %v10264
    %v10526 = vpack.c.b16 %v10274, %v10265
    %v10527 = vpack.c.b16 %v10275, %v10266
    %v10528 = vpack.c.b16 %v10276, %v10267
    %v10529 = vpack.c.b16 %v10286, %v10277
    %v10530 = vpack.c.b16 %v10287, %v10278
    %v10531 = vpack.c.b16 %v10288, %v10279
    %v10532 = vpack.c.b16 %v10289, %v10280
    %v10533 = vpack.c.b16 %v10290, %v10281
    %v10534 = vpack.c.b16 %v10291, %v10282
    %v10535 = vpack.c.b16 %v10292, %v10283
    %v10536 = vpack.c.b16 %v10293, %v10284
    %v10537 = vpack.c.b16 %v10294, %v10285
    %v10538 = vpack.c.b16 %v10304, %v10295
    %v10539 = vpack.c.b16 %v10305, %v10296
    %v10540 = vpack.c.b16 %v10306, %v10297
    %v10541 = vpack.c.b16 %v10307, %v10298
    %v10542 = vpack.c.b16 %v10308, %v10299
    %v10543 = vpack.c.b16 %v10309, %v10300
    %v10544 = vpack.c.b16 %v10310, %v10301
    %v10545 = vpack.c.b16 %v10311, %v10302
    %v10546 = vpack.c.b16 %v10312, %v10303
    %v10547 = vpack.c.b16 %v10322, %v10313
    %v10548 = vpack.c.b16 %v10323, %v10314
    %v10549 = vpack.c.b16 %v10324, %v10315
    %v10550 = vpack.c.b16 %v10325, %v10316
    %v10551 = vpack.c.b16 %v10326, %v10317
    %v10552 = vpack.c.b16 %v10327, %v10318
    %v10553 = vpack.c.b16 %v10328, %v10319
    %v10554 = vpack.c.b16 %v10329, %v10320
    %v10555 = vpack.c.b16 %v10330, %v10321
    %v10556 = vpack.c.b16 %v10340, %v10331
    %v10557 = vpack.c.b16 %v10341, %v10332
    %v10558 = vpack.c.b16 %v10342, %v10333
    %v10559 = vpack.c.b16 %v10343, %v10334
    %v10560 = vpack.c.b16 %v10344, %v10335
    %v10561 = vpack.c.b16 %v10345, %v10336
    %v10562 = vpack.c.b16 %v10346, %v10337
    %v10563 = vpack.c.b16 %v10347, %v10338
    %v10564 = vpack.c.b16 %v10348, %v10339
    %v10783 = vlaneseq
    %v10784 = vshrl.u32 %v10783, 7
    %v10785 = vsub.s32 0, %v10784
    %v10786 = vrot.slane %v9675, %v10785
    %v10787 = vlaneseq
    %v10788 = vshrl.u32 %v10787, 7
    %v10789 = vsub.s32 1, %v10788
    %v10790 = vrot.slane %v9675, %v10789
    %v10791 = vlaneseq
    %v10792 = vshrl.u32 %v10791, 7
    %v10793 = vsub.s32 2, %v10792
    %v10794 = vrot.slane %v9675, %v10793
    %v10795 = vlaneseq
    %v10796 = vshrl.u32 %v10795, 7
    %v10797 = vsub.s32 3, %v10796
    %v10798 = vrot.slane %v9675, %v10797
    %v10799 = vlaneseq
    %v10800 = vshrl.u32 %v10799, 7
    %v10801 = vsub.s32 4, %v10800
    %v10802 = vrot.slane %v9675, %v10801
    %v10803 = vlaneseq
    %v10804 = vshrl.u32 %v10803, 7
    %v10805 = vsub.s32 5, %v10804
    %v10806 = vrot.slane %v9675, %v10805
    %v10807 = vlaneseq
    %v10808 = vshrl.u32 %v10807, 7
    %v10809 = vsub.s32 6, %v10808
    %v10810 = vrot.slane %v9675, %v10809
    %v10811 = vlaneseq
    %v10812 = vshrl.u32 %v10811, 7
    %v10813 = vsub.s32 7, %v10812
    %v10814 = vrot.slane %v9675, %v10813
    %v10815 = vlaneseq
    %v10816 = vshrl.u32 %v10815, 7
    %v10817 = vsub.s32 0, %v10816
    %v10818 = vrot.slane %v9676, %v10817
    %10828 = vmatprep.subr.bf16.mxu0 %v10350
    %10829 = vmatpush1.bf16.msra.mxu0 %v10349
    %10830 = vmatprep.subr.bf16.mxu0 %v10359
    %10831 = vmatpush1.bf16.msra.mxu0 %v10358
    %10832 = vmatprep.subr.bf16.mxu0 %v10368
    %10833 = vmatpush1.bf16.msra.mxu0 %v10367
    %10834 = vmatprep.subr.bf16.mxu0 %v10377
    %10835 = vmatpush1.bf16.msra.mxu0 %v10376
    %10836 = vmatprep.subr.bf16.mxu0 %v10386
    %10837 = vmatpush1.bf16.msra.mxu0 %v10385
    %10838 = vmatprep.subr.bf16.mxu0 %v10395
    %10839 = vmatpush1.bf16.msra.mxu0 %v10394
    %10840 = vmatprep.subr.bf16.mxu0 %v10404
    %10841 = vmatpush1.bf16.msra.mxu0 %v10403
    %10842 = vmatprep.subr.bf16.mxu0 %v10413
    %10843 = vmatpush1.bf16.msra.mxu0 %v10412
    %10844 = vmatprep.subr.bf16.mxu0 %v10422
    %10845 = vmatpush1.bf16.msra.mxu0 %v10421
    %10846 = vmatprep.subr.bf16.mxu0 %v10431
    %10847 = vmatpush1.bf16.msra.mxu0 %v10430
    %10848 = vmatprep.subr.bf16.mxu0 %v10440
    %10849 = vmatpush1.bf16.msra.mxu0 %v10439
    %10850 = vmatprep.subr.bf16.mxu0 %v10449
    %10851 = vmatpush1.bf16.msra.mxu0 %v10448
    %10852 = vmatprep.subr.bf16.mxu0 %v10458
    %10853 = vmatpush1.bf16.msra.mxu0 %v10457
    %10854 = vmatprep.subr.bf16.mxu0 %v10467
    %10855 = vmatpush1.bf16.msra.mxu0 %v10466
    %10856 = vmatprep.subr.bf16.mxu0 %v10476
    %10857 = vmatpush1.bf16.msra.mxu0 %v10475
    %10858 = vmatprep.subr.bf16.mxu0 %v10485
    %10859 = vmatpush1.bf16.msra.mxu0 %v10484
    %10860 = vmatprep.mubr.bf16.mxu0 %v9431
    %10861 = vmatmul.mubr.bf16.gmra.mrb[0].mxu0 %v9430
    %v10862 = vpop.f32.mrb[0].mxu0
    %v10863 = vadd.f32 %v10786, %v10862
    %v10864 = vpop.f32.mrb[0].mxu0
    %v10865 = vadd.f32 %v10790, %v10864
    %v10866 = vpop.f32.mrb[0].mxu0
    %v10867 = vpop.f32.mrb[0].mxu0
    %10868 = vdwg.mxu0
    %10869 = vmatprep.subr.bf16.mxu0 %v10494
    %10870 = vmatpush1.bf16.msra.mxu0 %v10493
    %10871 = vmatprep.subr.bf16.mxu0 %v10503
    %10872 = vmatpush1.bf16.msra.mxu0 %v10502
    %10873 = vmatprep.subr.bf16.mxu0 %v10512
    %10874 = vmatpush1.bf16.msra.mxu0 %v10511
    %10875 = vmatprep.subr.bf16.mxu0 %v10521
    %10876 = vmatpush1.bf16.msra.mxu0 %v10520
    %10877 = vmatprep.subr.bf16.mxu0 %v10530
    %10878 = vmatpush1.bf16.msra.mxu0 %v10529
    %10879 = vmatprep.subr.bf16.mxu0 %v10539
    %10880 = vmatpush1.bf16.msra.mxu0 %v10538
    %10881 = vmatprep.subr.bf16.mxu0 %v10548
    %10882 = vmatpush1.bf16.msra.mxu0 %v10547
    %10883 = vmatprep.subr.bf16.mxu0 %v10557
    %10884 = vmatpush1.bf16.msra.mxu0 %v10556
    %10885 = vmatprep.subr.bf16.mxu0 0
    %10886 = vmatpush1.bf16.msra.mxu0 0
    %10887 = vmatprep.subr.bf16.mxu0 0
    %10888 = vmatpush1.bf16.msra.mxu0 0
    %10889 = vmatprep.subr.bf16.mxu0 0
    %10890 = vmatpush1.bf16.msra.mxu0 0
    %10891 = vmatprep.subr.bf16.mxu0 0
    %10892 = vmatpush1.bf16.msra.mxu0 0
    %10893 = vmatprep.subr.bf16.mxu0 0
    %10894 = vmatpush1.bf16.msra.mxu0 0
    %10895 = vmatprep.subr.bf16.mxu0 0
    %10896 = vmatpush1.bf16.msra.mxu0 0
    %10897 = vmatprep.subr.bf16.mxu0 0
    %10898 = vmatpush1.bf16.msra.mxu0 0
    %10899 = vmatprep.subr.bf16.mxu0 0
    %10900 = vmatpush1.bf16.msra.mxu0 0
    %10901 = vmatprep.mubr.bf16.mxu0 0
    %10902 = vmatmul.mubr.bf16.gmra.mrb[0].mxu0 %v9432
    %v10903 = vpop.f32.mrb[0].mxu0
    %v10904 = vadd.f32 %v10863, %v10903
    %v10905 = vpop.f32.mrb[0].mxu0
    %v10906 = vadd.f32 %v10865, %v10905
    %v10907 = vpop.f32.mrb[0].mxu0
    %v10908 = vpop.f32.mrb[0].mxu0
    %10909 = vdwg.mxu0
    %10910 = vmatprep.subr.bf16.mxu0 %v10352
    %10911 = vmatpush1.bf16.msra.mxu0 %v10351
    %10912 = vmatprep.subr.bf16.mxu0 %v10361
    %10913 = vmatpush1.bf16.msra.mxu0 %v10360
    %10914 = vmatprep.subr.bf16.mxu0 %v10370
    %10915 = vmatpush1.bf16.msra.mxu0 %v10369
    %10916 = vmatprep.subr.bf16.mxu0 %v10379
    %10917 = vmatpush1.bf16.msra.mxu0 %v10378
    %10918 = vmatprep.subr.bf16.mxu0 %v10388
    %10919 = vmatpush1.bf16.msra.mxu0 %v10387
    %10920 = vmatprep.subr.bf16.mxu0 %v10397
    %10921 = vmatpush1.bf16.msra.mxu0 %v10396
    %10922 = vmatprep.subr.bf16.mxu0 %v10406
    %10923 = vmatpush1.bf16.msra.mxu0 %v10405
    %10924 = vmatprep.subr.bf16.mxu0 %v10415
    %10925 = vmatpush1.bf16.msra.mxu0 %v10414
    %10926 = vmatprep.subr.bf16.mxu0 %v10424
    %10927 = vmatpush1.bf16.msra.mxu0 %v10423
    %10928 = vmatprep.subr.bf16.mxu0 %v10433
    %10929 = vmatpush1.bf16.msra.mxu0 %v10432
    %10930 = vmatprep.subr.bf16.mxu0 %v10442
    %10931 = vmatpush1.bf16.msra.mxu0 %v10441
    %10932 = vmatprep.subr.bf16.mxu0 %v10451
    %10933 = vmatpush1.bf16.msra.mxu0 %v10450
    %10934 = vmatprep.subr.bf16.mxu0 %v10460
    %10935 = vmatpush1.bf16.msra.mxu0 %v10459
    %10936 = vmatprep.subr.bf16.mxu0 %v10469
    %10937 = vmatpush1.bf16.msra.mxu0 %v10468
    %10938 = vmatprep.subr.bf16.mxu0 %v10478
    %10939 = vmatpush1.bf16.msra.mxu0 %v10477
    %10940 = vmatprep.subr.bf16.mxu0 %v10487
    %10941 = vmatpush1.bf16.msra.mxu0 %v10486
    %10942 = vmatprep.mubr.bf16.mxu0 %v9431
    %10943 = vmatmul.mubr.bf16.gmra.mrb[0].mxu0 %v9430
    %v10944 = vpop.f32.mrb[0].mxu0
    %v10945 = vadd.f32 %v10794, %v10944
    %v10946 = vpop.f32.mrb[0].mxu0
    %v10947 = vadd.f32 %v10798, %v10946
    %v10948 = vpop.f32.mrb[0].mxu0
    %v10949 = vpop.f32.mrb[0].mxu0
    %10950 = vdwg.mxu0
    %10951 = vmatprep.subr.bf16.mxu0 %v10496
    %10952 = vmatpush1.bf16.msra.mxu0 %v10495
    %10953 = vmatprep.subr.bf16.mxu0 %v10505
    %10954 = vmatpush1.bf16.msra.mxu0 %v10504
    %10955 = vmatprep.subr.bf16.mxu0 %v10514
    %10956 = vmatpush1.bf16.msra.mxu0 %v10513
    %10957 = vmatprep.subr.bf16.mxu0 %v10523
    %10958 = vmatpush1.bf16.msra.mxu0 %v10522
    %10959 = vmatprep.subr.bf16.mxu0 %v10532
    %10960 = vmatpush1.bf16.msra.mxu0 %v10531
    %10961 = vmatprep.subr.bf16.mxu0 %v10541
    %10962 = vmatpush1.bf16.msra.mxu0 %v10540
    %10963 = vmatprep.subr.bf16.mxu0 %v10550
    %10964 = vmatpush1.bf16.msra.mxu0 %v10549
    %10965 = vmatprep.subr.bf16.mxu0 %v10559
    %10966 = vmatpush1.bf16.msra.mxu0 %v10558
    %10967 = vmatprep.subr.bf16.mxu0 0
    %10968 = vmatpush1.bf16.msra.mxu0 0
    %10969 = vmatprep.subr.bf16.mxu0 0
    %10970 = vmatpush1.bf16.msra.mxu0 0
    %10971 = vmatprep.subr.bf16.mxu0 0
    %10972 = vmatpush1.bf16.msra.mxu0 0
    %10973 = vmatprep.subr.bf16.mxu0 0
    %10974 = vmatpush1.bf16.msra.mxu0 0
    %10975 = vmatprep.subr.bf16.mxu0 0
    %10976 = vmatpush1.bf16.msra.mxu0 0
    %10977 = vmatprep.subr.bf16.mxu0 0
    %10978 = vmatpush1.bf16.msra.mxu0 0
    %10979 = vmatprep.subr.bf16.mxu0 0
    %10980 = vmatpush1.bf16.msra.mxu0 0
    %10981 = vmatprep.subr.bf16.mxu0 0
    %10982 = vmatpush1.bf16.msra.mxu0 0
    %10983 = vmatprep.mubr.bf16.mxu0 0
    %10984 = vmatmul.mubr.bf16.gmra.mrb[0].mxu0 %v9432
    %v10985 = vpop.f32.mrb[0].mxu0
    %v10986 = vadd.f32 %v10945, %v10985
    %v10987 = vpop.f32.mrb[0].mxu0
    %v10988 = vadd.f32 %v10947, %v10987
    %v10989 = vpop.f32.mrb[0].mxu0
    %v10990 = vpop.f32.mrb[0].mxu0
    %10991 = vdwg.mxu0
    %10992 = vmatprep.subr.bf16.mxu0 %v10354
    %10993 = vmatpush1.bf16.msra.mxu0 %v10353
    %10994 = vmatprep.subr.bf16.mxu0 %v10363
    %10995 = vmatpush1.bf16.msra.mxu0 %v10362
    %10996 = vmatprep.subr.bf16.mxu0 %v10372
    %10997 = vmatpush1.bf16.msra.mxu0 %v10371
    %10998 = vmatprep.subr.bf16.mxu0 %v10381
    %10999 = vmatpush1.bf16.msra.mxu0 %v10380
    %11000 = vmatprep.subr.bf16.mxu0 %v10390
    %11001 = vmatpush1.bf16.msra.mxu0 %v10389
    %11002 = vmatprep.subr.bf16.mxu0 %v10399
    %11003 = vmatpush1.bf16.msra.mxu0 %v10398
    %11004 = vmatprep.subr.bf16.mxu0 %v10408
    %11005 = vmatpush1.bf16.msra.mxu0 %v10407
    %11006 = vmatprep.subr.bf16.mxu0 %v10417
    %11007 = vmatpush1.bf16.msra.mxu0 %v10416
    %11008 = vmatprep.subr.bf16.mxu0 %v10426
    %11009 = vmatpush1.bf16.msra.mxu0 %v10425
    %11010 = vmatprep.subr.bf16.mxu0 %v10435
    %11011 = vmatpush1.bf16.msra.mxu0 %v10434
    %11012 = vmatprep.subr.bf16.mxu0 %v10444
    %11013 = vmatpush1.bf16.msra.mxu0 %v10443
    %11014 = vmatprep.subr.bf16.mxu0 %v10453
    %11015 = vmatpush1.bf16.msra.mxu0 %v10452
    %11016 = vmatprep.subr.bf16.mxu0 %v10462
    %11017 = vmatpush1.bf16.msra.mxu0 %v10461
    %11018 = vmatprep.subr.bf16.mxu0 %v10471
    %11019 = vmatpush1.bf16.msra.mxu0 %v10470
    %11020 = vmatprep.subr.bf16.mxu0 %v10480
    %11021 = vmatpush1.bf16.msra.mxu0 %v10479
    %11022 = vmatprep.subr.bf16.mxu0 %v10489
    %11023 = vmatpush1.bf16.msra.mxu0 %v10488
    %11024 = vmatprep.mubr.bf16.mxu0 %v9431
    %11025 = vmatmul.mubr.bf16.gmra.mrb[0].mxu0 %v9430
    %v11026 = vpop.f32.mrb[0].mxu0
    %v11027 = vadd.f32 %v10802, %v11026
    %v11028 = vpop.f32.mrb[0].mxu0
    %v11029 = vadd.f32 %v10806, %v11028
    %v11030 = vpop.f32.mrb[0].mxu0
    %v11031 = vpop.f32.mrb[0].mxu0
    %11032 = vdwg.mxu0
    %11033 = vmatprep.subr.bf16.mxu0 %v10498
    %11034 = vmatpush1.bf16.msra.mxu0 %v10497
    %11035 = vmatprep.subr.bf16.mxu0 %v10507
    %11036 = vmatpush1.bf16.msra.mxu0 %v10506
    %11037 = vmatprep.subr.bf16.mxu0 %v10516
    %11038 = vmatpush1.bf16.msra.mxu0 %v10515
    %11039 = vmatprep.subr.bf16.mxu0 %v10525
    %11040 = vmatpush1.bf16.msra.mxu0 %v10524
    %11041 = vmatprep.subr.bf16.mxu0 %v10534
    %11042 = vmatpush1.bf16.msra.mxu0 %v10533
    %11043 = vmatprep.subr.bf16.mxu0 %v10543
    %11044 = vmatpush1.bf16.msra.mxu0 %v10542
    %11045 = vmatprep.subr.bf16.mxu0 %v10552
    %11046 = vmatpush1.bf16.msra.mxu0 %v10551
    %11047 = vmatprep.subr.bf16.mxu0 %v10561
    %11048 = vmatpush1.bf16.msra.mxu0 %v10560
    %11049 = vmatprep.subr.bf16.mxu0 0
    %11050 = vmatpush1.bf16.msra.mxu0 0
    %11051 = vmatprep.subr.bf16.mxu0 0
    %11052 = vmatpush1.bf16.msra.mxu0 0
    %11053 = vmatprep.subr.bf16.mxu0 0
    %11054 = vmatpush1.bf16.msra.mxu0 0
    %11055 = vmatprep.subr.bf16.mxu0 0
    %11056 = vmatpush1.bf16.msra.mxu0 0
    %11057 = vmatprep.subr.bf16.mxu0 0
    %11058 = vmatpush1.bf16.msra.mxu0 0
    %11059 = vmatprep.subr.bf16.mxu0 0
    %11060 = vmatpush1.bf16.msra.mxu0 0
    %11061 = vmatprep.subr.bf16.mxu0 0
    %11062 = vmatpush1.bf16.msra.mxu0 0
    %11063 = vmatprep.subr.bf16.mxu0 0
    %11064 = vmatpush1.bf16.msra.mxu0 0
    %11065 = vmatprep.mubr.bf16.mxu0 0
    %11066 = vmatmul.mubr.bf16.gmra.mrb[0].mxu0 %v9432
    %v11067 = vpop.f32.mrb[0].mxu0
    %v11068 = vadd.f32 %v11027, %v11067
    %v11069 = vpop.f32.mrb[0].mxu0
    %v11070 = vadd.f32 %v11029, %v11069
    %v11071 = vpop.f32.mrb[0].mxu0
    %v11072 = vpop.f32.mrb[0].mxu0
    %11073 = vdwg.mxu0
    %11074 = vmatprep.subr.bf16.mxu0 %v10356
    %11075 = vmatpush1.bf16.msra.mxu0 %v10355
    %11076 = vmatprep.subr.bf16.mxu0 %v10365
    %11077 = vmatpush1.bf16.msra.mxu0 %v10364
    %11078 = vmatprep.subr.bf16.mxu0 %v10374
    %11079 = vmatpush1.bf16.msra.mxu0 %v10373
    %11080 = vmatprep.subr.bf16.mxu0 %v10383
    %11081 = vmatpush1.bf16.msra.mxu0 %v10382
    %11082 = vmatprep.subr.bf16.mxu0 %v10392
    %11083 = vmatpush1.bf16.msra.mxu0 %v10391
    %11084 = vmatprep.subr.bf16.mxu0 %v10401
    %11085 = vmatpush1.bf16.msra.mxu0 %v10400
    %11086 = vmatprep.subr.bf16.mxu0 %v10410
    %11087 = vmatpush1.bf16.msra.mxu0 %v10409
    %11088 = vmatprep.subr.bf16.mxu0 %v10419
    %11089 = vmatpush1.bf16.msra.mxu0 %v10418
    %11090 = vmatprep.subr.bf16.mxu0 %v10428
    %11091 = vmatpush1.bf16.msra.mxu0 %v10427
    %11092 = vmatprep.subr.bf16.mxu0 %v10437
    %11093 = vmatpush1.bf16.msra.mxu0 %v10436
    %11094 = vmatprep.subr.bf16.mxu0 %v10446
    %11095 = vmatpush1.bf16.msra.mxu0 %v10445
    %11096 = vmatprep.subr.bf16.mxu0 %v10455
    %11097 = vmatpush1.bf16.msra.mxu0 %v10454
    %11098 = vmatprep.subr.bf16.mxu0 %v10464
    %11099 = vmatpush1.bf16.msra.mxu0 %v10463
    %11100 = vmatprep.subr.bf16.mxu0 %v10473
    %11101 = vmatpush1.bf16.msra.mxu0 %v10472
    %11102 = vmatprep.subr.bf16.mxu0 %v10482
    %11103 = vmatpush1.bf16.msra.mxu0 %v10481
    %11104 = vmatprep.subr.bf16.mxu0 %v10491
    %11105 = vmatpush1.bf16.msra.mxu0 %v10490
    %11106 = vmatprep.mubr.bf16.mxu0 %v9431
    %11107 = vmatmul.mubr.bf16.gmra.mrb[0].mxu0 %v9430
    %v11108 = vpop.f32.mrb[0].mxu0
    %v11109 = vadd.f32 %v10810, %v11108
    %v11110 = vpop.f32.mrb[0].mxu0
    %v11111 = vadd.f32 %v10814, %v11110
    %v11112 = vpop.f32.mrb[0].mxu0
    %v11113 = vpop.f32.mrb[0].mxu0
    %11114 = vdwg.mxu0
    %11115 = vmatprep.subr.bf16.mxu0 %v10500
    %11116 = vmatpush1.bf16.msra.mxu0 %v10499
    %11117 = vmatprep.subr.bf16.mxu0 %v10509
    %11118 = vmatpush1.bf16.msra.mxu0 %v10508
    %11119 = vmatprep.subr.bf16.mxu0 %v10518
    %11120 = vmatpush1.bf16.msra.mxu0 %v10517
    %11121 = vmatprep.subr.bf16.mxu0 %v10527
    %11122 = vmatpush1.bf16.msra.mxu0 %v10526
    %11123 = vmatprep.subr.bf16.mxu0 %v10536
    %11124 = vmatpush1.bf16.msra.mxu0 %v10535
    %11125 = vmatprep.subr.bf16.mxu0 %v10545
    %11126 = vmatpush1.bf16.msra.mxu0 %v10544
    %11127 = vmatprep.subr.bf16.mxu0 %v10554
    %11128 = vmatpush1.bf16.msra.mxu0 %v10553
    %11129 = vmatprep.subr.bf16.mxu0 %v10563
    %11130 = vmatpush1.bf16.msra.mxu0 %v10562
    %11131 = vmatprep.subr.bf16.mxu0 0
    %11132 = vmatpush1.bf16.msra.mxu0 0
    %11133 = vmatprep.subr.bf16.mxu0 0
    %11134 = vmatpush1.bf16.msra.mxu0 0
    %11135 = vmatprep.subr.bf16.mxu0 0
    %11136 = vmatpush1.bf16.msra.mxu0 0
    %11137 = vmatprep.subr.bf16.mxu0 0
    %11138 = vmatpush1.bf16.msra.mxu0 0
    %11139 = vmatprep.subr.bf16.mxu0 0
    %11140 = vmatpush1.bf16.msra.mxu0 0
    %11141 = vmatprep.subr.bf16.mxu0 0
    %11142 = vmatpush1.bf16.msra.mxu0 0
    %11143 = vmatprep.subr.bf16.mxu0 0
    %11144 = vmatpush1.bf16.msra.mxu0 0
    %11145 = vmatprep.subr.bf16.mxu0 0
    %11146 = vmatpush1.bf16.msra.mxu0 0
    %11147 = vmatprep.mubr.bf16.mxu0 0
    %11148 = vmatmul.mubr.bf16.gmra.mrb[0].mxu0 %v9432
    %v11149 = vpop.f32.mrb[0].mxu0
    %v11150 = vadd.f32 %v11109, %v11149
    %v11151 = vpop.f32.mrb[0].mxu0
    %v11152 = vadd.f32 %v11111, %v11151
    %v11153 = vpop.f32.mrb[0].mxu0
    %v11154 = vpop.f32.mrb[0].mxu0
    %11155 = vdwg.mxu0
    %11156 = vmatprep.subr.bf16.mxu0 0
    %11157 = vmatpush1.bf16.msra.mxu0 %v10357
    %11158 = vmatprep.subr.bf16.mxu0 0
    %11159 = vmatpush1.bf16.msra.mxu0 %v10366
    %11160 = vmatprep.subr.bf16.mxu0 0
    %11161 = vmatpush1.bf16.msra.mxu0 %v10375
    %11162 = vmatprep.subr.bf16.mxu0 0
    %11163 = vmatpush1.bf16.msra.mxu0 %v10384
    %11164 = vmatprep.subr.bf16.mxu0 0
    %11165 = vmatpush1.bf16.msra.mxu0 %v10393
    %11166 = vmatprep.subr.bf16.mxu0 0
    %11167 = vmatpush1.bf16.msra.mxu0 %v10402
    %11168 = vmatprep.subr.bf16.mxu0 0
    %11169 = vmatpush1.bf16.msra.mxu0 %v10411
    %11170 = vmatprep.subr.bf16.mxu0 0
    %11171 = vmatpush1.bf16.msra.mxu0 %v10420
    %11172 = vmatprep.subr.bf16.mxu0 0
    %11173 = vmatpush1.bf16.msra.mxu0 %v10429
    %11174 = vmatprep.subr.bf16.mxu0 0
    %11175 = vmatpush1.bf16.msra.mxu0 %v10438
    %11176 = vmatprep.subr.bf16.mxu0 0
    %11177 = vmatpush1.bf16.msra.mxu0 %v10447
    %11178 = vmatprep.subr.bf16.mxu0 0
    %11179 = vmatpush1.bf16.msra.mxu0 %v10456
    %11180 = vmatprep.subr.bf16.mxu0 0
    %11181 = vmatpush1.bf16.msra.mxu0 %v10465
    %11182 = vmatprep.subr.bf16.mxu0 0
    %11183 = vmatpush1.bf16.msra.mxu0 %v10474
    %11184 = vmatprep.subr.bf16.mxu0 0
    %11185 = vmatpush1.bf16.msra.mxu0 %v10483
    %11186 = vmatprep.subr.bf16.mxu0 0
    %11187 = vmatpush1.bf16.msra.mxu0 %v10492
    %11188 = vmatprep.mubr.bf16.mxu0 %v9431
    %11189 = vmatmul.mubr.bf16.gmra.mrb[0].mxu0 %v9430
    %v11190 = vpop.f32.mrb[0].mxu0
    %v11191 = vadd.f32 %v10818, %v11190
    %v11192 = vpop.f32.mrb[0].mxu0
    %v11193 = vpop.f32.mrb[0].mxu0
    %v11194 = vpop.f32.mrb[0].mxu0
    %11195 = vdwg.mxu0
    %11196 = vmatprep.subr.bf16.mxu0 0
    %11197 = vmatpush1.bf16.msra.mxu0 %v10501
    %11198 = vmatprep.subr.bf16.mxu0 0
    %11199 = vmatpush1.bf16.msra.mxu0 %v10510
    %11200 = vmatprep.subr.bf16.mxu0 0
    %11201 = vmatpush1.bf16.msra.mxu0 %v10519
    %11202 = vmatprep.subr.bf16.mxu0 0
    %11203 = vmatpush1.bf16.msra.mxu0 %v10528
    %11204 = vmatprep.subr.bf16.mxu0 0
    %11205 = vmatpush1.bf16.msra.mxu0 %v10537
    %11206 = vmatprep.subr.bf16.mxu0 0
    %11207 = vmatpush1.bf16.msra.mxu0 %v10546
    %11208 = vmatprep.subr.bf16.mxu0 0
    %11209 = vmatpush1.bf16.msra.mxu0 %v10555
    %11210 = vmatprep.subr.bf16.mxu0 0
    %11211 = vmatpush1.bf16.msra.mxu0 %v10564
    %11212 = vmatprep.subr.bf16.mxu0 0
    %11213 = vmatpush1.bf16.msra.mxu0 0
    %11214 = vmatprep.subr.bf16.mxu0 0
    %11215 = vmatpush1.bf16.msra.mxu0 0
    %11216 = vmatprep.subr.bf16.mxu0 0
    %11217 = vmatpush1.bf16.msra.mxu0 0
    %11218 = vmatprep.subr.bf16.mxu0 0
    %11219 = vmatpush1.bf16.msra.mxu0 0
    %11220 = vmatprep.subr.bf16.mxu0 0
    %11221 = vmatpush1.bf16.msra.mxu0 0
    %11222 = vmatprep.subr.bf16.mxu0 0
    %11223 = vmatpush1.bf16.msra.mxu0 0
    %11224 = vmatprep.subr.bf16.mxu0 0
    %11225 = vmatpush1.bf16.msra.mxu0 0
    %11226 = vmatprep.subr.bf16.mxu0 0
    %11227 = vmatpush1.bf16.msra.mxu0 0
    %11228 = vmatprep.mubr.bf16.mxu0 0
    %11229 = vmatmul.mubr.bf16.gmra.mrb[0].mxu0 %v9432
    %v11230 = vpop.f32.mrb[0].mxu0
    %v11231 = vadd.f32 %v11191, %v11230
    %v11232 = vpop.f32.mrb[0].mxu0
    %v11233 = vpop.f32.mrb[0].mxu0
    %v11234 = vpop.f32.mrb[0].mxu0
    %11235 = vdwg.mxu0
    %v11236 = vld [vmem:[%s3776] ss:$4 sm:$0x7]
    %v11237 = vadd.f32 %v10904, %v5268
    %v11238 = vadd.f32 %v10906, %v5270
    %v11239 = vadd.f32 %v10986, %v5350
    %v11240 = vxor.u32 %v11237, 2147483648
    %v11241 = vxor.u32 %v11238, 2147483648
    %v11242 = vxor.u32 %v11239, 2147483648
    %v11243 = vmul.f32 %v11240, 1.442695
    %v11244 = vpow.pop %v11243
    %v11245 = vmul.f32 %v11241, 1.442695
    %v11246 = vpow.pop %v11245
    %v11247 = vmul.f32 %v11242, 1.442695
    %v11248 = vpow.pop %v11247
    %v11249 = vadd.f32 %v11244, 1.0
    %v11250 = vadd.f32 %v11246, 1.0
    %v11251 = vadd.f32 %v11248, 1.0
    %v11252 = vrcp.pop %v11249
    %v11253 = vmul.f32 1.0, %v11252
    %v11254 = vrcp.pop %v11250
    %v11255 = vmul.f32 1.0, %v11254
    %v11256 = vrcp.pop %v11251
    %v11257 = vmul.f32 1.0, %v11256
    %v11258 = vadd.f32 %v10988, %v5352
    %v11259 = vadd.f32 %v11068, %v5432
    %v11260 = vadd.f32 %v11070, %v5434
    %v11261 = vxor.u32 %v11258, 2147483648
    %v11262 = vxor.u32 %v11259, 2147483648
    %v11263 = vxor.u32 %v11260, 2147483648
    %v11264 = vmul.f32 %v11261, 1.442695
    %v11265 = vpow.pop %v11264
    %v11266 = vmul.f32 %v11262, 1.442695
    %v11267 = vpow.pop %v11266
    %v11268 = vmul.f32 %v11263, 1.442695
    %v11269 = vpow.pop %v11268
    %v11270 = vadd.f32 %v11265, 1.0
    %v11271 = vadd.f32 %v11267, 1.0
    %v11272 = vadd.f32 %v11269, 1.0
    %v11273 = vrcp.pop %v11270
    %v11274 = vmul.f32 1.0, %v11273
    %v11275 = vrcp.pop %v11271
    %v11276 = vmul.f32 1.0, %v11275
    %v11277 = vrcp.pop %v11272
    %v11278 = vmul.f32 1.0, %v11277
    %v11279 = vmul.f32 %v11253, %v5514
    %v11280 = vmul.f32 %v11255, %v5516
    %v11281 = vmul.f32 %v11257, %v5595
    %v11282 = vadd.f32 %v11150, %v11279
    %v11283 = vadd.f32 %v11152, %v11280
    %v11284 = vadd.f32 %v11231, %v11281
    %v11285 = vtanh.pop %v11282
    %v11286 = vtanh.pop %v11283
    %v11287 = vtanh.pop %v11284
    %v11288 = vsub.f32 1.0, %v11274
    %v11289 = vsub.f32 1.0, %v11276
    %v11290 = vsub.f32 1.0, %v11278
    %v11291 = vmul.f32 %v11288, %v11285
    %v11292 = vmul.f32 %v11289, %v11286
    %v11293 = vmul.f32 %v11290, %v11287
    %v11295 = vlaneseq
    %v11296 = vshrl.u32 %v11295, 7
    %v11297 = vsub.s32 0, %v11296
    %v11298 = vrot.slane %v11236, %v11297
    %v11299 = vlaneseq
    %v11300 = vshrl.u32 %v11299, 7
    %v11301 = vsub.s32 1, %v11300
    %v11302 = vrot.slane %v11236, %v11301
    %v11303 = vlaneseq
    %v11304 = vshrl.u32 %v11303, 7
    %v11305 = vsub.s32 2, %v11304
    %v11306 = vrot.slane %v11236, %v11305
    %v11310 = vmul.f32 %v11274, %v11298
    %v11311 = vmul.f32 %v11276, %v11302
    %v11312 = vmul.f32 %v11278, %v11306
    %v11313 = vadd.f32 %v11291, %v11310
    %v11314 = vadd.f32 %v11292, %v11311
    %v11315 = vadd.f32 %v11293, %v11312
    %v11319 = vcombine.low %v11313, %v11314
    %v11321 = vunpack.c.l.s4 1966171168
    %v11322 = vunpack.c.0.s8 %v11321
    %v11323 = vlaneseq
    %v11324 = vshrl.u32 %v11323, 7
    %v11325 = vsub.s32 %v11322, %v11324
    %v11326 = vrot.slane %v11319, %v11325
    %v11328 = vunpack.c.l.s4 1966171168
    %v11329 = vunpack.c.0.s8 %v11328
    %v11330 = vlaneseq
    %v11331 = vshrl.u32 %v11330, 7
    %v11332 = vsub.s32 %v11329, %v11331
    %v11333 = vrot.slane %v11315, %v11332
    %v11334 = vcombine.low %v11326, %v11333
    %v11336 = vunpack.c.l.s4 1966171168
    %v11337 = vunpack.c.0.s8 %v11336
    %v11338 = vlaneseq
    %v11339 = vshrl.u32 %v11338, 7
    %v11340 = vsub.s32 %v11337, %v11339
    %v11341 = vrot.slane %v11334, %v11340
    %s11343 = scalar_lea.vmem %s9, 2
    %11344 = vst.msk [vmem:[%s11343] ss:$4 sm:$0x7] %vm7513, %v11341
    %v11345 = vpack.c.bf16 %v11313, %v11313
    %v11346 = vpack.c.bf16 %v11314, %v11314
    %v11347 = vpack.c.bf16 %v11315, %v11315
    %v11348 = vld [vmem:[#allocation12] sm:$0xff]
    %v11349 = vld [vmem:[#allocation12 + $0x8] sm:$0xff]
    %v11350 = vld [vmem:[#allocation12 + $0x10] sm:$0xff]
    %v11351 = vld [vmem:[#allocation12 + $0x18] sm:$0xff]
    %v11352 = vld [vmem:[#allocation12 + $0x20] sm:$0xff]
    %v11353 = vld [vmem:[#allocation12 + $0x28] sm:$0xff]
    %v11354 = vld [vmem:[#allocation12 + $0x30] sm:$0xff]
    %v11355 = vld [vmem:[#allocation12 + $0x38] sm:$0xff]
    %v11356 = vld [vmem:[#allocation12 + $0x40] sm:$0xff]
    %v11357 = vld [vmem:[#allocation12 + $0x48] sm:$0xff]
    %v11358 = vld [vmem:[#allocation12 + $0x50] sm:$0xff]
    %v11359 = vld [vmem:[#allocation12 + $0x58] sm:$0xff]
    %v11360 = vld [vmem:[#allocation12 + $0x60] sm:$0xff]
    %v11361 = vld [vmem:[#allocation12 + $0x68] sm:$0xff]
    %v11362 = vld [vmem:[#allocation12 + $0x70] sm:$0xff]
    %v11363 = vld [vmem:[#allocation12 + $0x78] sm:$0xff]
    %v11364 = vld [vmem:[#allocation12 + $0x80] sm:$0xff]
    %v11365 = vld [vmem:[#allocation12 + $0x88] sm:$0xff]
    %v11366 = vld [vmem:[#allocation12 + $0x90] sm:$0xff]
    %v11367 = vld [vmem:[#allocation12 + $0x98] sm:$0xff]
    %v11368 = vld [vmem:[#allocation12 + $0xa0] sm:$0xff]
    %v11369 = vld [vmem:[#allocation12 + $0xa8] sm:$0xff]
    %v11370 = vld [vmem:[#allocation12 + $0xb0] sm:$0xff]
    %v11371 = vld [vmem:[#allocation12 + $0xb8] sm:$0xff]
    %v11372 = vld [vmem:[#allocation12 + $0xc0] sm:$0xff]
    %v11373 = vld [vmem:[#allocation12 + $0xc8] sm:$0xff]
    %v11374 = vld [vmem:[#allocation12 + $0xd0] sm:$0xff]
    %v11375 = vld [vmem:[#allocation12 + $0xd8] sm:$0xff]
    %v11376 = vld [vmem:[#allocation12 + $0xe0] sm:$0xff]
    %v11377 = vld [vmem:[#allocation12 + $0xe8] sm:$0xff]
    %v11378 = vld [vmem:[#allocation12 + $0xf0] sm:$0xff]
    %v11379 = vld [vmem:[#allocation12 + $0xf8] sm:$0xff]
    %v11380 = vld [vmem:[#allocation12 + $0x100] sm:$0xff]
    %v11381 = vld [vmem:[#allocation12 + $0x108] sm:$0xff]
    %v11382 = vld [vmem:[#allocation12 + $0x110] sm:$0xff]
    %v11383 = vld [vmem:[#allocation12 + $0x118] sm:$0xff]
    %v11384 = vld [vmem:[#allocation12 + $0x120] sm:$0xff]
    %v11385 = vld [vmem:[#allocation12 + $0x128] sm:$0xff]
    %v11386 = vld [vmem:[#allocation12 + $0x130] sm:$0xff]
    %v11387 = vld [vmem:[#allocation12 + $0x138] sm:$0xff]
    %v11388 = vld [vmem:[#allocation12 + $0x140] sm:$0xff]
    %v11389 = vld [vmem:[#allocation12 + $0x148] sm:$0xff]
    %v11390 = vld [vmem:[#allocation12 + $0x150] sm:$0xff]
    %v11391 = vld [vmem:[#allocation12 + $0x158] sm:$0xff]
    %v11392 = vld [vmem:[#allocation12 + $0x160] sm:$0xff]
    %v11393 = vld [vmem:[#allocation12 + $0x168] sm:$0xff]
    %v11394 = vld [vmem:[#allocation12 + $0x170] sm:$0xff]
    %v11395 = vld [vmem:[#allocation12 + $0x178] sm:$0xff]
    %v11396 = vld [vmem:[#allocation14] sm:$0x3]
    %v11445 = vunpack.c.l.b16 %v11348
    %v11446 = vunpack.c.h.b16 %v11348
    %v11447 = vunpack.c.l.b16 %v11349
    %v11448 = vunpack.c.h.b16 %v11349
    %v11449 = vunpack.c.l.b16 %v11350
    %v11450 = vunpack.c.h.b16 %v11350
    %v11451 = vunpack.c.l.b16 %v11351
    %v11452 = vunpack.c.h.b16 %v11351
    %v11453 = vunpack.c.l.b16 %v11352
    %v11454 = vunpack.c.h.b16 %v11352
    %v11455 = vunpack.c.l.b16 %v11353
    %v11456 = vunpack.c.h.b16 %v11353
    %v11457 = vunpack.c.l.b16 %v11354
    %v11458 = vunpack.c.h.b16 %v11354
    %v11459 = vunpack.c.l.b16 %v11355
    %v11460 = vunpack.c.h.b16 %v11355
    %v11461 = vunpack.c.l.b16 %v11356
    %v11462 = vunpack.c.h.b16 %v11356
    %v11463 = vunpack.c.l.b16 %v11357
    %v11464 = vunpack.c.h.b16 %v11357
    %v11465 = vunpack.c.l.b16 %v11358
    %v11466 = vunpack.c.h.b16 %v11358
    %v11467 = vunpack.c.l.b16 %v11359
    %v11468 = vunpack.c.h.b16 %v11359
    %v11469 = vunpack.c.l.b16 %v11360
    %v11470 = vunpack.c.h.b16 %v11360
    %v11471 = vunpack.c.l.b16 %v11361
    %v11472 = vunpack.c.h.b16 %v11361
    %v11473 = vunpack.c.l.b16 %v11362
    %v11474 = vunpack.c.h.b16 %v11362
    %v11475 = vunpack.c.l.b16 %v11363
    %v11476 = vunpack.c.h.b16 %v11363
    %v11477 = vunpack.c.l.b16 %v11364
    %v11478 = vunpack.c.h.b16 %v11364
    %v11479 = vunpack.c.l.b16 %v11365
    %v11480 = vunpack.c.h.b16 %v11365
    %v11481 = vunpack.c.l.b16 %v11366
    %v11482 = vunpack.c.h.b16 %v11366
    %v11483 = vunpack.c.l.b16 %v11367
    %v11484 = vunpack.c.h.b16 %v11367
    %v11485 = vunpack.c.l.b16 %v11368
    %v11486 = vunpack.c.h.b16 %v11368
    %v11487 = vunpack.c.l.b16 %v11369
    %v11488 = vunpack.c.h.b16 %v11369
    %v11489 = vunpack.c.l.b16 %v11370
    %v11490 = vunpack.c.h.b16 %v11370
    %v11491 = vunpack.c.l.b16 %v11371
    %v11492 = vunpack.c.h.b16 %v11371
    %v11493 = vunpack.c.l.b16 %v11372
    %v11494 = vunpack.c.h.b16 %v11372
    %v11495 = vunpack.c.l.b16 %v11373
    %v11496 = vunpack.c.h.b16 %v11373
    %v11497 = vunpack.c.l.b16 %v11374
    %v11498 = vunpack.c.h.b16 %v11374
    %v11499 = vunpack.c.l.b16 %v11375
    %v11500 = vunpack.c.h.b16 %v11375
    %v11501 = vunpack.c.l.b16 %v11376
    %v11502 = vunpack.c.h.b16 %v11376
    %v11503 = vunpack.c.l.b16 %v11377
    %v11504 = vunpack.c.h.b16 %v11377
    %v11505 = vunpack.c.l.b16 %v11378
    %v11506 = vunpack.c.h.b16 %v11378
    %v11507 = vunpack.c.l.b16 %v11379
    %v11508 = vunpack.c.h.b16 %v11379
    %v11509 = vunpack.c.l.b16 %v11380
    %v11510 = vunpack.c.h.b16 %v11380
    %v11511 = vunpack.c.l.b16 %v11381
    %v11512 = vunpack.c.h.b16 %v11381
    %v11513 = vunpack.c.l.b16 %v11382
    %v11514 = vunpack.c.h.b16 %v11382
    %v11515 = vunpack.c.l.b16 %v11383
    %v11516 = vunpack.c.h.b16 %v11383
    %v11517 = vunpack.c.l.b16 %v11384
    %v11518 = vunpack.c.h.b16 %v11384
    %v11519 = vunpack.c.l.b16 %v11385
    %v11520 = vunpack.c.h.b16 %v11385
    %v11521 = vunpack.c.l.b16 %v11386
    %v11522 = vunpack.c.h.b16 %v11386
    %v11523 = vunpack.c.l.b16 %v11387
    %v11524 = vunpack.c.h.b16 %v11387
    %v11525 = vunpack.c.l.b16 %v11388
    %v11526 = vunpack.c.h.b16 %v11388
    %v11527 = vunpack.c.l.b16 %v11389
    %v11528 = vunpack.c.h.b16 %v11389
    %v11529 = vunpack.c.l.b16 %v11390
    %v11530 = vunpack.c.h.b16 %v11390
    %v11531 = vunpack.c.l.b16 %v11391
    %v11532 = vunpack.c.h.b16 %v11391
    %v11533 = vunpack.c.l.b16 %v11392
    %v11534 = vunpack.c.h.b16 %v11392
    %v11535 = vunpack.c.l.b16 %v11393
    %v11536 = vunpack.c.h.b16 %v11393
    %v11537 = vunpack.c.l.b16 %v11394
    %v11538 = vunpack.c.h.b16 %v11394
    %v11539 = vunpack.c.l.b16 %v11395
    %v11540 = vunpack.c.h.b16 %v11395
    %v11541 = vpack.c.b16 %v11447, %v11445
    %v11542 = vpack.c.b16 %v11448, %v11446
    %v11543 = vpack.c.b16 %v11451, %v11449
    %v11544 = vpack.c.b16 %v11452, %v11450
    %v11545 = vpack.c.b16 %v11455, %v11453
    %v11546 = vpack.c.b16 %v11456, %v11454
    %v11547 = vpack.c.b16 %v11459, %v11457
    %v11548 = vpack.c.b16 %v11460, %v11458
    %v11549 = vpack.c.b16 %v11463, %v11461
    %v11550 = vpack.c.b16 %v11464, %v11462
    %v11551 = vpack.c.b16 %v11467, %v11465
    %v11552 = vpack.c.b16 %v11468, %v11466
    %v11553 = vpack.c.b16 %v11471, %v11469
    %v11554 = vpack.c.b16 %v11472, %v11470
    %v11555 = vpack.c.b16 %v11475, %v11473
    %v11556 = vpack.c.b16 %v11476, %v11474
    %v11557 = vpack.c.b16 %v11479, %v11477
    %v11558 = vpack.c.b16 %v11480, %v11478
    %v11559 = vpack.c.b16 %v11483, %v11481
    %v11560 = vpack.c.b16 %v11484, %v11482
    %v11561 = vpack.c.b16 %v11487, %v11485
    %v11562 = vpack.c.b16 %v11488, %v11486
    %v11563 = vpack.c.b16 %v11491, %v11489
    %v11564 = vpack.c.b16 %v11492, %v11490
    %v11565 = vpack.c.b16 %v11495, %v11493
    %v11566 = vpack.c.b16 %v11496, %v11494
    %v11567 = vpack.c.b16 %v11499, %v11497
    %v11568 = vpack.c.b16 %v11500, %v11498
    %v11569 = vpack.c.b16 %v11503, %v11501
    %v11570 = vpack.c.b16 %v11504, %v11502
    %v11571 = vpack.c.b16 %v11507, %v11505
    %v11572 = vpack.c.b16 %v11508, %v11506
    %v11573 = vpack.c.b16 %v11511, %v11509
    %v11574 = vpack.c.b16 %v11512, %v11510
    %v11575 = vpack.c.b16 %v11515, %v11513
    %v11576 = vpack.c.b16 %v11516, %v11514
    %v11577 = vpack.c.b16 %v11519, %v11517
    %v11578 = vpack.c.b16 %v11520, %v11518
    %v11579 = vpack.c.b16 %v11523, %v11521
    %v11580 = vpack.c.b16 %v11524, %v11522
    %v11581 = vpack.c.b16 %v11527, %v11525
    %v11582 = vpack.c.b16 %v11528, %v11526
    %v11583 = vpack.c.b16 %v11531, %v11529
    %v11584 = vpack.c.b16 %v11532, %v11530
    %v11585 = vpack.c.b16 %v11535, %v11533
    %v11586 = vpack.c.b16 %v11536, %v11534
    %v11587 = vpack.c.b16 %v11539, %v11537
    %v11588 = vpack.c.b16 %v11540, %v11538
    %v11638 = vlaneseq
    %v11639 = vshrl.u32 %v11638, 7
    %v11640 = vsub.s32 0, %v11639
    %v11641 = vrot.slane %v11396, %v11640
    %v11642 = vlaneseq
    %v11643 = vshrl.u32 %v11642, 7
    %v11644 = vsub.s32 1, %v11643
    %v11645 = vrot.slane %v11396, %v11644
    %11648 = vmatprep.subr.bf16.mxu0 %v11542
    %11649 = vmatpush1.bf16.msra.mxu0 %v11541
    %11650 = vmatprep.subr.bf16.mxu0 %v11544
    %11651 = vmatpush1.bf16.msra.mxu0 %v11543
    %11652 = vmatprep.subr.bf16.mxu0 %v11546
    %11653 = vmatpush1.bf16.msra.mxu0 %v11545
    %11654 = vmatprep.subr.bf16.mxu0 %v11548
    %11655 = vmatpush1.bf16.msra.mxu0 %v11547
    %11656 = vmatprep.subr.bf16.mxu0 %v11550
    %11657 = vmatpush1.bf16.msra.mxu0 %v11549
    %11658 = vmatprep.subr.bf16.mxu0 %v11552
    %11659 = vmatpush1.bf16.msra.mxu0 %v11551
    %11660 = vmatprep.subr.bf16.mxu0 %v11554
    %11661 = vmatpush1.bf16.msra.mxu0 %v11553
    %11662 = vmatprep.subr.bf16.mxu0 %v11556
    %11663 = vmatpush1.bf16.msra.mxu0 %v11555
    %11664 = vmatprep.subr.bf16.mxu0 %v11558
    %11665 = vmatpush1.bf16.msra.mxu0 %v11557
    %11666 = vmatprep.subr.bf16.mxu0 %v11560
    %11667 = vmatpush1.bf16.msra.mxu0 %v11559
    %11668 = vmatprep.subr.bf16.mxu0 %v11562
    %11669 = vmatpush1.bf16.msra.mxu0 %v11561
    %11670 = vmatprep.subr.bf16.mxu0 %v11564
    %11671 = vmatpush1.bf16.msra.mxu0 %v11563
    %11672 = vmatprep.subr.bf16.mxu0 %v11566
    %11673 = vmatpush1.bf16.msra.mxu0 %v11565
    %11674 = vmatprep.subr.bf16.mxu0 %v11568
    %11675 = vmatpush1.bf16.msra.mxu0 %v11567
    %11676 = vmatprep.subr.bf16.mxu0 %v11570
    %11677 = vmatpush1.bf16.msra.mxu0 %v11569
    %11678 = vmatprep.subr.bf16.mxu0 %v11572
    %11679 = vmatpush1.bf16.msra.mxu0 %v11571
    %11680 = vmatprep.mubr.bf16.mxu0 %v11346
    %11681 = vmatmul.mubr.bf16.gmra.mrb[0].mxu0 %v11345
    %v11682 = vpop.f32.mrb[0].mxu0
    %v11683 = vadd.f32 %v11641, %v11682
    %v11684 = vpop.f32.mrb[0].mxu0
    %v11685 = vadd.f32 %v11645, %v11684
    %v11686 = vpop.f32.mrb[0].mxu0
    %v11687 = vpop.f32.mrb[0].mxu0
    %11688 = vdwg.mxu0
    %11689 = vmatprep.subr.bf16.mxu0 %v11574
    %11690 = vmatpush1.bf16.msra.mxu0 %v11573
    %11691 = vmatprep.subr.bf16.mxu0 %v11576
    %11692 = vmatpush1.bf16.msra.mxu0 %v11575
    %11693 = vmatprep.subr.bf16.mxu0 %v11578
    %11694 = vmatpush1.bf16.msra.mxu0 %v11577
    %11695 = vmatprep.subr.bf16.mxu0 %v11580
    %11696 = vmatpush1.bf16.msra.mxu0 %v11579
    %11697 = vmatprep.subr.bf16.mxu0 %v11582
    %11698 = vmatpush1.bf16.msra.mxu0 %v11581
    %11699 = vmatprep.subr.bf16.mxu0 %v11584
    %11700 = vmatpush1.bf16.msra.mxu0 %v11583
    %11701 = vmatprep.subr.bf16.mxu0 %v11586
    %11702 = vmatpush1.bf16.msra.mxu0 %v11585
    %11703 = vmatprep.subr.bf16.mxu0 %v11588
    %11704 = vmatpush1.bf16.msra.mxu0 %v11587
    %11705 = vmatprep.subr.bf16.mxu0 0
    %11706 = vmatpush1.bf16.msra.mxu0 0
    %11707 = vmatprep.subr.bf16.mxu0 0
    %11708 = vmatpush1.bf16.msra.mxu0 0
    %11709 = vmatprep.subr.bf16.mxu0 0
    %11710 = vmatpush1.bf16.msra.mxu0 0
    %11711 = vmatprep.subr.bf16.mxu0 0
    %11712 = vmatpush1.bf16.msra.mxu0 0
    %11713 = vmatprep.subr.bf16.mxu0 0
    %11714 = vmatpush1.bf16.msra.mxu0 0
    %11715 = vmatprep.subr.bf16.mxu0 0
    %11716 = vmatpush1.bf16.msra.mxu0 0
    %11717 = vmatprep.subr.bf16.mxu0 0
    %11718 = vmatpush1.bf16.msra.mxu0 0
    %11719 = vmatprep.subr.bf16.mxu0 0
    %11720 = vmatpush1.bf16.msra.mxu0 0
    %11721 = vmatprep.mubr.bf16.mxu0 0
    %11722 = vmatmul.mubr.bf16.gmra.mrb[0].mxu0 %v11347
    %v11723 = vpop.f32.mrb[0].mxu0
    %v11724 = vadd.f32 %v11683, %v11723
    %v11725 = vpop.f32.mrb[0].mxu0
    %v11726 = vadd.f32 %v11685, %v11725
    %v11727 = vpop.f32.mrb[0].mxu0
    %v11728 = vpop.f32.mrb[0].mxu0
    %11729 = vdwg.mxu0
    %v11732 = vcombine.low %v11724, %v11726
    %v11734 = vunpack.c.l.s4 1966171168
    %v11735 = vunpack.c.0.s8 %v11734
    %v11736 = vlaneseq
    %v11737 = vshrl.u32 %v11736, 7
    %v11738 = vsub.s32 %v11735, %v11737
    %v11739 = vrot.slane %v11732, %v11738
    %v11741 = vunpack.c.l.s4 1966171168
    %v11742 = vunpack.c.0.s8 %v11741
    %v11743 = vlaneseq
    %v11744 = vshrl.u32 %v11743, 7
    %v11745 = vsub.s32 %v11742, %v11744
    %v11746 = vrot.slane %v11739, %v11745
    %vm11748 = vcmp.lt.s32.totalorder %v7510, 256
    %vm11749 = vmand %vm7511, %vm11748
    %11750 = vst.msk [vmem:[%s10] sm:$0x3] %vm11749, %v11746
    // Predicated region
    $region62: #{ic_v6_forward.1} parent=1 // pred_check
      _
    $region63: #{ic_v6_forward.1} parent=1 // pred_check_branch
      %11752 = sbr.rel (0) target = $region65
    $region64: #{ic_v6_forward.1} parent=1 // pred_region
      _
    $region65: #{ic_v6_forward.1} parent=1 // pred_fallthru
      _
    // Predicated region
    $region66: #{ic_v6_forward.1} parent=1 // pred_check
      _
    $region67: #{ic_v6_forward.1} parent=1 // pred_check_branch
      %11754 = sbr.rel (0) target = $region69
    $region68: #{ic_v6_forward.1} parent=1 // pred_region
      _
    $region69: #{ic_v6_forward.1} parent=1 // pred_fallthru
      _
    // Predicated region
    $region70: #{ic_v6_forward.1} parent=1 // pred_check
      _
    $region71: #{ic_v6_forward.1} parent=1 // pred_check_branch
      %11756 = sbr.rel (0) target = $region73
    $region72: #{ic_v6_forward.1} parent=1 // pred_region
      _
    $region73: #{ic_v6_forward.1} parent=1 // pred_fallthru
      _
    // Predicated region
    $region74: #{ic_v6_forward.1} parent=1 // pred_check
      _
    $region75: #{ic_v6_forward.1} parent=1 // pred_check_branch
      %11758 = sbr.rel (0) target = $region77
    $region76: #{ic_v6_forward.1} parent=1 // pred_region
      _
    $region77: #{ic_v6_forward.1} parent=1 // pred_fallthru
      _
    %11759 = vsyncpa [#allocation5], 1
    %11760 = vsyncpa [#allocation7], 1
    %11761 = vsyncpa [#allocation10], 1
    %11762 = vsyncpa [#allocation13], 1

</llo_original>
